<compile_context>
chip_gen: v7x
topology: tpu7x:2x2x1
jax: 0.10.0
libtpu: 0.0.40
codegen_flags: <defaults>
</compile_context>

<pallas_src>
import jax
import jax.numpy as jnp
from jax.experimental import pallas as pl
from jax.experimental.pallas import tpu as pltpu

OC_PAD = 128                       # channel / feature dims padded to one lane width
K1_PAD = 128                       # conv1 im2col K: 3*5*5 = 75  -> 128
K2_PAD = 256                       # conv2 im2col K: 6*5*5 = 150 -> 256
_VMEM_LIMIT = 32 * 1024 * 1024     # safe on v5e/v6e (128 MiB) and v7x (64 MiB)


def _round_up(x, m):
    return ((x + m - 1) // m) * m


def _pick_row_tile(r, cap=1024):
    """Row tile for the conv kernels: multiple of 8, >= 2 grid steps when possible
    (v7x has 2 TensorCores and 'parallel' grid axes shard across them), capped so
    the double-buffered patch block stays small in VMEM."""
    if r <= 16:
        return _round_up(max(r, 8), 8)
    return min(_round_up(pl.cdiv(r, 2), 8), cap)


# ----------------------------- Pallas kernels ------------------------------

def _conv_relu_pool_kernel(p_ref, w_ref, b_ref, o_ref):
    """Fused conv (im2col matmul) + bias + ReLU + 2x2 max-pool on one row tile.

    p_ref : (4, TM, Kp) bf16  im2col patches grouped by pool-window corner;
                              rows = flattened (image, pooled position)
    w_ref : (Kp, 128) bf16    conv weight, K and OC zero-padded
    b_ref : (1, 128) f32      bias, zero-padded
    o_ref : (TM, 128) bf16    pooled activation rows, channels-last, lane-dense
    """
    w = w_ref[...]
    m0 = jnp.dot(p_ref[0], w, preferred_element_type=jnp.float32)
    m1 = jnp.dot(p_ref[1], w, preferred_element_type=jnp.float32)
    m2 = jnp.dot(p_ref[2], w, preferred_element_type=jnp.float32)
    m3 = jnp.dot(p_ref[3], w, preferred_element_type=jnp.float32)
    # max over the four corners == 2x2 max-pool (per-channel bias and ReLU are
    # monotone, so they commute with the max and are applied once afterwards)
    pooled = jnp.maximum(jnp.maximum(m0, m1), jnp.maximum(m2, m3))
    o_ref[...] = jnp.maximum(pooled + b_ref[...], 0.0).astype(o_ref.dtype)


def conv_relu_pool(patches, w2d, bias, *, tm=None):
    """patches: (4, R, Kp) bf16 with R = N * pooled_H * pooled_W;
    w2d: (Kp, 128) bf16; bias: (1, 128) f32.  Returns (R, 128) bf16."""
    four, r, kp = patches.shape
    assert four == 4
    oc = w2d.shape[1]
    if tm is None:
        tm = _pick_row_tile(r)
    r_pad = _round_up(r, tm)
    if r_pad != r:
        patches = jnp.pad(patches, ((0, 0), (0, r_pad - r), (0, 0)))
    out = pl.pallas_call(
        _conv_relu_pool_kernel,
        out_shape=jax.ShapeDtypeStruct((r_pad, oc), jnp.bfloat16),
        grid_spec=pltpu.PrefetchScalarGridSpec(
            num_scalar_prefetch=0,
            grid=(r_pad // tm,),
            in_specs=[
                pl.BlockSpec((4, tm, kp), lambda i: (0, i, 0)),
                pl.BlockSpec(w2d.shape, lambda i: (0, 0)),
                pl.BlockSpec(bias.shape, lambda i: (0, 0)),
            ],
            out_specs=pl.BlockSpec((tm, oc), lambda i: (i, 0)),
        ),
        compiler_params=pltpu.CompilerParams(
            dimension_semantics=("parallel",),
            vmem_limit_bytes=_VMEM_LIMIT,
        ),
    )(patches, w2d, bias)
    return out[:r]


def _fc_stack_kernel(x_ref, w1_ref, b1_ref, w2_ref, b2_ref, w3_ref, b3_ref, o_ref):
    """Fused fc1+ReLU -> fc2+ReLU -> fc3 on one row tile; weights stay in VMEM."""
    h = jnp.dot(x_ref[...], w1_ref[...], preferred_element_type=jnp.float32)
    h = jnp.maximum(h + b1_ref[...], 0.0).astype(jnp.bfloat16)
    h = jnp.dot(h, w2_ref[...], preferred_element_type=jnp.float32)
    h = jnp.maximum(h + b2_ref[...], 0.0).astype(jnp.bfloat16)
    h = jnp.dot(h, w3_ref[...], preferred_element_type=jnp.float32)
    o_ref[...] = (h + b3_ref[...]).astype(o_ref.dtype)


def fc_stack(xf, w1, b1, w2, b2, w3, b3, *, tm=None):
    """xf: (N, K) bf16 -> (N, 128) f32 (first 10 lanes are the logits)."""
    n, k = xf.shape
    if tm is None:
        tm = min(128, _round_up(n, 8))     # big MXU row fill; no huge pad for tiny N
    n_pad = _round_up(n, tm)
    if n_pad != n:
        xf = jnp.pad(xf, ((0, n_pad - n), (0, 0)))
    f3 = w3.shape[1]
    out = pl.pallas_call(
        _fc_stack_kernel,
        out_shape=jax.ShapeDtypeStruct((n_pad, f3), jnp.float32),
        grid_spec=pltpu.PrefetchScalarGridSpec(
            num_scalar_prefetch=0,
            grid=(n_pad // tm,),
            in_specs=[
                pl.BlockSpec((tm, k), lambda i: (i, 0)),
                pl.BlockSpec(w1.shape, lambda i: (0, 0)),
                pl.BlockSpec(b1.shape, lambda i: (0, 0)),
                pl.BlockSpec(w2.shape, lambda i: (0, 0)),
                pl.BlockSpec(b2.shape, lambda i: (0, 0)),
                pl.BlockSpec(w3.shape, lambda i: (0, 0)),
                pl.BlockSpec(b3.shape, lambda i: (0, 0)),
            ],
            out_specs=pl.BlockSpec((tm, f3), lambda i: (i, 0)),
        ),
        compiler_params=pltpu.CompilerParams(
            dimension_semantics=("parallel",),
            vmem_limit_bytes=_VMEM_LIMIT,
        ),
    )(xf, w1, b1, w2, b2, w3, b3)
    return out[:n]


# ------------------------------- XLA glue -----------------------------------

def _im2col_pool_corners(x, kh, kw, k_pad):
    """x: (N, H, W, C) channels-last -> (4, N*PH*PW, k_pad) bf16 patches grouped
    by 2x2 pool-window corner, with (image, pooled position) flattened into one
    row axis and K zero-padded to a lane multiple.

    Row (corner=a*2+b, n*PH*PW + ph*PW + pw), column (c*KH*KW + ky*KW + kx)
    holds x[n, 2*ph + a + ky, 2*pw + b + kx, c] — the im2col row of conv-output
    position (2*ph + a, 2*pw + b).  Column order matches the torch Conv2d
    weight flattened as (OC, IC*KH*KW)."""
    n, h, w, c = x.shape
    oh, ow = h - kh + 1, w - kw + 1
    ph, pw = oh // 2, ow // 2
    k = c * kh * kw
    corners = []
    for a in range(2):
        for b in range(2):
            taps = []
            for ky in range(kh):
                for kx in range(kw):
                    sl = x[:, a + ky: a + ky + 2 * ph: 2,
                           b + kx: b + kx + 2 * pw: 2, :]        # (N, PH, PW, C)
                    taps.append(sl)
            t = jnp.stack(taps, axis=-1)                         # (N, PH, PW, C, KH*KW)
            corners.append(t.reshape(n, ph * pw, k))
    p = jnp.stack(corners, axis=0).reshape(4, n * ph * pw, k)    # (4, N*PH*PW, K)
    if k_pad > k:
        p = jnp.pad(p, ((0, 0), (0, 0), (0, k_pad - k)))
    return p, ph, pw


def _pad_to(a, axis, target):
    pad = [(0, 0)] * a.ndim
    pad[axis] = (0, target - a.shape[axis])
    return jnp.pad(a, pad)


# --------------------------------- model ------------------------------------

def init_params(key):
    """Parameters in torch layouts: conv (OC, IC, KH, KW), linear (out, in)."""
    def uni(k, shape, fan_in):
        bound = 1.0 / float(fan_in) ** 0.5
        return jax.random.uniform(k, shape, jnp.float32, -bound, bound)

    keys = jax.random.split(key, 10)
    return {
        "conv1_w": uni(keys[0], (6, 3, 5, 5), 3 * 25),
        "conv1_b": uni(keys[1], (6,), 3 * 25),
        "conv2_w": uni(keys[2], (16, 6, 5, 5), 6 * 25),
        "conv2_b": uni(keys[3], (16,), 6 * 25),
        "fc1_w": uni(keys[4], (120, 16 * 5 * 5), 16 * 5 * 5),
        "fc1_b": uni(keys[5], (120,), 16 * 5 * 5),
        "fc2_w": uni(keys[6], (84, 120), 120),
        "fc2_b": uni(keys[7], (84,), 120),
        "fc3_w": uni(keys[8], (10, 84), 84),
        "fc3_b": uni(keys[9], (10,), 84),
    }


def prepare_params(p):
    """One-time kernel-layout prep: flatten / transpose / zero-pad / cast weights."""
    cw1 = _pad_to(_pad_to(p["conv1_w"].reshape(6, 75).T, 0, K1_PAD), 1, OC_PAD)
    cw1 = cw1.astype(jnp.bfloat16)                                       # (128, 128)
    cb1 = _pad_to(p["conv1_b"], 0, OC_PAD).reshape(1, OC_PAD).astype(jnp.float32)
    cw2 = _pad_to(_pad_to(p["conv2_w"].reshape(16, 150).T, 0, K2_PAD), 1, OC_PAD)
    cw2 = cw2.astype(jnp.bfloat16)                                       # (256, 128)
    cb2 = _pad_to(p["conv2_b"], 0, OC_PAD).reshape(1, OC_PAD).astype(jnp.float32)

    # fc1: torch weight (120, 400) with in-features flattened (c, h, w).  The
    # kernels feed fc1 a (N, 25*128) slab flattened (h*w, c_padded), so permute
    # the weight rows to (h*w, c) order and zero-pad c 16->128, out 120->128.
    fw1 = p["fc1_w"].reshape(120, 16, 25).transpose(2, 1, 0)             # (hw, c, out)
    fw1 = _pad_to(fw1, 1, OC_PAD).reshape(25 * OC_PAD, 120)
    fw1 = _pad_to(fw1, 1, 128).astype(jnp.bfloat16)                      # (3200, 128)
    fb1 = _pad_to(p["fc1_b"], 0, 128).reshape(1, 128).astype(jnp.float32)
    fw2 = _pad_to(_pad_to(p["fc2_w"].T, 0, 128), 1, 128).astype(jnp.bfloat16)
    fb2 = _pad_to(p["fc2_b"], 0, 128).reshape(1, 128).astype(jnp.float32)
    fw3 = _pad_to(_pad_to(p["fc3_w"].T, 0, 128), 1, 128).astype(jnp.bfloat16)
    fb3 = _pad_to(p["fc3_b"], 0, 128).reshape(1, 128).astype(jnp.float32)
    return dict(cw1=cw1, cb1=cb1, cw2=cw2, cb2=cb2,
                fw1=fw1, fb1=fb1, fw2=fw2, fb2=fb2, fw3=fw3, fb3=fb3)


def net_forward(prep, x):
    """x: (N, 3, 32, 32) f32 NCHW (torch layout) -> (N, 10) f32 logits."""
    n = x.shape[0]
    xh = jnp.transpose(x, (0, 2, 3, 1)).astype(jnp.bfloat16)       # NHWC once
    p1, ph1, pw1 = _im2col_pool_corners(xh, 5, 5, K1_PAD)          # (4, N*196, 128)
    y1 = conv_relu_pool(p1, prep["cw1"], prep["cb1"])              # (N*196, 128)
    x1 = y1.reshape(n, ph1, pw1, OC_PAD)[..., :6]                  # (N, 14, 14, 6)
    p2, ph2, pw2 = _im2col_pool_corners(x1, 5, 5, K2_PAD)          # (4, N*25, 256)
    y2 = conv_relu_pool(p2, prep["cw2"], prep["cb2"])              # (N*25, 128)
    xf = y2.reshape(n, ph2 * pw2 * OC_PAD)                         # (N, 3200), (hw, c_pad) order
    logits = fc_stack(xf, prep["fw1"], prep["fb1"], prep["fw2"], prep["fb2"],
                      prep["fw3"], prep["fb3"])                    # (N, 128) f32
    return logits[:, :10]


# ------------------------- pure-JAX f32 reference ----------------------------

def reference_forward(params, x):
    dn = ("NCHW", "OIHW", "NCHW")
    hp = jax.lax.Precision.HIGHEST
    y = jax.lax.conv_general_dilated(x, params["conv1_w"], (1, 1), "VALID",
                                     dimension_numbers=dn, precision=hp)
    y = jax.nn.relu(y + params["conv1_b"][None, :, None, None])
    y = jax.lax.reduce_window(y, -jnp.inf, jax.lax.max, (1, 1, 2, 2), (1, 1, 2, 2), "VALID")
    y = jax.lax.conv_general_dilated(y, params["conv2_w"], (1, 1), "VALID",
                                     dimension_numbers=dn, precision=hp)
    y = jax.nn.relu(y + params["conv2_b"][None, :, None, None])
    y = jax.lax.reduce_window(y, -jnp.inf, jax.lax.max, (1, 1, 2, 2), (1, 1, 2, 2), "VALID")
    y = y.reshape(y.shape[0], -1)
    y = jax.nn.relu(jnp.dot(y, params["fc1_w"].T, precision=hp) + params["fc1_b"])
    y = jax.nn.relu(jnp.dot(y, params["fc2_w"].T, precision=hp) + params["fc2_b"])
    return jnp.dot(y, params["fc3_w"].T, precision=hp) + params["fc3_b"]


if __name__ == "__main__":
    key = jax.random.PRNGKey(0)
    kp, kx = jax.random.split(key)
    params = init_params(kp)
    prep = prepare_params(params)          # weight layout prep hoisted, done once
    # Input must be 32x32 so the flatten is 16*5*5, as the module's fc1 implies.
    x = jax.random.normal(kx, (8, 3, 32, 32), dtype=jnp.float32)

    out = jax.jit(net_forward)(prep, x)
    out = jax.block_until_ready(out)
    assert out.shape == (8, 10), out.shape
    assert out.dtype == jnp.float32

    # Sanity check vs. a pure-JAX f32 reference (kernel uses bf16 operands).
    ref = reference_forward(params, x)
    err = float(jnp.max(jnp.abs(out - ref)))
    assert err < 0.1, f"max abs error vs reference: {err}"

    print("KERNEL_OK")
</pallas_src>

<mosaic_0001>
module attributes {stable_mosaic.version = 11 : i64} {
  func.func @_conv_relu_pool_kernel(%arg0: i32, %arg1: memref<4x784x128xbf16, #tpu.memory_space<vmem>>, %arg2: memref<128x128xbf16, #tpu.memory_space<vmem>>, %arg3: memref<1x128xf32, #tpu.memory_space<vmem>>, %arg4: memref<784x128xbf16, #tpu.memory_space<vmem>>) attributes {dimension_semantics = [#tpu.dimension_semantics<parallel>], iteration_bounds = array<i64: 2>, scalar_prefetch = 0 : i64, scratch_operands = 0 : i64, tpu.core_type = #tpu.core_type<tc>, window_params = [{transform_indices = @transform_0, window_bounds = array<i64: 4, 784, 128>}, {pipeline_mode = #tpu.pipeline_mode<synchronous>, transform_indices = @transform_1, window_bounds = array<i64: 128, 128>}, {pipeline_mode = #tpu.pipeline_mode<synchronous>, transform_indices = @transform_2, window_bounds = array<i64: 1, 128>}, {transform_indices = @transform_3, window_bounds = array<i64: 784, 128>}]} {
    %c0 = arith.constant 0 : index
    %c0_0 = arith.constant 0 : index
    %0 = vector.load %arg2[%c0, %c0_0] : memref<128x128xbf16, #tpu.memory_space<vmem>>, vector<128x128xbf16>
    %c0_1 = arith.constant 0 : index
    %c0_2 = arith.constant 0 : index
    %c0_3 = arith.constant 0 : index
    %1 = vector.load %arg1[%c0_1, %c0_2, %c0_3] : memref<4x784x128xbf16, #tpu.memory_space<vmem>>, vector<1x784x128xbf16>
    %2 = vector.shape_cast %1 : vector<1x784x128xbf16> to vector<784x128xbf16>
    %cst = arith.constant dense<0.000000e+00> : vector<784x128xf32>
    %3 = tpu.matmul %2, %0, %cst {dimension_numbers = #tpu.dot_dimension_numbers<[1], [0], [0], [1], [0, 0, 1, 1], [], []>} : vector<784x128xbf16>, vector<128x128xbf16>, vector<784x128xf32> -> vector<784x128xf32>
    %c1 = arith.constant 1 : index
    %c0_4 = arith.constant 0 : index
    %c0_5 = arith.constant 0 : index
    %4 = vector.load %arg1[%c1, %c0_4, %c0_5] : memref<4x784x128xbf16, #tpu.memory_space<vmem>>, vector<1x784x128xbf16>
    %5 = vector.shape_cast %4 : vector<1x784x128xbf16> to vector<784x128xbf16>
    %cst_6 = arith.constant dense<0.000000e+00> : vector<784x128xf32>
    %6 = tpu.matmul %5, %0, %cst_6 {dimension_numbers = #tpu.dot_dimension_numbers<[1], [0], [0], [1], [0, 0, 1, 1], [], []>} : vector<784x128xbf16>, vector<128x128xbf16>, vector<784x128xf32> -> vector<784x128xf32>
    %c2 = arith.constant 2 : index
    %c0_7 = arith.constant 0 : index
    %c0_8 = arith.constant 0 : index
    %7 = vector.load %arg1[%c2, %c0_7, %c0_8] : memref<4x784x128xbf16, #tpu.memory_space<vmem>>, vector<1x784x128xbf16>
    %8 = vector.shape_cast %7 : vector<1x784x128xbf16> to vector<784x128xbf16>
    %cst_9 = arith.constant dense<0.000000e+00> : vector<784x128xf32>
    %9 = tpu.matmul %8, %0, %cst_9 {dimension_numbers = #tpu.dot_dimension_numbers<[1], [0], [0], [1], [0, 0, 1, 1], [], []>} : vector<784x128xbf16>, vector<128x128xbf16>, vector<784x128xf32> -> vector<784x128xf32>
    %c3 = arith.constant 3 : index
    %c0_10 = arith.constant 0 : index
    %c0_11 = arith.constant 0 : index
    %10 = vector.load %arg1[%c3, %c0_10, %c0_11] : memref<4x784x128xbf16, #tpu.memory_space<vmem>>, vector<1x784x128xbf16>
    %11 = vector.shape_cast %10 : vector<1x784x128xbf16> to vector<784x128xbf16>
    %cst_12 = arith.constant dense<0.000000e+00> : vector<784x128xf32>
    %12 = tpu.matmul %11, %0, %cst_12 {dimension_numbers = #tpu.dot_dimension_numbers<[1], [0], [0], [1], [0, 0, 1, 1], [], []>} : vector<784x128xbf16>, vector<128x128xbf16>, vector<784x128xf32> -> vector<784x128xf32>
    %13 = arith.maximumf %3, %6 : vector<784x128xf32>
    %14 = arith.maximumf %9, %12 : vector<784x128xf32>
    %15 = arith.maximumf %13, %14 : vector<784x128xf32>
    %c0_13 = arith.constant 0 : index
    %c0_14 = arith.constant 0 : index
    %16 = vector.load %arg3[%c0_13, %c0_14] : memref<1x128xf32, #tpu.memory_space<vmem>>, vector<1x128xf32>
    %17 = vector.broadcast %16 : vector<1x128xf32> to vector<784x128xf32>
    %18 = arith.addf %15, %17 : vector<784x128xf32>
    %cst_15 = arith.constant 0.000000e+00 : f32
    %19 = vector.broadcast %cst_15 : f32 to vector<784x128xf32>
    %20 = arith.maximumf %18, %19 : vector<784x128xf32>
    %21 = arith.truncf %20 : vector<784x128xf32> to vector<784x128xbf16>
    %c0_16 = arith.constant 0 : index
    %c0_17 = arith.constant 0 : index
    %22 = vector.load %arg4[%c0_16, %c0_17] : memref<784x128xbf16, #tpu.memory_space<vmem>>, vector<784x128xbf16>
    tpu.vector_store %arg4[%c0_16, %c0_17], %21 {strides = array<i32>} : memref<784x128xbf16, #tpu.memory_space<vmem>>, vector<784x128xbf16>,
    return
  }
  func.func @transform_0(%arg0: i32) -> (i32, i32, i32) {
    %c0_i32 = arith.constant 0 : i32
    %c0_i32_0 = arith.constant 0 : i32
    %c0_i32_1 = arith.constant 0 : i32
    return %c0_i32, %arg0, %c0_i32_0 : i32, i32, i32
  }
  func.func @transform_1(%arg0: i32) -> (i32, i32) {
    %c0_i32 = arith.constant 0 : i32
    %c0_i32_0 = arith.constant 0 : i32
    %c0_i32_1 = arith.constant 0 : i32
    return %c0_i32, %c0_i32_0 : i32, i32
  }
  func.func @transform_2(%arg0: i32) -> (i32, i32) {
    %c0_i32 = arith.constant 0 : i32
    %c0_i32_0 = arith.constant 0 : i32
    %c0_i32_1 = arith.constant 0 : i32
    return %c0_i32, %c0_i32_0 : i32, i32
  }
  func.func @transform_3(%arg0: i32) -> (i32, i32) {
    %c0_i32 = arith.constant 0 : i32
    %c0_i32_0 = arith.constant 0 : i32
    return %arg0, %c0_i32 : i32, i32
  }
}

module attributes {stable_mosaic.version = 11 : i64} {
  func.func @_conv_relu_pool_kernel(%arg0: i32, %arg1: memref<4x104x256xbf16, #tpu.memory_space<vmem>>, %arg2: memref<256x128xbf16, #tpu.memory_space<vmem>>, %arg3: memref<1x128xf32, #tpu.memory_space<vmem>>, %arg4: memref<104x128xbf16, #tpu.memory_space<vmem>>) attributes {dimension_semantics = [#tpu.dimension_semantics<parallel>], iteration_bounds = array<i64: 2>, scalar_prefetch = 0 : i64, scratch_operands = 0 : i64, tpu.core_type = #tpu.core_type<tc>, window_params = [{transform_indices = @transform_0, window_bounds = array<i64: 4, 104, 256>}, {pipeline_mode = #tpu.pipeline_mode<synchronous>, transform_indices = @transform_1, window_bounds = array<i64: 256, 128>}, {pipeline_mode = #tpu.pipeline_mode<synchronous>, transform_indices = @transform_2, window_bounds = array<i64: 1, 128>}, {transform_indices = @transform_3, window_bounds = array<i64: 104, 128>}]} {
    %c0 = arith.constant 0 : index
    %c0_0 = arith.constant 0 : index
    %0 = vector.load %arg2[%c0, %c0_0] : memref<256x128xbf16, #tpu.memory_space<vmem>>, vector<256x128xbf16>
    %c0_1 = arith.constant 0 : index
    %c0_2 = arith.constant 0 : index
    %c0_3 = arith.constant 0 : index
    %1 = vector.load %arg1[%c0_1, %c0_2, %c0_3] : memref<4x104x256xbf16, #tpu.memory_space<vmem>>, vector<1x104x256xbf16>
    %2 = vector.shape_cast %1 : vector<1x104x256xbf16> to vector<104x256xbf16>
    %cst = arith.constant dense<0.000000e+00> : vector<104x128xf32>
    %3 = tpu.matmul %2, %0, %cst {dimension_numbers = #tpu.dot_dimension_numbers<[1], [0], [0], [1], [0, 0, 1, 1], [], []>} : vector<104x256xbf16>, vector<256x128xbf16>, vector<104x128xf32> -> vector<104x128xf32>
    %c1 = arith.constant 1 : index
    %c0_4 = arith.constant 0 : index
    %c0_5 = arith.constant 0 : index
    %4 = vector.load %arg1[%c1, %c0_4, %c0_5] : memref<4x104x256xbf16, #tpu.memory_space<vmem>>, vector<1x104x256xbf16>
    %5 = vector.shape_cast %4 : vector<1x104x256xbf16> to vector<104x256xbf16>
    %cst_6 = arith.constant dense<0.000000e+00> : vector<104x128xf32>
    %6 = tpu.matmul %5, %0, %cst_6 {dimension_numbers = #tpu.dot_dimension_numbers<[1], [0], [0], [1], [0, 0, 1, 1], [], []>} : vector<104x256xbf16>, vector<256x128xbf16>, vector<104x128xf32> -> vector<104x128xf32>
    %c2 = arith.constant 2 : index
    %c0_7 = arith.constant 0 : index
    %c0_8 = arith.constant 0 : index
    %7 = vector.load %arg1[%c2, %c0_7, %c0_8] : memref<4x104x256xbf16, #tpu.memory_space<vmem>>, vector<1x104x256xbf16>
    %8 = vector.shape_cast %7 : vector<1x104x256xbf16> to vector<104x256xbf16>
    %cst_9 = arith.constant dense<0.000000e+00> : vector<104x128xf32>
    %9 = tpu.matmul %8, %0, %cst_9 {dimension_numbers = #tpu.dot_dimension_numbers<[1], [0], [0], [1], [0, 0, 1, 1], [], []>} : vector<104x256xbf16>, vector<256x128xbf16>, vector<104x128xf32> -> vector<104x128xf32>
    %c3 = arith.constant 3 : index
    %c0_10 = arith.constant 0 : index
    %c0_11 = arith.constant 0 : index
    %10 = vector.load %arg1[%c3, %c0_10, %c0_11] : memref<4x104x256xbf16, #tpu.memory_space<vmem>>, vector<1x104x256xbf16>
    %11 = vector.shape_cast %10 : vector<1x104x256xbf16> to vector<104x256xbf16>
    %cst_12 = arith.constant dense<0.000000e+00> : vector<104x128xf32>
    %12 = tpu.matmul %11, %0, %cst_12 {dimension_numbers = #tpu.dot_dimension_numbers<[1], [0], [0], [1], [0, 0, 1, 1], [], []>} : vector<104x256xbf16>, vector<256x128xbf16>, vector<104x128xf32> -> vector<104x128xf32>
    %13 = arith.maximumf %3, %6 : vector<104x128xf32>
    %14 = arith.maximumf %9, %12 : vector<104x128xf32>
    %15 = arith.maximumf %13, %14 : vector<104x128xf32>
    %c0_13 = arith.constant 0 : index
    %c0_14 = arith.constant 0 : index
    %16 = vector.load %arg3[%c0_13, %c0_14] : memref<1x128xf32, #tpu.memory_space<vmem>>, vector<1x128xf32>
    %17 = vector.broadcast %16 : vector<1x128xf32> to vector<104x128xf32>
    %18 = arith.addf %15, %17 : vector<104x128xf32>
    %cst_15 = arith.constant 0.000000e+00 : f32
    %19 = vector.broadcast %cst_15 : f32 to vector<104x128xf32>
    %20 = arith.maximumf %18, %19 : vector<104x128xf32>
    %21 = arith.truncf %20 : vector<104x128xf32> to vector<104x128xbf16>
    %c0_16 = arith.constant 0 : index
    %c0_17 = arith.constant 0 : index
    %22 = vector.load %arg4[%c0_16, %c0_17] : memref<104x128xbf16, #tpu.memory_space<vmem>>, vector<104x128xbf16>
    tpu.vector_store %arg4[%c0_16, %c0_17], %21 {strides = array<i32>} : memref<104x128xbf16, #tpu.memory_space<vmem>>, vector<104x128xbf16>,
    return
  }
  func.func @transform_0(%arg0: i32) -> (i32, i32, i32) {
    %c0_i32 = arith.constant 0 : i32
    %c0_i32_0 = arith.constant 0 : i32
    %c0_i32_1 = arith.constant 0 : i32
    return %c0_i32, %arg0, %c0_i32_0 : i32, i32, i32
  }
  func.func @transform_1(%arg0: i32) -> (i32, i32) {
    %c0_i32 = arith.constant 0 : i32
    %c0_i32_0 = arith.constant 0 : i32
    %c0_i32_1 = arith.constant 0 : i32
    return %c0_i32, %c0_i32_0 : i32, i32
  }
  func.func @transform_2(%arg0: i32) -> (i32, i32) {
    %c0_i32 = arith.constant 0 : i32
    %c0_i32_0 = arith.constant 0 : i32
    %c0_i32_1 = arith.constant 0 : i32
    return %c0_i32, %c0_i32_0 : i32, i32
  }
  func.func @transform_3(%arg0: i32) -> (i32, i32) {
    %c0_i32 = arith.constant 0 : i32
    %c0_i32_0 = arith.constant 0 : i32
    return %arg0, %c0_i32 : i32, i32
  }
}

module attributes {stable_mosaic.version = 11 : i64} {
  func.func @_fc_stack_kernel(%arg0: i32, %arg1: memref<8x3200xbf16, #tpu.memory_space<vmem>>, %arg2: memref<3200x128xbf16, #tpu.memory_space<vmem>>, %arg3: memref<1x128xf32, #tpu.memory_space<vmem>>, %arg4: memref<128x128xbf16, #tpu.memory_space<vmem>>, %arg5: memref<1x128xf32, #tpu.memory_space<vmem>>, %arg6: memref<128x128xbf16, #tpu.memory_space<vmem>>, %arg7: memref<1x128xf32, #tpu.memory_space<vmem>>, %arg8: memref<8x128xf32, #tpu.memory_space<vmem>>) attributes {dimension_semantics = [#tpu.dimension_semantics<parallel>], iteration_bounds = array<i64: 1>, scalar_prefetch = 0 : i64, scratch_operands = 0 : i64, tpu.core_type = #tpu.core_type<tc>, window_params = [{transform_indices = @transform_0, window_bounds = array<i64: 8, 3200>}, {pipeline_mode = #tpu.pipeline_mode<synchronous>, transform_indices = @transform_1, window_bounds = array<i64: 3200, 128>}, {pipeline_mode = #tpu.pipeline_mode<synchronous>, transform_indices = @transform_2, window_bounds = array<i64: 1, 128>}, {pipeline_mode = #tpu.pipeline_mode<synchronous>, transform_indices = @transform_3, window_bounds = array<i64: 128, 128>}, {pipeline_mode = #tpu.pipeline_mode<synchronous>, transform_indices = @transform_4, window_bounds = array<i64: 1, 128>}, {pipeline_mode = #tpu.pipeline_mode<synchronous>, transform_indices = @transform_5, window_bounds = array<i64: 128, 128>}, {pipeline_mode = #tpu.pipeline_mode<synchronous>, transform_indices = @transform_6, window_bounds = array<i64: 1, 128>}, {transform_indices = @transform_7, window_bounds = array<i64: 8, 128>}]} {
    %c0 = arith.constant 0 : index
    %c0_0 = arith.constant 0 : index
    %0 = vector.load %arg1[%c0, %c0_0] : memref<8x3200xbf16, #tpu.memory_space<vmem>>, vector<8x3200xbf16>
    %c0_1 = arith.constant 0 : index
    %c0_2 = arith.constant 0 : index
    %1 = vector.load %arg2[%c0_1, %c0_2] : memref<3200x128xbf16, #tpu.memory_space<vmem>>, vector<3200x128xbf16>
    %cst = arith.constant dense<0.000000e+00> : vector<8x128xf32>
    %2 = tpu.matmul %0, %1, %cst {dimension_numbers = #tpu.dot_dimension_numbers<[1], [0], [0], [1], [0, 0, 1, 1], [], []>} : vector<8x3200xbf16>, vector<3200x128xbf16>, vector<8x128xf32> -> vector<8x128xf32>
    %c0_3 = arith.constant 0 : index
    %c0_4 = arith.constant 0 : index
    %3 = vector.load %arg3[%c0_3, %c0_4] : memref<1x128xf32, #tpu.memory_space<vmem>>, vector<1x128xf32>
    %4 = vector.broadcast %3 : vector<1x128xf32> to vector<8x128xf32>
    %5 = arith.addf %2, %4 : vector<8x128xf32>
    %cst_5 = arith.constant 0.000000e+00 : f32
    %6 = vector.broadcast %cst_5 : f32 to vector<8x128xf32>
    %7 = arith.maximumf %5, %6 : vector<8x128xf32>
    %8 = arith.truncf %7 : vector<8x128xf32> to vector<8x128xbf16>
    %c0_6 = arith.constant 0 : index
    %c0_7 = arith.constant 0 : index
    %9 = vector.load %arg4[%c0_6, %c0_7] : memref<128x128xbf16, #tpu.memory_space<vmem>>, vector<128x128xbf16>
    %cst_8 = arith.constant dense<0.000000e+00> : vector<8x128xf32>
    %10 = tpu.matmul %8, %9, %cst_8 {dimension_numbers = #tpu.dot_dimension_numbers<[1], [0], [0], [1], [0, 0, 1, 1], [], []>} : vector<8x128xbf16>, vector<128x128xbf16>, vector<8x128xf32> -> vector<8x128xf32>
    %c0_9 = arith.constant 0 : index
    %c0_10 = arith.constant 0 : index
    %11 = vector.load %arg5[%c0_9, %c0_10] : memref<1x128xf32, #tpu.memory_space<vmem>>, vector<1x128xf32>
    %12 = vector.broadcast %11 : vector<1x128xf32> to vector<8x128xf32>
    %13 = arith.addf %10, %12 : vector<8x128xf32>
    %cst_11 = arith.constant 0.000000e+00 : f32
    %14 = vector.broadcast %cst_11 : f32 to vector<8x128xf32>
    %15 = arith.maximumf %13, %14 : vector<8x128xf32>
    %16 = arith.truncf %15 : vector<8x128xf32> to vector<8x128xbf16>
    %c0_12 = arith.constant 0 : index
    %c0_13 = arith.constant 0 : index
    %17 = vector.load %arg6[%c0_12, %c0_13] : memref<128x128xbf16, #tpu.memory_space<vmem>>, vector<128x128xbf16>
    %cst_14 = arith.constant dense<0.000000e+00> : vector<8x128xf32>
    %18 = tpu.matmul %16, %17, %cst_14 {dimension_numbers = #tpu.dot_dimension_numbers<[1], [0], [0], [1], [0, 0, 1, 1], [], []>} : vector<8x128xbf16>, vector<128x128xbf16>, vector<8x128xf32> -> vector<8x128xf32>
    %c0_15 = arith.constant 0 : index
    %c0_16 = arith.constant 0 : index
    %19 = vector.load %arg7[%c0_15, %c0_16] : memref<1x128xf32, #tpu.memory_space<vmem>>, vector<1x128xf32>
    %20 = vector.broadcast %19 : vector<1x128xf32> to vector<8x128xf32>
    %21 = arith.addf %18, %20 : vector<8x128xf32>
    %c0_17 = arith.constant 0 : index
    %c0_18 = arith.constant 0 : index
    %22 = vector.load %arg8[%c0_17, %c0_18] : memref<8x128xf32, #tpu.memory_space<vmem>>, vector<8x128xf32>
    tpu.vector_store %arg8[%c0_17, %c0_18], %21 {strides = array<i32>} : memref<8x128xf32, #tpu.memory_space<vmem>>, vector<8x128xf32>,
    return
  }
  func.func @transform_0(%arg0: i32) -> (i32, i32) {
    %c0_i32 = arith.constant 0 : i32
    %c0_i32_0 = arith.constant 0 : i32
    return %arg0, %c0_i32 : i32, i32
  }
  func.func @transform_1(%arg0: i32) -> (i32, i32) {
    %c0_i32 = arith.constant 0 : i32
    %c0_i32_0 = arith.constant 0 : i32
    %c0_i32_1 = arith.constant 0 : i32
    return %c0_i32, %c0_i32_0 : i32, i32
  }
  func.func @transform_2(%arg0: i32) -> (i32, i32) {
    %c0_i32 = arith.constant 0 : i32
    %c0_i32_0 = arith.constant 0 : i32
    %c0_i32_1 = arith.constant 0 : i32
    return %c0_i32, %c0_i32_0 : i32, i32
  }
  func.func @transform_3(%arg0: i32) -> (i32, i32) {
    %c0_i32 = arith.constant 0 : i32
    %c0_i32_0 = arith.constant 0 : i32
    %c0_i32_1 = arith.constant 0 : i32
    return %c0_i32, %c0_i32_0 : i32, i32
  }
  func.func @transform_4(%arg0: i32) -> (i32, i32) {
    %c0_i32 = arith.constant 0 : i32
    %c0_i32_0 = arith.constant 0 : i32
    %c0_i32_1 = arith.constant 0 : i32
    return %c0_i32, %c0_i32_0 : i32, i32
  }
  func.func @transform_5(%arg0: i32) -> (i32, i32) {
    %c0_i32 = arith.constant 0 : i32
    %c0_i32_0 = arith.constant 0 : i32
    %c0_i32_1 = arith.constant 0 : i32
    return %c0_i32, %c0_i32_0 : i32, i32
  }
  func.func @transform_6(%arg0: i32) -> (i32, i32) {
    %c0_i32 = arith.constant 0 : i32
    %c0_i32_0 = arith.constant 0 : i32
    %c0_i32_1 = arith.constant 0 : i32
    return %c0_i32, %c0_i32_0 : i32, i32
  }
  func.func @transform_7(%arg0: i32) -> (i32, i32) {
    %c0_i32 = arith.constant 0 : i32
    %c0_i32_0 = arith.constant 0 : i32
    return %arg0, %c0_i32 : i32, i32
  }
}

</mosaic_0001>

<llo_original>
// kernel: net_forward.3
$region0: #{net_forward.3}
  #allocation0 [shape = 'u32[]', space=smem, size = 0x4, offset = 0x4, fixed_abs, tag = 'smem constant byte address 0x4 - core index']
  #allocation1 [shape = 'u32[144,128]{1,0:T(1,128)}', space=vmem, size = 0x12000, scoped, tag = 'internal scratch']
  %s0 = inlined_call_operand.vmem [shape: bf16[4,1568,128], index: 0, kind: input, shape index: {}]
  %s1 = inlined_call_operand.vmem [shape: bf16[128,128], index: 1, kind: input, shape index: {}]
  %s2 = inlined_call_operand.vmem [shape: f32[1,128], index: 2, kind: input, shape index: {}]
  %s3 = inlined_call_operand.vmem [shape: bf16[1568,128], index: 3, kind: output, shape index: {}]
  %s4 = sld [smem:[#allocation0]]
  $region86: #{net_forward.3} parent=0
    _
  %s6 = ssub.s32 1, %s4
  %s7 = scalar_select 0, %s6, %s4
  $region1: #{net_forward.3} parent=0
    #allocation2 [shape = 'u8[1605632]{0}', space=vmem, size = 0x188000, scoped, tag = 'input window, operand 0']
    loop: start=0, step=1, limit=4
    $region2: #{net_forward.3} parent=1 // loop_pre_header
      _
    $region3: #{net_forward.3} parent=1 // loop_header
      %s9 = sphi 0, %s13
      %p10 = scmp.ge.s32.totalorder %s9, 4
      %s19 = sphi 0, %s21
      %s22 = sphi 0, %s19
      %s23 = sphi 0, %s22
      %s39 = sphi 0, %s23
      %s43 = sphi 0, %s43
      %s45 = sphi 0, %s43
      %s46 = sphi 0, %s45
      %s60 = sphi 0, %s46
      %s64 = sphi 0, %s64
      %s66 = sphi 0, %s64
      %s67 = sphi 0, %s66
      %s81 = sphi 0, %s67
      %s87 = sphi 0, %s89
      %s90 = sphi 0, %s87
      %s91 = sphi 0, %s90
      %s107 = sphi 0, %s91
    $region4: #{net_forward.3} parent=1 // loop_header_branch
      %12 = sbr.rel (%p10) target = $region8
    $region5: #{net_forward.3} parent=1 // loop_body
      %s14 = ssub.s32 %s9, 1
      %s15 = ssub.s32 %s9, 2
      %s16 = sadd.s32 %s9, 1
      %s17 = ssub.s32 %s9, %s16
      %p18 = scmp.eq.s32.totalorder %s17, 0
      %s20 = sadd.s32 %s19, 1
      %s21 = scalar_select %p18, %s19, %s20
      %p24 = pneg %p18
      %p25 = scmp.eq.s32.totalorder %s9, 1
      %p26 = por %p24, %p25
      %p27 = scmp.ne.s32.totalorder %s19, %s22
      %p28 = scmp.eq.s32.totalorder %s9, 0
      %p29 = por %p27, %p28
      %p30 = scmp.ne.s32.totalorder %s19, %s22
      %p31 = scmp.eq.s32.totalorder %s14, 1
      %p32 = por %p30, %p31
      %p33 = scmp.ne.s32.totalorder %s22, %s23
      %p34 = scmp.eq.s32.totalorder %s14, 0
      %p35 = por %p33, %p34
      %p36 = scmp.ne.s32.totalorder %s22, %s23
      %p37 = scmp.eq.s32.totalorder %s15, 1
      %p38 = por %p36, %p37
      %p40 = scmp.ne.s32.totalorder %s23, %s39
      %p41 = scmp.eq.s32.totalorder %s15, 0
      %p42 = por %p40, %p41
      %s44 = sadd.s32 %s43, 1
      %p47 = scmp.eq.s32.totalorder %s9, 1
      %p48 = scmp.ne.s32.totalorder %s43, %s45
      %p49 = scmp.eq.s32.totalorder %s9, 0
      %p50 = por %p48, %p49
      %p51 = scmp.ne.s32.totalorder %s43, %s45
      %p52 = scmp.eq.s32.totalorder %s14, 1
      %p53 = por %p51, %p52
      %p54 = scmp.ne.s32.totalorder %s45, %s46
      %p55 = scmp.eq.s32.totalorder %s14, 0
      %p56 = por %p54, %p55
      %p57 = scmp.ne.s32.totalorder %s45, %s46
      %p58 = scmp.eq.s32.totalorder %s15, 1
      %p59 = por %p57, %p58
      %p61 = scmp.ne.s32.totalorder %s46, %s60
      %p62 = scmp.eq.s32.totalorder %s15, 0
      %p63 = por %p61, %p62
      %s65 = sadd.s32 %s64, 1
      %p68 = scmp.eq.s32.totalorder %s9, 1
      %p69 = scmp.ne.s32.totalorder %s64, %s66
      %p70 = scmp.eq.s32.totalorder %s9, 0
      %p71 = por %p69, %p70
      %p72 = scmp.ne.s32.totalorder %s64, %s66
      %p73 = scmp.eq.s32.totalorder %s14, 1
      %p74 = por %p72, %p73
      %p75 = scmp.ne.s32.totalorder %s66, %s67
      %p76 = scmp.eq.s32.totalorder %s14, 0
      %p77 = por %p75, %p76
      %p78 = scmp.ne.s32.totalorder %s66, %s67
      %p79 = scmp.eq.s32.totalorder %s15, 1
      %p80 = por %p78, %p79
      %p82 = scmp.ne.s32.totalorder %s67, %s81
      %p83 = scmp.eq.s32.totalorder %s15, 0
      %p84 = por %p82, %p83
      %s85 = ssub.s32 %s9, %s16
      %p86 = scmp.eq.s32.totalorder %s85, 0
      %s88 = sadd.s32 %s87, 1
      %s89 = scalar_select %p86, %s87, %s88
      %p92 = pneg %p86
      %p93 = scmp.eq.s32.totalorder %s9, 1
      %p94 = por %p92, %p93
      %p95 = scmp.ne.s32.totalorder %s87, %s90
      %p96 = scmp.eq.s32.totalorder %s9, 0
      %p97 = por %p95, %p96
      %p98 = scmp.ne.s32.totalorder %s87, %s90
      %p99 = scmp.eq.s32.totalorder %s14, 1
      %p100 = por %p98, %p99
      %p101 = scmp.ne.s32.totalorder %s90, %s91
      %p102 = scmp.eq.s32.totalorder %s14, 0
      %p103 = por %p101, %p102
      %p104 = scmp.ne.s32.totalorder %s90, %s91
      %p105 = scmp.eq.s32.totalorder %s15, 1
      %p106 = por %p104, %p105
      %p108 = scmp.ne.s32.totalorder %s91, %s107
      %p109 = scmp.eq.s32.totalorder %s15, 0
      %p110 = por %p108, %p109
      %p111 = scmp.le.s32.totalorder 1, %s9
      %p112 = scmp.lt.s32.totalorder %s9, 3
      %p113 = pnand %p111, %p112
      %p114 = pneg %p113
      // Predicated region
      $region9: #{net_forward.3} parent=5 // pred_check
        _
      $region10: #{net_forward.3} parent=5 // pred_check_branch
        %116 = sbr.rel (%p113) target = $region12
      $region11: #{net_forward.3} parent=5 // pred_region
        %s117 = ssub.s32 %s9, 1
        // Predicated region
        $region13: #{net_forward.3} parent=11 // pred_check
          %p118 = pneg %p56
        $region14: #{net_forward.3} parent=11 // pred_check_branch
          %120 = sbr.rel (%p118) target = $region16
        $region15: #{net_forward.3} parent=11 // pred_region
          _
        $region16: #{net_forward.3} parent=11 // pred_fallthru
          _
        // Predicated region
        $region17: #{net_forward.3} parent=11 // pred_check
          %p121 = pneg %p77
        $region18: #{net_forward.3} parent=11 // pred_check_branch
          %123 = sbr.rel (%p121) target = $region20
        $region19: #{net_forward.3} parent=11 // pred_region
          _
        $region20: #{net_forward.3} parent=11 // pred_fallthru
          _
      $region12: #{net_forward.3} parent=5 // pred_fallthru
        _
      %p124 = scmp.lt.s32.totalorder %s9, 2
      // Predicated region
      $region21: #{net_forward.3} parent=5 // pred_check
        %p125 = pneg %p124
      $region22: #{net_forward.3} parent=5 // pred_check_branch
        %127 = sbr.rel (%p125) target = $region24
      $region23: #{net_forward.3} parent=5 // pred_region
        // Predicated region
        $region25: #{net_forward.3} parent=23 // pred_check
          %p128 = pneg %p29
        $region26: #{net_forward.3} parent=23 // pred_check_branch
          %130 = sbr.rel (%p128) target = $region28
        $region27: #{net_forward.3} parent=23 // pred_region
          %s131 = sand.u32 %s19, 1
          %s132 = sand.u32 %s19, 1
          %s133 = smul.addr %s132, 1568
          %s134 = scalar_lea.vmem [#allocation2], %s133
          %s135 = smul.u32 98, %s9
          %s136 = smul.addr %s135, 4
          %s137 = scalar_lea.vmem %s0, %s136
          // Predicated region
          $region29: #{net_forward.3} parent=27 // pred_check
            _
          $region30: #{net_forward.3} parent=27 // pred_check_branch
            %139 = sbr.rel (0) target = $region32
          $region31: #{net_forward.3} parent=27 // pred_region
            // Predicated region
            $region33: #{net_forward.3} parent=31 // pred_check
              _
            $region34: #{net_forward.3} parent=31 // pred_check_branch
              %141 = sbr.rel target = $region36
            $region35: #{net_forward.3} parent=31 // pred_region
              // Predicated region
              $region48: #{net_forward.3} parent=35 // pred_check
                _
              $region49: #{net_forward.3} parent=35 // pred_check_branch
                %938 = sbr.rel (0) target = $region51
              $region50: #{net_forward.3} parent=35 // pred_region
                loop: start=0, step=1, limit=1
                $region52: #{net_forward.3} parent=50 // loop_pre_header
                  _
                $region53: #{net_forward.3} parent=50 // loop_header
                  %s940 = sphi 0, %s944
                  %p941 = scmp.ge.s32.totalorder %s940, 1
                  %s945 = sphi %s137, %s137
                  %s946 = sphi %s134, %s134
                $region54: #{net_forward.3} parent=50 // loop_header_branch
                  %943 = sbr.rel (%p941) target = $region58
                $region55: #{net_forward.3} parent=50 // loop_body
                  _
                $region56: #{net_forward.3} parent=50 // loop_footer
                  %s944 = sadd.s32 1, %s940
                $region57: #{net_forward.3} parent=50 // loop_footer_branch
                  %939 = sbr.rel target = $region53
                $region58: #{net_forward.3} parent=50 // loop_exit
                  _
                loop: start=0, step=1, limit=1
                $region59: #{net_forward.3} parent=50 // loop_pre_header
                  _
                $region60: #{net_forward.3} parent=50 // loop_header
                  %s949 = sphi 0, %s953
                  %p950 = scmp.ge.s32.totalorder %s949, 1
                  %s954 = sphi %s137, %s137
                  %s955 = sphi %s134, %s134
                $region61: #{net_forward.3} parent=50 // loop_header_branch
                  %952 = sbr.rel (%p950) target = $region65
                $region62: #{net_forward.3} parent=50 // loop_body
                  %v956 = vld [vmem:[%s954] sm:$0xf]
                  %957 = vst [vmem:[%s955] sm:$0xf] %v956
                  %v958 = vld [vmem:[%s954 + $0x4] sm:$0xf]
                  %959 = vst [vmem:[%s955 + $0x4] sm:$0xf] %v958
                  %v960 = vld [vmem:[%s954 + $0x8] sm:$0xf]
                  %961 = vst [vmem:[%s955 + $0x8] sm:$0xf] %v960
                  %v962 = vld [vmem:[%s954 + $0xc] sm:$0xf]
                  %963 = vst [vmem:[%s955 + $0xc] sm:$0xf] %v962
                  %v964 = vld [vmem:[%s954 + $0x10] sm:$0xf]
                  %965 = vst [vmem:[%s955 + $0x10] sm:$0xf] %v964
                  %v966 = vld [vmem:[%s954 + $0x14] sm:$0xf]
                  %967 = vst [vmem:[%s955 + $0x14] sm:$0xf] %v966
                  %v968 = vld [vmem:[%s954 + $0x18] sm:$0xf]
                  %969 = vst [vmem:[%s955 + $0x18] sm:$0xf] %v968
                  %v970 = vld [vmem:[%s954 + $0x1c] sm:$0xf]
                  %971 = vst [vmem:[%s955 + $0x1c] sm:$0xf] %v970
                  %v972 = vld [vmem:[%s954 + $0x20] sm:$0xf]
                  %973 = vst [vmem:[%s955 + $0x20] sm:$0xf] %v972
                  %v974 = vld [vmem:[%s954 + $0x24] sm:$0xf]
                  %975 = vst [vmem:[%s955 + $0x24] sm:$0xf] %v974
                  %v976 = vld [vmem:[%s954 + $0x28] sm:$0xf]
                  %977 = vst [vmem:[%s955 + $0x28] sm:$0xf] %v976
                  %v978 = vld [vmem:[%s954 + $0x2c] sm:$0xf]
                  %979 = vst [vmem:[%s955 + $0x2c] sm:$0xf] %v978
                  %v980 = vld [vmem:[%s954 + $0x30] sm:$0xf]
                  %981 = vst [vmem:[%s955 + $0x30] sm:$0xf] %v980
                  %v982 = vld [vmem:[%s954 + $0x34] sm:$0xf]
                  %983 = vst [vmem:[%s955 + $0x34] sm:$0xf] %v982
                  %v984 = vld [vmem:[%s954 + $0x38] sm:$0xf]
                  %985 = vst [vmem:[%s955 + $0x38] sm:$0xf] %v984
                  %v986 = vld [vmem:[%s954 + $0x3c] sm:$0xf]
                  %987 = vst [vmem:[%s955 + $0x3c] sm:$0xf] %v986
                  %v988 = vld [vmem:[%s954 + $0x40] sm:$0xf]
                  %989 = vst [vmem:[%s955 + $0x40] sm:$0xf] %v988
                  %v990 = vld [vmem:[%s954 + $0x44] sm:$0xf]
                  %991 = vst [vmem:[%s955 + $0x44] sm:$0xf] %v990
                  %v992 = vld [vmem:[%s954 + $0x48] sm:$0xf]
                  %993 = vst [vmem:[%s955 + $0x48] sm:$0xf] %v992
                  %v994 = vld [vmem:[%s954 + $0x4c] sm:$0xf]
                  %995 = vst [vmem:[%s955 + $0x4c] sm:$0xf] %v994
                  %v996 = vld [vmem:[%s954 + $0x50] sm:$0xf]
                  %997 = vst [vmem:[%s955 + $0x50] sm:$0xf] %v996
                  %v998 = vld [vmem:[%s954 + $0x54] sm:$0xf]
                  %999 = vst [vmem:[%s955 + $0x54] sm:$0xf] %v998
                  %v1000 = vld [vmem:[%s954 + $0x58] sm:$0xf]
                  %1001 = vst [vmem:[%s955 + $0x58] sm:$0xf] %v1000
                  %v1002 = vld [vmem:[%s954 + $0x5c] sm:$0xf]
                  %1003 = vst [vmem:[%s955 + $0x5c] sm:$0xf] %v1002
                  %v1004 = vld [vmem:[%s954 + $0x60] sm:$0xf]
                  %1005 = vst [vmem:[%s955 + $0x60] sm:$0xf] %v1004
                  %v1006 = vld [vmem:[%s954 + $0x64] sm:$0xf]
                  %1007 = vst [vmem:[%s955 + $0x64] sm:$0xf] %v1006
                  %v1008 = vld [vmem:[%s954 + $0x68] sm:$0xf]
                  %1009 = vst [vmem:[%s955 + $0x68] sm:$0xf] %v1008
                  %v1010 = vld [vmem:[%s954 + $0x6c] sm:$0xf]
                  %1011 = vst [vmem:[%s955 + $0x6c] sm:$0xf] %v1010
                  %v1012 = vld [vmem:[%s954 + $0x70] sm:$0xf]
                  %1013 = vst [vmem:[%s955 + $0x70] sm:$0xf] %v1012
                  %v1014 = vld [vmem:[%s954 + $0x74] sm:$0xf]
                  %1015 = vst [vmem:[%s955 + $0x74] sm:$0xf] %v1014
                  %v1016 = vld [vmem:[%s954 + $0x78] sm:$0xf]
                  %1017 = vst [vmem:[%s955 + $0x78] sm:$0xf] %v1016
                  %v1018 = vld [vmem:[%s954 + $0x7c] sm:$0xf]
                  %1019 = vst [vmem:[%s955 + $0x7c] sm:$0xf] %v1018
                  %v1020 = vld [vmem:[%s954 + $0x80] sm:$0xf]
                  %1021 = vst [vmem:[%s955 + $0x80] sm:$0xf] %v1020
                  %v1022 = vld [vmem:[%s954 + $0x84] sm:$0xf]
                  %1023 = vst [vmem:[%s955 + $0x84] sm:$0xf] %v1022
                  %v1024 = vld [vmem:[%s954 + $0x88] sm:$0xf]
                  %1025 = vst [vmem:[%s955 + $0x88] sm:$0xf] %v1024
                  %v1026 = vld [vmem:[%s954 + $0x8c] sm:$0xf]
                  %1027 = vst [vmem:[%s955 + $0x8c] sm:$0xf] %v1026
                  %v1028 = vld [vmem:[%s954 + $0x90] sm:$0xf]
                  %1029 = vst [vmem:[%s955 + $0x90] sm:$0xf] %v1028
                  %v1030 = vld [vmem:[%s954 + $0x94] sm:$0xf]
                  %1031 = vst [vmem:[%s955 + $0x94] sm:$0xf] %v1030
                  %v1032 = vld [vmem:[%s954 + $0x98] sm:$0xf]
                  %1033 = vst [vmem:[%s955 + $0x98] sm:$0xf] %v1032
                  %v1034 = vld [vmem:[%s954 + $0x9c] sm:$0xf]
                  %1035 = vst [vmem:[%s955 + $0x9c] sm:$0xf] %v1034
                  %v1036 = vld [vmem:[%s954 + $0xa0] sm:$0xf]
                  %1037 = vst [vmem:[%s955 + $0xa0] sm:$0xf] %v1036
                  %v1038 = vld [vmem:[%s954 + $0xa4] sm:$0xf]
                  %1039 = vst [vmem:[%s955 + $0xa4] sm:$0xf] %v1038
                  %v1040 = vld [vmem:[%s954 + $0xa8] sm:$0xf]
                  %1041 = vst [vmem:[%s955 + $0xa8] sm:$0xf] %v1040
                  %v1042 = vld [vmem:[%s954 + $0xac] sm:$0xf]
                  %1043 = vst [vmem:[%s955 + $0xac] sm:$0xf] %v1042
                  %v1044 = vld [vmem:[%s954 + $0xb0] sm:$0xf]
                  %1045 = vst [vmem:[%s955 + $0xb0] sm:$0xf] %v1044
                  %v1046 = vld [vmem:[%s954 + $0xb4] sm:$0xf]
                  %1047 = vst [vmem:[%s955 + $0xb4] sm:$0xf] %v1046
                  %v1048 = vld [vmem:[%s954 + $0xb8] sm:$0xf]
                  %1049 = vst [vmem:[%s955 + $0xb8] sm:$0xf] %v1048
                  %v1050 = vld [vmem:[%s954 + $0xbc] sm:$0xf]
                  %1051 = vst [vmem:[%s955 + $0xbc] sm:$0xf] %v1050
                  %v1052 = vld [vmem:[%s954 + $0xc0] sm:$0xf]
                  %1053 = vst [vmem:[%s955 + $0xc0] sm:$0xf] %v1052
                  %v1054 = vld [vmem:[%s954 + $0xc4] sm:$0xf]
                  %1055 = vst [vmem:[%s955 + $0xc4] sm:$0xf] %v1054
                  %v1056 = vld [vmem:[%s954 + $0xc8] sm:$0xf]
                  %1057 = vst [vmem:[%s955 + $0xc8] sm:$0xf] %v1056
                  %v1058 = vld [vmem:[%s954 + $0xcc] sm:$0xf]
                  %1059 = vst [vmem:[%s955 + $0xcc] sm:$0xf] %v1058
                  %v1060 = vld [vmem:[%s954 + $0xd0] sm:$0xf]
                  %1061 = vst [vmem:[%s955 + $0xd0] sm:$0xf] %v1060
                  %v1062 = vld [vmem:[%s954 + $0xd4] sm:$0xf]
                  %1063 = vst [vmem:[%s955 + $0xd4] sm:$0xf] %v1062
                  %v1064 = vld [vmem:[%s954 + $0xd8] sm:$0xf]
                  %1065 = vst [vmem:[%s955 + $0xd8] sm:$0xf] %v1064
                  %v1066 = vld [vmem:[%s954 + $0xdc] sm:$0xf]
                  %1067 = vst [vmem:[%s955 + $0xdc] sm:$0xf] %v1066
                  %v1068 = vld [vmem:[%s954 + $0xe0] sm:$0xf]
                  %1069 = vst [vmem:[%s955 + $0xe0] sm:$0xf] %v1068
                  %v1070 = vld [vmem:[%s954 + $0xe4] sm:$0xf]
                  %1071 = vst [vmem:[%s955 + $0xe4] sm:$0xf] %v1070
                  %v1072 = vld [vmem:[%s954 + $0xe8] sm:$0xf]
                  %1073 = vst [vmem:[%s955 + $0xe8] sm:$0xf] %v1072
                  %v1074 = vld [vmem:[%s954 + $0xec] sm:$0xf]
                  %1075 = vst [vmem:[%s955 + $0xec] sm:$0xf] %v1074
                  %v1076 = vld [vmem:[%s954 + $0xf0] sm:$0xf]
                  %1077 = vst [vmem:[%s955 + $0xf0] sm:$0xf] %v1076
                  %v1078 = vld [vmem:[%s954 + $0xf4] sm:$0xf]
                  %1079 = vst [vmem:[%s955 + $0xf4] sm:$0xf] %v1078
                  %v1080 = vld [vmem:[%s954 + $0xf8] sm:$0xf]
                  %1081 = vst [vmem:[%s955 + $0xf8] sm:$0xf] %v1080
                  %v1082 = vld [vmem:[%s954 + $0xfc] sm:$0xf]
                  %1083 = vst [vmem:[%s955 + $0xfc] sm:$0xf] %v1082
                  %v1084 = vld [vmem:[%s954 + $0x100] sm:$0xf]
                  %1085 = vst [vmem:[%s955 + $0x100] sm:$0xf] %v1084
                  %v1086 = vld [vmem:[%s954 + $0x104] sm:$0xf]
                  %1087 = vst [vmem:[%s955 + $0x104] sm:$0xf] %v1086
                  %v1088 = vld [vmem:[%s954 + $0x108] sm:$0xf]
                  %1089 = vst [vmem:[%s955 + $0x108] sm:$0xf] %v1088
                  %v1090 = vld [vmem:[%s954 + $0x10c] sm:$0xf]
                  %1091 = vst [vmem:[%s955 + $0x10c] sm:$0xf] %v1090
                  %v1092 = vld [vmem:[%s954 + $0x110] sm:$0xf]
                  %1093 = vst [vmem:[%s955 + $0x110] sm:$0xf] %v1092
                  %v1094 = vld [vmem:[%s954 + $0x114] sm:$0xf]
                  %1095 = vst [vmem:[%s955 + $0x114] sm:$0xf] %v1094
                  %v1096 = vld [vmem:[%s954 + $0x118] sm:$0xf]
                  %1097 = vst [vmem:[%s955 + $0x118] sm:$0xf] %v1096
                  %v1098 = vld [vmem:[%s954 + $0x11c] sm:$0xf]
                  %1099 = vst [vmem:[%s955 + $0x11c] sm:$0xf] %v1098
                  %v1100 = vld [vmem:[%s954 + $0x120] sm:$0xf]
                  %1101 = vst [vmem:[%s955 + $0x120] sm:$0xf] %v1100
                  %v1102 = vld [vmem:[%s954 + $0x124] sm:$0xf]
                  %1103 = vst [vmem:[%s955 + $0x124] sm:$0xf] %v1102
                  %v1104 = vld [vmem:[%s954 + $0x128] sm:$0xf]
                  %1105 = vst [vmem:[%s955 + $0x128] sm:$0xf] %v1104
                  %v1106 = vld [vmem:[%s954 + $0x12c] sm:$0xf]
                  %1107 = vst [vmem:[%s955 + $0x12c] sm:$0xf] %v1106
                  %v1108 = vld [vmem:[%s954 + $0x130] sm:$0xf]
                  %1109 = vst [vmem:[%s955 + $0x130] sm:$0xf] %v1108
                  %v1110 = vld [vmem:[%s954 + $0x134] sm:$0xf]
                  %1111 = vst [vmem:[%s955 + $0x134] sm:$0xf] %v1110
                  %v1112 = vld [vmem:[%s954 + $0x138] sm:$0xf]
                  %1113 = vst [vmem:[%s955 + $0x138] sm:$0xf] %v1112
                  %v1114 = vld [vmem:[%s954 + $0x13c] sm:$0xf]
                  %1115 = vst [vmem:[%s955 + $0x13c] sm:$0xf] %v1114
                  %v1116 = vld [vmem:[%s954 + $0x140] sm:$0xf]
                  %1117 = vst [vmem:[%s955 + $0x140] sm:$0xf] %v1116
                  %v1118 = vld [vmem:[%s954 + $0x144] sm:$0xf]
                  %1119 = vst [vmem:[%s955 + $0x144] sm:$0xf] %v1118
                  %v1120 = vld [vmem:[%s954 + $0x148] sm:$0xf]
                  %1121 = vst [vmem:[%s955 + $0x148] sm:$0xf] %v1120
                  %v1122 = vld [vmem:[%s954 + $0x14c] sm:$0xf]
                  %1123 = vst [vmem:[%s955 + $0x14c] sm:$0xf] %v1122
                  %v1124 = vld [vmem:[%s954 + $0x150] sm:$0xf]
                  %1125 = vst [vmem:[%s955 + $0x150] sm:$0xf] %v1124
                  %v1126 = vld [vmem:[%s954 + $0x154] sm:$0xf]
                  %1127 = vst [vmem:[%s955 + $0x154] sm:$0xf] %v1126
                  %v1128 = vld [vmem:[%s954 + $0x158] sm:$0xf]
                  %1129 = vst [vmem:[%s955 + $0x158] sm:$0xf] %v1128
                  %v1130 = vld [vmem:[%s954 + $0x15c] sm:$0xf]
                  %1131 = vst [vmem:[%s955 + $0x15c] sm:$0xf] %v1130
                  %v1132 = vld [vmem:[%s954 + $0x160] sm:$0xf]
                  %1133 = vst [vmem:[%s955 + $0x160] sm:$0xf] %v1132
                  %v1134 = vld [vmem:[%s954 + $0x164] sm:$0xf]
                  %1135 = vst [vmem:[%s955 + $0x164] sm:$0xf] %v1134
                  %v1136 = vld [vmem:[%s954 + $0x168] sm:$0xf]
                  %1137 = vst [vmem:[%s955 + $0x168] sm:$0xf] %v1136
                  %v1138 = vld [vmem:[%s954 + $0x16c] sm:$0xf]
                  %1139 = vst [vmem:[%s955 + $0x16c] sm:$0xf] %v1138
                  %v1140 = vld [vmem:[%s954 + $0x170] sm:$0xf]
                  %1141 = vst [vmem:[%s955 + $0x170] sm:$0xf] %v1140
                  %v1142 = vld [vmem:[%s954 + $0x174] sm:$0xf]
                  %1143 = vst [vmem:[%s955 + $0x174] sm:$0xf] %v1142
                  %v1144 = vld [vmem:[%s954 + $0x178] sm:$0xf]
                  %1145 = vst [vmem:[%s955 + $0x178] sm:$0xf] %v1144
                  %v1146 = vld [vmem:[%s954 + $0x17c] sm:$0xf]
                  %1147 = vst [vmem:[%s955 + $0x17c] sm:$0xf] %v1146
                  %v1148 = vld [vmem:[%s954 + $0x180] sm:$0xf]
                  %1149 = vst [vmem:[%s955 + $0x180] sm:$0xf] %v1148
                  %v1150 = vld [vmem:[%s954 + $0x184] sm:$0xf]
                  %1151 = vst [vmem:[%s955 + $0x184] sm:$0xf] %v1150
                  %v1152 = vld [vmem:[%s954 + $0x310] sm:$0xf]
                  %1153 = vst [vmem:[%s955 + $0x188] sm:$0xf] %v1152
                  %v1154 = vld [vmem:[%s954 + $0x314] sm:$0xf]
                  %1155 = vst [vmem:[%s955 + $0x18c] sm:$0xf] %v1154
                  %v1156 = vld [vmem:[%s954 + $0x318] sm:$0xf]
                  %1157 = vst [vmem:[%s955 + $0x190] sm:$0xf] %v1156
                  %v1158 = vld [vmem:[%s954 + $0x31c] sm:$0xf]
                  %1159 = vst [vmem:[%s955 + $0x194] sm:$0xf] %v1158
                  %v1160 = vld [vmem:[%s954 + $0x320] sm:$0xf]
                  %1161 = vst [vmem:[%s955 + $0x198] sm:$0xf] %v1160
                  %v1162 = vld [vmem:[%s954 + $0x324] sm:$0xf]
                  %1163 = vst [vmem:[%s955 + $0x19c] sm:$0xf] %v1162
                  %v1164 = vld [vmem:[%s954 + $0x328] sm:$0xf]
                  %1165 = vst [vmem:[%s955 + $0x1a0] sm:$0xf] %v1164
                  %v1166 = vld [vmem:[%s954 + $0x32c] sm:$0xf]
                  %1167 = vst [vmem:[%s955 + $0x1a4] sm:$0xf] %v1166
                  %v1168 = vld [vmem:[%s954 + $0x330] sm:$0xf]
                  %1169 = vst [vmem:[%s955 + $0x1a8] sm:$0xf] %v1168
                  %v1170 = vld [vmem:[%s954 + $0x334] sm:$0xf]
                  %1171 = vst [vmem:[%s955 + $0x1ac] sm:$0xf] %v1170
                  %v1172 = vld [vmem:[%s954 + $0x338] sm:$0xf]
                  %1173 = vst [vmem:[%s955 + $0x1b0] sm:$0xf] %v1172
                  %v1174 = vld [vmem:[%s954 + $0x33c] sm:$0xf]
                  %1175 = vst [vmem:[%s955 + $0x1b4] sm:$0xf] %v1174
                  %v1176 = vld [vmem:[%s954 + $0x340] sm:$0xf]
                  %1177 = vst [vmem:[%s955 + $0x1b8] sm:$0xf] %v1176
                  %v1178 = vld [vmem:[%s954 + $0x344] sm:$0xf]
                  %1179 = vst [vmem:[%s955 + $0x1bc] sm:$0xf] %v1178
                  %v1180 = vld [vmem:[%s954 + $0x348] sm:$0xf]
                  %1181 = vst [vmem:[%s955 + $0x1c0] sm:$0xf] %v1180
                  %v1182 = vld [vmem:[%s954 + $0x34c] sm:$0xf]
                  %1183 = vst [vmem:[%s955 + $0x1c4] sm:$0xf] %v1182
                  %v1184 = vld [vmem:[%s954 + $0x350] sm:$0xf]
                  %1185 = vst [vmem:[%s955 + $0x1c8] sm:$0xf] %v1184
                  %v1186 = vld [vmem:[%s954 + $0x354] sm:$0xf]
                  %1187 = vst [vmem:[%s955 + $0x1cc] sm:$0xf] %v1186
                  %v1188 = vld [vmem:[%s954 + $0x358] sm:$0xf]
                  %1189 = vst [vmem:[%s955 + $0x1d0] sm:$0xf] %v1188
                  %v1190 = vld [vmem:[%s954 + $0x35c] sm:$0xf]
                  %1191 = vst [vmem:[%s955 + $0x1d4] sm:$0xf] %v1190
                  %v1192 = vld [vmem:[%s954 + $0x360] sm:$0xf]
                  %1193 = vst [vmem:[%s955 + $0x1d8] sm:$0xf] %v1192
                  %v1194 = vld [vmem:[%s954 + $0x364] sm:$0xf]
                  %1195 = vst [vmem:[%s955 + $0x1dc] sm:$0xf] %v1194
                  %v1196 = vld [vmem:[%s954 + $0x368] sm:$0xf]
                  %1197 = vst [vmem:[%s955 + $0x1e0] sm:$0xf] %v1196
                  %v1198 = vld [vmem:[%s954 + $0x36c] sm:$0xf]
                  %1199 = vst [vmem:[%s955 + $0x1e4] sm:$0xf] %v1198
                  %v1200 = vld [vmem:[%s954 + $0x370] sm:$0xf]
                  %1201 = vst [vmem:[%s955 + $0x1e8] sm:$0xf] %v1200
                  %v1202 = vld [vmem:[%s954 + $0x374] sm:$0xf]
                  %1203 = vst [vmem:[%s955 + $0x1ec] sm:$0xf] %v1202
                  %v1204 = vld [vmem:[%s954 + $0x378] sm:$0xf]
                  %1205 = vst [vmem:[%s955 + $0x1f0] sm:$0xf] %v1204
                  %v1206 = vld [vmem:[%s954 + $0x37c] sm:$0xf]
                  %1207 = vst [vmem:[%s955 + $0x1f4] sm:$0xf] %v1206
                  %v1208 = vld [vmem:[%s954 + $0x380] sm:$0xf]
                  %1209 = vst [vmem:[%s955 + $0x1f8] sm:$0xf] %v1208
                  %v1210 = vld [vmem:[%s954 + $0x384] sm:$0xf]
                  %1211 = vst [vmem:[%s955 + $0x1fc] sm:$0xf] %v1210
                  %v1212 = vld [vmem:[%s954 + $0x388] sm:$0xf]
                  %1213 = vst [vmem:[%s955 + $0x200] sm:$0xf] %v1212
                  %v1214 = vld [vmem:[%s954 + $0x38c] sm:$0xf]
                  %1215 = vst [vmem:[%s955 + $0x204] sm:$0xf] %v1214
                  %v1216 = vld [vmem:[%s954 + $0x390] sm:$0xf]
                  %1217 = vst [vmem:[%s955 + $0x208] sm:$0xf] %v1216
                  %v1218 = vld [vmem:[%s954 + $0x394] sm:$0xf]
                  %1219 = vst [vmem:[%s955 + $0x20c] sm:$0xf] %v1218
                  %v1220 = vld [vmem:[%s954 + $0x398] sm:$0xf]
                  %1221 = vst [vmem:[%s955 + $0x210] sm:$0xf] %v1220
                  %v1222 = vld [vmem:[%s954 + $0x39c] sm:$0xf]
                  %1223 = vst [vmem:[%s955 + $0x214] sm:$0xf] %v1222
                  %v1224 = vld [vmem:[%s954 + $0x3a0] sm:$0xf]
                  %1225 = vst [vmem:[%s955 + $0x218] sm:$0xf] %v1224
                  %v1226 = vld [vmem:[%s954 + $0x3a4] sm:$0xf]
                  %1227 = vst [vmem:[%s955 + $0x21c] sm:$0xf] %v1226
                  %v1228 = vld [vmem:[%s954 + $0x3a8] sm:$0xf]
                  %1229 = vst [vmem:[%s955 + $0x220] sm:$0xf] %v1228
                  %v1230 = vld [vmem:[%s954 + $0x3ac] sm:$0xf]
                  %1231 = vst [vmem:[%s955 + $0x224] sm:$0xf] %v1230
                  %v1232 = vld [vmem:[%s954 + $0x3b0] sm:$0xf]
                  %1233 = vst [vmem:[%s955 + $0x228] sm:$0xf] %v1232
                  %v1234 = vld [vmem:[%s954 + $0x3b4] sm:$0xf]
                  %1235 = vst [vmem:[%s955 + $0x22c] sm:$0xf] %v1234
                  %v1236 = vld [vmem:[%s954 + $0x3b8] sm:$0xf]
                  %1237 = vst [vmem:[%s955 + $0x230] sm:$0xf] %v1236
                  %v1238 = vld [vmem:[%s954 + $0x3bc] sm:$0xf]
                  %1239 = vst [vmem:[%s955 + $0x234] sm:$0xf] %v1238
                  %v1240 = vld [vmem:[%s954 + $0x3c0] sm:$0xf]
                  %1241 = vst [vmem:[%s955 + $0x238] sm:$0xf] %v1240
                  %v1242 = vld [vmem:[%s954 + $0x3c4] sm:$0xf]
                  %1243 = vst [vmem:[%s955 + $0x23c] sm:$0xf] %v1242
                  %v1244 = vld [vmem:[%s954 + $0x3c8] sm:$0xf]
                  %1245 = vst [vmem:[%s955 + $0x240] sm:$0xf] %v1244
                  %v1246 = vld [vmem:[%s954 + $0x3cc] sm:$0xf]
                  %1247 = vst [vmem:[%s955 + $0x244] sm:$0xf] %v1246
                  %v1248 = vld [vmem:[%s954 + $0x3d0] sm:$0xf]
                  %1249 = vst [vmem:[%s955 + $0x248] sm:$0xf] %v1248
                  %v1250 = vld [vmem:[%s954 + $0x3d4] sm:$0xf]
                  %1251 = vst [vmem:[%s955 + $0x24c] sm:$0xf] %v1250
                  %v1252 = vld [vmem:[%s954 + $0x3d8] sm:$0xf]
                  %1253 = vst [vmem:[%s955 + $0x250] sm:$0xf] %v1252
                  %v1254 = vld [vmem:[%s954 + $0x3dc] sm:$0xf]
                  %1255 = vst [vmem:[%s955 + $0x254] sm:$0xf] %v1254
                  %v1256 = vld [vmem:[%s954 + $0x3e0] sm:$0xf]
                  %1257 = vst [vmem:[%s955 + $0x258] sm:$0xf] %v1256
                  %v1258 = vld [vmem:[%s954 + $0x3e4] sm:$0xf]
                  %1259 = vst [vmem:[%s955 + $0x25c] sm:$0xf] %v1258
                  %v1260 = vld [vmem:[%s954 + $0x3e8] sm:$0xf]
                  %1261 = vst [vmem:[%s955 + $0x260] sm:$0xf] %v1260
                  %v1262 = vld [vmem:[%s954 + $0x3ec] sm:$0xf]
                  %1263 = vst [vmem:[%s955 + $0x264] sm:$0xf] %v1262
                  %v1264 = vld [vmem:[%s954 + $0x3f0] sm:$0xf]
                  %1265 = vst [vmem:[%s955 + $0x268] sm:$0xf] %v1264
                  %v1266 = vld [vmem:[%s954 + $0x3f4] sm:$0xf]
                  %1267 = vst [vmem:[%s955 + $0x26c] sm:$0xf] %v1266
                  %v1268 = vld [vmem:[%s954 + $0x3f8] sm:$0xf]
                  %1269 = vst [vmem:[%s955 + $0x270] sm:$0xf] %v1268
                  %v1270 = vld [vmem:[%s954 + $0x3fc] sm:$0xf]
                  %1271 = vst [vmem:[%s955 + $0x274] sm:$0xf] %v1270
                  %v1272 = vld [vmem:[%s954 + $0x400] sm:$0xf]
                  %1273 = vst [vmem:[%s955 + $0x278] sm:$0xf] %v1272
                  %v1274 = vld [vmem:[%s954 + $0x404] sm:$0xf]
                  %1275 = vst [vmem:[%s955 + $0x27c] sm:$0xf] %v1274
                  %v1276 = vld [vmem:[%s954 + $0x408] sm:$0xf]
                  %1277 = vst [vmem:[%s955 + $0x280] sm:$0xf] %v1276
                  %v1278 = vld [vmem:[%s954 + $0x40c] sm:$0xf]
                  %1279 = vst [vmem:[%s955 + $0x284] sm:$0xf] %v1278
                  %v1280 = vld [vmem:[%s954 + $0x410] sm:$0xf]
                  %1281 = vst [vmem:[%s955 + $0x288] sm:$0xf] %v1280
                  %v1282 = vld [vmem:[%s954 + $0x414] sm:$0xf]
                  %1283 = vst [vmem:[%s955 + $0x28c] sm:$0xf] %v1282
                  %v1284 = vld [vmem:[%s954 + $0x418] sm:$0xf]
                  %1285 = vst [vmem:[%s955 + $0x290] sm:$0xf] %v1284
                  %v1286 = vld [vmem:[%s954 + $0x41c] sm:$0xf]
                  %1287 = vst [vmem:[%s955 + $0x294] sm:$0xf] %v1286
                  %v1288 = vld [vmem:[%s954 + $0x420] sm:$0xf]
                  %1289 = vst [vmem:[%s955 + $0x298] sm:$0xf] %v1288
                  %v1290 = vld [vmem:[%s954 + $0x424] sm:$0xf]
                  %1291 = vst [vmem:[%s955 + $0x29c] sm:$0xf] %v1290
                  %v1292 = vld [vmem:[%s954 + $0x428] sm:$0xf]
                  %1293 = vst [vmem:[%s955 + $0x2a0] sm:$0xf] %v1292
                  %v1294 = vld [vmem:[%s954 + $0x42c] sm:$0xf]
                  %1295 = vst [vmem:[%s955 + $0x2a4] sm:$0xf] %v1294
                  %v1296 = vld [vmem:[%s954 + $0x430] sm:$0xf]
                  %1297 = vst [vmem:[%s955 + $0x2a8] sm:$0xf] %v1296
                  %v1298 = vld [vmem:[%s954 + $0x434] sm:$0xf]
                  %1299 = vst [vmem:[%s955 + $0x2ac] sm:$0xf] %v1298
                  %v1300 = vld [vmem:[%s954 + $0x438] sm:$0xf]
                  %1301 = vst [vmem:[%s955 + $0x2b0] sm:$0xf] %v1300
                  %v1302 = vld [vmem:[%s954 + $0x43c] sm:$0xf]
                  %1303 = vst [vmem:[%s955 + $0x2b4] sm:$0xf] %v1302
                  %v1304 = vld [vmem:[%s954 + $0x440] sm:$0xf]
                  %1305 = vst [vmem:[%s955 + $0x2b8] sm:$0xf] %v1304
                  %v1306 = vld [vmem:[%s954 + $0x444] sm:$0xf]
                  %1307 = vst [vmem:[%s955 + $0x2bc] sm:$0xf] %v1306
                  %v1308 = vld [vmem:[%s954 + $0x448] sm:$0xf]
                  %1309 = vst [vmem:[%s955 + $0x2c0] sm:$0xf] %v1308
                  %v1310 = vld [vmem:[%s954 + $0x44c] sm:$0xf]
                  %1311 = vst [vmem:[%s955 + $0x2c4] sm:$0xf] %v1310
                  %v1312 = vld [vmem:[%s954 + $0x450] sm:$0xf]
                  %1313 = vst [vmem:[%s955 + $0x2c8] sm:$0xf] %v1312
                  %v1314 = vld [vmem:[%s954 + $0x454] sm:$0xf]
                  %1315 = vst [vmem:[%s955 + $0x2cc] sm:$0xf] %v1314
                  %v1316 = vld [vmem:[%s954 + $0x458] sm:$0xf]
                  %1317 = vst [vmem:[%s955 + $0x2d0] sm:$0xf] %v1316
                  %v1318 = vld [vmem:[%s954 + $0x45c] sm:$0xf]
                  %1319 = vst [vmem:[%s955 + $0x2d4] sm:$0xf] %v1318
                  %v1320 = vld [vmem:[%s954 + $0x460] sm:$0xf]
                  %1321 = vst [vmem:[%s955 + $0x2d8] sm:$0xf] %v1320
                  %v1322 = vld [vmem:[%s954 + $0x464] sm:$0xf]
                  %1323 = vst [vmem:[%s955 + $0x2dc] sm:$0xf] %v1322
                  %v1324 = vld [vmem:[%s954 + $0x468] sm:$0xf]
                  %1325 = vst [vmem:[%s955 + $0x2e0] sm:$0xf] %v1324
                  %v1326 = vld [vmem:[%s954 + $0x46c] sm:$0xf]
                  %1327 = vst [vmem:[%s955 + $0x2e4] sm:$0xf] %v1326
                  %v1328 = vld [vmem:[%s954 + $0x470] sm:$0xf]
                  %1329 = vst [vmem:[%s955 + $0x2e8] sm:$0xf] %v1328
                  %v1330 = vld [vmem:[%s954 + $0x474] sm:$0xf]
                  %1331 = vst [vmem:[%s955 + $0x2ec] sm:$0xf] %v1330
                  %v1332 = vld [vmem:[%s954 + $0x478] sm:$0xf]
                  %1333 = vst [vmem:[%s955 + $0x2f0] sm:$0xf] %v1332
                  %v1334 = vld [vmem:[%s954 + $0x47c] sm:$0xf]
                  %1335 = vst [vmem:[%s955 + $0x2f4] sm:$0xf] %v1334
                  %v1336 = vld [vmem:[%s954 + $0x480] sm:$0xf]
                  %1337 = vst [vmem:[%s955 + $0x2f8] sm:$0xf] %v1336
                  %v1338 = vld [vmem:[%s954 + $0x484] sm:$0xf]
                  %1339 = vst [vmem:[%s955 + $0x2fc] sm:$0xf] %v1338
                  %v1340 = vld [vmem:[%s954 + $0x488] sm:$0xf]
                  %1341 = vst [vmem:[%s955 + $0x300] sm:$0xf] %v1340
                  %v1342 = vld [vmem:[%s954 + $0x48c] sm:$0xf]
                  %1343 = vst [vmem:[%s955 + $0x304] sm:$0xf] %v1342
                  %v1344 = vld [vmem:[%s954 + $0x490] sm:$0xf]
                  %1345 = vst [vmem:[%s955 + $0x308] sm:$0xf] %v1344
                  %v1346 = vld [vmem:[%s954 + $0x494] sm:$0xf]
                  %1347 = vst [vmem:[%s955 + $0x30c] sm:$0xf] %v1346
                  %v1348 = vld [vmem:[%s954 + $0x620] sm:$0xf]
                  %1349 = vst [vmem:[%s955 + $0x310] sm:$0xf] %v1348
                  %v1350 = vld [vmem:[%s954 + $0x624] sm:$0xf]
                  %1351 = vst [vmem:[%s955 + $0x314] sm:$0xf] %v1350
                  %v1352 = vld [vmem:[%s954 + $0x628] sm:$0xf]
                  %1353 = vst [vmem:[%s955 + $0x318] sm:$0xf] %v1352
                  %v1354 = vld [vmem:[%s954 + $0x62c] sm:$0xf]
                  %1355 = vst [vmem:[%s955 + $0x31c] sm:$0xf] %v1354
                  %v1356 = vld [vmem:[%s954 + $0x630] sm:$0xf]
                  %1357 = vst [vmem:[%s955 + $0x320] sm:$0xf] %v1356
                  %v1358 = vld [vmem:[%s954 + $0x634] sm:$0xf]
                  %1359 = vst [vmem:[%s955 + $0x324] sm:$0xf] %v1358
                  %v1360 = vld [vmem:[%s954 + $0x638] sm:$0xf]
                  %1361 = vst [vmem:[%s955 + $0x328] sm:$0xf] %v1360
                  %v1362 = vld [vmem:[%s954 + $0x63c] sm:$0xf]
                  %1363 = vst [vmem:[%s955 + $0x32c] sm:$0xf] %v1362
                  %v1364 = vld [vmem:[%s954 + $0x640] sm:$0xf]
                  %1365 = vst [vmem:[%s955 + $0x330] sm:$0xf] %v1364
                  %v1366 = vld [vmem:[%s954 + $0x644] sm:$0xf]
                  %1367 = vst [vmem:[%s955 + $0x334] sm:$0xf] %v1366
                  %v1368 = vld [vmem:[%s954 + $0x648] sm:$0xf]
                  %1369 = vst [vmem:[%s955 + $0x338] sm:$0xf] %v1368
                  %v1370 = vld [vmem:[%s954 + $0x64c] sm:$0xf]
                  %1371 = vst [vmem:[%s955 + $0x33c] sm:$0xf] %v1370
                  %v1372 = vld [vmem:[%s954 + $0x650] sm:$0xf]
                  %1373 = vst [vmem:[%s955 + $0x340] sm:$0xf] %v1372
                  %v1374 = vld [vmem:[%s954 + $0x654] sm:$0xf]
                  %1375 = vst [vmem:[%s955 + $0x344] sm:$0xf] %v1374
                  %v1376 = vld [vmem:[%s954 + $0x658] sm:$0xf]
                  %1377 = vst [vmem:[%s955 + $0x348] sm:$0xf] %v1376
                  %v1378 = vld [vmem:[%s954 + $0x65c] sm:$0xf]
                  %1379 = vst [vmem:[%s955 + $0x34c] sm:$0xf] %v1378
                  %v1380 = vld [vmem:[%s954 + $0x660] sm:$0xf]
                  %1381 = vst [vmem:[%s955 + $0x350] sm:$0xf] %v1380
                  %v1382 = vld [vmem:[%s954 + $0x664] sm:$0xf]
                  %1383 = vst [vmem:[%s955 + $0x354] sm:$0xf] %v1382
                  %v1384 = vld [vmem:[%s954 + $0x668] sm:$0xf]
                  %1385 = vst [vmem:[%s955 + $0x358] sm:$0xf] %v1384
                  %v1386 = vld [vmem:[%s954 + $0x66c] sm:$0xf]
                  %1387 = vst [vmem:[%s955 + $0x35c] sm:$0xf] %v1386
                  %v1388 = vld [vmem:[%s954 + $0x670] sm:$0xf]
                  %1389 = vst [vmem:[%s955 + $0x360] sm:$0xf] %v1388
                  %v1390 = vld [vmem:[%s954 + $0x674] sm:$0xf]
                  %1391 = vst [vmem:[%s955 + $0x364] sm:$0xf] %v1390
                  %v1392 = vld [vmem:[%s954 + $0x678] sm:$0xf]
                  %1393 = vst [vmem:[%s955 + $0x368] sm:$0xf] %v1392
                  %v1394 = vld [vmem:[%s954 + $0x67c] sm:$0xf]
                  %1395 = vst [vmem:[%s955 + $0x36c] sm:$0xf] %v1394
                  %v1396 = vld [vmem:[%s954 + $0x680] sm:$0xf]
                  %1397 = vst [vmem:[%s955 + $0x370] sm:$0xf] %v1396
                  %v1398 = vld [vmem:[%s954 + $0x684] sm:$0xf]
                  %1399 = vst [vmem:[%s955 + $0x374] sm:$0xf] %v1398
                  %v1400 = vld [vmem:[%s954 + $0x688] sm:$0xf]
                  %1401 = vst [vmem:[%s955 + $0x378] sm:$0xf] %v1400
                  %v1402 = vld [vmem:[%s954 + $0x68c] sm:$0xf]
                  %1403 = vst [vmem:[%s955 + $0x37c] sm:$0xf] %v1402
                  %v1404 = vld [vmem:[%s954 + $0x690] sm:$0xf]
                  %1405 = vst [vmem:[%s955 + $0x380] sm:$0xf] %v1404
                  %v1406 = vld [vmem:[%s954 + $0x694] sm:$0xf]
                  %1407 = vst [vmem:[%s955 + $0x384] sm:$0xf] %v1406
                  %v1408 = vld [vmem:[%s954 + $0x698] sm:$0xf]
                  %1409 = vst [vmem:[%s955 + $0x388] sm:$0xf] %v1408
                  %v1410 = vld [vmem:[%s954 + $0x69c] sm:$0xf]
                  %1411 = vst [vmem:[%s955 + $0x38c] sm:$0xf] %v1410
                  %v1412 = vld [vmem:[%s954 + $0x6a0] sm:$0xf]
                  %1413 = vst [vmem:[%s955 + $0x390] sm:$0xf] %v1412
                  %v1414 = vld [vmem:[%s954 + $0x6a4] sm:$0xf]
                  %1415 = vst [vmem:[%s955 + $0x394] sm:$0xf] %v1414
                  %v1416 = vld [vmem:[%s954 + $0x6a8] sm:$0xf]
                  %1417 = vst [vmem:[%s955 + $0x398] sm:$0xf] %v1416
                  %v1418 = vld [vmem:[%s954 + $0x6ac] sm:$0xf]
                  %1419 = vst [vmem:[%s955 + $0x39c] sm:$0xf] %v1418
                  %v1420 = vld [vmem:[%s954 + $0x6b0] sm:$0xf]
                  %1421 = vst [vmem:[%s955 + $0x3a0] sm:$0xf] %v1420
                  %v1422 = vld [vmem:[%s954 + $0x6b4] sm:$0xf]
                  %1423 = vst [vmem:[%s955 + $0x3a4] sm:$0xf] %v1422
                  %v1424 = vld [vmem:[%s954 + $0x6b8] sm:$0xf]
                  %1425 = vst [vmem:[%s955 + $0x3a8] sm:$0xf] %v1424
                  %v1426 = vld [vmem:[%s954 + $0x6bc] sm:$0xf]
                  %1427 = vst [vmem:[%s955 + $0x3ac] sm:$0xf] %v1426
                  %v1428 = vld [vmem:[%s954 + $0x6c0] sm:$0xf]
                  %1429 = vst [vmem:[%s955 + $0x3b0] sm:$0xf] %v1428
                  %v1430 = vld [vmem:[%s954 + $0x6c4] sm:$0xf]
                  %1431 = vst [vmem:[%s955 + $0x3b4] sm:$0xf] %v1430
                  %v1432 = vld [vmem:[%s954 + $0x6c8] sm:$0xf]
                  %1433 = vst [vmem:[%s955 + $0x3b8] sm:$0xf] %v1432
                  %v1434 = vld [vmem:[%s954 + $0x6cc] sm:$0xf]
                  %1435 = vst [vmem:[%s955 + $0x3bc] sm:$0xf] %v1434
                  %v1436 = vld [vmem:[%s954 + $0x6d0] sm:$0xf]
                  %1437 = vst [vmem:[%s955 + $0x3c0] sm:$0xf] %v1436
                  %v1438 = vld [vmem:[%s954 + $0x6d4] sm:$0xf]
                  %1439 = vst [vmem:[%s955 + $0x3c4] sm:$0xf] %v1438
                  %v1440 = vld [vmem:[%s954 + $0x6d8] sm:$0xf]
                  %1441 = vst [vmem:[%s955 + $0x3c8] sm:$0xf] %v1440
                  %v1442 = vld [vmem:[%s954 + $0x6dc] sm:$0xf]
                  %1443 = vst [vmem:[%s955 + $0x3cc] sm:$0xf] %v1442
                  %v1444 = vld [vmem:[%s954 + $0x6e0] sm:$0xf]
                  %1445 = vst [vmem:[%s955 + $0x3d0] sm:$0xf] %v1444
                  %v1446 = vld [vmem:[%s954 + $0x6e4] sm:$0xf]
                  %1447 = vst [vmem:[%s955 + $0x3d4] sm:$0xf] %v1446
                  %v1448 = vld [vmem:[%s954 + $0x6e8] sm:$0xf]
                  %1449 = vst [vmem:[%s955 + $0x3d8] sm:$0xf] %v1448
                  %v1450 = vld [vmem:[%s954 + $0x6ec] sm:$0xf]
                  %1451 = vst [vmem:[%s955 + $0x3dc] sm:$0xf] %v1450
                  %v1452 = vld [vmem:[%s954 + $0x6f0] sm:$0xf]
                  %1453 = vst [vmem:[%s955 + $0x3e0] sm:$0xf] %v1452
                  %v1454 = vld [vmem:[%s954 + $0x6f4] sm:$0xf]
                  %1455 = vst [vmem:[%s955 + $0x3e4] sm:$0xf] %v1454
                  %v1456 = vld [vmem:[%s954 + $0x6f8] sm:$0xf]
                  %1457 = vst [vmem:[%s955 + $0x3e8] sm:$0xf] %v1456
                  %v1458 = vld [vmem:[%s954 + $0x6fc] sm:$0xf]
                  %1459 = vst [vmem:[%s955 + $0x3ec] sm:$0xf] %v1458
                  %v1460 = vld [vmem:[%s954 + $0x700] sm:$0xf]
                  %1461 = vst [vmem:[%s955 + $0x3f0] sm:$0xf] %v1460
                  %v1462 = vld [vmem:[%s954 + $0x704] sm:$0xf]
                  %1463 = vst [vmem:[%s955 + $0x3f4] sm:$0xf] %v1462
                  %v1464 = vld [vmem:[%s954 + $0x708] sm:$0xf]
                  %1465 = vst [vmem:[%s955 + $0x3f8] sm:$0xf] %v1464
                  %v1466 = vld [vmem:[%s954 + $0x70c] sm:$0xf]
                  %1467 = vst [vmem:[%s955 + $0x3fc] sm:$0xf] %v1466
                  %v1468 = vld [vmem:[%s954 + $0x710] sm:$0xf]
                  %1469 = vst [vmem:[%s955 + $0x400] sm:$0xf] %v1468
                  %v1470 = vld [vmem:[%s954 + $0x714] sm:$0xf]
                  %1471 = vst [vmem:[%s955 + $0x404] sm:$0xf] %v1470
                  %v1472 = vld [vmem:[%s954 + $0x718] sm:$0xf]
                  %1473 = vst [vmem:[%s955 + $0x408] sm:$0xf] %v1472
                  %v1474 = vld [vmem:[%s954 + $0x71c] sm:$0xf]
                  %1475 = vst [vmem:[%s955 + $0x40c] sm:$0xf] %v1474
                  %v1476 = vld [vmem:[%s954 + $0x720] sm:$0xf]
                  %1477 = vst [vmem:[%s955 + $0x410] sm:$0xf] %v1476
                  %v1478 = vld [vmem:[%s954 + $0x724] sm:$0xf]
                  %1479 = vst [vmem:[%s955 + $0x414] sm:$0xf] %v1478
                  %v1480 = vld [vmem:[%s954 + $0x728] sm:$0xf]
                  %1481 = vst [vmem:[%s955 + $0x418] sm:$0xf] %v1480
                  %v1482 = vld [vmem:[%s954 + $0x72c] sm:$0xf]
                  %1483 = vst [vmem:[%s955 + $0x41c] sm:$0xf] %v1482
                  %v1484 = vld [vmem:[%s954 + $0x730] sm:$0xf]
                  %1485 = vst [vmem:[%s955 + $0x420] sm:$0xf] %v1484
                  %v1486 = vld [vmem:[%s954 + $0x734] sm:$0xf]
                  %1487 = vst [vmem:[%s955 + $0x424] sm:$0xf] %v1486
                  %v1488 = vld [vmem:[%s954 + $0x738] sm:$0xf]
                  %1489 = vst [vmem:[%s955 + $0x428] sm:$0xf] %v1488
                  %v1490 = vld [vmem:[%s954 + $0x73c] sm:$0xf]
                  %1491 = vst [vmem:[%s955 + $0x42c] sm:$0xf] %v1490
                  %v1492 = vld [vmem:[%s954 + $0x740] sm:$0xf]
                  %1493 = vst [vmem:[%s955 + $0x430] sm:$0xf] %v1492
                  %v1494 = vld [vmem:[%s954 + $0x744] sm:$0xf]
                  %1495 = vst [vmem:[%s955 + $0x434] sm:$0xf] %v1494
                  %v1496 = vld [vmem:[%s954 + $0x748] sm:$0xf]
                  %1497 = vst [vmem:[%s955 + $0x438] sm:$0xf] %v1496
                  %v1498 = vld [vmem:[%s954 + $0x74c] sm:$0xf]
                  %1499 = vst [vmem:[%s955 + $0x43c] sm:$0xf] %v1498
                  %v1500 = vld [vmem:[%s954 + $0x750] sm:$0xf]
                  %1501 = vst [vmem:[%s955 + $0x440] sm:$0xf] %v1500
                  %v1502 = vld [vmem:[%s954 + $0x754] sm:$0xf]
                  %1503 = vst [vmem:[%s955 + $0x444] sm:$0xf] %v1502
                  %v1504 = vld [vmem:[%s954 + $0x758] sm:$0xf]
                  %1505 = vst [vmem:[%s955 + $0x448] sm:$0xf] %v1504
                  %v1506 = vld [vmem:[%s954 + $0x75c] sm:$0xf]
                  %1507 = vst [vmem:[%s955 + $0x44c] sm:$0xf] %v1506
                  %v1508 = vld [vmem:[%s954 + $0x760] sm:$0xf]
                  %1509 = vst [vmem:[%s955 + $0x450] sm:$0xf] %v1508
                  %v1510 = vld [vmem:[%s954 + $0x764] sm:$0xf]
                  %1511 = vst [vmem:[%s955 + $0x454] sm:$0xf] %v1510
                  %v1512 = vld [vmem:[%s954 + $0x768] sm:$0xf]
                  %1513 = vst [vmem:[%s955 + $0x458] sm:$0xf] %v1512
                  %v1514 = vld [vmem:[%s954 + $0x76c] sm:$0xf]
                  %1515 = vst [vmem:[%s955 + $0x45c] sm:$0xf] %v1514
                  %v1516 = vld [vmem:[%s954 + $0x770] sm:$0xf]
                  %1517 = vst [vmem:[%s955 + $0x460] sm:$0xf] %v1516
                  %v1518 = vld [vmem:[%s954 + $0x774] sm:$0xf]
                  %1519 = vst [vmem:[%s955 + $0x464] sm:$0xf] %v1518
                  %v1520 = vld [vmem:[%s954 + $0x778] sm:$0xf]
                  %1521 = vst [vmem:[%s955 + $0x468] sm:$0xf] %v1520
                  %v1522 = vld [vmem:[%s954 + $0x77c] sm:$0xf]
                  %1523 = vst [vmem:[%s955 + $0x46c] sm:$0xf] %v1522
                  %v1524 = vld [vmem:[%s954 + $0x780] sm:$0xf]
                  %1525 = vst [vmem:[%s955 + $0x470] sm:$0xf] %v1524
                  %v1526 = vld [vmem:[%s954 + $0x784] sm:$0xf]
                  %1527 = vst [vmem:[%s955 + $0x474] sm:$0xf] %v1526
                  %v1528 = vld [vmem:[%s954 + $0x788] sm:$0xf]
                  %1529 = vst [vmem:[%s955 + $0x478] sm:$0xf] %v1528
                  %v1530 = vld [vmem:[%s954 + $0x78c] sm:$0xf]
                  %1531 = vst [vmem:[%s955 + $0x47c] sm:$0xf] %v1530
                  %v1532 = vld [vmem:[%s954 + $0x790] sm:$0xf]
                  %1533 = vst [vmem:[%s955 + $0x480] sm:$0xf] %v1532
                  %v1534 = vld [vmem:[%s954 + $0x794] sm:$0xf]
                  %1535 = vst [vmem:[%s955 + $0x484] sm:$0xf] %v1534
                  %v1536 = vld [vmem:[%s954 + $0x798] sm:$0xf]
                  %1537 = vst [vmem:[%s955 + $0x488] sm:$0xf] %v1536
                  %v1538 = vld [vmem:[%s954 + $0x79c] sm:$0xf]
                  %1539 = vst [vmem:[%s955 + $0x48c] sm:$0xf] %v1538
                  %v1540 = vld [vmem:[%s954 + $0x7a0] sm:$0xf]
                  %1541 = vst [vmem:[%s955 + $0x490] sm:$0xf] %v1540
                  %v1542 = vld [vmem:[%s954 + $0x7a4] sm:$0xf]
                  %1543 = vst [vmem:[%s955 + $0x494] sm:$0xf] %v1542
                  %v1544 = vld [vmem:[%s954 + $0x930] sm:$0xf]
                  %1545 = vst [vmem:[%s955 + $0x498] sm:$0xf] %v1544
                  %v1546 = vld [vmem:[%s954 + $0x934] sm:$0xf]
                  %1547 = vst [vmem:[%s955 + $0x49c] sm:$0xf] %v1546
                  %v1548 = vld [vmem:[%s954 + $0x938] sm:$0xf]
                  %1549 = vst [vmem:[%s955 + $0x4a0] sm:$0xf] %v1548
                  %v1550 = vld [vmem:[%s954 + $0x93c] sm:$0xf]
                  %1551 = vst [vmem:[%s955 + $0x4a4] sm:$0xf] %v1550
                  %v1552 = vld [vmem:[%s954 + $0x940] sm:$0xf]
                  %1553 = vst [vmem:[%s955 + $0x4a8] sm:$0xf] %v1552
                  %v1554 = vld [vmem:[%s954 + $0x944] sm:$0xf]
                  %1555 = vst [vmem:[%s955 + $0x4ac] sm:$0xf] %v1554
                  %v1556 = vld [vmem:[%s954 + $0x948] sm:$0xf]
                  %1557 = vst [vmem:[%s955 + $0x4b0] sm:$0xf] %v1556
                  %v1558 = vld [vmem:[%s954 + $0x94c] sm:$0xf]
                  %1559 = vst [vmem:[%s955 + $0x4b4] sm:$0xf] %v1558
                  %v1560 = vld [vmem:[%s954 + $0x950] sm:$0xf]
                  %1561 = vst [vmem:[%s955 + $0x4b8] sm:$0xf] %v1560
                  %v1562 = vld [vmem:[%s954 + $0x954] sm:$0xf]
                  %1563 = vst [vmem:[%s955 + $0x4bc] sm:$0xf] %v1562
                  %v1564 = vld [vmem:[%s954 + $0x958] sm:$0xf]
                  %1565 = vst [vmem:[%s955 + $0x4c0] sm:$0xf] %v1564
                  %v1566 = vld [vmem:[%s954 + $0x95c] sm:$0xf]
                  %1567 = vst [vmem:[%s955 + $0x4c4] sm:$0xf] %v1566
                  %v1568 = vld [vmem:[%s954 + $0x960] sm:$0xf]
                  %1569 = vst [vmem:[%s955 + $0x4c8] sm:$0xf] %v1568
                  %v1570 = vld [vmem:[%s954 + $0x964] sm:$0xf]
                  %1571 = vst [vmem:[%s955 + $0x4cc] sm:$0xf] %v1570
                  %v1572 = vld [vmem:[%s954 + $0x968] sm:$0xf]
                  %1573 = vst [vmem:[%s955 + $0x4d0] sm:$0xf] %v1572
                  %v1574 = vld [vmem:[%s954 + $0x96c] sm:$0xf]
                  %1575 = vst [vmem:[%s955 + $0x4d4] sm:$0xf] %v1574
                  %v1576 = vld [vmem:[%s954 + $0x970] sm:$0xf]
                  %1577 = vst [vmem:[%s955 + $0x4d8] sm:$0xf] %v1576
                  %v1578 = vld [vmem:[%s954 + $0x974] sm:$0xf]
                  %1579 = vst [vmem:[%s955 + $0x4dc] sm:$0xf] %v1578
                  %v1580 = vld [vmem:[%s954 + $0x978] sm:$0xf]
                  %1581 = vst [vmem:[%s955 + $0x4e0] sm:$0xf] %v1580
                  %v1582 = vld [vmem:[%s954 + $0x97c] sm:$0xf]
                  %1583 = vst [vmem:[%s955 + $0x4e4] sm:$0xf] %v1582
                  %v1584 = vld [vmem:[%s954 + $0x980] sm:$0xf]
                  %1585 = vst [vmem:[%s955 + $0x4e8] sm:$0xf] %v1584
                  %v1586 = vld [vmem:[%s954 + $0x984] sm:$0xf]
                  %1587 = vst [vmem:[%s955 + $0x4ec] sm:$0xf] %v1586
                  %v1588 = vld [vmem:[%s954 + $0x988] sm:$0xf]
                  %1589 = vst [vmem:[%s955 + $0x4f0] sm:$0xf] %v1588
                  %v1590 = vld [vmem:[%s954 + $0x98c] sm:$0xf]
                  %1591 = vst [vmem:[%s955 + $0x4f4] sm:$0xf] %v1590
                  %v1592 = vld [vmem:[%s954 + $0x990] sm:$0xf]
                  %1593 = vst [vmem:[%s955 + $0x4f8] sm:$0xf] %v1592
                  %v1594 = vld [vmem:[%s954 + $0x994] sm:$0xf]
                  %1595 = vst [vmem:[%s955 + $0x4fc] sm:$0xf] %v1594
                  %v1596 = vld [vmem:[%s954 + $0x998] sm:$0xf]
                  %1597 = vst [vmem:[%s955 + $0x500] sm:$0xf] %v1596
                  %v1598 = vld [vmem:[%s954 + $0x99c] sm:$0xf]
                  %1599 = vst [vmem:[%s955 + $0x504] sm:$0xf] %v1598
                  %v1600 = vld [vmem:[%s954 + $0x9a0] sm:$0xf]
                  %1601 = vst [vmem:[%s955 + $0x508] sm:$0xf] %v1600
                  %v1602 = vld [vmem:[%s954 + $0x9a4] sm:$0xf]
                  %1603 = vst [vmem:[%s955 + $0x50c] sm:$0xf] %v1602
                  %v1604 = vld [vmem:[%s954 + $0x9a8] sm:$0xf]
                  %1605 = vst [vmem:[%s955 + $0x510] sm:$0xf] %v1604
                  %v1606 = vld [vmem:[%s954 + $0x9ac] sm:$0xf]
                  %1607 = vst [vmem:[%s955 + $0x514] sm:$0xf] %v1606
                  %v1608 = vld [vmem:[%s954 + $0x9b0] sm:$0xf]
                  %1609 = vst [vmem:[%s955 + $0x518] sm:$0xf] %v1608
                  %v1610 = vld [vmem:[%s954 + $0x9b4] sm:$0xf]
                  %1611 = vst [vmem:[%s955 + $0x51c] sm:$0xf] %v1610
                  %v1612 = vld [vmem:[%s954 + $0x9b8] sm:$0xf]
                  %1613 = vst [vmem:[%s955 + $0x520] sm:$0xf] %v1612
                  %v1614 = vld [vmem:[%s954 + $0x9bc] sm:$0xf]
                  %1615 = vst [vmem:[%s955 + $0x524] sm:$0xf] %v1614
                  %v1616 = vld [vmem:[%s954 + $0x9c0] sm:$0xf]
                  %1617 = vst [vmem:[%s955 + $0x528] sm:$0xf] %v1616
                  %v1618 = vld [vmem:[%s954 + $0x9c4] sm:$0xf]
                  %1619 = vst [vmem:[%s955 + $0x52c] sm:$0xf] %v1618
                  %v1620 = vld [vmem:[%s954 + $0x9c8] sm:$0xf]
                  %1621 = vst [vmem:[%s955 + $0x530] sm:$0xf] %v1620
                  %v1622 = vld [vmem:[%s954 + $0x9cc] sm:$0xf]
                  %1623 = vst [vmem:[%s955 + $0x534] sm:$0xf] %v1622
                  %v1624 = vld [vmem:[%s954 + $0x9d0] sm:$0xf]
                  %1625 = vst [vmem:[%s955 + $0x538] sm:$0xf] %v1624
                  %v1626 = vld [vmem:[%s954 + $0x9d4] sm:$0xf]
                  %1627 = vst [vmem:[%s955 + $0x53c] sm:$0xf] %v1626
                  %v1628 = vld [vmem:[%s954 + $0x9d8] sm:$0xf]
                  %1629 = vst [vmem:[%s955 + $0x540] sm:$0xf] %v1628
                  %v1630 = vld [vmem:[%s954 + $0x9dc] sm:$0xf]
                  %1631 = vst [vmem:[%s955 + $0x544] sm:$0xf] %v1630
                  %v1632 = vld [vmem:[%s954 + $0x9e0] sm:$0xf]
                  %1633 = vst [vmem:[%s955 + $0x548] sm:$0xf] %v1632
                  %v1634 = vld [vmem:[%s954 + $0x9e4] sm:$0xf]
                  %1635 = vst [vmem:[%s955 + $0x54c] sm:$0xf] %v1634
                  %v1636 = vld [vmem:[%s954 + $0x9e8] sm:$0xf]
                  %1637 = vst [vmem:[%s955 + $0x550] sm:$0xf] %v1636
                  %v1638 = vld [vmem:[%s954 + $0x9ec] sm:$0xf]
                  %1639 = vst [vmem:[%s955 + $0x554] sm:$0xf] %v1638
                  %v1640 = vld [vmem:[%s954 + $0x9f0] sm:$0xf]
                  %1641 = vst [vmem:[%s955 + $0x558] sm:$0xf] %v1640
                  %v1642 = vld [vmem:[%s954 + $0x9f4] sm:$0xf]
                  %1643 = vst [vmem:[%s955 + $0x55c] sm:$0xf] %v1642
                  %v1644 = vld [vmem:[%s954 + $0x9f8] sm:$0xf]
                  %1645 = vst [vmem:[%s955 + $0x560] sm:$0xf] %v1644
                  %v1646 = vld [vmem:[%s954 + $0x9fc] sm:$0xf]
                  %1647 = vst [vmem:[%s955 + $0x564] sm:$0xf] %v1646
                  %v1648 = vld [vmem:[%s954 + $0xa00] sm:$0xf]
                  %1649 = vst [vmem:[%s955 + $0x568] sm:$0xf] %v1648
                  %v1650 = vld [vmem:[%s954 + $0xa04] sm:$0xf]
                  %1651 = vst [vmem:[%s955 + $0x56c] sm:$0xf] %v1650
                  %v1652 = vld [vmem:[%s954 + $0xa08] sm:$0xf]
                  %1653 = vst [vmem:[%s955 + $0x570] sm:$0xf] %v1652
                  %v1654 = vld [vmem:[%s954 + $0xa0c] sm:$0xf]
                  %1655 = vst [vmem:[%s955 + $0x574] sm:$0xf] %v1654
                  %v1656 = vld [vmem:[%s954 + $0xa10] sm:$0xf]
                  %1657 = vst [vmem:[%s955 + $0x578] sm:$0xf] %v1656
                  %v1658 = vld [vmem:[%s954 + $0xa14] sm:$0xf]
                  %1659 = vst [vmem:[%s955 + $0x57c] sm:$0xf] %v1658
                  %v1660 = vld [vmem:[%s954 + $0xa18] sm:$0xf]
                  %1661 = vst [vmem:[%s955 + $0x580] sm:$0xf] %v1660
                  %v1662 = vld [vmem:[%s954 + $0xa1c] sm:$0xf]
                  %1663 = vst [vmem:[%s955 + $0x584] sm:$0xf] %v1662
                  %v1664 = vld [vmem:[%s954 + $0xa20] sm:$0xf]
                  %1665 = vst [vmem:[%s955 + $0x588] sm:$0xf] %v1664
                  %v1666 = vld [vmem:[%s954 + $0xa24] sm:$0xf]
                  %1667 = vst [vmem:[%s955 + $0x58c] sm:$0xf] %v1666
                  %v1668 = vld [vmem:[%s954 + $0xa28] sm:$0xf]
                  %1669 = vst [vmem:[%s955 + $0x590] sm:$0xf] %v1668
                  %v1670 = vld [vmem:[%s954 + $0xa2c] sm:$0xf]
                  %1671 = vst [vmem:[%s955 + $0x594] sm:$0xf] %v1670
                  %v1672 = vld [vmem:[%s954 + $0xa30] sm:$0xf]
                  %1673 = vst [vmem:[%s955 + $0x598] sm:$0xf] %v1672
                  %v1674 = vld [vmem:[%s954 + $0xa34] sm:$0xf]
                  %1675 = vst [vmem:[%s955 + $0x59c] sm:$0xf] %v1674
                  %v1676 = vld [vmem:[%s954 + $0xa38] sm:$0xf]
                  %1677 = vst [vmem:[%s955 + $0x5a0] sm:$0xf] %v1676
                  %v1678 = vld [vmem:[%s954 + $0xa3c] sm:$0xf]
                  %1679 = vst [vmem:[%s955 + $0x5a4] sm:$0xf] %v1678
                  %v1680 = vld [vmem:[%s954 + $0xa40] sm:$0xf]
                  %1681 = vst [vmem:[%s955 + $0x5a8] sm:$0xf] %v1680
                  %v1682 = vld [vmem:[%s954 + $0xa44] sm:$0xf]
                  %1683 = vst [vmem:[%s955 + $0x5ac] sm:$0xf] %v1682
                  %v1684 = vld [vmem:[%s954 + $0xa48] sm:$0xf]
                  %1685 = vst [vmem:[%s955 + $0x5b0] sm:$0xf] %v1684
                  %v1686 = vld [vmem:[%s954 + $0xa4c] sm:$0xf]
                  %1687 = vst [vmem:[%s955 + $0x5b4] sm:$0xf] %v1686
                  %v1688 = vld [vmem:[%s954 + $0xa50] sm:$0xf]
                  %1689 = vst [vmem:[%s955 + $0x5b8] sm:$0xf] %v1688
                  %v1690 = vld [vmem:[%s954 + $0xa54] sm:$0xf]
                  %1691 = vst [vmem:[%s955 + $0x5bc] sm:$0xf] %v1690
                  %v1692 = vld [vmem:[%s954 + $0xa58] sm:$0xf]
                  %1693 = vst [vmem:[%s955 + $0x5c0] sm:$0xf] %v1692
                  %v1694 = vld [vmem:[%s954 + $0xa5c] sm:$0xf]
                  %1695 = vst [vmem:[%s955 + $0x5c4] sm:$0xf] %v1694
                  %v1696 = vld [vmem:[%s954 + $0xa60] sm:$0xf]
                  %1697 = vst [vmem:[%s955 + $0x5c8] sm:$0xf] %v1696
                  %v1698 = vld [vmem:[%s954 + $0xa64] sm:$0xf]
                  %1699 = vst [vmem:[%s955 + $0x5cc] sm:$0xf] %v1698
                  %v1700 = vld [vmem:[%s954 + $0xa68] sm:$0xf]
                  %1701 = vst [vmem:[%s955 + $0x5d0] sm:$0xf] %v1700
                  %v1702 = vld [vmem:[%s954 + $0xa6c] sm:$0xf]
                  %1703 = vst [vmem:[%s955 + $0x5d4] sm:$0xf] %v1702
                  %v1704 = vld [vmem:[%s954 + $0xa70] sm:$0xf]
                  %1705 = vst [vmem:[%s955 + $0x5d8] sm:$0xf] %v1704
                  %v1706 = vld [vmem:[%s954 + $0xa74] sm:$0xf]
                  %1707 = vst [vmem:[%s955 + $0x5dc] sm:$0xf] %v1706
                  %v1708 = vld [vmem:[%s954 + $0xa78] sm:$0xf]
                  %1709 = vst [vmem:[%s955 + $0x5e0] sm:$0xf] %v1708
                  %v1710 = vld [vmem:[%s954 + $0xa7c] sm:$0xf]
                  %1711 = vst [vmem:[%s955 + $0x5e4] sm:$0xf] %v1710
                  %v1712 = vld [vmem:[%s954 + $0xa80] sm:$0xf]
                  %1713 = vst [vmem:[%s955 + $0x5e8] sm:$0xf] %v1712
                  %v1714 = vld [vmem:[%s954 + $0xa84] sm:$0xf]
                  %1715 = vst [vmem:[%s955 + $0x5ec] sm:$0xf] %v1714
                  %v1716 = vld [vmem:[%s954 + $0xa88] sm:$0xf]
                  %1717 = vst [vmem:[%s955 + $0x5f0] sm:$0xf] %v1716
                  %v1718 = vld [vmem:[%s954 + $0xa8c] sm:$0xf]
                  %1719 = vst [vmem:[%s955 + $0x5f4] sm:$0xf] %v1718
                  %v1720 = vld [vmem:[%s954 + $0xa90] sm:$0xf]
                  %1721 = vst [vmem:[%s955 + $0x5f8] sm:$0xf] %v1720
                  %v1722 = vld [vmem:[%s954 + $0xa94] sm:$0xf]
                  %1723 = vst [vmem:[%s955 + $0x5fc] sm:$0xf] %v1722
                  %v1724 = vld [vmem:[%s954 + $0xa98] sm:$0xf]
                  %1725 = vst [vmem:[%s955 + $0x600] sm:$0xf] %v1724
                  %v1726 = vld [vmem:[%s954 + $0xa9c] sm:$0xf]
                  %1727 = vst [vmem:[%s955 + $0x604] sm:$0xf] %v1726
                  %v1728 = vld [vmem:[%s954 + $0xaa0] sm:$0xf]
                  %1729 = vst [vmem:[%s955 + $0x608] sm:$0xf] %v1728
                  %v1730 = vld [vmem:[%s954 + $0xaa4] sm:$0xf]
                  %1731 = vst [vmem:[%s955 + $0x60c] sm:$0xf] %v1730
                  %v1732 = vld [vmem:[%s954 + $0xaa8] sm:$0xf]
                  %1733 = vst [vmem:[%s955 + $0x610] sm:$0xf] %v1732
                  %v1734 = vld [vmem:[%s954 + $0xaac] sm:$0xf]
                  %1735 = vst [vmem:[%s955 + $0x614] sm:$0xf] %v1734
                  %v1736 = vld [vmem:[%s954 + $0xab0] sm:$0xf]
                  %1737 = vst [vmem:[%s955 + $0x618] sm:$0xf] %v1736
                  %v1738 = vld [vmem:[%s954 + $0xab4] sm:$0xf]
                  %1739 = vst [vmem:[%s955 + $0x61c] sm:$0xf] %v1738
                $region63: #{net_forward.3} parent=50 // loop_footer
                  %s953 = sadd.s32 1, %s949
                $region64: #{net_forward.3} parent=50 // loop_footer_branch
                  %948 = sbr.rel target = $region60
                $region65: #{net_forward.3} parent=50 // loop_exit
                  _
              $region51: #{net_forward.3} parent=35 // pred_fallthru
                _
            $region36: #{net_forward.3} parent=31 // pred_fallthru
              _
            // Predicated region
            $region37: #{net_forward.3} parent=31 // pred_check
              _
            $region38: #{net_forward.3} parent=31 // pred_check_branch
              %143 = sbr.rel (0) target = $region40
            $region39: #{net_forward.3} parent=31 // pred_region
              loop: start=0, step=1, limit=1
              $region41: #{net_forward.3} parent=39 // loop_pre_header
                _
              $region42: #{net_forward.3} parent=39 // loop_header
                %s146 = sphi 0, %s150
                %p147 = scmp.ge.s32.totalorder %s146, 1
                %s151 = sphi %s137, %s137
                %s152 = sphi %s134, %s134
              $region43: #{net_forward.3} parent=39 // loop_header_branch
                %149 = sbr.rel (%p147) target = $region47
              $region44: #{net_forward.3} parent=39 // loop_body
                %v153 = vld [vmem:[%s151] sm:$0xf]
                %154 = vst [vmem:[%s152] sm:$0xf] %v153
                %v155 = vld [vmem:[%s151 + $0x4] sm:$0xf]
                %156 = vst [vmem:[%s152 + $0x4] sm:$0xf] %v155
                %v157 = vld [vmem:[%s151 + $0x8] sm:$0xf]
                %158 = vst [vmem:[%s152 + $0x8] sm:$0xf] %v157
                %v159 = vld [vmem:[%s151 + $0xc] sm:$0xf]
                %160 = vst [vmem:[%s152 + $0xc] sm:$0xf] %v159
                %v161 = vld [vmem:[%s151 + $0x10] sm:$0xf]
                %162 = vst [vmem:[%s152 + $0x10] sm:$0xf] %v161
                %v163 = vld [vmem:[%s151 + $0x14] sm:$0xf]
                %164 = vst [vmem:[%s152 + $0x14] sm:$0xf] %v163
                %v165 = vld [vmem:[%s151 + $0x18] sm:$0xf]
                %166 = vst [vmem:[%s152 + $0x18] sm:$0xf] %v165
                %v167 = vld [vmem:[%s151 + $0x1c] sm:$0xf]
                %168 = vst [vmem:[%s152 + $0x1c] sm:$0xf] %v167
                %v169 = vld [vmem:[%s151 + $0x20] sm:$0xf]
                %170 = vst [vmem:[%s152 + $0x20] sm:$0xf] %v169
                %v171 = vld [vmem:[%s151 + $0x24] sm:$0xf]
                %172 = vst [vmem:[%s152 + $0x24] sm:$0xf] %v171
                %v173 = vld [vmem:[%s151 + $0x28] sm:$0xf]
                %174 = vst [vmem:[%s152 + $0x28] sm:$0xf] %v173
                %v175 = vld [vmem:[%s151 + $0x2c] sm:$0xf]
                %176 = vst [vmem:[%s152 + $0x2c] sm:$0xf] %v175
                %v177 = vld [vmem:[%s151 + $0x30] sm:$0xf]
                %178 = vst [vmem:[%s152 + $0x30] sm:$0xf] %v177
                %v179 = vld [vmem:[%s151 + $0x34] sm:$0xf]
                %180 = vst [vmem:[%s152 + $0x34] sm:$0xf] %v179
                %v181 = vld [vmem:[%s151 + $0x38] sm:$0xf]
                %182 = vst [vmem:[%s152 + $0x38] sm:$0xf] %v181
                %v183 = vld [vmem:[%s151 + $0x3c] sm:$0xf]
                %184 = vst [vmem:[%s152 + $0x3c] sm:$0xf] %v183
                %v185 = vld [vmem:[%s151 + $0x40] sm:$0xf]
                %186 = vst [vmem:[%s152 + $0x40] sm:$0xf] %v185
                %v187 = vld [vmem:[%s151 + $0x44] sm:$0xf]
                %188 = vst [vmem:[%s152 + $0x44] sm:$0xf] %v187
                %v189 = vld [vmem:[%s151 + $0x48] sm:$0xf]
                %190 = vst [vmem:[%s152 + $0x48] sm:$0xf] %v189
                %v191 = vld [vmem:[%s151 + $0x4c] sm:$0xf]
                %192 = vst [vmem:[%s152 + $0x4c] sm:$0xf] %v191
                %v193 = vld [vmem:[%s151 + $0x50] sm:$0xf]
                %194 = vst [vmem:[%s152 + $0x50] sm:$0xf] %v193
                %v195 = vld [vmem:[%s151 + $0x54] sm:$0xf]
                %196 = vst [vmem:[%s152 + $0x54] sm:$0xf] %v195
                %v197 = vld [vmem:[%s151 + $0x58] sm:$0xf]
                %198 = vst [vmem:[%s152 + $0x58] sm:$0xf] %v197
                %v199 = vld [vmem:[%s151 + $0x5c] sm:$0xf]
                %200 = vst [vmem:[%s152 + $0x5c] sm:$0xf] %v199
                %v201 = vld [vmem:[%s151 + $0x60] sm:$0xf]
                %202 = vst [vmem:[%s152 + $0x60] sm:$0xf] %v201
                %v203 = vld [vmem:[%s151 + $0x64] sm:$0xf]
                %204 = vst [vmem:[%s152 + $0x64] sm:$0xf] %v203
                %v205 = vld [vmem:[%s151 + $0x68] sm:$0xf]
                %206 = vst [vmem:[%s152 + $0x68] sm:$0xf] %v205
                %v207 = vld [vmem:[%s151 + $0x6c] sm:$0xf]
                %208 = vst [vmem:[%s152 + $0x6c] sm:$0xf] %v207
                %v209 = vld [vmem:[%s151 + $0x70] sm:$0xf]
                %210 = vst [vmem:[%s152 + $0x70] sm:$0xf] %v209
                %v211 = vld [vmem:[%s151 + $0x74] sm:$0xf]
                %212 = vst [vmem:[%s152 + $0x74] sm:$0xf] %v211
                %v213 = vld [vmem:[%s151 + $0x78] sm:$0xf]
                %214 = vst [vmem:[%s152 + $0x78] sm:$0xf] %v213
                %v215 = vld [vmem:[%s151 + $0x7c] sm:$0xf]
                %216 = vst [vmem:[%s152 + $0x7c] sm:$0xf] %v215
                %v217 = vld [vmem:[%s151 + $0x80] sm:$0xf]
                %218 = vst [vmem:[%s152 + $0x80] sm:$0xf] %v217
                %v219 = vld [vmem:[%s151 + $0x84] sm:$0xf]
                %220 = vst [vmem:[%s152 + $0x84] sm:$0xf] %v219
                %v221 = vld [vmem:[%s151 + $0x88] sm:$0xf]
                %222 = vst [vmem:[%s152 + $0x88] sm:$0xf] %v221
                %v223 = vld [vmem:[%s151 + $0x8c] sm:$0xf]
                %224 = vst [vmem:[%s152 + $0x8c] sm:$0xf] %v223
                %v225 = vld [vmem:[%s151 + $0x90] sm:$0xf]
                %226 = vst [vmem:[%s152 + $0x90] sm:$0xf] %v225
                %v227 = vld [vmem:[%s151 + $0x94] sm:$0xf]
                %228 = vst [vmem:[%s152 + $0x94] sm:$0xf] %v227
                %v229 = vld [vmem:[%s151 + $0x98] sm:$0xf]
                %230 = vst [vmem:[%s152 + $0x98] sm:$0xf] %v229
                %v231 = vld [vmem:[%s151 + $0x9c] sm:$0xf]
                %232 = vst [vmem:[%s152 + $0x9c] sm:$0xf] %v231
                %v233 = vld [vmem:[%s151 + $0xa0] sm:$0xf]
                %234 = vst [vmem:[%s152 + $0xa0] sm:$0xf] %v233
                %v235 = vld [vmem:[%s151 + $0xa4] sm:$0xf]
                %236 = vst [vmem:[%s152 + $0xa4] sm:$0xf] %v235
                %v237 = vld [vmem:[%s151 + $0xa8] sm:$0xf]
                %238 = vst [vmem:[%s152 + $0xa8] sm:$0xf] %v237
                %v239 = vld [vmem:[%s151 + $0xac] sm:$0xf]
                %240 = vst [vmem:[%s152 + $0xac] sm:$0xf] %v239
                %v241 = vld [vmem:[%s151 + $0xb0] sm:$0xf]
                %242 = vst [vmem:[%s152 + $0xb0] sm:$0xf] %v241
                %v243 = vld [vmem:[%s151 + $0xb4] sm:$0xf]
                %244 = vst [vmem:[%s152 + $0xb4] sm:$0xf] %v243
                %v245 = vld [vmem:[%s151 + $0xb8] sm:$0xf]
                %246 = vst [vmem:[%s152 + $0xb8] sm:$0xf] %v245
                %v247 = vld [vmem:[%s151 + $0xbc] sm:$0xf]
                %248 = vst [vmem:[%s152 + $0xbc] sm:$0xf] %v247
                %v249 = vld [vmem:[%s151 + $0xc0] sm:$0xf]
                %250 = vst [vmem:[%s152 + $0xc0] sm:$0xf] %v249
                %v251 = vld [vmem:[%s151 + $0xc4] sm:$0xf]
                %252 = vst [vmem:[%s152 + $0xc4] sm:$0xf] %v251
                %v253 = vld [vmem:[%s151 + $0xc8] sm:$0xf]
                %254 = vst [vmem:[%s152 + $0xc8] sm:$0xf] %v253
                %v255 = vld [vmem:[%s151 + $0xcc] sm:$0xf]
                %256 = vst [vmem:[%s152 + $0xcc] sm:$0xf] %v255
                %v257 = vld [vmem:[%s151 + $0xd0] sm:$0xf]
                %258 = vst [vmem:[%s152 + $0xd0] sm:$0xf] %v257
                %v259 = vld [vmem:[%s151 + $0xd4] sm:$0xf]
                %260 = vst [vmem:[%s152 + $0xd4] sm:$0xf] %v259
                %v261 = vld [vmem:[%s151 + $0xd8] sm:$0xf]
                %262 = vst [vmem:[%s152 + $0xd8] sm:$0xf] %v261
                %v263 = vld [vmem:[%s151 + $0xdc] sm:$0xf]
                %264 = vst [vmem:[%s152 + $0xdc] sm:$0xf] %v263
                %v265 = vld [vmem:[%s151 + $0xe0] sm:$0xf]
                %266 = vst [vmem:[%s152 + $0xe0] sm:$0xf] %v265
                %v267 = vld [vmem:[%s151 + $0xe4] sm:$0xf]
                %268 = vst [vmem:[%s152 + $0xe4] sm:$0xf] %v267
                %v269 = vld [vmem:[%s151 + $0xe8] sm:$0xf]
                %270 = vst [vmem:[%s152 + $0xe8] sm:$0xf] %v269
                %v271 = vld [vmem:[%s151 + $0xec] sm:$0xf]
                %272 = vst [vmem:[%s152 + $0xec] sm:$0xf] %v271
                %v273 = vld [vmem:[%s151 + $0xf0] sm:$0xf]
                %274 = vst [vmem:[%s152 + $0xf0] sm:$0xf] %v273
                %v275 = vld [vmem:[%s151 + $0xf4] sm:$0xf]
                %276 = vst [vmem:[%s152 + $0xf4] sm:$0xf] %v275
                %v277 = vld [vmem:[%s151 + $0xf8] sm:$0xf]
                %278 = vst [vmem:[%s152 + $0xf8] sm:$0xf] %v277
                %v279 = vld [vmem:[%s151 + $0xfc] sm:$0xf]
                %280 = vst [vmem:[%s152 + $0xfc] sm:$0xf] %v279
                %v281 = vld [vmem:[%s151 + $0x100] sm:$0xf]
                %282 = vst [vmem:[%s152 + $0x100] sm:$0xf] %v281
                %v283 = vld [vmem:[%s151 + $0x104] sm:$0xf]
                %284 = vst [vmem:[%s152 + $0x104] sm:$0xf] %v283
                %v285 = vld [vmem:[%s151 + $0x108] sm:$0xf]
                %286 = vst [vmem:[%s152 + $0x108] sm:$0xf] %v285
                %v287 = vld [vmem:[%s151 + $0x10c] sm:$0xf]
                %288 = vst [vmem:[%s152 + $0x10c] sm:$0xf] %v287
                %v289 = vld [vmem:[%s151 + $0x110] sm:$0xf]
                %290 = vst [vmem:[%s152 + $0x110] sm:$0xf] %v289
                %v291 = vld [vmem:[%s151 + $0x114] sm:$0xf]
                %292 = vst [vmem:[%s152 + $0x114] sm:$0xf] %v291
                %v293 = vld [vmem:[%s151 + $0x118] sm:$0xf]
                %294 = vst [vmem:[%s152 + $0x118] sm:$0xf] %v293
                %v295 = vld [vmem:[%s151 + $0x11c] sm:$0xf]
                %296 = vst [vmem:[%s152 + $0x11c] sm:$0xf] %v295
                %v297 = vld [vmem:[%s151 + $0x120] sm:$0xf]
                %298 = vst [vmem:[%s152 + $0x120] sm:$0xf] %v297
                %v299 = vld [vmem:[%s151 + $0x124] sm:$0xf]
                %300 = vst [vmem:[%s152 + $0x124] sm:$0xf] %v299
                %v301 = vld [vmem:[%s151 + $0x128] sm:$0xf]
                %302 = vst [vmem:[%s152 + $0x128] sm:$0xf] %v301
                %v303 = vld [vmem:[%s151 + $0x12c] sm:$0xf]
                %304 = vst [vmem:[%s152 + $0x12c] sm:$0xf] %v303
                %v305 = vld [vmem:[%s151 + $0x130] sm:$0xf]
                %306 = vst [vmem:[%s152 + $0x130] sm:$0xf] %v305
                %v307 = vld [vmem:[%s151 + $0x134] sm:$0xf]
                %308 = vst [vmem:[%s152 + $0x134] sm:$0xf] %v307
                %v309 = vld [vmem:[%s151 + $0x138] sm:$0xf]
                %310 = vst [vmem:[%s152 + $0x138] sm:$0xf] %v309
                %v311 = vld [vmem:[%s151 + $0x13c] sm:$0xf]
                %312 = vst [vmem:[%s152 + $0x13c] sm:$0xf] %v311
                %v313 = vld [vmem:[%s151 + $0x140] sm:$0xf]
                %314 = vst [vmem:[%s152 + $0x140] sm:$0xf] %v313
                %v315 = vld [vmem:[%s151 + $0x144] sm:$0xf]
                %316 = vst [vmem:[%s152 + $0x144] sm:$0xf] %v315
                %v317 = vld [vmem:[%s151 + $0x148] sm:$0xf]
                %318 = vst [vmem:[%s152 + $0x148] sm:$0xf] %v317
                %v319 = vld [vmem:[%s151 + $0x14c] sm:$0xf]
                %320 = vst [vmem:[%s152 + $0x14c] sm:$0xf] %v319
                %v321 = vld [vmem:[%s151 + $0x150] sm:$0xf]
                %322 = vst [vmem:[%s152 + $0x150] sm:$0xf] %v321
                %v323 = vld [vmem:[%s151 + $0x154] sm:$0xf]
                %324 = vst [vmem:[%s152 + $0x154] sm:$0xf] %v323
                %v325 = vld [vmem:[%s151 + $0x158] sm:$0xf]
                %326 = vst [vmem:[%s152 + $0x158] sm:$0xf] %v325
                %v327 = vld [vmem:[%s151 + $0x15c] sm:$0xf]
                %328 = vst [vmem:[%s152 + $0x15c] sm:$0xf] %v327
                %v329 = vld [vmem:[%s151 + $0x160] sm:$0xf]
                %330 = vst [vmem:[%s152 + $0x160] sm:$0xf] %v329
                %v331 = vld [vmem:[%s151 + $0x164] sm:$0xf]
                %332 = vst [vmem:[%s152 + $0x164] sm:$0xf] %v331
                %v333 = vld [vmem:[%s151 + $0x168] sm:$0xf]
                %334 = vst [vmem:[%s152 + $0x168] sm:$0xf] %v333
                %v335 = vld [vmem:[%s151 + $0x16c] sm:$0xf]
                %336 = vst [vmem:[%s152 + $0x16c] sm:$0xf] %v335
                %v337 = vld [vmem:[%s151 + $0x170] sm:$0xf]
                %338 = vst [vmem:[%s152 + $0x170] sm:$0xf] %v337
                %v339 = vld [vmem:[%s151 + $0x174] sm:$0xf]
                %340 = vst [vmem:[%s152 + $0x174] sm:$0xf] %v339
                %v341 = vld [vmem:[%s151 + $0x178] sm:$0xf]
                %342 = vst [vmem:[%s152 + $0x178] sm:$0xf] %v341
                %v343 = vld [vmem:[%s151 + $0x17c] sm:$0xf]
                %344 = vst [vmem:[%s152 + $0x17c] sm:$0xf] %v343
                %v345 = vld [vmem:[%s151 + $0x180] sm:$0xf]
                %346 = vst [vmem:[%s152 + $0x180] sm:$0xf] %v345
                %v347 = vld [vmem:[%s151 + $0x184] sm:$0xf]
                %348 = vst [vmem:[%s152 + $0x184] sm:$0xf] %v347
                %v349 = vld [vmem:[%s151 + $0x310] sm:$0xf]
                %350 = vst [vmem:[%s152 + $0x188] sm:$0xf] %v349
                %v351 = vld [vmem:[%s151 + $0x314] sm:$0xf]
                %352 = vst [vmem:[%s152 + $0x18c] sm:$0xf] %v351
                %v353 = vld [vmem:[%s151 + $0x318] sm:$0xf]
                %354 = vst [vmem:[%s152 + $0x190] sm:$0xf] %v353
                %v355 = vld [vmem:[%s151 + $0x31c] sm:$0xf]
                %356 = vst [vmem:[%s152 + $0x194] sm:$0xf] %v355
                %v357 = vld [vmem:[%s151 + $0x320] sm:$0xf]
                %358 = vst [vmem:[%s152 + $0x198] sm:$0xf] %v357
                %v359 = vld [vmem:[%s151 + $0x324] sm:$0xf]
                %360 = vst [vmem:[%s152 + $0x19c] sm:$0xf] %v359
                %v361 = vld [vmem:[%s151 + $0x328] sm:$0xf]
                %362 = vst [vmem:[%s152 + $0x1a0] sm:$0xf] %v361
                %v363 = vld [vmem:[%s151 + $0x32c] sm:$0xf]
                %364 = vst [vmem:[%s152 + $0x1a4] sm:$0xf] %v363
                %v365 = vld [vmem:[%s151 + $0x330] sm:$0xf]
                %366 = vst [vmem:[%s152 + $0x1a8] sm:$0xf] %v365
                %v367 = vld [vmem:[%s151 + $0x334] sm:$0xf]
                %368 = vst [vmem:[%s152 + $0x1ac] sm:$0xf] %v367
                %v369 = vld [vmem:[%s151 + $0x338] sm:$0xf]
                %370 = vst [vmem:[%s152 + $0x1b0] sm:$0xf] %v369
                %v371 = vld [vmem:[%s151 + $0x33c] sm:$0xf]
                %372 = vst [vmem:[%s152 + $0x1b4] sm:$0xf] %v371
                %v373 = vld [vmem:[%s151 + $0x340] sm:$0xf]
                %374 = vst [vmem:[%s152 + $0x1b8] sm:$0xf] %v373
                %v375 = vld [vmem:[%s151 + $0x344] sm:$0xf]
                %376 = vst [vmem:[%s152 + $0x1bc] sm:$0xf] %v375
                %v377 = vld [vmem:[%s151 + $0x348] sm:$0xf]
                %378 = vst [vmem:[%s152 + $0x1c0] sm:$0xf] %v377
                %v379 = vld [vmem:[%s151 + $0x34c] sm:$0xf]
                %380 = vst [vmem:[%s152 + $0x1c4] sm:$0xf] %v379
                %v381 = vld [vmem:[%s151 + $0x350] sm:$0xf]
                %382 = vst [vmem:[%s152 + $0x1c8] sm:$0xf] %v381
                %v383 = vld [vmem:[%s151 + $0x354] sm:$0xf]
                %384 = vst [vmem:[%s152 + $0x1cc] sm:$0xf] %v383
                %v385 = vld [vmem:[%s151 + $0x358] sm:$0xf]
                %386 = vst [vmem:[%s152 + $0x1d0] sm:$0xf] %v385
                %v387 = vld [vmem:[%s151 + $0x35c] sm:$0xf]
                %388 = vst [vmem:[%s152 + $0x1d4] sm:$0xf] %v387
                %v389 = vld [vmem:[%s151 + $0x360] sm:$0xf]
                %390 = vst [vmem:[%s152 + $0x1d8] sm:$0xf] %v389
                %v391 = vld [vmem:[%s151 + $0x364] sm:$0xf]
                %392 = vst [vmem:[%s152 + $0x1dc] sm:$0xf] %v391
                %v393 = vld [vmem:[%s151 + $0x368] sm:$0xf]
                %394 = vst [vmem:[%s152 + $0x1e0] sm:$0xf] %v393
                %v395 = vld [vmem:[%s151 + $0x36c] sm:$0xf]
                %396 = vst [vmem:[%s152 + $0x1e4] sm:$0xf] %v395
                %v397 = vld [vmem:[%s151 + $0x370] sm:$0xf]
                %398 = vst [vmem:[%s152 + $0x1e8] sm:$0xf] %v397
                %v399 = vld [vmem:[%s151 + $0x374] sm:$0xf]
                %400 = vst [vmem:[%s152 + $0x1ec] sm:$0xf] %v399
                %v401 = vld [vmem:[%s151 + $0x378] sm:$0xf]
                %402 = vst [vmem:[%s152 + $0x1f0] sm:$0xf] %v401
                %v403 = vld [vmem:[%s151 + $0x37c] sm:$0xf]
                %404 = vst [vmem:[%s152 + $0x1f4] sm:$0xf] %v403
                %v405 = vld [vmem:[%s151 + $0x380] sm:$0xf]
                %406 = vst [vmem:[%s152 + $0x1f8] sm:$0xf] %v405
                %v407 = vld [vmem:[%s151 + $0x384] sm:$0xf]
                %408 = vst [vmem:[%s152 + $0x1fc] sm:$0xf] %v407
                %v409 = vld [vmem:[%s151 + $0x388] sm:$0xf]
                %410 = vst [vmem:[%s152 + $0x200] sm:$0xf] %v409
                %v411 = vld [vmem:[%s151 + $0x38c] sm:$0xf]
                %412 = vst [vmem:[%s152 + $0x204] sm:$0xf] %v411
                %v413 = vld [vmem:[%s151 + $0x390] sm:$0xf]
                %414 = vst [vmem:[%s152 + $0x208] sm:$0xf] %v413
                %v415 = vld [vmem:[%s151 + $0x394] sm:$0xf]
                %416 = vst [vmem:[%s152 + $0x20c] sm:$0xf] %v415
                %v417 = vld [vmem:[%s151 + $0x398] sm:$0xf]
                %418 = vst [vmem:[%s152 + $0x210] sm:$0xf] %v417
                %v419 = vld [vmem:[%s151 + $0x39c] sm:$0xf]
                %420 = vst [vmem:[%s152 + $0x214] sm:$0xf] %v419
                %v421 = vld [vmem:[%s151 + $0x3a0] sm:$0xf]
                %422 = vst [vmem:[%s152 + $0x218] sm:$0xf] %v421
                %v423 = vld [vmem:[%s151 + $0x3a4] sm:$0xf]
                %424 = vst [vmem:[%s152 + $0x21c] sm:$0xf] %v423
                %v425 = vld [vmem:[%s151 + $0x3a8] sm:$0xf]
                %426 = vst [vmem:[%s152 + $0x220] sm:$0xf] %v425
                %v427 = vld [vmem:[%s151 + $0x3ac] sm:$0xf]
                %428 = vst [vmem:[%s152 + $0x224] sm:$0xf] %v427
                %v429 = vld [vmem:[%s151 + $0x3b0] sm:$0xf]
                %430 = vst [vmem:[%s152 + $0x228] sm:$0xf] %v429
                %v431 = vld [vmem:[%s151 + $0x3b4] sm:$0xf]
                %432 = vst [vmem:[%s152 + $0x22c] sm:$0xf] %v431
                %v433 = vld [vmem:[%s151 + $0x3b8] sm:$0xf]
                %434 = vst [vmem:[%s152 + $0x230] sm:$0xf] %v433
                %v435 = vld [vmem:[%s151 + $0x3bc] sm:$0xf]
                %436 = vst [vmem:[%s152 + $0x234] sm:$0xf] %v435
                %v437 = vld [vmem:[%s151 + $0x3c0] sm:$0xf]
                %438 = vst [vmem:[%s152 + $0x238] sm:$0xf] %v437
                %v439 = vld [vmem:[%s151 + $0x3c4] sm:$0xf]
                %440 = vst [vmem:[%s152 + $0x23c] sm:$0xf] %v439
                %v441 = vld [vmem:[%s151 + $0x3c8] sm:$0xf]
                %442 = vst [vmem:[%s152 + $0x240] sm:$0xf] %v441
                %v443 = vld [vmem:[%s151 + $0x3cc] sm:$0xf]
                %444 = vst [vmem:[%s152 + $0x244] sm:$0xf] %v443
                %v445 = vld [vmem:[%s151 + $0x3d0] sm:$0xf]
                %446 = vst [vmem:[%s152 + $0x248] sm:$0xf] %v445
                %v447 = vld [vmem:[%s151 + $0x3d4] sm:$0xf]
                %448 = vst [vmem:[%s152 + $0x24c] sm:$0xf] %v447
                %v449 = vld [vmem:[%s151 + $0x3d8] sm:$0xf]
                %450 = vst [vmem:[%s152 + $0x250] sm:$0xf] %v449
                %v451 = vld [vmem:[%s151 + $0x3dc] sm:$0xf]
                %452 = vst [vmem:[%s152 + $0x254] sm:$0xf] %v451
                %v453 = vld [vmem:[%s151 + $0x3e0] sm:$0xf]
                %454 = vst [vmem:[%s152 + $0x258] sm:$0xf] %v453
                %v455 = vld [vmem:[%s151 + $0x3e4] sm:$0xf]
                %456 = vst [vmem:[%s152 + $0x25c] sm:$0xf] %v455
                %v457 = vld [vmem:[%s151 + $0x3e8] sm:$0xf]
                %458 = vst [vmem:[%s152 + $0x260] sm:$0xf] %v457
                %v459 = vld [vmem:[%s151 + $0x3ec] sm:$0xf]
                %460 = vst [vmem:[%s152 + $0x264] sm:$0xf] %v459
                %v461 = vld [vmem:[%s151 + $0x3f0] sm:$0xf]
                %462 = vst [vmem:[%s152 + $0x268] sm:$0xf] %v461
                %v463 = vld [vmem:[%s151 + $0x3f4] sm:$0xf]
                %464 = vst [vmem:[%s152 + $0x26c] sm:$0xf] %v463
                %v465 = vld [vmem:[%s151 + $0x3f8] sm:$0xf]
                %466 = vst [vmem:[%s152 + $0x270] sm:$0xf] %v465
                %v467 = vld [vmem:[%s151 + $0x3fc] sm:$0xf]
                %468 = vst [vmem:[%s152 + $0x274] sm:$0xf] %v467
                %v469 = vld [vmem:[%s151 + $0x400] sm:$0xf]
                %470 = vst [vmem:[%s152 + $0x278] sm:$0xf] %v469
                %v471 = vld [vmem:[%s151 + $0x404] sm:$0xf]
                %472 = vst [vmem:[%s152 + $0x27c] sm:$0xf] %v471
                %v473 = vld [vmem:[%s151 + $0x408] sm:$0xf]
                %474 = vst [vmem:[%s152 + $0x280] sm:$0xf] %v473
                %v475 = vld [vmem:[%s151 + $0x40c] sm:$0xf]
                %476 = vst [vmem:[%s152 + $0x284] sm:$0xf] %v475
                %v477 = vld [vmem:[%s151 + $0x410] sm:$0xf]
                %478 = vst [vmem:[%s152 + $0x288] sm:$0xf] %v477
                %v479 = vld [vmem:[%s151 + $0x414] sm:$0xf]
                %480 = vst [vmem:[%s152 + $0x28c] sm:$0xf] %v479
                %v481 = vld [vmem:[%s151 + $0x418] sm:$0xf]
                %482 = vst [vmem:[%s152 + $0x290] sm:$0xf] %v481
                %v483 = vld [vmem:[%s151 + $0x41c] sm:$0xf]
                %484 = vst [vmem:[%s152 + $0x294] sm:$0xf] %v483
                %v485 = vld [vmem:[%s151 + $0x420] sm:$0xf]
                %486 = vst [vmem:[%s152 + $0x298] sm:$0xf] %v485
                %v487 = vld [vmem:[%s151 + $0x424] sm:$0xf]
                %488 = vst [vmem:[%s152 + $0x29c] sm:$0xf] %v487
                %v489 = vld [vmem:[%s151 + $0x428] sm:$0xf]
                %490 = vst [vmem:[%s152 + $0x2a0] sm:$0xf] %v489
                %v491 = vld [vmem:[%s151 + $0x42c] sm:$0xf]
                %492 = vst [vmem:[%s152 + $0x2a4] sm:$0xf] %v491
                %v493 = vld [vmem:[%s151 + $0x430] sm:$0xf]
                %494 = vst [vmem:[%s152 + $0x2a8] sm:$0xf] %v493
                %v495 = vld [vmem:[%s151 + $0x434] sm:$0xf]
                %496 = vst [vmem:[%s152 + $0x2ac] sm:$0xf] %v495
                %v497 = vld [vmem:[%s151 + $0x438] sm:$0xf]
                %498 = vst [vmem:[%s152 + $0x2b0] sm:$0xf] %v497
                %v499 = vld [vmem:[%s151 + $0x43c] sm:$0xf]
                %500 = vst [vmem:[%s152 + $0x2b4] sm:$0xf] %v499
                %v501 = vld [vmem:[%s151 + $0x440] sm:$0xf]
                %502 = vst [vmem:[%s152 + $0x2b8] sm:$0xf] %v501
                %v503 = vld [vmem:[%s151 + $0x444] sm:$0xf]
                %504 = vst [vmem:[%s152 + $0x2bc] sm:$0xf] %v503
                %v505 = vld [vmem:[%s151 + $0x448] sm:$0xf]
                %506 = vst [vmem:[%s152 + $0x2c0] sm:$0xf] %v505
                %v507 = vld [vmem:[%s151 + $0x44c] sm:$0xf]
                %508 = vst [vmem:[%s152 + $0x2c4] sm:$0xf] %v507
                %v509 = vld [vmem:[%s151 + $0x450] sm:$0xf]
                %510 = vst [vmem:[%s152 + $0x2c8] sm:$0xf] %v509
                %v511 = vld [vmem:[%s151 + $0x454] sm:$0xf]
                %512 = vst [vmem:[%s152 + $0x2cc] sm:$0xf] %v511
                %v513 = vld [vmem:[%s151 + $0x458] sm:$0xf]
                %514 = vst [vmem:[%s152 + $0x2d0] sm:$0xf] %v513
                %v515 = vld [vmem:[%s151 + $0x45c] sm:$0xf]
                %516 = vst [vmem:[%s152 + $0x2d4] sm:$0xf] %v515
                %v517 = vld [vmem:[%s151 + $0x460] sm:$0xf]
                %518 = vst [vmem:[%s152 + $0x2d8] sm:$0xf] %v517
                %v519 = vld [vmem:[%s151 + $0x464] sm:$0xf]
                %520 = vst [vmem:[%s152 + $0x2dc] sm:$0xf] %v519
                %v521 = vld [vmem:[%s151 + $0x468] sm:$0xf]
                %522 = vst [vmem:[%s152 + $0x2e0] sm:$0xf] %v521
                %v523 = vld [vmem:[%s151 + $0x46c] sm:$0xf]
                %524 = vst [vmem:[%s152 + $0x2e4] sm:$0xf] %v523
                %v525 = vld [vmem:[%s151 + $0x470] sm:$0xf]
                %526 = vst [vmem:[%s152 + $0x2e8] sm:$0xf] %v525
                %v527 = vld [vmem:[%s151 + $0x474] sm:$0xf]
                %528 = vst [vmem:[%s152 + $0x2ec] sm:$0xf] %v527
                %v529 = vld [vmem:[%s151 + $0x478] sm:$0xf]
                %530 = vst [vmem:[%s152 + $0x2f0] sm:$0xf] %v529
                %v531 = vld [vmem:[%s151 + $0x47c] sm:$0xf]
                %532 = vst [vmem:[%s152 + $0x2f4] sm:$0xf] %v531
                %v533 = vld [vmem:[%s151 + $0x480] sm:$0xf]
                %534 = vst [vmem:[%s152 + $0x2f8] sm:$0xf] %v533
                %v535 = vld [vmem:[%s151 + $0x484] sm:$0xf]
                %536 = vst [vmem:[%s152 + $0x2fc] sm:$0xf] %v535
                %v537 = vld [vmem:[%s151 + $0x488] sm:$0xf]
                %538 = vst [vmem:[%s152 + $0x300] sm:$0xf] %v537
                %v539 = vld [vmem:[%s151 + $0x48c] sm:$0xf]
                %540 = vst [vmem:[%s152 + $0x304] sm:$0xf] %v539
                %v541 = vld [vmem:[%s151 + $0x490] sm:$0xf]
                %542 = vst [vmem:[%s152 + $0x308] sm:$0xf] %v541
                %v543 = vld [vmem:[%s151 + $0x494] sm:$0xf]
                %544 = vst [vmem:[%s152 + $0x30c] sm:$0xf] %v543
                %v545 = vld [vmem:[%s151 + $0x620] sm:$0xf]
                %546 = vst [vmem:[%s152 + $0x310] sm:$0xf] %v545
                %v547 = vld [vmem:[%s151 + $0x624] sm:$0xf]
                %548 = vst [vmem:[%s152 + $0x314] sm:$0xf] %v547
                %v549 = vld [vmem:[%s151 + $0x628] sm:$0xf]
                %550 = vst [vmem:[%s152 + $0x318] sm:$0xf] %v549
                %v551 = vld [vmem:[%s151 + $0x62c] sm:$0xf]
                %552 = vst [vmem:[%s152 + $0x31c] sm:$0xf] %v551
                %v553 = vld [vmem:[%s151 + $0x630] sm:$0xf]
                %554 = vst [vmem:[%s152 + $0x320] sm:$0xf] %v553
                %v555 = vld [vmem:[%s151 + $0x634] sm:$0xf]
                %556 = vst [vmem:[%s152 + $0x324] sm:$0xf] %v555
                %v557 = vld [vmem:[%s151 + $0x638] sm:$0xf]
                %558 = vst [vmem:[%s152 + $0x328] sm:$0xf] %v557
                %v559 = vld [vmem:[%s151 + $0x63c] sm:$0xf]
                %560 = vst [vmem:[%s152 + $0x32c] sm:$0xf] %v559
                %v561 = vld [vmem:[%s151 + $0x640] sm:$0xf]
                %562 = vst [vmem:[%s152 + $0x330] sm:$0xf] %v561
                %v563 = vld [vmem:[%s151 + $0x644] sm:$0xf]
                %564 = vst [vmem:[%s152 + $0x334] sm:$0xf] %v563
                %v565 = vld [vmem:[%s151 + $0x648] sm:$0xf]
                %566 = vst [vmem:[%s152 + $0x338] sm:$0xf] %v565
                %v567 = vld [vmem:[%s151 + $0x64c] sm:$0xf]
                %568 = vst [vmem:[%s152 + $0x33c] sm:$0xf] %v567
                %v569 = vld [vmem:[%s151 + $0x650] sm:$0xf]
                %570 = vst [vmem:[%s152 + $0x340] sm:$0xf] %v569
                %v571 = vld [vmem:[%s151 + $0x654] sm:$0xf]
                %572 = vst [vmem:[%s152 + $0x344] sm:$0xf] %v571
                %v573 = vld [vmem:[%s151 + $0x658] sm:$0xf]
                %574 = vst [vmem:[%s152 + $0x348] sm:$0xf] %v573
                %v575 = vld [vmem:[%s151 + $0x65c] sm:$0xf]
                %576 = vst [vmem:[%s152 + $0x34c] sm:$0xf] %v575
                %v577 = vld [vmem:[%s151 + $0x660] sm:$0xf]
                %578 = vst [vmem:[%s152 + $0x350] sm:$0xf] %v577
                %v579 = vld [vmem:[%s151 + $0x664] sm:$0xf]
                %580 = vst [vmem:[%s152 + $0x354] sm:$0xf] %v579
                %v581 = vld [vmem:[%s151 + $0x668] sm:$0xf]
                %582 = vst [vmem:[%s152 + $0x358] sm:$0xf] %v581
                %v583 = vld [vmem:[%s151 + $0x66c] sm:$0xf]
                %584 = vst [vmem:[%s152 + $0x35c] sm:$0xf] %v583
                %v585 = vld [vmem:[%s151 + $0x670] sm:$0xf]
                %586 = vst [vmem:[%s152 + $0x360] sm:$0xf] %v585
                %v587 = vld [vmem:[%s151 + $0x674] sm:$0xf]
                %588 = vst [vmem:[%s152 + $0x364] sm:$0xf] %v587
                %v589 = vld [vmem:[%s151 + $0x678] sm:$0xf]
                %590 = vst [vmem:[%s152 + $0x368] sm:$0xf] %v589
                %v591 = vld [vmem:[%s151 + $0x67c] sm:$0xf]
                %592 = vst [vmem:[%s152 + $0x36c] sm:$0xf] %v591
                %v593 = vld [vmem:[%s151 + $0x680] sm:$0xf]
                %594 = vst [vmem:[%s152 + $0x370] sm:$0xf] %v593
                %v595 = vld [vmem:[%s151 + $0x684] sm:$0xf]
                %596 = vst [vmem:[%s152 + $0x374] sm:$0xf] %v595
                %v597 = vld [vmem:[%s151 + $0x688] sm:$0xf]
                %598 = vst [vmem:[%s152 + $0x378] sm:$0xf] %v597
                %v599 = vld [vmem:[%s151 + $0x68c] sm:$0xf]
                %600 = vst [vmem:[%s152 + $0x37c] sm:$0xf] %v599
                %v601 = vld [vmem:[%s151 + $0x690] sm:$0xf]
                %602 = vst [vmem:[%s152 + $0x380] sm:$0xf] %v601
                %v603 = vld [vmem:[%s151 + $0x694] sm:$0xf]
                %604 = vst [vmem:[%s152 + $0x384] sm:$0xf] %v603
                %v605 = vld [vmem:[%s151 + $0x698] sm:$0xf]
                %606 = vst [vmem:[%s152 + $0x388] sm:$0xf] %v605
                %v607 = vld [vmem:[%s151 + $0x69c] sm:$0xf]
                %608 = vst [vmem:[%s152 + $0x38c] sm:$0xf] %v607
                %v609 = vld [vmem:[%s151 + $0x6a0] sm:$0xf]
                %610 = vst [vmem:[%s152 + $0x390] sm:$0xf] %v609
                %v611 = vld [vmem:[%s151 + $0x6a4] sm:$0xf]
                %612 = vst [vmem:[%s152 + $0x394] sm:$0xf] %v611
                %v613 = vld [vmem:[%s151 + $0x6a8] sm:$0xf]
                %614 = vst [vmem:[%s152 + $0x398] sm:$0xf] %v613
                %v615 = vld [vmem:[%s151 + $0x6ac] sm:$0xf]
                %616 = vst [vmem:[%s152 + $0x39c] sm:$0xf] %v615
                %v617 = vld [vmem:[%s151 + $0x6b0] sm:$0xf]
                %618 = vst [vmem:[%s152 + $0x3a0] sm:$0xf] %v617
                %v619 = vld [vmem:[%s151 + $0x6b4] sm:$0xf]
                %620 = vst [vmem:[%s152 + $0x3a4] sm:$0xf] %v619
                %v621 = vld [vmem:[%s151 + $0x6b8] sm:$0xf]
                %622 = vst [vmem:[%s152 + $0x3a8] sm:$0xf] %v621
                %v623 = vld [vmem:[%s151 + $0x6bc] sm:$0xf]
                %624 = vst [vmem:[%s152 + $0x3ac] sm:$0xf] %v623
                %v625 = vld [vmem:[%s151 + $0x6c0] sm:$0xf]
                %626 = vst [vmem:[%s152 + $0x3b0] sm:$0xf] %v625
                %v627 = vld [vmem:[%s151 + $0x6c4] sm:$0xf]
                %628 = vst [vmem:[%s152 + $0x3b4] sm:$0xf] %v627
                %v629 = vld [vmem:[%s151 + $0x6c8] sm:$0xf]
                %630 = vst [vmem:[%s152 + $0x3b8] sm:$0xf] %v629
                %v631 = vld [vmem:[%s151 + $0x6cc] sm:$0xf]
                %632 = vst [vmem:[%s152 + $0x3bc] sm:$0xf] %v631
                %v633 = vld [vmem:[%s151 + $0x6d0] sm:$0xf]
                %634 = vst [vmem:[%s152 + $0x3c0] sm:$0xf] %v633
                %v635 = vld [vmem:[%s151 + $0x6d4] sm:$0xf]
                %636 = vst [vmem:[%s152 + $0x3c4] sm:$0xf] %v635
                %v637 = vld [vmem:[%s151 + $0x6d8] sm:$0xf]
                %638 = vst [vmem:[%s152 + $0x3c8] sm:$0xf] %v637
                %v639 = vld [vmem:[%s151 + $0x6dc] sm:$0xf]
                %640 = vst [vmem:[%s152 + $0x3cc] sm:$0xf] %v639
                %v641 = vld [vmem:[%s151 + $0x6e0] sm:$0xf]
                %642 = vst [vmem:[%s152 + $0x3d0] sm:$0xf] %v641
                %v643 = vld [vmem:[%s151 + $0x6e4] sm:$0xf]
                %644 = vst [vmem:[%s152 + $0x3d4] sm:$0xf] %v643
                %v645 = vld [vmem:[%s151 + $0x6e8] sm:$0xf]
                %646 = vst [vmem:[%s152 + $0x3d8] sm:$0xf] %v645
                %v647 = vld [vmem:[%s151 + $0x6ec] sm:$0xf]
                %648 = vst [vmem:[%s152 + $0x3dc] sm:$0xf] %v647
                %v649 = vld [vmem:[%s151 + $0x6f0] sm:$0xf]
                %650 = vst [vmem:[%s152 + $0x3e0] sm:$0xf] %v649
                %v651 = vld [vmem:[%s151 + $0x6f4] sm:$0xf]
                %652 = vst [vmem:[%s152 + $0x3e4] sm:$0xf] %v651
                %v653 = vld [vmem:[%s151 + $0x6f8] sm:$0xf]
                %654 = vst [vmem:[%s152 + $0x3e8] sm:$0xf] %v653
                %v655 = vld [vmem:[%s151 + $0x6fc] sm:$0xf]
                %656 = vst [vmem:[%s152 + $0x3ec] sm:$0xf] %v655
                %v657 = vld [vmem:[%s151 + $0x700] sm:$0xf]
                %658 = vst [vmem:[%s152 + $0x3f0] sm:$0xf] %v657
                %v659 = vld [vmem:[%s151 + $0x704] sm:$0xf]
                %660 = vst [vmem:[%s152 + $0x3f4] sm:$0xf] %v659
                %v661 = vld [vmem:[%s151 + $0x708] sm:$0xf]
                %662 = vst [vmem:[%s152 + $0x3f8] sm:$0xf] %v661
                %v663 = vld [vmem:[%s151 + $0x70c] sm:$0xf]
                %664 = vst [vmem:[%s152 + $0x3fc] sm:$0xf] %v663
                %v665 = vld [vmem:[%s151 + $0x710] sm:$0xf]
                %666 = vst [vmem:[%s152 + $0x400] sm:$0xf] %v665
                %v667 = vld [vmem:[%s151 + $0x714] sm:$0xf]
                %668 = vst [vmem:[%s152 + $0x404] sm:$0xf] %v667
                %v669 = vld [vmem:[%s151 + $0x718] sm:$0xf]
                %670 = vst [vmem:[%s152 + $0x408] sm:$0xf] %v669
                %v671 = vld [vmem:[%s151 + $0x71c] sm:$0xf]
                %672 = vst [vmem:[%s152 + $0x40c] sm:$0xf] %v671
                %v673 = vld [vmem:[%s151 + $0x720] sm:$0xf]
                %674 = vst [vmem:[%s152 + $0x410] sm:$0xf] %v673
                %v675 = vld [vmem:[%s151 + $0x724] sm:$0xf]
                %676 = vst [vmem:[%s152 + $0x414] sm:$0xf] %v675
                %v677 = vld [vmem:[%s151 + $0x728] sm:$0xf]
                %678 = vst [vmem:[%s152 + $0x418] sm:$0xf] %v677
                %v679 = vld [vmem:[%s151 + $0x72c] sm:$0xf]
                %680 = vst [vmem:[%s152 + $0x41c] sm:$0xf] %v679
                %v681 = vld [vmem:[%s151 + $0x730] sm:$0xf]
                %682 = vst [vmem:[%s152 + $0x420] sm:$0xf] %v681
                %v683 = vld [vmem:[%s151 + $0x734] sm:$0xf]
                %684 = vst [vmem:[%s152 + $0x424] sm:$0xf] %v683
                %v685 = vld [vmem:[%s151 + $0x738] sm:$0xf]
                %686 = vst [vmem:[%s152 + $0x428] sm:$0xf] %v685
                %v687 = vld [vmem:[%s151 + $0x73c] sm:$0xf]
                %688 = vst [vmem:[%s152 + $0x42c] sm:$0xf] %v687
                %v689 = vld [vmem:[%s151 + $0x740] sm:$0xf]
                %690 = vst [vmem:[%s152 + $0x430] sm:$0xf] %v689
                %v691 = vld [vmem:[%s151 + $0x744] sm:$0xf]
                %692 = vst [vmem:[%s152 + $0x434] sm:$0xf] %v691
                %v693 = vld [vmem:[%s151 + $0x748] sm:$0xf]
                %694 = vst [vmem:[%s152 + $0x438] sm:$0xf] %v693
                %v695 = vld [vmem:[%s151 + $0x74c] sm:$0xf]
                %696 = vst [vmem:[%s152 + $0x43c] sm:$0xf] %v695
                %v697 = vld [vmem:[%s151 + $0x750] sm:$0xf]
                %698 = vst [vmem:[%s152 + $0x440] sm:$0xf] %v697
                %v699 = vld [vmem:[%s151 + $0x754] sm:$0xf]
                %700 = vst [vmem:[%s152 + $0x444] sm:$0xf] %v699
                %v701 = vld [vmem:[%s151 + $0x758] sm:$0xf]
                %702 = vst [vmem:[%s152 + $0x448] sm:$0xf] %v701
                %v703 = vld [vmem:[%s151 + $0x75c] sm:$0xf]
                %704 = vst [vmem:[%s152 + $0x44c] sm:$0xf] %v703
                %v705 = vld [vmem:[%s151 + $0x760] sm:$0xf]
                %706 = vst [vmem:[%s152 + $0x450] sm:$0xf] %v705
                %v707 = vld [vmem:[%s151 + $0x764] sm:$0xf]
                %708 = vst [vmem:[%s152 + $0x454] sm:$0xf] %v707
                %v709 = vld [vmem:[%s151 + $0x768] sm:$0xf]
                %710 = vst [vmem:[%s152 + $0x458] sm:$0xf] %v709
                %v711 = vld [vmem:[%s151 + $0x76c] sm:$0xf]
                %712 = vst [vmem:[%s152 + $0x45c] sm:$0xf] %v711
                %v713 = vld [vmem:[%s151 + $0x770] sm:$0xf]
                %714 = vst [vmem:[%s152 + $0x460] sm:$0xf] %v713
                %v715 = vld [vmem:[%s151 + $0x774] sm:$0xf]
                %716 = vst [vmem:[%s152 + $0x464] sm:$0xf] %v715
                %v717 = vld [vmem:[%s151 + $0x778] sm:$0xf]
                %718 = vst [vmem:[%s152 + $0x468] sm:$0xf] %v717
                %v719 = vld [vmem:[%s151 + $0x77c] sm:$0xf]
                %720 = vst [vmem:[%s152 + $0x46c] sm:$0xf] %v719
                %v721 = vld [vmem:[%s151 + $0x780] sm:$0xf]
                %722 = vst [vmem:[%s152 + $0x470] sm:$0xf] %v721
                %v723 = vld [vmem:[%s151 + $0x784] sm:$0xf]
                %724 = vst [vmem:[%s152 + $0x474] sm:$0xf] %v723
                %v725 = vld [vmem:[%s151 + $0x788] sm:$0xf]
                %726 = vst [vmem:[%s152 + $0x478] sm:$0xf] %v725
                %v727 = vld [vmem:[%s151 + $0x78c] sm:$0xf]
                %728 = vst [vmem:[%s152 + $0x47c] sm:$0xf] %v727
                %v729 = vld [vmem:[%s151 + $0x790] sm:$0xf]
                %730 = vst [vmem:[%s152 + $0x480] sm:$0xf] %v729
                %v731 = vld [vmem:[%s151 + $0x794] sm:$0xf]
                %732 = vst [vmem:[%s152 + $0x484] sm:$0xf] %v731
                %v733 = vld [vmem:[%s151 + $0x798] sm:$0xf]
                %734 = vst [vmem:[%s152 + $0x488] sm:$0xf] %v733
                %v735 = vld [vmem:[%s151 + $0x79c] sm:$0xf]
                %736 = vst [vmem:[%s152 + $0x48c] sm:$0xf] %v735
                %v737 = vld [vmem:[%s151 + $0x7a0] sm:$0xf]
                %738 = vst [vmem:[%s152 + $0x490] sm:$0xf] %v737
                %v739 = vld [vmem:[%s151 + $0x7a4] sm:$0xf]
                %740 = vst [vmem:[%s152 + $0x494] sm:$0xf] %v739
                %v741 = vld [vmem:[%s151 + $0x930] sm:$0xf]
                %742 = vst [vmem:[%s152 + $0x498] sm:$0xf] %v741
                %v743 = vld [vmem:[%s151 + $0x934] sm:$0xf]
                %744 = vst [vmem:[%s152 + $0x49c] sm:$0xf] %v743
                %v745 = vld [vmem:[%s151 + $0x938] sm:$0xf]
                %746 = vst [vmem:[%s152 + $0x4a0] sm:$0xf] %v745
                %v747 = vld [vmem:[%s151 + $0x93c] sm:$0xf]
                %748 = vst [vmem:[%s152 + $0x4a4] sm:$0xf] %v747
                %v749 = vld [vmem:[%s151 + $0x940] sm:$0xf]
                %750 = vst [vmem:[%s152 + $0x4a8] sm:$0xf] %v749
                %v751 = vld [vmem:[%s151 + $0x944] sm:$0xf]
                %752 = vst [vmem:[%s152 + $0x4ac] sm:$0xf] %v751
                %v753 = vld [vmem:[%s151 + $0x948] sm:$0xf]
                %754 = vst [vmem:[%s152 + $0x4b0] sm:$0xf] %v753
                %v755 = vld [vmem:[%s151 + $0x94c] sm:$0xf]
                %756 = vst [vmem:[%s152 + $0x4b4] sm:$0xf] %v755
                %v757 = vld [vmem:[%s151 + $0x950] sm:$0xf]
                %758 = vst [vmem:[%s152 + $0x4b8] sm:$0xf] %v757
                %v759 = vld [vmem:[%s151 + $0x954] sm:$0xf]
                %760 = vst [vmem:[%s152 + $0x4bc] sm:$0xf] %v759
                %v761 = vld [vmem:[%s151 + $0x958] sm:$0xf]
                %762 = vst [vmem:[%s152 + $0x4c0] sm:$0xf] %v761
                %v763 = vld [vmem:[%s151 + $0x95c] sm:$0xf]
                %764 = vst [vmem:[%s152 + $0x4c4] sm:$0xf] %v763
                %v765 = vld [vmem:[%s151 + $0x960] sm:$0xf]
                %766 = vst [vmem:[%s152 + $0x4c8] sm:$0xf] %v765
                %v767 = vld [vmem:[%s151 + $0x964] sm:$0xf]
                %768 = vst [vmem:[%s152 + $0x4cc] sm:$0xf] %v767
                %v769 = vld [vmem:[%s151 + $0x968] sm:$0xf]
                %770 = vst [vmem:[%s152 + $0x4d0] sm:$0xf] %v769
                %v771 = vld [vmem:[%s151 + $0x96c] sm:$0xf]
                %772 = vst [vmem:[%s152 + $0x4d4] sm:$0xf] %v771
                %v773 = vld [vmem:[%s151 + $0x970] sm:$0xf]
                %774 = vst [vmem:[%s152 + $0x4d8] sm:$0xf] %v773
                %v775 = vld [vmem:[%s151 + $0x974] sm:$0xf]
                %776 = vst [vmem:[%s152 + $0x4dc] sm:$0xf] %v775
                %v777 = vld [vmem:[%s151 + $0x978] sm:$0xf]
                %778 = vst [vmem:[%s152 + $0x4e0] sm:$0xf] %v777
                %v779 = vld [vmem:[%s151 + $0x97c] sm:$0xf]
                %780 = vst [vmem:[%s152 + $0x4e4] sm:$0xf] %v779
                %v781 = vld [vmem:[%s151 + $0x980] sm:$0xf]
                %782 = vst [vmem:[%s152 + $0x4e8] sm:$0xf] %v781
                %v783 = vld [vmem:[%s151 + $0x984] sm:$0xf]
                %784 = vst [vmem:[%s152 + $0x4ec] sm:$0xf] %v783
                %v785 = vld [vmem:[%s151 + $0x988] sm:$0xf]
                %786 = vst [vmem:[%s152 + $0x4f0] sm:$0xf] %v785
                %v787 = vld [vmem:[%s151 + $0x98c] sm:$0xf]
                %788 = vst [vmem:[%s152 + $0x4f4] sm:$0xf] %v787
                %v789 = vld [vmem:[%s151 + $0x990] sm:$0xf]
                %790 = vst [vmem:[%s152 + $0x4f8] sm:$0xf] %v789
                %v791 = vld [vmem:[%s151 + $0x994] sm:$0xf]
                %792 = vst [vmem:[%s152 + $0x4fc] sm:$0xf] %v791
                %v793 = vld [vmem:[%s151 + $0x998] sm:$0xf]
                %794 = vst [vmem:[%s152 + $0x500] sm:$0xf] %v793
                %v795 = vld [vmem:[%s151 + $0x99c] sm:$0xf]
                %796 = vst [vmem:[%s152 + $0x504] sm:$0xf] %v795
                %v797 = vld [vmem:[%s151 + $0x9a0] sm:$0xf]
                %798 = vst [vmem:[%s152 + $0x508] sm:$0xf] %v797
                %v799 = vld [vmem:[%s151 + $0x9a4] sm:$0xf]
                %800 = vst [vmem:[%s152 + $0x50c] sm:$0xf] %v799
                %v801 = vld [vmem:[%s151 + $0x9a8] sm:$0xf]
                %802 = vst [vmem:[%s152 + $0x510] sm:$0xf] %v801
                %v803 = vld [vmem:[%s151 + $0x9ac] sm:$0xf]
                %804 = vst [vmem:[%s152 + $0x514] sm:$0xf] %v803
                %v805 = vld [vmem:[%s151 + $0x9b0] sm:$0xf]
                %806 = vst [vmem:[%s152 + $0x518] sm:$0xf] %v805
                %v807 = vld [vmem:[%s151 + $0x9b4] sm:$0xf]
                %808 = vst [vmem:[%s152 + $0x51c] sm:$0xf] %v807
                %v809 = vld [vmem:[%s151 + $0x9b8] sm:$0xf]
                %810 = vst [vmem:[%s152 + $0x520] sm:$0xf] %v809
                %v811 = vld [vmem:[%s151 + $0x9bc] sm:$0xf]
                %812 = vst [vmem:[%s152 + $0x524] sm:$0xf] %v811
                %v813 = vld [vmem:[%s151 + $0x9c0] sm:$0xf]
                %814 = vst [vmem:[%s152 + $0x528] sm:$0xf] %v813
                %v815 = vld [vmem:[%s151 + $0x9c4] sm:$0xf]
                %816 = vst [vmem:[%s152 + $0x52c] sm:$0xf] %v815
                %v817 = vld [vmem:[%s151 + $0x9c8] sm:$0xf]
                %818 = vst [vmem:[%s152 + $0x530] sm:$0xf] %v817
                %v819 = vld [vmem:[%s151 + $0x9cc] sm:$0xf]
                %820 = vst [vmem:[%s152 + $0x534] sm:$0xf] %v819
                %v821 = vld [vmem:[%s151 + $0x9d0] sm:$0xf]
                %822 = vst [vmem:[%s152 + $0x538] sm:$0xf] %v821
                %v823 = vld [vmem:[%s151 + $0x9d4] sm:$0xf]
                %824 = vst [vmem:[%s152 + $0x53c] sm:$0xf] %v823
                %v825 = vld [vmem:[%s151 + $0x9d8] sm:$0xf]
                %826 = vst [vmem:[%s152 + $0x540] sm:$0xf] %v825
                %v827 = vld [vmem:[%s151 + $0x9dc] sm:$0xf]
                %828 = vst [vmem:[%s152 + $0x544] sm:$0xf] %v827
                %v829 = vld [vmem:[%s151 + $0x9e0] sm:$0xf]
                %830 = vst [vmem:[%s152 + $0x548] sm:$0xf] %v829
                %v831 = vld [vmem:[%s151 + $0x9e4] sm:$0xf]
                %832 = vst [vmem:[%s152 + $0x54c] sm:$0xf] %v831
                %v833 = vld [vmem:[%s151 + $0x9e8] sm:$0xf]
                %834 = vst [vmem:[%s152 + $0x550] sm:$0xf] %v833
                %v835 = vld [vmem:[%s151 + $0x9ec] sm:$0xf]
                %836 = vst [vmem:[%s152 + $0x554] sm:$0xf] %v835
                %v837 = vld [vmem:[%s151 + $0x9f0] sm:$0xf]
                %838 = vst [vmem:[%s152 + $0x558] sm:$0xf] %v837
                %v839 = vld [vmem:[%s151 + $0x9f4] sm:$0xf]
                %840 = vst [vmem:[%s152 + $0x55c] sm:$0xf] %v839
                %v841 = vld [vmem:[%s151 + $0x9f8] sm:$0xf]
                %842 = vst [vmem:[%s152 + $0x560] sm:$0xf] %v841
                %v843 = vld [vmem:[%s151 + $0x9fc] sm:$0xf]
                %844 = vst [vmem:[%s152 + $0x564] sm:$0xf] %v843
                %v845 = vld [vmem:[%s151 + $0xa00] sm:$0xf]
                %846 = vst [vmem:[%s152 + $0x568] sm:$0xf] %v845
                %v847 = vld [vmem:[%s151 + $0xa04] sm:$0xf]
                %848 = vst [vmem:[%s152 + $0x56c] sm:$0xf] %v847
                %v849 = vld [vmem:[%s151 + $0xa08] sm:$0xf]
                %850 = vst [vmem:[%s152 + $0x570] sm:$0xf] %v849
                %v851 = vld [vmem:[%s151 + $0xa0c] sm:$0xf]
                %852 = vst [vmem:[%s152 + $0x574] sm:$0xf] %v851
                %v853 = vld [vmem:[%s151 + $0xa10] sm:$0xf]
                %854 = vst [vmem:[%s152 + $0x578] sm:$0xf] %v853
                %v855 = vld [vmem:[%s151 + $0xa14] sm:$0xf]
                %856 = vst [vmem:[%s152 + $0x57c] sm:$0xf] %v855
                %v857 = vld [vmem:[%s151 + $0xa18] sm:$0xf]
                %858 = vst [vmem:[%s152 + $0x580] sm:$0xf] %v857
                %v859 = vld [vmem:[%s151 + $0xa1c] sm:$0xf]
                %860 = vst [vmem:[%s152 + $0x584] sm:$0xf] %v859
                %v861 = vld [vmem:[%s151 + $0xa20] sm:$0xf]
                %862 = vst [vmem:[%s152 + $0x588] sm:$0xf] %v861
                %v863 = vld [vmem:[%s151 + $0xa24] sm:$0xf]
                %864 = vst [vmem:[%s152 + $0x58c] sm:$0xf] %v863
                %v865 = vld [vmem:[%s151 + $0xa28] sm:$0xf]
                %866 = vst [vmem:[%s152 + $0x590] sm:$0xf] %v865
                %v867 = vld [vmem:[%s151 + $0xa2c] sm:$0xf]
                %868 = vst [vmem:[%s152 + $0x594] sm:$0xf] %v867
                %v869 = vld [vmem:[%s151 + $0xa30] sm:$0xf]
                %870 = vst [vmem:[%s152 + $0x598] sm:$0xf] %v869
                %v871 = vld [vmem:[%s151 + $0xa34] sm:$0xf]
                %872 = vst [vmem:[%s152 + $0x59c] sm:$0xf] %v871
                %v873 = vld [vmem:[%s151 + $0xa38] sm:$0xf]
                %874 = vst [vmem:[%s152 + $0x5a0] sm:$0xf] %v873
                %v875 = vld [vmem:[%s151 + $0xa3c] sm:$0xf]
                %876 = vst [vmem:[%s152 + $0x5a4] sm:$0xf] %v875
                %v877 = vld [vmem:[%s151 + $0xa40] sm:$0xf]
                %878 = vst [vmem:[%s152 + $0x5a8] sm:$0xf] %v877
                %v879 = vld [vmem:[%s151 + $0xa44] sm:$0xf]
                %880 = vst [vmem:[%s152 + $0x5ac] sm:$0xf] %v879
                %v881 = vld [vmem:[%s151 + $0xa48] sm:$0xf]
                %882 = vst [vmem:[%s152 + $0x5b0] sm:$0xf] %v881
                %v883 = vld [vmem:[%s151 + $0xa4c] sm:$0xf]
                %884 = vst [vmem:[%s152 + $0x5b4] sm:$0xf] %v883
                %v885 = vld [vmem:[%s151 + $0xa50] sm:$0xf]
                %886 = vst [vmem:[%s152 + $0x5b8] sm:$0xf] %v885
                %v887 = vld [vmem:[%s151 + $0xa54] sm:$0xf]
                %888 = vst [vmem:[%s152 + $0x5bc] sm:$0xf] %v887
                %v889 = vld [vmem:[%s151 + $0xa58] sm:$0xf]
                %890 = vst [vmem:[%s152 + $0x5c0] sm:$0xf] %v889
                %v891 = vld [vmem:[%s151 + $0xa5c] sm:$0xf]
                %892 = vst [vmem:[%s152 + $0x5c4] sm:$0xf] %v891
                %v893 = vld [vmem:[%s151 + $0xa60] sm:$0xf]
                %894 = vst [vmem:[%s152 + $0x5c8] sm:$0xf] %v893
                %v895 = vld [vmem:[%s151 + $0xa64] sm:$0xf]
                %896 = vst [vmem:[%s152 + $0x5cc] sm:$0xf] %v895
                %v897 = vld [vmem:[%s151 + $0xa68] sm:$0xf]
                %898 = vst [vmem:[%s152 + $0x5d0] sm:$0xf] %v897
                %v899 = vld [vmem:[%s151 + $0xa6c] sm:$0xf]
                %900 = vst [vmem:[%s152 + $0x5d4] sm:$0xf] %v899
                %v901 = vld [vmem:[%s151 + $0xa70] sm:$0xf]
                %902 = vst [vmem:[%s152 + $0x5d8] sm:$0xf] %v901
                %v903 = vld [vmem:[%s151 + $0xa74] sm:$0xf]
                %904 = vst [vmem:[%s152 + $0x5dc] sm:$0xf] %v903
                %v905 = vld [vmem:[%s151 + $0xa78] sm:$0xf]
                %906 = vst [vmem:[%s152 + $0x5e0] sm:$0xf] %v905
                %v907 = vld [vmem:[%s151 + $0xa7c] sm:$0xf]
                %908 = vst [vmem:[%s152 + $0x5e4] sm:$0xf] %v907
                %v909 = vld [vmem:[%s151 + $0xa80] sm:$0xf]
                %910 = vst [vmem:[%s152 + $0x5e8] sm:$0xf] %v909
                %v911 = vld [vmem:[%s151 + $0xa84] sm:$0xf]
                %912 = vst [vmem:[%s152 + $0x5ec] sm:$0xf] %v911
                %v913 = vld [vmem:[%s151 + $0xa88] sm:$0xf]
                %914 = vst [vmem:[%s152 + $0x5f0] sm:$0xf] %v913
                %v915 = vld [vmem:[%s151 + $0xa8c] sm:$0xf]
                %916 = vst [vmem:[%s152 + $0x5f4] sm:$0xf] %v915
                %v917 = vld [vmem:[%s151 + $0xa90] sm:$0xf]
                %918 = vst [vmem:[%s152 + $0x5f8] sm:$0xf] %v917
                %v919 = vld [vmem:[%s151 + $0xa94] sm:$0xf]
                %920 = vst [vmem:[%s152 + $0x5fc] sm:$0xf] %v919
                %v921 = vld [vmem:[%s151 + $0xa98] sm:$0xf]
                %922 = vst [vmem:[%s152 + $0x600] sm:$0xf] %v921
                %v923 = vld [vmem:[%s151 + $0xa9c] sm:$0xf]
                %924 = vst [vmem:[%s152 + $0x604] sm:$0xf] %v923
                %v925 = vld [vmem:[%s151 + $0xaa0] sm:$0xf]
                %926 = vst [vmem:[%s152 + $0x608] sm:$0xf] %v925
                %v927 = vld [vmem:[%s151 + $0xaa4] sm:$0xf]
                %928 = vst [vmem:[%s152 + $0x60c] sm:$0xf] %v927
                %v929 = vld [vmem:[%s151 + $0xaa8] sm:$0xf]
                %930 = vst [vmem:[%s152 + $0x610] sm:$0xf] %v929
                %v931 = vld [vmem:[%s151 + $0xaac] sm:$0xf]
                %932 = vst [vmem:[%s152 + $0x614] sm:$0xf] %v931
                %v933 = vld [vmem:[%s151 + $0xab0] sm:$0xf]
                %934 = vst [vmem:[%s152 + $0x618] sm:$0xf] %v933
                %v935 = vld [vmem:[%s151 + $0xab4] sm:$0xf]
                %936 = vst [vmem:[%s152 + $0x61c] sm:$0xf] %v935
              $region45: #{net_forward.3} parent=39 // loop_footer
                %s150 = sadd.s32 1, %s146
              $region46: #{net_forward.3} parent=39 // loop_footer_branch
                %145 = sbr.rel target = $region42
              $region47: #{net_forward.3} parent=39 // loop_exit
                _
            $region40: #{net_forward.3} parent=31 // pred_fallthru
              _
          $region32: #{net_forward.3} parent=27 // pred_fallthru
            _
          %1740 = vnop
        $region28: #{net_forward.3} parent=23 // pred_fallthru
          _
      $region24: #{net_forward.3} parent=5 // pred_fallthru
        _
      %p1741 = scmp.le.s32.totalorder 1, %s9
      %p1742 = scmp.lt.s32.totalorder %s9, 3
      %p1743 = pnand %p1741, %p1742
      %p1744 = pneg %p1743
      // Predicated region
      $region66: #{net_forward.3} parent=5 // pred_check
        _
      $region67: #{net_forward.3} parent=5 // pred_check_branch
        %1746 = sbr.rel (%p1743) target = $region69
      $region68: #{net_forward.3} parent=5 // pred_region
        %s1747 = ssub.s32 %s9, 1
        %s1748 = sand.u32 %s22, 1
        %s1749 = sand.u32 %s22, 1
        %s1750 = smul.addr %s1749, 1568
        %s1751 = scalar_lea.vmem [#allocation2], %s1750
        // Predicated region
        $region70: #{net_forward.3} parent=68 // pred_check
          %p1752 = pneg %p35
        $region71: #{net_forward.3} parent=68 // pred_check_branch
          %1754 = sbr.rel (%p1752) target = $region73
        $region72: #{net_forward.3} parent=68 // pred_region
          _
        $region73: #{net_forward.3} parent=68 // pred_fallthru
          _
        %s1755 = sand.u32 %s22, 1
        %s1756 = sand.u32 %s22, 1
        %s1757 = smul.addr %s1756, 1568
        %s1758 = scalar_lea.vmem [#allocation2], %s1757
        %p1759 = pneg %p35
        %p1760 = pneg %p32
        %p1761 = pneg %p56
        %p1762 = pneg %p53
        %p1763 = pneg %p77
        %p1764 = pneg %p74
        %p1765 = pneg %p103
        %p1766 = pneg %p100
        %s1767 = smul.u32 98, %s14
        %p1768 = scmp.lt.s32.totalorder %s1767, 195
        %s1769 = scalar_select %p1768, %s1767, 195
        %s1770 = smul.addr %s1769, 4
        %s1771 = scalar_lea.vmem %s3, %s1770
        %s1772 = smul.u32 98, %s14
        %s1773 = smul.u32 98, %s14
        %p1774 = scmp.lt.s32.totalorder %s1773, 195
        %s1775 = scalar_select %p1774, %s1773, 195
        %s1776 = smul.addr %s1775, 4
        %s1777 = scalar_lea.vmem %s3, %s1776
        %s1778 = smul.u32 98, %s14
        %v1780 = vld [vmem:[%s1] sm:$0xf]
        %v1781 = vld [vmem:[%s1 + $0x4] sm:$0xf]
        %v1782 = vld [vmem:[%s1 + $0x8] sm:$0xf]
        %v1783 = vld [vmem:[%s1 + $0xc] sm:$0xf]
        %v1784 = vld [vmem:[%s1 + $0x10] sm:$0xf]
        %v1785 = vld [vmem:[%s1 + $0x14] sm:$0xf]
        %v1786 = vld [vmem:[%s1 + $0x18] sm:$0xf]
        %v1787 = vld [vmem:[%s1 + $0x1c] sm:$0xf]
        %v1788 = vld [vmem:[%s1 + $0x20] sm:$0xf]
        %v1789 = vld [vmem:[%s1 + $0x24] sm:$0xf]
        %v1790 = vld [vmem:[%s1 + $0x28] sm:$0xf]
        %v1791 = vld [vmem:[%s1 + $0x2c] sm:$0xf]
        %v1792 = vld [vmem:[%s1 + $0x30] sm:$0xf]
        %v1793 = vld [vmem:[%s1 + $0x34] sm:$0xf]
        %v1794 = vld [vmem:[%s1 + $0x38] sm:$0xf]
        %v1795 = vld [vmem:[%s1 + $0x3c] sm:$0xf]
        %v1796 = vld [vmem:[%s1751] sm:$0xf]
        %v1797 = vld [vmem:[%s1751 + $0x4] sm:$0xf]
        %v1798 = vld [vmem:[%s1751 + $0x8] sm:$0xf]
        %v1799 = vld [vmem:[%s1751 + $0xc] sm:$0xf]
        %v1800 = vld [vmem:[%s1751 + $0x10] sm:$0xf]
        %v1801 = vld [vmem:[%s1751 + $0x14] sm:$0xf]
        %v1802 = vld [vmem:[%s1751 + $0x18] sm:$0xf]
        %v1803 = vld [vmem:[%s1751 + $0x1c] sm:$0xf]
        %v1804 = vld [vmem:[%s1751 + $0x20] sm:$0xf]
        %v1805 = vld [vmem:[%s1751 + $0x24] sm:$0xf]
        %v1806 = vld [vmem:[%s1751 + $0x28] sm:$0xf]
        %v1807 = vld [vmem:[%s1751 + $0x2c] sm:$0xf]
        %v1808 = vld [vmem:[%s1751 + $0x30] sm:$0xf]
        %v1809 = vld [vmem:[%s1751 + $0x34] sm:$0xf]
        %v1810 = vld [vmem:[%s1751 + $0x38] sm:$0xf]
        %v1811 = vld [vmem:[%s1751 + $0x3c] sm:$0xf]
        %v1812 = vld [vmem:[%s1751 + $0x40] sm:$0xf]
        %v1813 = vld [vmem:[%s1751 + $0x44] sm:$0xf]
        %v1814 = vld [vmem:[%s1751 + $0x48] sm:$0xf]
        %v1815 = vld [vmem:[%s1751 + $0x4c] sm:$0xf]
        %v1816 = vld [vmem:[%s1751 + $0x50] sm:$0xf]
        %v1817 = vld [vmem:[%s1751 + $0x54] sm:$0xf]
        %v1818 = vld [vmem:[%s1751 + $0x58] sm:$0xf]
        %v1819 = vld [vmem:[%s1751 + $0x5c] sm:$0xf]
        %v1820 = vld [vmem:[%s1751 + $0x60] sm:$0xf]
        %v1821 = vld [vmem:[%s1751 + $0x64] sm:$0xf]
        %v1822 = vld [vmem:[%s1751 + $0x68] sm:$0xf]
        %v1823 = vld [vmem:[%s1751 + $0x6c] sm:$0xf]
        %v1824 = vld [vmem:[%s1751 + $0x70] sm:$0xf]
        %v1825 = vld [vmem:[%s1751 + $0x74] sm:$0xf]
        %v1826 = vld [vmem:[%s1751 + $0x78] sm:$0xf]
        %v1827 = vld [vmem:[%s1751 + $0x7c] sm:$0xf]
        %v1828 = vld [vmem:[%s1751 + $0x80] sm:$0xf]
        %v1829 = vld [vmem:[%s1751 + $0x84] sm:$0xf]
        %v1830 = vld [vmem:[%s1751 + $0x88] sm:$0xf]
        %v1831 = vld [vmem:[%s1751 + $0x8c] sm:$0xf]
        %v1832 = vld [vmem:[%s1751 + $0x90] sm:$0xf]
        %v1833 = vld [vmem:[%s1751 + $0x94] sm:$0xf]
        %v1834 = vld [vmem:[%s1751 + $0x98] sm:$0xf]
        %v1835 = vld [vmem:[%s1751 + $0x9c] sm:$0xf]
        %v1836 = vld [vmem:[%s1751 + $0xa0] sm:$0xf]
        %v1837 = vld [vmem:[%s1751 + $0xa4] sm:$0xf]
        %v1838 = vld [vmem:[%s1751 + $0xa8] sm:$0xf]
        %v1839 = vld [vmem:[%s1751 + $0xac] sm:$0xf]
        %v1840 = vld [vmem:[%s1751 + $0xb0] sm:$0xf]
        %v1841 = vld [vmem:[%s1751 + $0xb4] sm:$0xf]
        %v1842 = vld [vmem:[%s1751 + $0xb8] sm:$0xf]
        %v1843 = vld [vmem:[%s1751 + $0xbc] sm:$0xf]
        %v1844 = vld [vmem:[%s1751 + $0xc0] sm:$0xf]
        %v1845 = vld [vmem:[%s1751 + $0xc4] sm:$0xf]
        %v1846 = vld [vmem:[%s1751 + $0xc8] sm:$0xf]
        %v1847 = vld [vmem:[%s1751 + $0xcc] sm:$0xf]
        %v1848 = vld [vmem:[%s1751 + $0xd0] sm:$0xf]
        %v1849 = vld [vmem:[%s1751 + $0xd4] sm:$0xf]
        %v1850 = vld [vmem:[%s1751 + $0xd8] sm:$0xf]
        %v1851 = vld [vmem:[%s1751 + $0xdc] sm:$0xf]
        %v1852 = vld [vmem:[%s1751 + $0xe0] sm:$0xf]
        %v1853 = vld [vmem:[%s1751 + $0xe4] sm:$0xf]
        %v1854 = vld [vmem:[%s1751 + $0xe8] sm:$0xf]
        %v1855 = vld [vmem:[%s1751 + $0xec] sm:$0xf]
        %v1856 = vld [vmem:[%s1751 + $0xf0] sm:$0xf]
        %v1857 = vld [vmem:[%s1751 + $0xf4] sm:$0xf]
        %v1858 = vld [vmem:[%s1751 + $0xf8] sm:$0xf]
        %v1859 = vld [vmem:[%s1751 + $0xfc] sm:$0xf]
        %v1860 = vld [vmem:[%s1751 + $0x100] sm:$0xf]
        %v1861 = vld [vmem:[%s1751 + $0x104] sm:$0xf]
        %v1862 = vld [vmem:[%s1751 + $0x108] sm:$0xf]
        %v1863 = vld [vmem:[%s1751 + $0x10c] sm:$0xf]
        %v1864 = vld [vmem:[%s1751 + $0x110] sm:$0xf]
        %v1865 = vld [vmem:[%s1751 + $0x114] sm:$0xf]
        %v1866 = vld [vmem:[%s1751 + $0x118] sm:$0xf]
        %v1867 = vld [vmem:[%s1751 + $0x11c] sm:$0xf]
        %v1868 = vld [vmem:[%s1751 + $0x120] sm:$0xf]
        %v1869 = vld [vmem:[%s1751 + $0x124] sm:$0xf]
        %v1870 = vld [vmem:[%s1751 + $0x128] sm:$0xf]
        %v1871 = vld [vmem:[%s1751 + $0x12c] sm:$0xf]
        %v1872 = vld [vmem:[%s1751 + $0x130] sm:$0xf]
        %v1873 = vld [vmem:[%s1751 + $0x134] sm:$0xf]
        %v1874 = vld [vmem:[%s1751 + $0x138] sm:$0xf]
        %v1875 = vld [vmem:[%s1751 + $0x13c] sm:$0xf]
        %v1876 = vld [vmem:[%s1751 + $0x140] sm:$0xf]
        %v1877 = vld [vmem:[%s1751 + $0x144] sm:$0xf]
        %v1878 = vld [vmem:[%s1751 + $0x148] sm:$0xf]
        %v1879 = vld [vmem:[%s1751 + $0x14c] sm:$0xf]
        %v1880 = vld [vmem:[%s1751 + $0x150] sm:$0xf]
        %v1881 = vld [vmem:[%s1751 + $0x154] sm:$0xf]
        %v1882 = vld [vmem:[%s1751 + $0x158] sm:$0xf]
        %v1883 = vld [vmem:[%s1751 + $0x15c] sm:$0xf]
        %v1884 = vld [vmem:[%s1751 + $0x160] sm:$0xf]
        %v1885 = vld [vmem:[%s1751 + $0x164] sm:$0xf]
        %v1886 = vld [vmem:[%s1751 + $0x168] sm:$0xf]
        %v1887 = vld [vmem:[%s1751 + $0x16c] sm:$0xf]
        %v1888 = vld [vmem:[%s1751 + $0x170] sm:$0xf]
        %v1889 = vld [vmem:[%s1751 + $0x174] sm:$0xf]
        %v1890 = vld [vmem:[%s1751 + $0x178] sm:$0xf]
        %v1891 = vld [vmem:[%s1751 + $0x17c] sm:$0xf]
        %v1892 = vld [vmem:[%s1751 + $0x180] sm:$0xf]
        %v1893 = vld [vmem:[%s1751 + $0x184] sm:$0xf]
        %v1992 = vunpack.c.l.b16 %v1796
        %v1993 = vunpack.c.l.b16 %v1797
        %v1994 = vunpack.c.l.b16 %v1798
        %v1995 = vunpack.c.l.b16 %v1799
        %v1996 = vunpack.c.l.b16 %v1800
        %v1997 = vunpack.c.l.b16 %v1801
        %v1998 = vunpack.c.l.b16 %v1802
        %v1999 = vunpack.c.l.b16 %v1803
        %v2000 = vunpack.c.l.b16 %v1804
        %v2001 = vunpack.c.l.b16 %v1805
        %v2002 = vunpack.c.l.b16 %v1806
        %v2003 = vunpack.c.l.b16 %v1807
        %v2004 = vunpack.c.l.b16 %v1808
        %v2005 = vunpack.c.l.b16 %v1809
        %v2006 = vunpack.c.l.b16 %v1810
        %v2007 = vunpack.c.l.b16 %v1811
        %v2008 = vunpack.c.l.b16 %v1812
        %v2009 = vunpack.c.l.b16 %v1813
        %v2010 = vunpack.c.l.b16 %v1814
        %v2011 = vunpack.c.l.b16 %v1815
        %v2012 = vunpack.c.l.b16 %v1816
        %v2013 = vunpack.c.l.b16 %v1817
        %v2014 = vunpack.c.l.b16 %v1818
        %v2015 = vunpack.c.l.b16 %v1819
        %v2016 = vunpack.c.l.b16 %v1820
        %v2017 = vunpack.c.l.b16 %v1821
        %v2018 = vunpack.c.l.b16 %v1822
        %v2019 = vunpack.c.l.b16 %v1823
        %v2020 = vunpack.c.l.b16 %v1824
        %v2021 = vunpack.c.l.b16 %v1825
        %v2022 = vunpack.c.l.b16 %v1826
        %v2023 = vunpack.c.l.b16 %v1827
        %v2024 = vunpack.c.l.b16 %v1828
        %v2025 = vunpack.c.l.b16 %v1829
        %v2026 = vunpack.c.l.b16 %v1830
        %v2027 = vunpack.c.l.b16 %v1831
        %v2028 = vunpack.c.l.b16 %v1832
        %v2029 = vunpack.c.l.b16 %v1833
        %v2030 = vunpack.c.l.b16 %v1834
        %v2031 = vunpack.c.l.b16 %v1835
        %v2032 = vunpack.c.l.b16 %v1836
        %v2033 = vunpack.c.l.b16 %v1837
        %v2034 = vunpack.c.l.b16 %v1838
        %v2035 = vunpack.c.l.b16 %v1839
        %v2036 = vunpack.c.l.b16 %v1840
        %v2037 = vunpack.c.l.b16 %v1841
        %v2038 = vunpack.c.l.b16 %v1842
        %v2039 = vunpack.c.l.b16 %v1843
        %v2040 = vunpack.c.l.b16 %v1844
        %v2041 = vunpack.c.l.b16 %v1845
        %v2042 = vunpack.c.l.b16 %v1846
        %v2043 = vunpack.c.l.b16 %v1847
        %v2044 = vunpack.c.l.b16 %v1848
        %v2045 = vunpack.c.l.b16 %v1849
        %v2046 = vunpack.c.l.b16 %v1850
        %v2047 = vunpack.c.l.b16 %v1851
        %v2048 = vunpack.c.l.b16 %v1852
        %v2049 = vunpack.c.l.b16 %v1853
        %v2050 = vunpack.c.l.b16 %v1854
        %v2051 = vunpack.c.l.b16 %v1855
        %v2052 = vunpack.c.l.b16 %v1856
        %v2053 = vunpack.c.l.b16 %v1857
        %v2054 = vunpack.c.l.b16 %v1858
        %v2055 = vunpack.c.l.b16 %v1859
        %v2056 = vunpack.c.l.b16 %v1860
        %v2057 = vunpack.c.l.b16 %v1861
        %v2058 = vunpack.c.l.b16 %v1862
        %v2059 = vunpack.c.l.b16 %v1863
        %v2060 = vunpack.c.l.b16 %v1864
        %v2061 = vunpack.c.l.b16 %v1865
        %v2062 = vunpack.c.l.b16 %v1866
        %v2063 = vunpack.c.l.b16 %v1867
        %v2064 = vunpack.c.l.b16 %v1868
        %v2065 = vunpack.c.l.b16 %v1869
        %v2066 = vunpack.c.l.b16 %v1870
        %v2067 = vunpack.c.l.b16 %v1871
        %v2068 = vunpack.c.l.b16 %v1872
        %v2069 = vunpack.c.l.b16 %v1873
        %v2070 = vunpack.c.l.b16 %v1874
        %v2071 = vunpack.c.l.b16 %v1875
        %v2072 = vunpack.c.l.b16 %v1876
        %v2073 = vunpack.c.l.b16 %v1877
        %v2074 = vunpack.c.l.b16 %v1878
        %v2075 = vunpack.c.l.b16 %v1879
        %v2076 = vunpack.c.l.b16 %v1880
        %v2077 = vunpack.c.l.b16 %v1881
        %v2078 = vunpack.c.l.b16 %v1882
        %v2079 = vunpack.c.l.b16 %v1883
        %v2080 = vunpack.c.l.b16 %v1884
        %v2081 = vunpack.c.l.b16 %v1885
        %v2082 = vunpack.c.l.b16 %v1886
        %v2083 = vunpack.c.l.b16 %v1887
        %v2084 = vunpack.c.l.b16 %v1888
        %v2085 = vunpack.c.l.b16 %v1889
        %v2086 = vunpack.c.l.b16 %v1890
        %v2087 = vunpack.c.l.b16 %v1891
        %v2088 = vunpack.c.l.b16 %v1892
        %v2089 = vunpack.c.l.b16 %v1893
        %v2090 = vpack.c.b16 %v1993, %v1992
        %v2091 = vpack.c.b16 %v1995, %v1994
        %v2092 = vpack.c.b16 %v1997, %v1996
        %v2093 = vpack.c.b16 %v1999, %v1998
        %v2094 = vpack.c.b16 %v2001, %v2000
        %v2095 = vpack.c.b16 %v2003, %v2002
        %v2096 = vpack.c.b16 %v2005, %v2004
        %v2097 = vpack.c.b16 %v2007, %v2006
        %v2098 = vpack.c.b16 %v2009, %v2008
        %v2099 = vpack.c.b16 %v2011, %v2010
        %v2100 = vpack.c.b16 %v2013, %v2012
        %v2101 = vpack.c.b16 %v2015, %v2014
        %v2102 = vpack.c.b16 %v2017, %v2016
        %v2103 = vpack.c.b16 %v2019, %v2018
        %v2104 = vpack.c.b16 %v2021, %v2020
        %v2105 = vpack.c.b16 %v2023, %v2022
        %v2106 = vpack.c.b16 %v2025, %v2024
        %v2107 = vpack.c.b16 %v2027, %v2026
        %v2108 = vpack.c.b16 %v2029, %v2028
        %v2109 = vpack.c.b16 %v2031, %v2030
        %v2110 = vpack.c.b16 %v2033, %v2032
        %v2111 = vpack.c.b16 %v2035, %v2034
        %v2112 = vpack.c.b16 %v2037, %v2036
        %v2113 = vpack.c.b16 %v2039, %v2038
        %v2114 = vpack.c.b16 %v2041, %v2040
        %v2115 = vpack.c.b16 %v2043, %v2042
        %v2116 = vpack.c.b16 %v2045, %v2044
        %v2117 = vpack.c.b16 %v2047, %v2046
        %v2118 = vpack.c.b16 %v2049, %v2048
        %v2119 = vpack.c.b16 %v2051, %v2050
        %v2120 = vpack.c.b16 %v2053, %v2052
        %v2121 = vpack.c.b16 %v2055, %v2054
        %v2122 = vpack.c.b16 %v2057, %v2056
        %v2123 = vpack.c.b16 %v2059, %v2058
        %v2124 = vpack.c.b16 %v2061, %v2060
        %v2125 = vpack.c.b16 %v2063, %v2062
        %v2126 = vpack.c.b16 %v2065, %v2064
        %v2127 = vpack.c.b16 %v2067, %v2066
        %v2128 = vpack.c.b16 %v2069, %v2068
        %v2129 = vpack.c.b16 %v2071, %v2070
        %v2130 = vpack.c.b16 %v2073, %v2072
        %v2131 = vpack.c.b16 %v2075, %v2074
        %v2132 = vpack.c.b16 %v2077, %v2076
        %v2133 = vpack.c.b16 %v2079, %v2078
        %v2134 = vpack.c.b16 %v2081, %v2080
        %v2135 = vpack.c.b16 %v2083, %v2082
        %v2136 = vpack.c.b16 %v2085, %v2084
        %v2137 = vpack.c.b16 %v2087, %v2086
        %v2138 = vpack.c.b16 %v2089, %v2088
        %v2204 = vunpack.c.l.b16 %v1780
        %v2205 = vunpack.c.l.b16 %v1781
        %v2206 = vunpack.c.l.b16 %v1782
        %v2207 = vunpack.c.l.b16 %v1783
        %v2208 = vunpack.c.l.b16 %v1784
        %v2209 = vunpack.c.l.b16 %v1785
        %v2210 = vunpack.c.l.b16 %v1786
        %v2211 = vunpack.c.l.b16 %v1787
        %v2212 = vunpack.c.l.b16 %v1788
        %v2213 = vunpack.c.l.b16 %v1789
        %v2214 = vunpack.c.l.b16 %v1790
        %v2215 = vunpack.c.l.b16 %v1791
        %v2216 = vunpack.c.l.b16 %v1792
        %v2217 = vunpack.c.l.b16 %v1793
        %v2218 = vunpack.c.l.b16 %v1794
        %v2219 = vunpack.c.l.b16 %v1795
        %v2220 = vpack.c.b16 %v2205, %v2204
        %v2221 = vpack.c.b16 %v2207, %v2206
        %v2222 = vpack.c.b16 %v2209, %v2208
        %v2223 = vpack.c.b16 %v2211, %v2210
        %v2224 = vpack.c.b16 %v2213, %v2212
        %v2225 = vpack.c.b16 %v2215, %v2214
        %v2226 = vpack.c.b16 %v2217, %v2216
        %v2227 = vpack.c.b16 %v2219, %v2218
        %2236 = vmatprep.subr.bf16.mxu0 0
        %2237 = vmatpush1.bf16.msra.mxu0 %v2220
        %2238 = vmatprep.subr.bf16.mxu0 0
        %2239 = vmatpush1.bf16.msra.mxu0 %v2221
        %2240 = vmatprep.subr.bf16.mxu0 0
        %2241 = vmatpush1.bf16.msra.mxu0 %v2222
        %2242 = vmatprep.subr.bf16.mxu0 0
        %2243 = vmatpush1.bf16.msra.mxu0 %v2223
        %2244 = vmatprep.subr.bf16.mxu0 0
        %2245 = vmatpush1.bf16.msra.mxu0 %v2224
        %2246 = vmatprep.subr.bf16.mxu0 0
        %2247 = vmatpush1.bf16.msra.mxu0 %v2225
        %2248 = vmatprep.subr.bf16.mxu0 0
        %2249 = vmatpush1.bf16.msra.mxu0 %v2226
        %2250 = vmatprep.subr.bf16.mxu0 0
        %2251 = vmatpush1.bf16.msra.mxu0 %v2227
        %2252 = vmatprep.subr.bf16.mxu0 0
        %2253 = vmatpush1.bf16.msra.mxu0 0
        %2254 = vmatprep.subr.bf16.mxu0 0
        %2255 = vmatpush1.bf16.msra.mxu0 0
        %2256 = vmatprep.subr.bf16.mxu0 0
        %2257 = vmatpush1.bf16.msra.mxu0 0
        %2258 = vmatprep.subr.bf16.mxu0 0
        %2259 = vmatpush1.bf16.msra.mxu0 0
        %2260 = vmatprep.subr.bf16.mxu0 0
        %2261 = vmatpush1.bf16.msra.mxu0 0
        %2262 = vmatprep.subr.bf16.mxu0 0
        %2263 = vmatpush1.bf16.msra.mxu0 0
        %2264 = vmatprep.subr.bf16.mxu0 0
        %2265 = vmatpush1.bf16.msra.mxu0 0
        %2266 = vmatprep.subr.bf16.mxu0 0
        %2267 = vmatpush1.bf16.msra.mxu0 0
        %2268 = vmatprep.mubr.bf16.mxu0 0
        %2269 = vmatmul.mubr.bf16.gmra.mrb[0].mxu0 %v2090
        %v2270 = vpop.f32.mrb[0].mxu0
        %v2271 = vadd.f32 0.0, %v2270
        %v2272 = vpop.f32.mrb[0].mxu0
        %v2273 = vpop.f32.mrb[0].mxu0
        %v2274 = vadd.f32 0.0, %v2273
        %v2275 = vpop.f32.mrb[0].mxu0
        %2276 = vmatprep.mubr.bf16.mxu0 0
        %2277 = vmatmul.mubr.bf16.gmra.mrb[0].mxu0 %v2091
        %v2278 = vpop.f32.mrb[0].mxu0
        %v2279 = vadd.f32 0.0, %v2278
        %v2280 = vpop.f32.mrb[0].mxu0
        %v2281 = vpop.f32.mrb[0].mxu0
        %v2282 = vadd.f32 0.0, %v2281
        %v2283 = vpop.f32.mrb[0].mxu0
        %2284 = vmatprep.mubr.bf16.mxu0 0
        %2285 = vmatmul.mubr.bf16.gmra.mrb[0].mxu0 %v2092
        %v2286 = vpop.f32.mrb[0].mxu0
        %v2287 = vadd.f32 0.0, %v2286
        %v2288 = vpop.f32.mrb[0].mxu0
        %v2289 = vpop.f32.mrb[0].mxu0
        %v2290 = vadd.f32 0.0, %v2289
        %v2291 = vpop.f32.mrb[0].mxu0
        %2292 = vmatprep.mubr.bf16.mxu0 0
        %2293 = vmatmul.mubr.bf16.gmra.mrb[0].mxu0 %v2093
        %v2294 = vpop.f32.mrb[0].mxu0
        %v2295 = vadd.f32 0.0, %v2294
        %v2296 = vpop.f32.mrb[0].mxu0
        %v2297 = vpop.f32.mrb[0].mxu0
        %v2298 = vadd.f32 0.0, %v2297
        %v2299 = vpop.f32.mrb[0].mxu0
        %2300 = vmatprep.mubr.bf16.mxu0 0
        %2301 = vmatmul.mubr.bf16.gmra.mrb[0].mxu0 %v2094
        %v2302 = vpop.f32.mrb[0].mxu0
        %v2303 = vadd.f32 0.0, %v2302
        %v2304 = vpop.f32.mrb[0].mxu0
        %v2305 = vpop.f32.mrb[0].mxu0
        %v2306 = vadd.f32 0.0, %v2305
        %v2307 = vpop.f32.mrb[0].mxu0
        %2308 = vmatprep.mubr.bf16.mxu0 0
        %2309 = vmatmul.mubr.bf16.gmra.mrb[0].mxu0 %v2095
        %v2310 = vpop.f32.mrb[0].mxu0
        %v2311 = vadd.f32 0.0, %v2310
        %v2312 = vpop.f32.mrb[0].mxu0
        %v2313 = vpop.f32.mrb[0].mxu0
        %v2314 = vadd.f32 0.0, %v2313
        %v2315 = vpop.f32.mrb[0].mxu0
        %2316 = vmatprep.mubr.bf16.mxu0 0
        %2317 = vmatmul.mubr.bf16.gmra.mrb[0].mxu0 %v2096
        %v2318 = vpop.f32.mrb[0].mxu0
        %v2319 = vadd.f32 0.0, %v2318
        %v2320 = vpop.f32.mrb[0].mxu0
        %v2321 = vpop.f32.mrb[0].mxu0
        %v2322 = vadd.f32 0.0, %v2321
        %v2323 = vpop.f32.mrb[0].mxu0
        %2324 = vmatprep.mubr.bf16.mxu0 0
        %2325 = vmatmul.mubr.bf16.gmra.mrb[0].mxu0 %v2097
        %v2326 = vpop.f32.mrb[0].mxu0
        %v2327 = vadd.f32 0.0, %v2326
        %v2328 = vpop.f32.mrb[0].mxu0
        %v2329 = vpop.f32.mrb[0].mxu0
        %v2330 = vadd.f32 0.0, %v2329
        %v2331 = vpop.f32.mrb[0].mxu0
        %2332 = vmatprep.mubr.bf16.mxu0 0
        %2333 = vmatmul.mubr.bf16.gmra.mrb[0].mxu0 %v2098
        %v2334 = vpop.f32.mrb[0].mxu0
        %v2335 = vadd.f32 0.0, %v2334
        %v2336 = vpop.f32.mrb[0].mxu0
        %v2337 = vpop.f32.mrb[0].mxu0
        %v2338 = vadd.f32 0.0, %v2337
        %v2339 = vpop.f32.mrb[0].mxu0
        %2340 = vmatprep.mubr.bf16.mxu0 0
        %2341 = vmatmul.mubr.bf16.gmra.mrb[0].mxu0 %v2099
        %v2342 = vpop.f32.mrb[0].mxu0
        %v2343 = vadd.f32 0.0, %v2342
        %v2344 = vpop.f32.mrb[0].mxu0
        %v2345 = vpop.f32.mrb[0].mxu0
        %v2346 = vadd.f32 0.0, %v2345
        %v2347 = vpop.f32.mrb[0].mxu0
        %2348 = vmatprep.mubr.bf16.mxu0 0
        %2349 = vmatmul.mubr.bf16.gmra.mrb[0].mxu0 %v2100
        %v2350 = vpop.f32.mrb[0].mxu0
        %v2351 = vadd.f32 0.0, %v2350
        %v2352 = vpop.f32.mrb[0].mxu0
        %v2353 = vpop.f32.mrb[0].mxu0
        %v2354 = vadd.f32 0.0, %v2353
        %v2355 = vpop.f32.mrb[0].mxu0
        %2356 = vmatprep.mubr.bf16.mxu0 0
        %2357 = vmatmul.mubr.bf16.gmra.mrb[0].mxu0 %v2101
        %v2358 = vpop.f32.mrb[0].mxu0
        %v2359 = vadd.f32 0.0, %v2358
        %v2360 = vpop.f32.mrb[0].mxu0
        %v2361 = vpop.f32.mrb[0].mxu0
        %v2362 = vadd.f32 0.0, %v2361
        %v2363 = vpop.f32.mrb[0].mxu0
        %2364 = vmatprep.mubr.bf16.mxu0 0
        %2365 = vmatmul.mubr.bf16.gmra.mrb[0].mxu0 %v2102
        %v2366 = vpop.f32.mrb[0].mxu0
        %v2367 = vadd.f32 0.0, %v2366
        %v2368 = vpop.f32.mrb[0].mxu0
        %v2369 = vpop.f32.mrb[0].mxu0
        %v2370 = vadd.f32 0.0, %v2369
        %v2371 = vpop.f32.mrb[0].mxu0
        %2372 = vmatprep.mubr.bf16.mxu0 0
        %2373 = vmatmul.mubr.bf16.gmra.mrb[0].mxu0 %v2103
        %v2374 = vpop.f32.mrb[0].mxu0
        %v2375 = vadd.f32 0.0, %v2374
        %v2376 = vpop.f32.mrb[0].mxu0
        %v2377 = vpop.f32.mrb[0].mxu0
        %v2378 = vadd.f32 0.0, %v2377
        %v2379 = vpop.f32.mrb[0].mxu0
        %2380 = vmatprep.mubr.bf16.mxu0 0
        %2381 = vmatmul.mubr.bf16.gmra.mrb[0].mxu0 %v2104
        %v2382 = vpop.f32.mrb[0].mxu0
        %v2383 = vadd.f32 0.0, %v2382
        %v2384 = vpop.f32.mrb[0].mxu0
        %v2385 = vpop.f32.mrb[0].mxu0
        %v2386 = vadd.f32 0.0, %v2385
        %v2387 = vpop.f32.mrb[0].mxu0
        %2388 = vmatprep.mubr.bf16.mxu0 0
        %2389 = vmatmul.mubr.bf16.gmra.mrb[0].mxu0 %v2105
        %v2390 = vpop.f32.mrb[0].mxu0
        %v2391 = vadd.f32 0.0, %v2390
        %v2392 = vpop.f32.mrb[0].mxu0
        %v2393 = vpop.f32.mrb[0].mxu0
        %v2394 = vadd.f32 0.0, %v2393
        %v2395 = vpop.f32.mrb[0].mxu0
        %2396 = vmatprep.mubr.bf16.mxu0 0
        %2397 = vmatmul.mubr.bf16.gmra.mrb[0].mxu0 %v2106
        %v2398 = vpop.f32.mrb[0].mxu0
        %v2399 = vadd.f32 0.0, %v2398
        %v2400 = vpop.f32.mrb[0].mxu0
        %v2401 = vpop.f32.mrb[0].mxu0
        %v2402 = vadd.f32 0.0, %v2401
        %v2403 = vpop.f32.mrb[0].mxu0
        %2404 = vmatprep.mubr.bf16.mxu0 0
        %2405 = vmatmul.mubr.bf16.gmra.mrb[0].mxu0 %v2107
        %v2406 = vpop.f32.mrb[0].mxu0
        %v2407 = vadd.f32 0.0, %v2406
        %v2408 = vpop.f32.mrb[0].mxu0
        %v2409 = vpop.f32.mrb[0].mxu0
        %v2410 = vadd.f32 0.0, %v2409
        %v2411 = vpop.f32.mrb[0].mxu0
        %2412 = vmatprep.mubr.bf16.mxu0 0
        %2413 = vmatmul.mubr.bf16.gmra.mrb[0].mxu0 %v2108
        %v2414 = vpop.f32.mrb[0].mxu0
        %v2415 = vadd.f32 0.0, %v2414
        %v2416 = vpop.f32.mrb[0].mxu0
        %v2417 = vpop.f32.mrb[0].mxu0
        %v2418 = vadd.f32 0.0, %v2417
        %v2419 = vpop.f32.mrb[0].mxu0
        %2420 = vmatprep.mubr.bf16.mxu0 0
        %2421 = vmatmul.mubr.bf16.gmra.mrb[0].mxu0 %v2109
        %v2422 = vpop.f32.mrb[0].mxu0
        %v2423 = vadd.f32 0.0, %v2422
        %v2424 = vpop.f32.mrb[0].mxu0
        %v2425 = vpop.f32.mrb[0].mxu0
        %v2426 = vadd.f32 0.0, %v2425
        %v2427 = vpop.f32.mrb[0].mxu0
        %2428 = vmatprep.mubr.bf16.mxu0 0
        %2429 = vmatmul.mubr.bf16.gmra.mrb[0].mxu0 %v2110
        %v2430 = vpop.f32.mrb[0].mxu0
        %v2431 = vadd.f32 0.0, %v2430
        %v2432 = vpop.f32.mrb[0].mxu0
        %v2433 = vpop.f32.mrb[0].mxu0
        %v2434 = vadd.f32 0.0, %v2433
        %v2435 = vpop.f32.mrb[0].mxu0
        %2436 = vmatprep.mubr.bf16.mxu0 0
        %2437 = vmatmul.mubr.bf16.gmra.mrb[0].mxu0 %v2111
        %v2438 = vpop.f32.mrb[0].mxu0
        %v2439 = vadd.f32 0.0, %v2438
        %v2440 = vpop.f32.mrb[0].mxu0
        %v2441 = vpop.f32.mrb[0].mxu0
        %v2442 = vadd.f32 0.0, %v2441
        %v2443 = vpop.f32.mrb[0].mxu0
        %2444 = vmatprep.mubr.bf16.mxu0 0
        %2445 = vmatmul.mubr.bf16.gmra.mrb[0].mxu0 %v2112
        %v2446 = vpop.f32.mrb[0].mxu0
        %v2447 = vadd.f32 0.0, %v2446
        %v2448 = vpop.f32.mrb[0].mxu0
        %v2449 = vpop.f32.mrb[0].mxu0
        %v2450 = vadd.f32 0.0, %v2449
        %v2451 = vpop.f32.mrb[0].mxu0
        %2452 = vmatprep.mubr.bf16.mxu0 0
        %2453 = vmatmul.mubr.bf16.gmra.mrb[0].mxu0 %v2113
        %v2454 = vpop.f32.mrb[0].mxu0
        %v2455 = vadd.f32 0.0, %v2454
        %v2456 = vpop.f32.mrb[0].mxu0
        %v2457 = vpop.f32.mrb[0].mxu0
        %v2458 = vadd.f32 0.0, %v2457
        %v2459 = vpop.f32.mrb[0].mxu0
        %2460 = vmatprep.mubr.bf16.mxu0 0
        %2461 = vmatmul.mubr.bf16.gmra.mrb[0].mxu0 %v2114
        %v2462 = vpop.f32.mrb[0].mxu0
        %v2463 = vadd.f32 0.0, %v2462
        %v2464 = vpop.f32.mrb[0].mxu0
        %v2465 = vpop.f32.mrb[0].mxu0
        %v2466 = vadd.f32 0.0, %v2465
        %v2467 = vpop.f32.mrb[0].mxu0
        %2468 = vmatprep.mubr.bf16.mxu0 0
        %2469 = vmatmul.mubr.bf16.gmra.mrb[0].mxu0 %v2115
        %v2470 = vpop.f32.mrb[0].mxu0
        %v2471 = vadd.f32 0.0, %v2470
        %v2472 = vpop.f32.mrb[0].mxu0
        %v2473 = vpop.f32.mrb[0].mxu0
        %v2474 = vadd.f32 0.0, %v2473
        %v2475 = vpop.f32.mrb[0].mxu0
        %2476 = vmatprep.mubr.bf16.mxu0 0
        %2477 = vmatmul.mubr.bf16.gmra.mrb[0].mxu0 %v2116
        %v2478 = vpop.f32.mrb[0].mxu0
        %v2479 = vadd.f32 0.0, %v2478
        %v2480 = vpop.f32.mrb[0].mxu0
        %v2481 = vpop.f32.mrb[0].mxu0
        %v2482 = vadd.f32 0.0, %v2481
        %v2483 = vpop.f32.mrb[0].mxu0
        %2484 = vmatprep.mubr.bf16.mxu0 0
        %2485 = vmatmul.mubr.bf16.gmra.mrb[0].mxu0 %v2117
        %v2486 = vpop.f32.mrb[0].mxu0
        %v2487 = vadd.f32 0.0, %v2486
        %v2488 = vpop.f32.mrb[0].mxu0
        %v2489 = vpop.f32.mrb[0].mxu0
        %v2490 = vadd.f32 0.0, %v2489
        %v2491 = vpop.f32.mrb[0].mxu0
        %2492 = vmatprep.mubr.bf16.mxu0 0
        %2493 = vmatmul.mubr.bf16.gmra.mrb[0].mxu0 %v2118
        %v2494 = vpop.f32.mrb[0].mxu0
        %v2495 = vadd.f32 0.0, %v2494
        %v2496 = vpop.f32.mrb[0].mxu0
        %v2497 = vpop.f32.mrb[0].mxu0
        %v2498 = vadd.f32 0.0, %v2497
        %v2499 = vpop.f32.mrb[0].mxu0
        %2500 = vmatprep.mubr.bf16.mxu0 0
        %2501 = vmatmul.mubr.bf16.gmra.mrb[0].mxu0 %v2119
        %v2502 = vpop.f32.mrb[0].mxu0
        %v2503 = vadd.f32 0.0, %v2502
        %v2504 = vpop.f32.mrb[0].mxu0
        %v2505 = vpop.f32.mrb[0].mxu0
        %v2506 = vadd.f32 0.0, %v2505
        %v2507 = vpop.f32.mrb[0].mxu0
        %2508 = vmatprep.mubr.bf16.mxu0 0
        %2509 = vmatmul.mubr.bf16.gmra.mrb[0].mxu0 %v2120
        %v2510 = vpop.f32.mrb[0].mxu0
        %v2511 = vadd.f32 0.0, %v2510
        %v2512 = vpop.f32.mrb[0].mxu0
        %v2513 = vpop.f32.mrb[0].mxu0
        %v2514 = vadd.f32 0.0, %v2513
        %v2515 = vpop.f32.mrb[0].mxu0
        %2516 = vmatprep.mubr.bf16.mxu0 0
        %2517 = vmatmul.mubr.bf16.gmra.mrb[0].mxu0 %v2121
        %v2518 = vpop.f32.mrb[0].mxu0
        %v2519 = vadd.f32 0.0, %v2518
        %v2520 = vpop.f32.mrb[0].mxu0
        %v2521 = vpop.f32.mrb[0].mxu0
        %v2522 = vadd.f32 0.0, %v2521
        %v2523 = vpop.f32.mrb[0].mxu0
        %2524 = vmatprep.mubr.bf16.mxu0 0
        %2525 = vmatmul.mubr.bf16.gmra.mrb[0].mxu0 %v2122
        %v2526 = vpop.f32.mrb[0].mxu0
        %v2527 = vadd.f32 0.0, %v2526
        %v2528 = vpop.f32.mrb[0].mxu0
        %v2529 = vpop.f32.mrb[0].mxu0
        %v2530 = vadd.f32 0.0, %v2529
        %v2531 = vpop.f32.mrb[0].mxu0
        %2532 = vmatprep.mubr.bf16.mxu0 0
        %2533 = vmatmul.mubr.bf16.gmra.mrb[0].mxu0 %v2123
        %v2534 = vpop.f32.mrb[0].mxu0
        %v2535 = vadd.f32 0.0, %v2534
        %v2536 = vpop.f32.mrb[0].mxu0
        %v2537 = vpop.f32.mrb[0].mxu0
        %v2538 = vadd.f32 0.0, %v2537
        %v2539 = vpop.f32.mrb[0].mxu0
        %2540 = vmatprep.mubr.bf16.mxu0 0
        %2541 = vmatmul.mubr.bf16.gmra.mrb[0].mxu0 %v2124
        %v2542 = vpop.f32.mrb[0].mxu0
        %v2543 = vadd.f32 0.0, %v2542
        %v2544 = vpop.f32.mrb[0].mxu0
        %v2545 = vpop.f32.mrb[0].mxu0
        %v2546 = vadd.f32 0.0, %v2545
        %v2547 = vpop.f32.mrb[0].mxu0
        %2548 = vmatprep.mubr.bf16.mxu0 0
        %2549 = vmatmul.mubr.bf16.gmra.mrb[0].mxu0 %v2125
        %v2550 = vpop.f32.mrb[0].mxu0
        %v2551 = vadd.f32 0.0, %v2550
        %v2552 = vpop.f32.mrb[0].mxu0
        %v2553 = vpop.f32.mrb[0].mxu0
        %v2554 = vadd.f32 0.0, %v2553
        %v2555 = vpop.f32.mrb[0].mxu0
        %2556 = vmatprep.mubr.bf16.mxu0 0
        %2557 = vmatmul.mubr.bf16.gmra.mrb[0].mxu0 %v2126
        %v2558 = vpop.f32.mrb[0].mxu0
        %v2559 = vadd.f32 0.0, %v2558
        %v2560 = vpop.f32.mrb[0].mxu0
        %v2561 = vpop.f32.mrb[0].mxu0
        %v2562 = vadd.f32 0.0, %v2561
        %v2563 = vpop.f32.mrb[0].mxu0
        %2564 = vmatprep.mubr.bf16.mxu0 0
        %2565 = vmatmul.mubr.bf16.gmra.mrb[0].mxu0 %v2127
        %v2566 = vpop.f32.mrb[0].mxu0
        %v2567 = vadd.f32 0.0, %v2566
        %v2568 = vpop.f32.mrb[0].mxu0
        %v2569 = vpop.f32.mrb[0].mxu0
        %v2570 = vadd.f32 0.0, %v2569
        %v2571 = vpop.f32.mrb[0].mxu0
        %2572 = vmatprep.mubr.bf16.mxu0 0
        %2573 = vmatmul.mubr.bf16.gmra.mrb[0].mxu0 %v2128
        %v2574 = vpop.f32.mrb[0].mxu0
        %v2575 = vadd.f32 0.0, %v2574
        %v2576 = vpop.f32.mrb[0].mxu0
        %v2577 = vpop.f32.mrb[0].mxu0
        %v2578 = vadd.f32 0.0, %v2577
        %v2579 = vpop.f32.mrb[0].mxu0
        %2580 = vmatprep.mubr.bf16.mxu0 0
        %2581 = vmatmul.mubr.bf16.gmra.mrb[0].mxu0 %v2129
        %v2582 = vpop.f32.mrb[0].mxu0
        %v2583 = vadd.f32 0.0, %v2582
        %v2584 = vpop.f32.mrb[0].mxu0
        %v2585 = vpop.f32.mrb[0].mxu0
        %v2586 = vadd.f32 0.0, %v2585
        %v2587 = vpop.f32.mrb[0].mxu0
        %2588 = vmatprep.mubr.bf16.mxu0 0
        %2589 = vmatmul.mubr.bf16.gmra.mrb[0].mxu0 %v2130
        %v2590 = vpop.f32.mrb[0].mxu0
        %v2591 = vadd.f32 0.0, %v2590
        %v2592 = vpop.f32.mrb[0].mxu0
        %v2593 = vpop.f32.mrb[0].mxu0
        %v2594 = vadd.f32 0.0, %v2593
        %v2595 = vpop.f32.mrb[0].mxu0
        %2596 = vmatprep.mubr.bf16.mxu0 0
        %2597 = vmatmul.mubr.bf16.gmra.mrb[0].mxu0 %v2131
        %v2598 = vpop.f32.mrb[0].mxu0
        %v2599 = vadd.f32 0.0, %v2598
        %v2600 = vpop.f32.mrb[0].mxu0
        %v2601 = vpop.f32.mrb[0].mxu0
        %v2602 = vadd.f32 0.0, %v2601
        %v2603 = vpop.f32.mrb[0].mxu0
        %2604 = vmatprep.mubr.bf16.mxu0 0
        %2605 = vmatmul.mubr.bf16.gmra.mrb[0].mxu0 %v2132
        %v2606 = vpop.f32.mrb[0].mxu0
        %v2607 = vadd.f32 0.0, %v2606
        %v2608 = vpop.f32.mrb[0].mxu0
        %v2609 = vpop.f32.mrb[0].mxu0
        %v2610 = vadd.f32 0.0, %v2609
        %v2611 = vpop.f32.mrb[0].mxu0
        %2612 = vmatprep.mubr.bf16.mxu0 0
        %2613 = vmatmul.mubr.bf16.gmra.mrb[0].mxu0 %v2133
        %v2614 = vpop.f32.mrb[0].mxu0
        %v2615 = vadd.f32 0.0, %v2614
        %v2616 = vpop.f32.mrb[0].mxu0
        %v2617 = vpop.f32.mrb[0].mxu0
        %v2618 = vadd.f32 0.0, %v2617
        %v2619 = vpop.f32.mrb[0].mxu0
        %2620 = vmatprep.mubr.bf16.mxu0 0
        %2621 = vmatmul.mubr.bf16.gmra.mrb[0].mxu0 %v2134
        %v2622 = vpop.f32.mrb[0].mxu0
        %v2623 = vadd.f32 0.0, %v2622
        %v2624 = vpop.f32.mrb[0].mxu0
        %v2625 = vpop.f32.mrb[0].mxu0
        %v2626 = vadd.f32 0.0, %v2625
        %v2627 = vpop.f32.mrb[0].mxu0
        %2628 = vmatprep.mubr.bf16.mxu0 0
        %2629 = vmatmul.mubr.bf16.gmra.mrb[0].mxu0 %v2135
        %v2630 = vpop.f32.mrb[0].mxu0
        %v2631 = vadd.f32 0.0, %v2630
        %v2632 = vpop.f32.mrb[0].mxu0
        %v2633 = vpop.f32.mrb[0].mxu0
        %v2634 = vadd.f32 0.0, %v2633
        %v2635 = vpop.f32.mrb[0].mxu0
        %2636 = vmatprep.mubr.bf16.mxu0 0
        %2637 = vmatmul.mubr.bf16.gmra.mrb[0].mxu0 %v2136
        %v2638 = vpop.f32.mrb[0].mxu0
        %v2639 = vadd.f32 0.0, %v2638
        %v2640 = vpop.f32.mrb[0].mxu0
        %v2641 = vpop.f32.mrb[0].mxu0
        %v2642 = vadd.f32 0.0, %v2641
        %v2643 = vpop.f32.mrb[0].mxu0
        %2644 = vmatprep.mubr.bf16.mxu0 0
        %2645 = vmatmul.mubr.bf16.gmra.mrb[0].mxu0 %v2137
        %v2646 = vpop.f32.mrb[0].mxu0
        %v2647 = vadd.f32 0.0, %v2646
        %v2648 = vpop.f32.mrb[0].mxu0
        %v2649 = vpop.f32.mrb[0].mxu0
        %v2650 = vadd.f32 0.0, %v2649
        %v2651 = vpop.f32.mrb[0].mxu0
        %2652 = vmatprep.mubr.bf16.mxu0 0
        %2653 = vmatmul.mubr.bf16.gmra.mrb[0].mxu0 %v2138
        %v2654 = vpop.f32.mrb[0].mxu0
        %v2655 = vadd.f32 0.0, %v2654
        %v2656 = vpop.f32.mrb[0].mxu0
        %v2657 = vpop.f32.mrb[0].mxu0
        %v2658 = vadd.f32 0.0, %v2657
        %v2659 = vpop.f32.mrb[0].mxu0
        %2660 = vdwg.mxu0
        %s2661 = scalar_lea.vmem %s1751, 392 [#allocation2]
        %v2662 = vld [vmem:[%s2661] sm:$0xf]
        %v2663 = vld [vmem:[%s2661 + $0x4] sm:$0xf]
        %v2664 = vld [vmem:[%s2661 + $0x8] sm:$0xf]
        %v2665 = vld [vmem:[%s2661 + $0xc] sm:$0xf]
        %v2666 = vld [vmem:[%s2661 + $0x10] sm:$0xf]
        %v2667 = vld [vmem:[%s2661 + $0x14] sm:$0xf]
        %v2668 = vld [vmem:[%s2661 + $0x18] sm:$0xf]
        %v2669 = vld [vmem:[%s2661 + $0x1c] sm:$0xf]
        %v2670 = vld [vmem:[%s2661 + $0x20] sm:$0xf]
        %v2671 = vld [vmem:[%s2661 + $0x24] sm:$0xf]
        %v2672 = vld [vmem:[%s2661 + $0x28] sm:$0xf]
        %v2673 = vld [vmem:[%s2661 + $0x2c] sm:$0xf]
        %v2674 = vld [vmem:[%s2661 + $0x30] sm:$0xf]
        %v2675 = vld [vmem:[%s2661 + $0x34] sm:$0xf]
        %v2676 = vld [vmem:[%s2661 + $0x38] sm:$0xf]
        %v2677 = vld [vmem:[%s2661 + $0x3c] sm:$0xf]
        %v2678 = vld [vmem:[%s2661 + $0x40] sm:$0xf]
        %v2679 = vld [vmem:[%s2661 + $0x44] sm:$0xf]
        %v2680 = vld [vmem:[%s2661 + $0x48] sm:$0xf]
        %v2681 = vld [vmem:[%s2661 + $0x4c] sm:$0xf]
        %v2682 = vld [vmem:[%s2661 + $0x50] sm:$0xf]
        %v2683 = vld [vmem:[%s2661 + $0x54] sm:$0xf]
        %v2684 = vld [vmem:[%s2661 + $0x58] sm:$0xf]
        %v2685 = vld [vmem:[%s2661 + $0x5c] sm:$0xf]
        %v2686 = vld [vmem:[%s2661 + $0x60] sm:$0xf]
        %v2687 = vld [vmem:[%s2661 + $0x64] sm:$0xf]
        %v2688 = vld [vmem:[%s2661 + $0x68] sm:$0xf]
        %v2689 = vld [vmem:[%s2661 + $0x6c] sm:$0xf]
        %v2690 = vld [vmem:[%s2661 + $0x70] sm:$0xf]
        %v2691 = vld [vmem:[%s2661 + $0x74] sm:$0xf]
        %v2692 = vld [vmem:[%s2661 + $0x78] sm:$0xf]
        %v2693 = vld [vmem:[%s2661 + $0x7c] sm:$0xf]
        %v2694 = vld [vmem:[%s2661 + $0x80] sm:$0xf]
        %v2695 = vld [vmem:[%s2661 + $0x84] sm:$0xf]
        %v2696 = vld [vmem:[%s2661 + $0x88] sm:$0xf]
        %v2697 = vld [vmem:[%s2661 + $0x8c] sm:$0xf]
        %v2698 = vld [vmem:[%s2661 + $0x90] sm:$0xf]
        %v2699 = vld [vmem:[%s2661 + $0x94] sm:$0xf]
        %v2700 = vld [vmem:[%s2661 + $0x98] sm:$0xf]
        %v2701 = vld [vmem:[%s2661 + $0x9c] sm:$0xf]
        %v2702 = vld [vmem:[%s2661 + $0xa0] sm:$0xf]
        %v2703 = vld [vmem:[%s2661 + $0xa4] sm:$0xf]
        %v2704 = vld [vmem:[%s2661 + $0xa8] sm:$0xf]
        %v2705 = vld [vmem:[%s2661 + $0xac] sm:$0xf]
        %v2706 = vld [vmem:[%s2661 + $0xb0] sm:$0xf]
        %v2707 = vld [vmem:[%s2661 + $0xb4] sm:$0xf]
        %v2708 = vld [vmem:[%s2661 + $0xb8] sm:$0xf]
        %v2709 = vld [vmem:[%s2661 + $0xbc] sm:$0xf]
        %v2710 = vld [vmem:[%s2661 + $0xc0] sm:$0xf]
        %v2711 = vld [vmem:[%s2661 + $0xc4] sm:$0xf]
        %v2712 = vld [vmem:[%s2661 + $0xc8] sm:$0xf]
        %v2713 = vld [vmem:[%s2661 + $0xcc] sm:$0xf]
        %v2714 = vld [vmem:[%s2661 + $0xd0] sm:$0xf]
        %v2715 = vld [vmem:[%s2661 + $0xd4] sm:$0xf]
        %v2716 = vld [vmem:[%s2661 + $0xd8] sm:$0xf]
        %v2717 = vld [vmem:[%s2661 + $0xdc] sm:$0xf]
        %v2718 = vld [vmem:[%s2661 + $0xe0] sm:$0xf]
        %v2719 = vld [vmem:[%s2661 + $0xe4] sm:$0xf]
        %v2720 = vld [vmem:[%s2661 + $0xe8] sm:$0xf]
        %v2721 = vld [vmem:[%s2661 + $0xec] sm:$0xf]
        %v2722 = vld [vmem:[%s2661 + $0xf0] sm:$0xf]
        %v2723 = vld [vmem:[%s2661 + $0xf4] sm:$0xf]
        %v2724 = vld [vmem:[%s2661 + $0xf8] sm:$0xf]
        %v2725 = vld [vmem:[%s2661 + $0xfc] sm:$0xf]
        %v2726 = vld [vmem:[%s2661 + $0x100] sm:$0xf]
        %v2727 = vld [vmem:[%s2661 + $0x104] sm:$0xf]
        %v2728 = vld [vmem:[%s2661 + $0x108] sm:$0xf]
        %v2729 = vld [vmem:[%s2661 + $0x10c] sm:$0xf]
        %v2730 = vld [vmem:[%s2661 + $0x110] sm:$0xf]
        %v2731 = vld [vmem:[%s2661 + $0x114] sm:$0xf]
        %v2732 = vld [vmem:[%s2661 + $0x118] sm:$0xf]
        %v2733 = vld [vmem:[%s2661 + $0x11c] sm:$0xf]
        %v2734 = vld [vmem:[%s2661 + $0x120] sm:$0xf]
        %v2735 = vld [vmem:[%s2661 + $0x124] sm:$0xf]
        %v2736 = vld [vmem:[%s2661 + $0x128] sm:$0xf]
        %v2737 = vld [vmem:[%s2661 + $0x12c] sm:$0xf]
        %v2738 = vld [vmem:[%s2661 + $0x130] sm:$0xf]
        %v2739 = vld [vmem:[%s2661 + $0x134] sm:$0xf]
        %v2740 = vld [vmem:[%s2661 + $0x138] sm:$0xf]
        %v2741 = vld [vmem:[%s2661 + $0x13c] sm:$0xf]
        %v2742 = vld [vmem:[%s2661 + $0x140] sm:$0xf]
        %v2743 = vld [vmem:[%s2661 + $0x144] sm:$0xf]
        %v2744 = vld [vmem:[%s2661 + $0x148] sm:$0xf]
        %v2745 = vld [vmem:[%s2661 + $0x14c] sm:$0xf]
        %v2746 = vld [vmem:[%s2661 + $0x150] sm:$0xf]
        %v2747 = vld [vmem:[%s2661 + $0x154] sm:$0xf]
        %v2748 = vld [vmem:[%s2661 + $0x158] sm:$0xf]
        %v2749 = vld [vmem:[%s2661 + $0x15c] sm:$0xf]
        %v2750 = vld [vmem:[%s2661 + $0x160] sm:$0xf]
        %v2751 = vld [vmem:[%s2661 + $0x164] sm:$0xf]
        %v2752 = vld [vmem:[%s2661 + $0x168] sm:$0xf]
        %v2753 = vld [vmem:[%s2661 + $0x16c] sm:$0xf]
        %v2754 = vld [vmem:[%s2661 + $0x170] sm:$0xf]
        %v2755 = vld [vmem:[%s2661 + $0x174] sm:$0xf]
        %v2756 = vld [vmem:[%s2661 + $0x178] sm:$0xf]
        %v2757 = vld [vmem:[%s2661 + $0x17c] sm:$0xf]
        %v2758 = vld [vmem:[%s2661 + $0x180] sm:$0xf]
        %v2759 = vld [vmem:[%s2661 + $0x184] sm:$0xf]
        %v2858 = vunpack.c.l.b16 %v2662
        %v2859 = vunpack.c.l.b16 %v2663
        %v2860 = vunpack.c.l.b16 %v2664
        %v2861 = vunpack.c.l.b16 %v2665
        %v2862 = vunpack.c.l.b16 %v2666
        %v2863 = vunpack.c.l.b16 %v2667
        %v2864 = vunpack.c.l.b16 %v2668
        %v2865 = vunpack.c.l.b16 %v2669
        %v2866 = vunpack.c.l.b16 %v2670
        %v2867 = vunpack.c.l.b16 %v2671
        %v2868 = vunpack.c.l.b16 %v2672
        %v2869 = vunpack.c.l.b16 %v2673
        %v2870 = vunpack.c.l.b16 %v2674
        %v2871 = vunpack.c.l.b16 %v2675
        %v2872 = vunpack.c.l.b16 %v2676
        %v2873 = vunpack.c.l.b16 %v2677
        %v2874 = vunpack.c.l.b16 %v2678
        %v2875 = vunpack.c.l.b16 %v2679
        %v2876 = vunpack.c.l.b16 %v2680
        %v2877 = vunpack.c.l.b16 %v2681
        %v2878 = vunpack.c.l.b16 %v2682
        %v2879 = vunpack.c.l.b16 %v2683
        %v2880 = vunpack.c.l.b16 %v2684
        %v2881 = vunpack.c.l.b16 %v2685
        %v2882 = vunpack.c.l.b16 %v2686
        %v2883 = vunpack.c.l.b16 %v2687
        %v2884 = vunpack.c.l.b16 %v2688
        %v2885 = vunpack.c.l.b16 %v2689
        %v2886 = vunpack.c.l.b16 %v2690
        %v2887 = vunpack.c.l.b16 %v2691
        %v2888 = vunpack.c.l.b16 %v2692
        %v2889 = vunpack.c.l.b16 %v2693
        %v2890 = vunpack.c.l.b16 %v2694
        %v2891 = vunpack.c.l.b16 %v2695
        %v2892 = vunpack.c.l.b16 %v2696
        %v2893 = vunpack.c.l.b16 %v2697
        %v2894 = vunpack.c.l.b16 %v2698
        %v2895 = vunpack.c.l.b16 %v2699
        %v2896 = vunpack.c.l.b16 %v2700
        %v2897 = vunpack.c.l.b16 %v2701
        %v2898 = vunpack.c.l.b16 %v2702
        %v2899 = vunpack.c.l.b16 %v2703
        %v2900 = vunpack.c.l.b16 %v2704
        %v2901 = vunpack.c.l.b16 %v2705
        %v2902 = vunpack.c.l.b16 %v2706
        %v2903 = vunpack.c.l.b16 %v2707
        %v2904 = vunpack.c.l.b16 %v2708
        %v2905 = vunpack.c.l.b16 %v2709
        %v2906 = vunpack.c.l.b16 %v2710
        %v2907 = vunpack.c.l.b16 %v2711
        %v2908 = vunpack.c.l.b16 %v2712
        %v2909 = vunpack.c.l.b16 %v2713
        %v2910 = vunpack.c.l.b16 %v2714
        %v2911 = vunpack.c.l.b16 %v2715
        %v2912 = vunpack.c.l.b16 %v2716
        %v2913 = vunpack.c.l.b16 %v2717
        %v2914 = vunpack.c.l.b16 %v2718
        %v2915 = vunpack.c.l.b16 %v2719
        %v2916 = vunpack.c.l.b16 %v2720
        %v2917 = vunpack.c.l.b16 %v2721
        %v2918 = vunpack.c.l.b16 %v2722
        %v2919 = vunpack.c.l.b16 %v2723
        %v2920 = vunpack.c.l.b16 %v2724
        %v2921 = vunpack.c.l.b16 %v2725
        %v2922 = vunpack.c.l.b16 %v2726
        %v2923 = vunpack.c.l.b16 %v2727
        %v2924 = vunpack.c.l.b16 %v2728
        %v2925 = vunpack.c.l.b16 %v2729
        %v2926 = vunpack.c.l.b16 %v2730
        %v2927 = vunpack.c.l.b16 %v2731
        %v2928 = vunpack.c.l.b16 %v2732
        %v2929 = vunpack.c.l.b16 %v2733
        %v2930 = vunpack.c.l.b16 %v2734
        %v2931 = vunpack.c.l.b16 %v2735
        %v2932 = vunpack.c.l.b16 %v2736
        %v2933 = vunpack.c.l.b16 %v2737
        %v2934 = vunpack.c.l.b16 %v2738
        %v2935 = vunpack.c.l.b16 %v2739
        %v2936 = vunpack.c.l.b16 %v2740
        %v2937 = vunpack.c.l.b16 %v2741
        %v2938 = vunpack.c.l.b16 %v2742
        %v2939 = vunpack.c.l.b16 %v2743
        %v2940 = vunpack.c.l.b16 %v2744
        %v2941 = vunpack.c.l.b16 %v2745
        %v2942 = vunpack.c.l.b16 %v2746
        %v2943 = vunpack.c.l.b16 %v2747
        %v2944 = vunpack.c.l.b16 %v2748
        %v2945 = vunpack.c.l.b16 %v2749
        %v2946 = vunpack.c.l.b16 %v2750
        %v2947 = vunpack.c.l.b16 %v2751
        %v2948 = vunpack.c.l.b16 %v2752
        %v2949 = vunpack.c.l.b16 %v2753
        %v2950 = vunpack.c.l.b16 %v2754
        %v2951 = vunpack.c.l.b16 %v2755
        %v2952 = vunpack.c.l.b16 %v2756
        %v2953 = vunpack.c.l.b16 %v2757
        %v2954 = vunpack.c.l.b16 %v2758
        %v2955 = vunpack.c.l.b16 %v2759
        %v2956 = vpack.c.b16 %v2859, %v2858
        %v2957 = vpack.c.b16 %v2861, %v2860
        %v2958 = vpack.c.b16 %v2863, %v2862
        %v2959 = vpack.c.b16 %v2865, %v2864
        %v2960 = vpack.c.b16 %v2867, %v2866
        %v2961 = vpack.c.b16 %v2869, %v2868
        %v2962 = vpack.c.b16 %v2871, %v2870
        %v2963 = vpack.c.b16 %v2873, %v2872
        %v2964 = vpack.c.b16 %v2875, %v2874
        %v2965 = vpack.c.b16 %v2877, %v2876
        %v2966 = vpack.c.b16 %v2879, %v2878
        %v2967 = vpack.c.b16 %v2881, %v2880
        %v2968 = vpack.c.b16 %v2883, %v2882
        %v2969 = vpack.c.b16 %v2885, %v2884
        %v2970 = vpack.c.b16 %v2887, %v2886
        %v2971 = vpack.c.b16 %v2889, %v2888
        %v2972 = vpack.c.b16 %v2891, %v2890
        %v2973 = vpack.c.b16 %v2893, %v2892
        %v2974 = vpack.c.b16 %v2895, %v2894
        %v2975 = vpack.c.b16 %v2897, %v2896
        %v2976 = vpack.c.b16 %v2899, %v2898
        %v2977 = vpack.c.b16 %v2901, %v2900
        %v2978 = vpack.c.b16 %v2903, %v2902
        %v2979 = vpack.c.b16 %v2905, %v2904
        %v2980 = vpack.c.b16 %v2907, %v2906
        %v2981 = vpack.c.b16 %v2909, %v2908
        %v2982 = vpack.c.b16 %v2911, %v2910
        %v2983 = vpack.c.b16 %v2913, %v2912
        %v2984 = vpack.c.b16 %v2915, %v2914
        %v2985 = vpack.c.b16 %v2917, %v2916
        %v2986 = vpack.c.b16 %v2919, %v2918
        %v2987 = vpack.c.b16 %v2921, %v2920
        %v2988 = vpack.c.b16 %v2923, %v2922
        %v2989 = vpack.c.b16 %v2925, %v2924
        %v2990 = vpack.c.b16 %v2927, %v2926
        %v2991 = vpack.c.b16 %v2929, %v2928
        %v2992 = vpack.c.b16 %v2931, %v2930
        %v2993 = vpack.c.b16 %v2933, %v2932
        %v2994 = vpack.c.b16 %v2935, %v2934
        %v2995 = vpack.c.b16 %v2937, %v2936
        %v2996 = vpack.c.b16 %v2939, %v2938
        %v2997 = vpack.c.b16 %v2941, %v2940
        %v2998 = vpack.c.b16 %v2943, %v2942
        %v2999 = vpack.c.b16 %v2945, %v2944
        %v3000 = vpack.c.b16 %v2947, %v2946
        %v3001 = vpack.c.b16 %v2949, %v2948
        %v3002 = vpack.c.b16 %v2951, %v2950
        %v3003 = vpack.c.b16 %v2953, %v2952
        %v3004 = vpack.c.b16 %v2955, %v2954
        %3054 = vmatprep.subr.bf16.mxu0 0
        %3055 = vmatpush1.bf16.msra.mxu0 %v2220
        %3056 = vmatprep.subr.bf16.mxu0 0
        %3057 = vmatpush1.bf16.msra.mxu0 %v2221
        %3058 = vmatprep.subr.bf16.mxu0 0
        %3059 = vmatpush1.bf16.msra.mxu0 %v2222
        %3060 = vmatprep.subr.bf16.mxu0 0
        %3061 = vmatpush1.bf16.msra.mxu0 %v2223
        %3062 = vmatprep.subr.bf16.mxu0 0
        %3063 = vmatpush1.bf16.msra.mxu0 %v2224
        %3064 = vmatprep.subr.bf16.mxu0 0
        %3065 = vmatpush1.bf16.msra.mxu0 %v2225
        %3066 = vmatprep.subr.bf16.mxu0 0
        %3067 = vmatpush1.bf16.msra.mxu0 %v2226
        %3068 = vmatprep.subr.bf16.mxu0 0
        %3069 = vmatpush1.bf16.msra.mxu0 %v2227
        %3070 = vmatprep.subr.bf16.mxu0 0
        %3071 = vmatpush1.bf16.msra.mxu0 0
        %3072 = vmatprep.subr.bf16.mxu0 0
        %3073 = vmatpush1.bf16.msra.mxu0 0
        %3074 = vmatprep.subr.bf16.mxu0 0
        %3075 = vmatpush1.bf16.msra.mxu0 0
        %3076 = vmatprep.subr.bf16.mxu0 0
        %3077 = vmatpush1.bf16.msra.mxu0 0
        %3078 = vmatprep.subr.bf16.mxu0 0
        %3079 = vmatpush1.bf16.msra.mxu0 0
        %3080 = vmatprep.subr.bf16.mxu0 0
        %3081 = vmatpush1.bf16.msra.mxu0 0
        %3082 = vmatprep.subr.bf16.mxu0 0
        %3083 = vmatpush1.bf16.msra.mxu0 0
        %3084 = vmatprep.subr.bf16.mxu0 0
        %3085 = vmatpush1.bf16.msra.mxu0 0
        %3086 = vmatprep.mubr.bf16.mxu0 0
        %3087 = vmatmul.mubr.bf16.gmra.mrb[0].mxu0 %v2956
        %v3088 = vpop.f32.mrb[0].mxu0
        %v3089 = vadd.f32 0.0, %v3088
        %v3090 = vpop.f32.mrb[0].mxu0
        %v3091 = vpop.f32.mrb[0].mxu0
        %v3092 = vadd.f32 0.0, %v3091
        %v3093 = vpop.f32.mrb[0].mxu0
        %3094 = vmatprep.mubr.bf16.mxu0 0
        %3095 = vmatmul.mubr.bf16.gmra.mrb[0].mxu0 %v2957
        %v3096 = vpop.f32.mrb[0].mxu0
        %v3097 = vadd.f32 0.0, %v3096
        %v3098 = vpop.f32.mrb[0].mxu0
        %v3099 = vpop.f32.mrb[0].mxu0
        %v3100 = vadd.f32 0.0, %v3099
        %v3101 = vpop.f32.mrb[0].mxu0
        %3102 = vmatprep.mubr.bf16.mxu0 0
        %3103 = vmatmul.mubr.bf16.gmra.mrb[0].mxu0 %v2958
        %v3104 = vpop.f32.mrb[0].mxu0
        %v3105 = vadd.f32 0.0, %v3104
        %v3106 = vpop.f32.mrb[0].mxu0
        %v3107 = vpop.f32.mrb[0].mxu0
        %v3108 = vadd.f32 0.0, %v3107
        %v3109 = vpop.f32.mrb[0].mxu0
        %3110 = vmatprep.mubr.bf16.mxu0 0
        %3111 = vmatmul.mubr.bf16.gmra.mrb[0].mxu0 %v2959
        %v3112 = vpop.f32.mrb[0].mxu0
        %v3113 = vadd.f32 0.0, %v3112
        %v3114 = vpop.f32.mrb[0].mxu0
        %v3115 = vpop.f32.mrb[0].mxu0
        %v3116 = vadd.f32 0.0, %v3115
        %v3117 = vpop.f32.mrb[0].mxu0
        %3118 = vmatprep.mubr.bf16.mxu0 0
        %3119 = vmatmul.mubr.bf16.gmra.mrb[0].mxu0 %v2960
        %v3120 = vpop.f32.mrb[0].mxu0
        %v3121 = vadd.f32 0.0, %v3120
        %v3122 = vpop.f32.mrb[0].mxu0
        %v3123 = vpop.f32.mrb[0].mxu0
        %v3124 = vadd.f32 0.0, %v3123
        %v3125 = vpop.f32.mrb[0].mxu0
        %3126 = vmatprep.mubr.bf16.mxu0 0
        %3127 = vmatmul.mubr.bf16.gmra.mrb[0].mxu0 %v2961
        %v3128 = vpop.f32.mrb[0].mxu0
        %v3129 = vadd.f32 0.0, %v3128
        %v3130 = vpop.f32.mrb[0].mxu0
        %v3131 = vpop.f32.mrb[0].mxu0
        %v3132 = vadd.f32 0.0, %v3131
        %v3133 = vpop.f32.mrb[0].mxu0
        %3134 = vmatprep.mubr.bf16.mxu0 0
        %3135 = vmatmul.mubr.bf16.gmra.mrb[0].mxu0 %v2962
        %v3136 = vpop.f32.mrb[0].mxu0
        %v3137 = vadd.f32 0.0, %v3136
        %v3138 = vpop.f32.mrb[0].mxu0
        %v3139 = vpop.f32.mrb[0].mxu0
        %v3140 = vadd.f32 0.0, %v3139
        %v3141 = vpop.f32.mrb[0].mxu0
        %3142 = vmatprep.mubr.bf16.mxu0 0
        %3143 = vmatmul.mubr.bf16.gmra.mrb[0].mxu0 %v2963
        %v3144 = vpop.f32.mrb[0].mxu0
        %v3145 = vadd.f32 0.0, %v3144
        %v3146 = vpop.f32.mrb[0].mxu0
        %v3147 = vpop.f32.mrb[0].mxu0
        %v3148 = vadd.f32 0.0, %v3147
        %v3149 = vpop.f32.mrb[0].mxu0
        %3150 = vmatprep.mubr.bf16.mxu0 0
        %3151 = vmatmul.mubr.bf16.gmra.mrb[0].mxu0 %v2964
        %v3152 = vpop.f32.mrb[0].mxu0
        %v3153 = vadd.f32 0.0, %v3152
        %v3154 = vpop.f32.mrb[0].mxu0
        %v3155 = vpop.f32.mrb[0].mxu0
        %v3156 = vadd.f32 0.0, %v3155
        %v3157 = vpop.f32.mrb[0].mxu0
        %3158 = vmatprep.mubr.bf16.mxu0 0
        %3159 = vmatmul.mubr.bf16.gmra.mrb[0].mxu0 %v2965
        %v3160 = vpop.f32.mrb[0].mxu0
        %v3161 = vadd.f32 0.0, %v3160
        %v3162 = vpop.f32.mrb[0].mxu0
        %v3163 = vpop.f32.mrb[0].mxu0
        %v3164 = vadd.f32 0.0, %v3163
        %v3165 = vpop.f32.mrb[0].mxu0
        %3166 = vmatprep.mubr.bf16.mxu0 0
        %3167 = vmatmul.mubr.bf16.gmra.mrb[0].mxu0 %v2966
        %v3168 = vpop.f32.mrb[0].mxu0
        %v3169 = vadd.f32 0.0, %v3168
        %v3170 = vpop.f32.mrb[0].mxu0
        %v3171 = vpop.f32.mrb[0].mxu0
        %v3172 = vadd.f32 0.0, %v3171
        %v3173 = vpop.f32.mrb[0].mxu0
        %3174 = vmatprep.mubr.bf16.mxu0 0
        %3175 = vmatmul.mubr.bf16.gmra.mrb[0].mxu0 %v2967
        %v3176 = vpop.f32.mrb[0].mxu0
        %v3177 = vadd.f32 0.0, %v3176
        %v3178 = vpop.f32.mrb[0].mxu0
        %v3179 = vpop.f32.mrb[0].mxu0
        %v3180 = vadd.f32 0.0, %v3179
        %v3181 = vpop.f32.mrb[0].mxu0
        %3182 = vmatprep.mubr.bf16.mxu0 0
        %3183 = vmatmul.mubr.bf16.gmra.mrb[0].mxu0 %v2968
        %v3184 = vpop.f32.mrb[0].mxu0
        %v3185 = vadd.f32 0.0, %v3184
        %v3186 = vpop.f32.mrb[0].mxu0
        %v3187 = vpop.f32.mrb[0].mxu0
        %v3188 = vadd.f32 0.0, %v3187
        %v3189 = vpop.f32.mrb[0].mxu0
        %3190 = vmatprep.mubr.bf16.mxu0 0
        %3191 = vmatmul.mubr.bf16.gmra.mrb[0].mxu0 %v2969
        %v3192 = vpop.f32.mrb[0].mxu0
        %v3193 = vadd.f32 0.0, %v3192
        %v3194 = vpop.f32.mrb[0].mxu0
        %v3195 = vpop.f32.mrb[0].mxu0
        %v3196 = vadd.f32 0.0, %v3195
        %v3197 = vpop.f32.mrb[0].mxu0
        %3198 = vmatprep.mubr.bf16.mxu0 0
        %3199 = vmatmul.mubr.bf16.gmra.mrb[0].mxu0 %v2970
        %v3200 = vpop.f32.mrb[0].mxu0
        %v3201 = vadd.f32 0.0, %v3200
        %v3202 = vpop.f32.mrb[0].mxu0
        %v3203 = vpop.f32.mrb[0].mxu0
        %v3204 = vadd.f32 0.0, %v3203
        %v3205 = vpop.f32.mrb[0].mxu0
        %3206 = vmatprep.mubr.bf16.mxu0 0
        %3207 = vmatmul.mubr.bf16.gmra.mrb[0].mxu0 %v2971
        %v3208 = vpop.f32.mrb[0].mxu0
        %v3209 = vadd.f32 0.0, %v3208
        %v3210 = vpop.f32.mrb[0].mxu0
        %v3211 = vpop.f32.mrb[0].mxu0
        %v3212 = vadd.f32 0.0, %v3211
        %v3213 = vpop.f32.mrb[0].mxu0
        %3214 = vmatprep.mubr.bf16.mxu0 0
        %3215 = vmatmul.mubr.bf16.gmra.mrb[0].mxu0 %v2972
        %v3216 = vpop.f32.mrb[0].mxu0
        %v3217 = vadd.f32 0.0, %v3216
        %v3218 = vpop.f32.mrb[0].mxu0
        %v3219 = vpop.f32.mrb[0].mxu0
        %v3220 = vadd.f32 0.0, %v3219
        %v3221 = vpop.f32.mrb[0].mxu0
        %3222 = vmatprep.mubr.bf16.mxu0 0
        %3223 = vmatmul.mubr.bf16.gmra.mrb[0].mxu0 %v2973
        %v3224 = vpop.f32.mrb[0].mxu0
        %v3225 = vadd.f32 0.0, %v3224
        %v3226 = vpop.f32.mrb[0].mxu0
        %v3227 = vpop.f32.mrb[0].mxu0
        %v3228 = vadd.f32 0.0, %v3227
        %v3229 = vpop.f32.mrb[0].mxu0
        %3230 = vmatprep.mubr.bf16.mxu0 0
        %3231 = vmatmul.mubr.bf16.gmra.mrb[0].mxu0 %v2974
        %v3232 = vpop.f32.mrb[0].mxu0
        %v3233 = vadd.f32 0.0, %v3232
        %v3234 = vpop.f32.mrb[0].mxu0
        %v3235 = vpop.f32.mrb[0].mxu0
        %v3236 = vadd.f32 0.0, %v3235
        %v3237 = vpop.f32.mrb[0].mxu0
        %3238 = vmatprep.mubr.bf16.mxu0 0
        %3239 = vmatmul.mubr.bf16.gmra.mrb[0].mxu0 %v2975
        %v3240 = vpop.f32.mrb[0].mxu0
        %v3241 = vadd.f32 0.0, %v3240
        %v3242 = vpop.f32.mrb[0].mxu0
        %v3243 = vpop.f32.mrb[0].mxu0
        %v3244 = vadd.f32 0.0, %v3243
        %v3245 = vpop.f32.mrb[0].mxu0
        %3246 = vmatprep.mubr.bf16.mxu0 0
        %3247 = vmatmul.mubr.bf16.gmra.mrb[0].mxu0 %v2976
        %v3248 = vpop.f32.mrb[0].mxu0
        %v3249 = vadd.f32 0.0, %v3248
        %v3250 = vpop.f32.mrb[0].mxu0
        %v3251 = vpop.f32.mrb[0].mxu0
        %v3252 = vadd.f32 0.0, %v3251
        %v3253 = vpop.f32.mrb[0].mxu0
        %3254 = vmatprep.mubr.bf16.mxu0 0
        %3255 = vmatmul.mubr.bf16.gmra.mrb[0].mxu0 %v2977
        %v3256 = vpop.f32.mrb[0].mxu0
        %v3257 = vadd.f32 0.0, %v3256
        %v3258 = vpop.f32.mrb[0].mxu0
        %v3259 = vpop.f32.mrb[0].mxu0
        %v3260 = vadd.f32 0.0, %v3259
        %v3261 = vpop.f32.mrb[0].mxu0
        %3262 = vmatprep.mubr.bf16.mxu0 0
        %3263 = vmatmul.mubr.bf16.gmra.mrb[0].mxu0 %v2978
        %v3264 = vpop.f32.mrb[0].mxu0
        %v3265 = vadd.f32 0.0, %v3264
        %v3266 = vpop.f32.mrb[0].mxu0
        %v3267 = vpop.f32.mrb[0].mxu0
        %v3268 = vadd.f32 0.0, %v3267
        %v3269 = vpop.f32.mrb[0].mxu0
        %3270 = vmatprep.mubr.bf16.mxu0 0
        %3271 = vmatmul.mubr.bf16.gmra.mrb[0].mxu0 %v2979
        %v3272 = vpop.f32.mrb[0].mxu0
        %v3273 = vadd.f32 0.0, %v3272
        %v3274 = vpop.f32.mrb[0].mxu0
        %v3275 = vpop.f32.mrb[0].mxu0
        %v3276 = vadd.f32 0.0, %v3275
        %v3277 = vpop.f32.mrb[0].mxu0
        %3278 = vmatprep.mubr.bf16.mxu0 0
        %3279 = vmatmul.mubr.bf16.gmra.mrb[0].mxu0 %v2980
        %v3280 = vpop.f32.mrb[0].mxu0
        %v3281 = vadd.f32 0.0, %v3280
        %v3282 = vpop.f32.mrb[0].mxu0
        %v3283 = vpop.f32.mrb[0].mxu0
        %v3284 = vadd.f32 0.0, %v3283
        %v3285 = vpop.f32.mrb[0].mxu0
        %3286 = vmatprep.mubr.bf16.mxu0 0
        %3287 = vmatmul.mubr.bf16.gmra.mrb[0].mxu0 %v2981
        %v3288 = vpop.f32.mrb[0].mxu0
        %v3289 = vadd.f32 0.0, %v3288
        %v3290 = vpop.f32.mrb[0].mxu0
        %v3291 = vpop.f32.mrb[0].mxu0
        %v3292 = vadd.f32 0.0, %v3291
        %v3293 = vpop.f32.mrb[0].mxu0
        %3294 = vmatprep.mubr.bf16.mxu0 0
        %3295 = vmatmul.mubr.bf16.gmra.mrb[0].mxu0 %v2982
        %v3296 = vpop.f32.mrb[0].mxu0
        %v3297 = vadd.f32 0.0, %v3296
        %v3298 = vpop.f32.mrb[0].mxu0
        %v3299 = vpop.f32.mrb[0].mxu0
        %v3300 = vadd.f32 0.0, %v3299
        %v3301 = vpop.f32.mrb[0].mxu0
        %3302 = vmatprep.mubr.bf16.mxu0 0
        %3303 = vmatmul.mubr.bf16.gmra.mrb[0].mxu0 %v2983
        %v3304 = vpop.f32.mrb[0].mxu0
        %v3305 = vadd.f32 0.0, %v3304
        %v3306 = vpop.f32.mrb[0].mxu0
        %v3307 = vpop.f32.mrb[0].mxu0
        %v3308 = vadd.f32 0.0, %v3307
        %v3309 = vpop.f32.mrb[0].mxu0
        %3310 = vmatprep.mubr.bf16.mxu0 0
        %3311 = vmatmul.mubr.bf16.gmra.mrb[0].mxu0 %v2984
        %v3312 = vpop.f32.mrb[0].mxu0
        %v3313 = vadd.f32 0.0, %v3312
        %v3314 = vpop.f32.mrb[0].mxu0
        %v3315 = vpop.f32.mrb[0].mxu0
        %v3316 = vadd.f32 0.0, %v3315
        %v3317 = vpop.f32.mrb[0].mxu0
        %3318 = vmatprep.mubr.bf16.mxu0 0
        %3319 = vmatmul.mubr.bf16.gmra.mrb[0].mxu0 %v2985
        %v3320 = vpop.f32.mrb[0].mxu0
        %v3321 = vadd.f32 0.0, %v3320
        %v3322 = vpop.f32.mrb[0].mxu0
        %v3323 = vpop.f32.mrb[0].mxu0
        %v3324 = vadd.f32 0.0, %v3323
        %v3325 = vpop.f32.mrb[0].mxu0
        %3326 = vmatprep.mubr.bf16.mxu0 0
        %3327 = vmatmul.mubr.bf16.gmra.mrb[0].mxu0 %v2986
        %v3328 = vpop.f32.mrb[0].mxu0
        %v3329 = vadd.f32 0.0, %v3328
        %v3330 = vpop.f32.mrb[0].mxu0
        %v3331 = vpop.f32.mrb[0].mxu0
        %v3332 = vadd.f32 0.0, %v3331
        %v3333 = vpop.f32.mrb[0].mxu0
        %3334 = vmatprep.mubr.bf16.mxu0 0
        %3335 = vmatmul.mubr.bf16.gmra.mrb[0].mxu0 %v2987
        %v3336 = vpop.f32.mrb[0].mxu0
        %v3337 = vadd.f32 0.0, %v3336
        %v3338 = vpop.f32.mrb[0].mxu0
        %v3339 = vpop.f32.mrb[0].mxu0
        %v3340 = vadd.f32 0.0, %v3339
        %v3341 = vpop.f32.mrb[0].mxu0
        %3342 = vmatprep.mubr.bf16.mxu0 0
        %3343 = vmatmul.mubr.bf16.gmra.mrb[0].mxu0 %v2988
        %v3344 = vpop.f32.mrb[0].mxu0
        %v3345 = vadd.f32 0.0, %v3344
        %v3346 = vpop.f32.mrb[0].mxu0
        %v3347 = vpop.f32.mrb[0].mxu0
        %v3348 = vadd.f32 0.0, %v3347
        %v3349 = vpop.f32.mrb[0].mxu0
        %3350 = vmatprep.mubr.bf16.mxu0 0
        %3351 = vmatmul.mubr.bf16.gmra.mrb[0].mxu0 %v2989
        %v3352 = vpop.f32.mrb[0].mxu0
        %v3353 = vadd.f32 0.0, %v3352
        %v3354 = vpop.f32.mrb[0].mxu0
        %v3355 = vpop.f32.mrb[0].mxu0
        %v3356 = vadd.f32 0.0, %v3355
        %v3357 = vpop.f32.mrb[0].mxu0
        %3358 = vmatprep.mubr.bf16.mxu0 0
        %3359 = vmatmul.mubr.bf16.gmra.mrb[0].mxu0 %v2990
        %v3360 = vpop.f32.mrb[0].mxu0
        %v3361 = vadd.f32 0.0, %v3360
        %v3362 = vpop.f32.mrb[0].mxu0
        %v3363 = vpop.f32.mrb[0].mxu0
        %v3364 = vadd.f32 0.0, %v3363
        %v3365 = vpop.f32.mrb[0].mxu0
        %3366 = vmatprep.mubr.bf16.mxu0 0
        %3367 = vmatmul.mubr.bf16.gmra.mrb[0].mxu0 %v2991
        %v3368 = vpop.f32.mrb[0].mxu0
        %v3369 = vadd.f32 0.0, %v3368
        %v3370 = vpop.f32.mrb[0].mxu0
        %v3371 = vpop.f32.mrb[0].mxu0
        %v3372 = vadd.f32 0.0, %v3371
        %v3373 = vpop.f32.mrb[0].mxu0
        %3374 = vmatprep.mubr.bf16.mxu0 0
        %3375 = vmatmul.mubr.bf16.gmra.mrb[0].mxu0 %v2992
        %v3376 = vpop.f32.mrb[0].mxu0
        %v3377 = vadd.f32 0.0, %v3376
        %v3378 = vpop.f32.mrb[0].mxu0
        %v3379 = vpop.f32.mrb[0].mxu0
        %v3380 = vadd.f32 0.0, %v3379
        %v3381 = vpop.f32.mrb[0].mxu0
        %3382 = vmatprep.mubr.bf16.mxu0 0
        %3383 = vmatmul.mubr.bf16.gmra.mrb[0].mxu0 %v2993
        %v3384 = vpop.f32.mrb[0].mxu0
        %v3385 = vadd.f32 0.0, %v3384
        %v3386 = vpop.f32.mrb[0].mxu0
        %v3387 = vpop.f32.mrb[0].mxu0
        %v3388 = vadd.f32 0.0, %v3387
        %v3389 = vpop.f32.mrb[0].mxu0
        %3390 = vmatprep.mubr.bf16.mxu0 0
        %3391 = vmatmul.mubr.bf16.gmra.mrb[0].mxu0 %v2994
        %v3392 = vpop.f32.mrb[0].mxu0
        %v3393 = vadd.f32 0.0, %v3392
        %v3394 = vpop.f32.mrb[0].mxu0
        %v3395 = vpop.f32.mrb[0].mxu0
        %v3396 = vadd.f32 0.0, %v3395
        %v3397 = vpop.f32.mrb[0].mxu0
        %3398 = vmatprep.mubr.bf16.mxu0 0
        %3399 = vmatmul.mubr.bf16.gmra.mrb[0].mxu0 %v2995
        %v3400 = vpop.f32.mrb[0].mxu0
        %v3401 = vadd.f32 0.0, %v3400
        %v3402 = vpop.f32.mrb[0].mxu0
        %v3403 = vpop.f32.mrb[0].mxu0
        %v3404 = vadd.f32 0.0, %v3403
        %v3405 = vpop.f32.mrb[0].mxu0
        %3406 = vmatprep.mubr.bf16.mxu0 0
        %3407 = vmatmul.mubr.bf16.gmra.mrb[0].mxu0 %v2996
        %v3408 = vpop.f32.mrb[0].mxu0
        %v3409 = vadd.f32 0.0, %v3408
        %v3410 = vpop.f32.mrb[0].mxu0
        %v3411 = vpop.f32.mrb[0].mxu0
        %v3412 = vadd.f32 0.0, %v3411
        %v3413 = vpop.f32.mrb[0].mxu0
        %3414 = vmatprep.mubr.bf16.mxu0 0
        %3415 = vmatmul.mubr.bf16.gmra.mrb[0].mxu0 %v2997
        %v3416 = vpop.f32.mrb[0].mxu0
        %v3417 = vadd.f32 0.0, %v3416
        %v3418 = vpop.f32.mrb[0].mxu0
        %v3419 = vpop.f32.mrb[0].mxu0
        %v3420 = vadd.f32 0.0, %v3419
        %v3421 = vpop.f32.mrb[0].mxu0
        %3422 = vmatprep.mubr.bf16.mxu0 0
        %3423 = vmatmul.mubr.bf16.gmra.mrb[0].mxu0 %v2998
        %v3424 = vpop.f32.mrb[0].mxu0
        %v3425 = vadd.f32 0.0, %v3424
        %v3426 = vpop.f32.mrb[0].mxu0
        %v3427 = vpop.f32.mrb[0].mxu0
        %v3428 = vadd.f32 0.0, %v3427
        %v3429 = vpop.f32.mrb[0].mxu0
        %3430 = vmatprep.mubr.bf16.mxu0 0
        %3431 = vmatmul.mubr.bf16.gmra.mrb[0].mxu0 %v2999
        %v3432 = vpop.f32.mrb[0].mxu0
        %v3433 = vadd.f32 0.0, %v3432
        %v3434 = vpop.f32.mrb[0].mxu0
        %v3435 = vpop.f32.mrb[0].mxu0
        %v3436 = vadd.f32 0.0, %v3435
        %v3437 = vpop.f32.mrb[0].mxu0
        %3438 = vmatprep.mubr.bf16.mxu0 0
        %3439 = vmatmul.mubr.bf16.gmra.mrb[0].mxu0 %v3000
        %v3440 = vpop.f32.mrb[0].mxu0
        %v3441 = vadd.f32 0.0, %v3440
        %v3442 = vpop.f32.mrb[0].mxu0
        %v3443 = vpop.f32.mrb[0].mxu0
        %v3444 = vadd.f32 0.0, %v3443
        %v3445 = vpop.f32.mrb[0].mxu0
        %3446 = vmatprep.mubr.bf16.mxu0 0
        %3447 = vmatmul.mubr.bf16.gmra.mrb[0].mxu0 %v3001
        %v3448 = vpop.f32.mrb[0].mxu0
        %v3449 = vadd.f32 0.0, %v3448
        %v3450 = vpop.f32.mrb[0].mxu0
        %v3451 = vpop.f32.mrb[0].mxu0
        %v3452 = vadd.f32 0.0, %v3451
        %v3453 = vpop.f32.mrb[0].mxu0
        %3454 = vmatprep.mubr.bf16.mxu0 0
        %3455 = vmatmul.mubr.bf16.gmra.mrb[0].mxu0 %v3002
        %v3456 = vpop.f32.mrb[0].mxu0
        %v3457 = vadd.f32 0.0, %v3456
        %v3458 = vpop.f32.mrb[0].mxu0
        %v3459 = vpop.f32.mrb[0].mxu0
        %v3460 = vadd.f32 0.0, %v3459
        %v3461 = vpop.f32.mrb[0].mxu0
        %3462 = vmatprep.mubr.bf16.mxu0 0
        %3463 = vmatmul.mubr.bf16.gmra.mrb[0].mxu0 %v3003
        %v3464 = vpop.f32.mrb[0].mxu0
        %v3465 = vadd.f32 0.0, %v3464
        %v3466 = vpop.f32.mrb[0].mxu0
        %v3467 = vpop.f32.mrb[0].mxu0
        %v3468 = vadd.f32 0.0, %v3467
        %v3469 = vpop.f32.mrb[0].mxu0
        %3470 = vmatprep.mubr.bf16.mxu0 0
        %3471 = vmatmul.mubr.bf16.gmra.mrb[0].mxu0 %v3004
        %v3472 = vpop.f32.mrb[0].mxu0
        %v3473 = vadd.f32 0.0, %v3472
        %v3474 = vpop.f32.mrb[0].mxu0
        %v3475 = vpop.f32.mrb[0].mxu0
        %v3476 = vadd.f32 0.0, %v3475
        %v3477 = vpop.f32.mrb[0].mxu0
        %3478 = vdwg.mxu0
        %s3479 = scalar_lea.vmem %s1751, 784 [#allocation2]
        %v3480 = vld [vmem:[%s3479] sm:$0xf]
        %v3481 = vld [vmem:[%s3479 + $0x4] sm:$0xf]
        %v3482 = vld [vmem:[%s3479 + $0x8] sm:$0xf]
        %v3483 = vld [vmem:[%s3479 + $0xc] sm:$0xf]
        %v3484 = vld [vmem:[%s3479 + $0x10] sm:$0xf]
        %v3485 = vld [vmem:[%s3479 + $0x14] sm:$0xf]
        %v3486 = vld [vmem:[%s3479 + $0x18] sm:$0xf]
        %v3487 = vld [vmem:[%s3479 + $0x1c] sm:$0xf]
        %v3488 = vld [vmem:[%s3479 + $0x20] sm:$0xf]
        %v3489 = vld [vmem:[%s3479 + $0x24] sm:$0xf]
        %v3490 = vld [vmem:[%s3479 + $0x28] sm:$0xf]
        %v3491 = vld [vmem:[%s3479 + $0x2c] sm:$0xf]
        %v3492 = vld [vmem:[%s3479 + $0x30] sm:$0xf]
        %v3493 = vld [vmem:[%s3479 + $0x34] sm:$0xf]
        %v3494 = vld [vmem:[%s3479 + $0x38] sm:$0xf]
        %v3495 = vld [vmem:[%s3479 + $0x3c] sm:$0xf]
        %v3496 = vld [vmem:[%s3479 + $0x40] sm:$0xf]
        %v3497 = vld [vmem:[%s3479 + $0x44] sm:$0xf]
        %v3498 = vld [vmem:[%s3479 + $0x48] sm:$0xf]
        %v3499 = vld [vmem:[%s3479 + $0x4c] sm:$0xf]
        %v3500 = vld [vmem:[%s3479 + $0x50] sm:$0xf]
        %v3501 = vld [vmem:[%s3479 + $0x54] sm:$0xf]
        %v3502 = vld [vmem:[%s3479 + $0x58] sm:$0xf]
        %v3503 = vld [vmem:[%s3479 + $0x5c] sm:$0xf]
        %v3504 = vld [vmem:[%s3479 + $0x60] sm:$0xf]
        %v3505 = vld [vmem:[%s3479 + $0x64] sm:$0xf]
        %v3506 = vld [vmem:[%s3479 + $0x68] sm:$0xf]
        %v3507 = vld [vmem:[%s3479 + $0x6c] sm:$0xf]
        %v3508 = vld [vmem:[%s3479 + $0x70] sm:$0xf]
        %v3509 = vld [vmem:[%s3479 + $0x74] sm:$0xf]
        %v3510 = vld [vmem:[%s3479 + $0x78] sm:$0xf]
        %v3511 = vld [vmem:[%s3479 + $0x7c] sm:$0xf]
        %v3512 = vld [vmem:[%s3479 + $0x80] sm:$0xf]
        %v3513 = vld [vmem:[%s3479 + $0x84] sm:$0xf]
        %v3514 = vld [vmem:[%s3479 + $0x88] sm:$0xf]
        %v3515 = vld [vmem:[%s3479 + $0x8c] sm:$0xf]
        %v3516 = vld [vmem:[%s3479 + $0x90] sm:$0xf]
        %v3517 = vld [vmem:[%s3479 + $0x94] sm:$0xf]
        %v3518 = vld [vmem:[%s3479 + $0x98] sm:$0xf]
        %v3519 = vld [vmem:[%s3479 + $0x9c] sm:$0xf]
        %v3520 = vld [vmem:[%s3479 + $0xa0] sm:$0xf]
        %v3521 = vld [vmem:[%s3479 + $0xa4] sm:$0xf]
        %v3522 = vld [vmem:[%s3479 + $0xa8] sm:$0xf]
        %v3523 = vld [vmem:[%s3479 + $0xac] sm:$0xf]
        %v3524 = vld [vmem:[%s3479 + $0xb0] sm:$0xf]
        %v3525 = vld [vmem:[%s3479 + $0xb4] sm:$0xf]
        %v3526 = vld [vmem:[%s3479 + $0xb8] sm:$0xf]
        %v3527 = vld [vmem:[%s3479 + $0xbc] sm:$0xf]
        %v3528 = vld [vmem:[%s3479 + $0xc0] sm:$0xf]
        %v3529 = vld [vmem:[%s3479 + $0xc4] sm:$0xf]
        %v3530 = vld [vmem:[%s3479 + $0xc8] sm:$0xf]
        %v3531 = vld [vmem:[%s3479 + $0xcc] sm:$0xf]
        %v3532 = vld [vmem:[%s3479 + $0xd0] sm:$0xf]
        %v3533 = vld [vmem:[%s3479 + $0xd4] sm:$0xf]
        %v3534 = vld [vmem:[%s3479 + $0xd8] sm:$0xf]
        %v3535 = vld [vmem:[%s3479 + $0xdc] sm:$0xf]
        %v3536 = vld [vmem:[%s3479 + $0xe0] sm:$0xf]
        %v3537 = vld [vmem:[%s3479 + $0xe4] sm:$0xf]
        %v3538 = vld [vmem:[%s3479 + $0xe8] sm:$0xf]
        %v3539 = vld [vmem:[%s3479 + $0xec] sm:$0xf]
        %v3540 = vld [vmem:[%s3479 + $0xf0] sm:$0xf]
        %v3541 = vld [vmem:[%s3479 + $0xf4] sm:$0xf]
        %v3542 = vld [vmem:[%s3479 + $0xf8] sm:$0xf]
        %v3543 = vld [vmem:[%s3479 + $0xfc] sm:$0xf]
        %v3544 = vld [vmem:[%s3479 + $0x100] sm:$0xf]
        %v3545 = vld [vmem:[%s3479 + $0x104] sm:$0xf]
        %v3546 = vld [vmem:[%s3479 + $0x108] sm:$0xf]
        %v3547 = vld [vmem:[%s3479 + $0x10c] sm:$0xf]
        %v3548 = vld [vmem:[%s3479 + $0x110] sm:$0xf]
        %v3549 = vld [vmem:[%s3479 + $0x114] sm:$0xf]
        %v3550 = vld [vmem:[%s3479 + $0x118] sm:$0xf]
        %v3551 = vld [vmem:[%s3479 + $0x11c] sm:$0xf]
        %v3552 = vld [vmem:[%s3479 + $0x120] sm:$0xf]
        %v3553 = vld [vmem:[%s3479 + $0x124] sm:$0xf]
        %v3554 = vld [vmem:[%s3479 + $0x128] sm:$0xf]
        %v3555 = vld [vmem:[%s3479 + $0x12c] sm:$0xf]
        %v3556 = vld [vmem:[%s3479 + $0x130] sm:$0xf]
        %v3557 = vld [vmem:[%s3479 + $0x134] sm:$0xf]
        %v3558 = vld [vmem:[%s3479 + $0x138] sm:$0xf]
        %v3559 = vld [vmem:[%s3479 + $0x13c] sm:$0xf]
        %v3560 = vld [vmem:[%s3479 + $0x140] sm:$0xf]
        %v3561 = vld [vmem:[%s3479 + $0x144] sm:$0xf]
        %v3562 = vld [vmem:[%s3479 + $0x148] sm:$0xf]
        %v3563 = vld [vmem:[%s3479 + $0x14c] sm:$0xf]
        %v3564 = vld [vmem:[%s3479 + $0x150] sm:$0xf]
        %v3565 = vld [vmem:[%s3479 + $0x154] sm:$0xf]
        %v3566 = vld [vmem:[%s3479 + $0x158] sm:$0xf]
        %v3567 = vld [vmem:[%s3479 + $0x15c] sm:$0xf]
        %v3568 = vld [vmem:[%s3479 + $0x160] sm:$0xf]
        %v3569 = vld [vmem:[%s3479 + $0x164] sm:$0xf]
        %v3570 = vld [vmem:[%s3479 + $0x168] sm:$0xf]
        %v3571 = vld [vmem:[%s3479 + $0x16c] sm:$0xf]
        %v3572 = vld [vmem:[%s3479 + $0x170] sm:$0xf]
        %v3573 = vld [vmem:[%s3479 + $0x174] sm:$0xf]
        %v3574 = vld [vmem:[%s3479 + $0x178] sm:$0xf]
        %v3575 = vld [vmem:[%s3479 + $0x17c] sm:$0xf]
        %v3576 = vld [vmem:[%s3479 + $0x180] sm:$0xf]
        %v3577 = vld [vmem:[%s3479 + $0x184] sm:$0xf]
        %v3676 = vunpack.c.l.b16 %v3480
        %v3677 = vunpack.c.l.b16 %v3481
        %v3678 = vunpack.c.l.b16 %v3482
        %v3679 = vunpack.c.l.b16 %v3483
        %v3680 = vunpack.c.l.b16 %v3484
        %v3681 = vunpack.c.l.b16 %v3485
        %v3682 = vunpack.c.l.b16 %v3486
        %v3683 = vunpack.c.l.b16 %v3487
        %v3684 = vunpack.c.l.b16 %v3488
        %v3685 = vunpack.c.l.b16 %v3489
        %v3686 = vunpack.c.l.b16 %v3490
        %v3687 = vunpack.c.l.b16 %v3491
        %v3688 = vunpack.c.l.b16 %v3492
        %v3689 = vunpack.c.l.b16 %v3493
        %v3690 = vunpack.c.l.b16 %v3494
        %v3691 = vunpack.c.l.b16 %v3495
        %v3692 = vunpack.c.l.b16 %v3496
        %v3693 = vunpack.c.l.b16 %v3497
        %v3694 = vunpack.c.l.b16 %v3498
        %v3695 = vunpack.c.l.b16 %v3499
        %v3696 = vunpack.c.l.b16 %v3500
        %v3697 = vunpack.c.l.b16 %v3501
        %v3698 = vunpack.c.l.b16 %v3502
        %v3699 = vunpack.c.l.b16 %v3503
        %v3700 = vunpack.c.l.b16 %v3504
        %v3701 = vunpack.c.l.b16 %v3505
        %v3702 = vunpack.c.l.b16 %v3506
        %v3703 = vunpack.c.l.b16 %v3507
        %v3704 = vunpack.c.l.b16 %v3508
        %v3705 = vunpack.c.l.b16 %v3509
        %v3706 = vunpack.c.l.b16 %v3510
        %v3707 = vunpack.c.l.b16 %v3511
        %v3708 = vunpack.c.l.b16 %v3512
        %v3709 = vunpack.c.l.b16 %v3513
        %v3710 = vunpack.c.l.b16 %v3514
        %v3711 = vunpack.c.l.b16 %v3515
        %v3712 = vunpack.c.l.b16 %v3516
        %v3713 = vunpack.c.l.b16 %v3517
        %v3714 = vunpack.c.l.b16 %v3518
        %v3715 = vunpack.c.l.b16 %v3519
        %v3716 = vunpack.c.l.b16 %v3520
        %v3717 = vunpack.c.l.b16 %v3521
        %v3718 = vunpack.c.l.b16 %v3522
        %v3719 = vunpack.c.l.b16 %v3523
        %v3720 = vunpack.c.l.b16 %v3524
        %v3721 = vunpack.c.l.b16 %v3525
        %v3722 = vunpack.c.l.b16 %v3526
        %v3723 = vunpack.c.l.b16 %v3527
        %v3724 = vunpack.c.l.b16 %v3528
        %v3725 = vunpack.c.l.b16 %v3529
        %v3726 = vunpack.c.l.b16 %v3530
        %v3727 = vunpack.c.l.b16 %v3531
        %v3728 = vunpack.c.l.b16 %v3532
        %v3729 = vunpack.c.l.b16 %v3533
        %v3730 = vunpack.c.l.b16 %v3534
        %v3731 = vunpack.c.l.b16 %v3535
        %v3732 = vunpack.c.l.b16 %v3536
        %v3733 = vunpack.c.l.b16 %v3537
        %v3734 = vunpack.c.l.b16 %v3538
        %v3735 = vunpack.c.l.b16 %v3539
        %v3736 = vunpack.c.l.b16 %v3540
        %v3737 = vunpack.c.l.b16 %v3541
        %v3738 = vunpack.c.l.b16 %v3542
        %v3739 = vunpack.c.l.b16 %v3543
        %v3740 = vunpack.c.l.b16 %v3544
        %v3741 = vunpack.c.l.b16 %v3545
        %v3742 = vunpack.c.l.b16 %v3546
        %v3743 = vunpack.c.l.b16 %v3547
        %v3744 = vunpack.c.l.b16 %v3548
        %v3745 = vunpack.c.l.b16 %v3549
        %v3746 = vunpack.c.l.b16 %v3550
        %v3747 = vunpack.c.l.b16 %v3551
        %v3748 = vunpack.c.l.b16 %v3552
        %v3749 = vunpack.c.l.b16 %v3553
        %v3750 = vunpack.c.l.b16 %v3554
        %v3751 = vunpack.c.l.b16 %v3555
        %v3752 = vunpack.c.l.b16 %v3556
        %v3753 = vunpack.c.l.b16 %v3557
        %v3754 = vunpack.c.l.b16 %v3558
        %v3755 = vunpack.c.l.b16 %v3559
        %v3756 = vunpack.c.l.b16 %v3560
        %v3757 = vunpack.c.l.b16 %v3561
        %v3758 = vunpack.c.l.b16 %v3562
        %v3759 = vunpack.c.l.b16 %v3563
        %v3760 = vunpack.c.l.b16 %v3564
        %v3761 = vunpack.c.l.b16 %v3565
        %v3762 = vunpack.c.l.b16 %v3566
        %v3763 = vunpack.c.l.b16 %v3567
        %v3764 = vunpack.c.l.b16 %v3568
        %v3765 = vunpack.c.l.b16 %v3569
        %v3766 = vunpack.c.l.b16 %v3570
        %v3767 = vunpack.c.l.b16 %v3571
        %v3768 = vunpack.c.l.b16 %v3572
        %v3769 = vunpack.c.l.b16 %v3573
        %v3770 = vunpack.c.l.b16 %v3574
        %v3771 = vunpack.c.l.b16 %v3575
        %v3772 = vunpack.c.l.b16 %v3576
        %v3773 = vunpack.c.l.b16 %v3577
        %v3774 = vpack.c.b16 %v3677, %v3676
        %v3775 = vpack.c.b16 %v3679, %v3678
        %v3776 = vpack.c.b16 %v3681, %v3680
        %v3777 = vpack.c.b16 %v3683, %v3682
        %v3778 = vpack.c.b16 %v3685, %v3684
        %v3779 = vpack.c.b16 %v3687, %v3686
        %v3780 = vpack.c.b16 %v3689, %v3688
        %v3781 = vpack.c.b16 %v3691, %v3690
        %v3782 = vpack.c.b16 %v3693, %v3692
        %v3783 = vpack.c.b16 %v3695, %v3694
        %v3784 = vpack.c.b16 %v3697, %v3696
        %v3785 = vpack.c.b16 %v3699, %v3698
        %v3786 = vpack.c.b16 %v3701, %v3700
        %v3787 = vpack.c.b16 %v3703, %v3702
        %v3788 = vpack.c.b16 %v3705, %v3704
        %v3789 = vpack.c.b16 %v3707, %v3706
        %v3790 = vpack.c.b16 %v3709, %v3708
        %v3791 = vpack.c.b16 %v3711, %v3710
        %v3792 = vpack.c.b16 %v3713, %v3712
        %v3793 = vpack.c.b16 %v3715, %v3714
        %v3794 = vpack.c.b16 %v3717, %v3716
        %v3795 = vpack.c.b16 %v3719, %v3718
        %v3796 = vpack.c.b16 %v3721, %v3720
        %v3797 = vpack.c.b16 %v3723, %v3722
        %v3798 = vpack.c.b16 %v3725, %v3724
        %v3799 = vpack.c.b16 %v3727, %v3726
        %v3800 = vpack.c.b16 %v3729, %v3728
        %v3801 = vpack.c.b16 %v3731, %v3730
        %v3802 = vpack.c.b16 %v3733, %v3732
        %v3803 = vpack.c.b16 %v3735, %v3734
        %v3804 = vpack.c.b16 %v3737, %v3736
        %v3805 = vpack.c.b16 %v3739, %v3738
        %v3806 = vpack.c.b16 %v3741, %v3740
        %v3807 = vpack.c.b16 %v3743, %v3742
        %v3808 = vpack.c.b16 %v3745, %v3744
        %v3809 = vpack.c.b16 %v3747, %v3746
        %v3810 = vpack.c.b16 %v3749, %v3748
        %v3811 = vpack.c.b16 %v3751, %v3750
        %v3812 = vpack.c.b16 %v3753, %v3752
        %v3813 = vpack.c.b16 %v3755, %v3754
        %v3814 = vpack.c.b16 %v3757, %v3756
        %v3815 = vpack.c.b16 %v3759, %v3758
        %v3816 = vpack.c.b16 %v3761, %v3760
        %v3817 = vpack.c.b16 %v3763, %v3762
        %v3818 = vpack.c.b16 %v3765, %v3764
        %v3819 = vpack.c.b16 %v3767, %v3766
        %v3820 = vpack.c.b16 %v3769, %v3768
        %v3821 = vpack.c.b16 %v3771, %v3770
        %v3822 = vpack.c.b16 %v3773, %v3772
        %3872 = vmatprep.subr.bf16.mxu0 0
        %3873 = vmatpush1.bf16.msra.mxu0 %v2220
        %3874 = vmatprep.subr.bf16.mxu0 0
        %3875 = vmatpush1.bf16.msra.mxu0 %v2221
        %3876 = vmatprep.subr.bf16.mxu0 0
        %3877 = vmatpush1.bf16.msra.mxu0 %v2222
        %3878 = vmatprep.subr.bf16.mxu0 0
        %3879 = vmatpush1.bf16.msra.mxu0 %v2223
        %3880 = vmatprep.subr.bf16.mxu0 0
        %3881 = vmatpush1.bf16.msra.mxu0 %v2224
        %3882 = vmatprep.subr.bf16.mxu0 0
        %3883 = vmatpush1.bf16.msra.mxu0 %v2225
        %3884 = vmatprep.subr.bf16.mxu0 0
        %3885 = vmatpush1.bf16.msra.mxu0 %v2226
        %3886 = vmatprep.subr.bf16.mxu0 0
        %3887 = vmatpush1.bf16.msra.mxu0 %v2227
        %3888 = vmatprep.subr.bf16.mxu0 0
        %3889 = vmatpush1.bf16.msra.mxu0 0
        %3890 = vmatprep.subr.bf16.mxu0 0
        %3891 = vmatpush1.bf16.msra.mxu0 0
        %3892 = vmatprep.subr.bf16.mxu0 0
        %3893 = vmatpush1.bf16.msra.mxu0 0
        %3894 = vmatprep.subr.bf16.mxu0 0
        %3895 = vmatpush1.bf16.msra.mxu0 0
        %3896 = vmatprep.subr.bf16.mxu0 0
        %3897 = vmatpush1.bf16.msra.mxu0 0
        %3898 = vmatprep.subr.bf16.mxu0 0
        %3899 = vmatpush1.bf16.msra.mxu0 0
        %3900 = vmatprep.subr.bf16.mxu0 0
        %3901 = vmatpush1.bf16.msra.mxu0 0
        %3902 = vmatprep.subr.bf16.mxu0 0
        %3903 = vmatpush1.bf16.msra.mxu0 0
        %3904 = vmatprep.mubr.bf16.mxu0 0
        %3905 = vmatmul.mubr.bf16.gmra.mrb[0].mxu0 %v3774
        %v3906 = vpop.f32.mrb[0].mxu0
        %v3907 = vadd.f32 0.0, %v3906
        %v3908 = vpop.f32.mrb[0].mxu0
        %v3909 = vpop.f32.mrb[0].mxu0
        %v3910 = vadd.f32 0.0, %v3909
        %v3911 = vpop.f32.mrb[0].mxu0
        %3912 = vmatprep.mubr.bf16.mxu0 0
        %3913 = vmatmul.mubr.bf16.gmra.mrb[0].mxu0 %v3775
        %v3914 = vpop.f32.mrb[0].mxu0
        %v3915 = vadd.f32 0.0, %v3914
        %v3916 = vpop.f32.mrb[0].mxu0
        %v3917 = vpop.f32.mrb[0].mxu0
        %v3918 = vadd.f32 0.0, %v3917
        %v3919 = vpop.f32.mrb[0].mxu0
        %3920 = vmatprep.mubr.bf16.mxu0 0
        %3921 = vmatmul.mubr.bf16.gmra.mrb[0].mxu0 %v3776
        %v3922 = vpop.f32.mrb[0].mxu0
        %v3923 = vadd.f32 0.0, %v3922
        %v3924 = vpop.f32.mrb[0].mxu0
        %v3925 = vpop.f32.mrb[0].mxu0
        %v3926 = vadd.f32 0.0, %v3925
        %v3927 = vpop.f32.mrb[0].mxu0
        %3928 = vmatprep.mubr.bf16.mxu0 0
        %3929 = vmatmul.mubr.bf16.gmra.mrb[0].mxu0 %v3777
        %v3930 = vpop.f32.mrb[0].mxu0
        %v3931 = vadd.f32 0.0, %v3930
        %v3932 = vpop.f32.mrb[0].mxu0
        %v3933 = vpop.f32.mrb[0].mxu0
        %v3934 = vadd.f32 0.0, %v3933
        %v3935 = vpop.f32.mrb[0].mxu0
        %3936 = vmatprep.mubr.bf16.mxu0 0
        %3937 = vmatmul.mubr.bf16.gmra.mrb[0].mxu0 %v3778
        %v3938 = vpop.f32.mrb[0].mxu0
        %v3939 = vadd.f32 0.0, %v3938
        %v3940 = vpop.f32.mrb[0].mxu0
        %v3941 = vpop.f32.mrb[0].mxu0
        %v3942 = vadd.f32 0.0, %v3941
        %v3943 = vpop.f32.mrb[0].mxu0
        %3944 = vmatprep.mubr.bf16.mxu0 0
        %3945 = vmatmul.mubr.bf16.gmra.mrb[0].mxu0 %v3779
        %v3946 = vpop.f32.mrb[0].mxu0
        %v3947 = vadd.f32 0.0, %v3946
        %v3948 = vpop.f32.mrb[0].mxu0
        %v3949 = vpop.f32.mrb[0].mxu0
        %v3950 = vadd.f32 0.0, %v3949
        %v3951 = vpop.f32.mrb[0].mxu0
        %3952 = vmatprep.mubr.bf16.mxu0 0
        %3953 = vmatmul.mubr.bf16.gmra.mrb[0].mxu0 %v3780
        %v3954 = vpop.f32.mrb[0].mxu0
        %v3955 = vadd.f32 0.0, %v3954
        %v3956 = vpop.f32.mrb[0].mxu0
        %v3957 = vpop.f32.mrb[0].mxu0
        %v3958 = vadd.f32 0.0, %v3957
        %v3959 = vpop.f32.mrb[0].mxu0
        %3960 = vmatprep.mubr.bf16.mxu0 0
        %3961 = vmatmul.mubr.bf16.gmra.mrb[0].mxu0 %v3781
        %v3962 = vpop.f32.mrb[0].mxu0
        %v3963 = vadd.f32 0.0, %v3962
        %v3964 = vpop.f32.mrb[0].mxu0
        %v3965 = vpop.f32.mrb[0].mxu0
        %v3966 = vadd.f32 0.0, %v3965
        %v3967 = vpop.f32.mrb[0].mxu0
        %3968 = vmatprep.mubr.bf16.mxu0 0
        %3969 = vmatmul.mubr.bf16.gmra.mrb[0].mxu0 %v3782
        %v3970 = vpop.f32.mrb[0].mxu0
        %v3971 = vadd.f32 0.0, %v3970
        %v3972 = vpop.f32.mrb[0].mxu0
        %v3973 = vpop.f32.mrb[0].mxu0
        %v3974 = vadd.f32 0.0, %v3973
        %v3975 = vpop.f32.mrb[0].mxu0
        %3976 = vmatprep.mubr.bf16.mxu0 0
        %3977 = vmatmul.mubr.bf16.gmra.mrb[0].mxu0 %v3783
        %v3978 = vpop.f32.mrb[0].mxu0
        %v3979 = vadd.f32 0.0, %v3978
        %v3980 = vpop.f32.mrb[0].mxu0
        %v3981 = vpop.f32.mrb[0].mxu0
        %v3982 = vadd.f32 0.0, %v3981
        %v3983 = vpop.f32.mrb[0].mxu0
        %3984 = vmatprep.mubr.bf16.mxu0 0
        %3985 = vmatmul.mubr.bf16.gmra.mrb[0].mxu0 %v3784
        %v3986 = vpop.f32.mrb[0].mxu0
        %v3987 = vadd.f32 0.0, %v3986
        %v3988 = vpop.f32.mrb[0].mxu0
        %v3989 = vpop.f32.mrb[0].mxu0
        %v3990 = vadd.f32 0.0, %v3989
        %v3991 = vpop.f32.mrb[0].mxu0
        %3992 = vmatprep.mubr.bf16.mxu0 0
        %3993 = vmatmul.mubr.bf16.gmra.mrb[0].mxu0 %v3785
        %v3994 = vpop.f32.mrb[0].mxu0
        %v3995 = vadd.f32 0.0, %v3994
        %v3996 = vpop.f32.mrb[0].mxu0
        %v3997 = vpop.f32.mrb[0].mxu0
        %v3998 = vadd.f32 0.0, %v3997
        %v3999 = vpop.f32.mrb[0].mxu0
        %4000 = vmatprep.mubr.bf16.mxu0 0
        %4001 = vmatmul.mubr.bf16.gmra.mrb[0].mxu0 %v3786
        %v4002 = vpop.f32.mrb[0].mxu0
        %v4003 = vadd.f32 0.0, %v4002
        %v4004 = vpop.f32.mrb[0].mxu0
        %v4005 = vpop.f32.mrb[0].mxu0
        %v4006 = vadd.f32 0.0, %v4005
        %v4007 = vpop.f32.mrb[0].mxu0
        %4008 = vmatprep.mubr.bf16.mxu0 0
        %4009 = vmatmul.mubr.bf16.gmra.mrb[0].mxu0 %v3787
        %v4010 = vpop.f32.mrb[0].mxu0
        %v4011 = vadd.f32 0.0, %v4010
        %v4012 = vpop.f32.mrb[0].mxu0
        %v4013 = vpop.f32.mrb[0].mxu0
        %v4014 = vadd.f32 0.0, %v4013
        %v4015 = vpop.f32.mrb[0].mxu0
        %4016 = vmatprep.mubr.bf16.mxu0 0
        %4017 = vmatmul.mubr.bf16.gmra.mrb[0].mxu0 %v3788
        %v4018 = vpop.f32.mrb[0].mxu0
        %v4019 = vadd.f32 0.0, %v4018
        %v4020 = vpop.f32.mrb[0].mxu0
        %v4021 = vpop.f32.mrb[0].mxu0
        %v4022 = vadd.f32 0.0, %v4021
        %v4023 = vpop.f32.mrb[0].mxu0
        %4024 = vmatprep.mubr.bf16.mxu0 0
        %4025 = vmatmul.mubr.bf16.gmra.mrb[0].mxu0 %v3789
        %v4026 = vpop.f32.mrb[0].mxu0
        %v4027 = vadd.f32 0.0, %v4026
        %v4028 = vpop.f32.mrb[0].mxu0
        %v4029 = vpop.f32.mrb[0].mxu0
        %v4030 = vadd.f32 0.0, %v4029
        %v4031 = vpop.f32.mrb[0].mxu0
        %4032 = vmatprep.mubr.bf16.mxu0 0
        %4033 = vmatmul.mubr.bf16.gmra.mrb[0].mxu0 %v3790
        %v4034 = vpop.f32.mrb[0].mxu0
        %v4035 = vadd.f32 0.0, %v4034
        %v4036 = vpop.f32.mrb[0].mxu0
        %v4037 = vpop.f32.mrb[0].mxu0
        %v4038 = vadd.f32 0.0, %v4037
        %v4039 = vpop.f32.mrb[0].mxu0
        %4040 = vmatprep.mubr.bf16.mxu0 0
        %4041 = vmatmul.mubr.bf16.gmra.mrb[0].mxu0 %v3791
        %v4042 = vpop.f32.mrb[0].mxu0
        %v4043 = vadd.f32 0.0, %v4042
        %v4044 = vpop.f32.mrb[0].mxu0
        %v4045 = vpop.f32.mrb[0].mxu0
        %v4046 = vadd.f32 0.0, %v4045
        %v4047 = vpop.f32.mrb[0].mxu0
        %4048 = vmatprep.mubr.bf16.mxu0 0
        %4049 = vmatmul.mubr.bf16.gmra.mrb[0].mxu0 %v3792
        %v4050 = vpop.f32.mrb[0].mxu0
        %v4051 = vadd.f32 0.0, %v4050
        %v4052 = vpop.f32.mrb[0].mxu0
        %v4053 = vpop.f32.mrb[0].mxu0
        %v4054 = vadd.f32 0.0, %v4053
        %v4055 = vpop.f32.mrb[0].mxu0
        %4056 = vmatprep.mubr.bf16.mxu0 0
        %4057 = vmatmul.mubr.bf16.gmra.mrb[0].mxu0 %v3793
        %v4058 = vpop.f32.mrb[0].mxu0
        %v4059 = vadd.f32 0.0, %v4058
        %v4060 = vpop.f32.mrb[0].mxu0
        %v4061 = vpop.f32.mrb[0].mxu0
        %v4062 = vadd.f32 0.0, %v4061
        %v4063 = vpop.f32.mrb[0].mxu0
        %4064 = vmatprep.mubr.bf16.mxu0 0
        %4065 = vmatmul.mubr.bf16.gmra.mrb[0].mxu0 %v3794
        %v4066 = vpop.f32.mrb[0].mxu0
        %v4067 = vadd.f32 0.0, %v4066
        %v4068 = vpop.f32.mrb[0].mxu0
        %v4069 = vpop.f32.mrb[0].mxu0
        %v4070 = vadd.f32 0.0, %v4069
        %v4071 = vpop.f32.mrb[0].mxu0
        %4072 = vmatprep.mubr.bf16.mxu0 0
        %4073 = vmatmul.mubr.bf16.gmra.mrb[0].mxu0 %v3795
        %v4074 = vpop.f32.mrb[0].mxu0
        %v4075 = vadd.f32 0.0, %v4074
        %v4076 = vpop.f32.mrb[0].mxu0
        %v4077 = vpop.f32.mrb[0].mxu0
        %v4078 = vadd.f32 0.0, %v4077
        %v4079 = vpop.f32.mrb[0].mxu0
        %4080 = vmatprep.mubr.bf16.mxu0 0
        %4081 = vmatmul.mubr.bf16.gmra.mrb[0].mxu0 %v3796
        %v4082 = vpop.f32.mrb[0].mxu0
        %v4083 = vadd.f32 0.0, %v4082
        %v4084 = vpop.f32.mrb[0].mxu0
        %v4085 = vpop.f32.mrb[0].mxu0
        %v4086 = vadd.f32 0.0, %v4085
        %v4087 = vpop.f32.mrb[0].mxu0
        %4088 = vmatprep.mubr.bf16.mxu0 0
        %4089 = vmatmul.mubr.bf16.gmra.mrb[0].mxu0 %v3797
        %v4090 = vpop.f32.mrb[0].mxu0
        %v4091 = vadd.f32 0.0, %v4090
        %v4092 = vpop.f32.mrb[0].mxu0
        %v4093 = vpop.f32.mrb[0].mxu0
        %v4094 = vadd.f32 0.0, %v4093
        %v4095 = vpop.f32.mrb[0].mxu0
        %4096 = vmatprep.mubr.bf16.mxu0 0
        %4097 = vmatmul.mubr.bf16.gmra.mrb[0].mxu0 %v3798
        %v4098 = vpop.f32.mrb[0].mxu0
        %v4099 = vadd.f32 0.0, %v4098
        %v4100 = vpop.f32.mrb[0].mxu0
        %v4101 = vpop.f32.mrb[0].mxu0
        %v4102 = vadd.f32 0.0, %v4101
        %v4103 = vpop.f32.mrb[0].mxu0
        %4104 = vmatprep.mubr.bf16.mxu0 0
        %4105 = vmatmul.mubr.bf16.gmra.mrb[0].mxu0 %v3799
        %v4106 = vpop.f32.mrb[0].mxu0
        %v4107 = vadd.f32 0.0, %v4106
        %v4108 = vpop.f32.mrb[0].mxu0
        %v4109 = vpop.f32.mrb[0].mxu0
        %v4110 = vadd.f32 0.0, %v4109
        %v4111 = vpop.f32.mrb[0].mxu0
        %4112 = vmatprep.mubr.bf16.mxu0 0
        %4113 = vmatmul.mubr.bf16.gmra.mrb[0].mxu0 %v3800
        %v4114 = vpop.f32.mrb[0].mxu0
        %v4115 = vadd.f32 0.0, %v4114
        %v4116 = vpop.f32.mrb[0].mxu0
        %v4117 = vpop.f32.mrb[0].mxu0
        %v4118 = vadd.f32 0.0, %v4117
        %v4119 = vpop.f32.mrb[0].mxu0
        %4120 = vmatprep.mubr.bf16.mxu0 0
        %4121 = vmatmul.mubr.bf16.gmra.mrb[0].mxu0 %v3801
        %v4122 = vpop.f32.mrb[0].mxu0
        %v4123 = vadd.f32 0.0, %v4122
        %v4124 = vpop.f32.mrb[0].mxu0
        %v4125 = vpop.f32.mrb[0].mxu0
        %v4126 = vadd.f32 0.0, %v4125
        %v4127 = vpop.f32.mrb[0].mxu0
        %4128 = vmatprep.mubr.bf16.mxu0 0
        %4129 = vmatmul.mubr.bf16.gmra.mrb[0].mxu0 %v3802
        %v4130 = vpop.f32.mrb[0].mxu0
        %v4131 = vadd.f32 0.0, %v4130
        %v4132 = vpop.f32.mrb[0].mxu0
        %v4133 = vpop.f32.mrb[0].mxu0
        %v4134 = vadd.f32 0.0, %v4133
        %v4135 = vpop.f32.mrb[0].mxu0
        %4136 = vmatprep.mubr.bf16.mxu0 0
        %4137 = vmatmul.mubr.bf16.gmra.mrb[0].mxu0 %v3803
        %v4138 = vpop.f32.mrb[0].mxu0
        %v4139 = vadd.f32 0.0, %v4138
        %v4140 = vpop.f32.mrb[0].mxu0
        %v4141 = vpop.f32.mrb[0].mxu0
        %v4142 = vadd.f32 0.0, %v4141
        %v4143 = vpop.f32.mrb[0].mxu0
        %4144 = vmatprep.mubr.bf16.mxu0 0
        %4145 = vmatmul.mubr.bf16.gmra.mrb[0].mxu0 %v3804
        %v4146 = vpop.f32.mrb[0].mxu0
        %v4147 = vadd.f32 0.0, %v4146
        %v4148 = vpop.f32.mrb[0].mxu0
        %v4149 = vpop.f32.mrb[0].mxu0
        %v4150 = vadd.f32 0.0, %v4149
        %v4151 = vpop.f32.mrb[0].mxu0
        %4152 = vmatprep.mubr.bf16.mxu0 0
        %4153 = vmatmul.mubr.bf16.gmra.mrb[0].mxu0 %v3805
        %v4154 = vpop.f32.mrb[0].mxu0
        %v4155 = vadd.f32 0.0, %v4154
        %v4156 = vpop.f32.mrb[0].mxu0
        %v4157 = vpop.f32.mrb[0].mxu0
        %v4158 = vadd.f32 0.0, %v4157
        %v4159 = vpop.f32.mrb[0].mxu0
        %4160 = vmatprep.mubr.bf16.mxu0 0
        %4161 = vmatmul.mubr.bf16.gmra.mrb[0].mxu0 %v3806
        %v4162 = vpop.f32.mrb[0].mxu0
        %v4163 = vadd.f32 0.0, %v4162
        %v4164 = vpop.f32.mrb[0].mxu0
        %v4165 = vpop.f32.mrb[0].mxu0
        %v4166 = vadd.f32 0.0, %v4165
        %v4167 = vpop.f32.mrb[0].mxu0
        %4168 = vmatprep.mubr.bf16.mxu0 0
        %4169 = vmatmul.mubr.bf16.gmra.mrb[0].mxu0 %v3807
        %v4170 = vpop.f32.mrb[0].mxu0
        %v4171 = vadd.f32 0.0, %v4170
        %v4172 = vpop.f32.mrb[0].mxu0
        %v4173 = vpop.f32.mrb[0].mxu0
        %v4174 = vadd.f32 0.0, %v4173
        %v4175 = vpop.f32.mrb[0].mxu0
        %4176 = vmatprep.mubr.bf16.mxu0 0
        %4177 = vmatmul.mubr.bf16.gmra.mrb[0].mxu0 %v3808
        %v4178 = vpop.f32.mrb[0].mxu0
        %v4179 = vadd.f32 0.0, %v4178
        %v4180 = vpop.f32.mrb[0].mxu0
        %v4181 = vpop.f32.mrb[0].mxu0
        %v4182 = vadd.f32 0.0, %v4181
        %v4183 = vpop.f32.mrb[0].mxu0
        %4184 = vmatprep.mubr.bf16.mxu0 0
        %4185 = vmatmul.mubr.bf16.gmra.mrb[0].mxu0 %v3809
        %v4186 = vpop.f32.mrb[0].mxu0
        %v4187 = vadd.f32 0.0, %v4186
        %v4188 = vpop.f32.mrb[0].mxu0
        %v4189 = vpop.f32.mrb[0].mxu0
        %v4190 = vadd.f32 0.0, %v4189
        %v4191 = vpop.f32.mrb[0].mxu0
        %4192 = vmatprep.mubr.bf16.mxu0 0
        %4193 = vmatmul.mubr.bf16.gmra.mrb[0].mxu0 %v3810
        %v4194 = vpop.f32.mrb[0].mxu0
        %v4195 = vadd.f32 0.0, %v4194
        %v4196 = vpop.f32.mrb[0].mxu0
        %v4197 = vpop.f32.mrb[0].mxu0
        %v4198 = vadd.f32 0.0, %v4197
        %v4199 = vpop.f32.mrb[0].mxu0
        %4200 = vmatprep.mubr.bf16.mxu0 0
        %4201 = vmatmul.mubr.bf16.gmra.mrb[0].mxu0 %v3811
        %v4202 = vpop.f32.mrb[0].mxu0
        %v4203 = vadd.f32 0.0, %v4202
        %v4204 = vpop.f32.mrb[0].mxu0
        %v4205 = vpop.f32.mrb[0].mxu0
        %v4206 = vadd.f32 0.0, %v4205
        %v4207 = vpop.f32.mrb[0].mxu0
        %4208 = vmatprep.mubr.bf16.mxu0 0
        %4209 = vmatmul.mubr.bf16.gmra.mrb[0].mxu0 %v3812
        %v4210 = vpop.f32.mrb[0].mxu0
        %v4211 = vadd.f32 0.0, %v4210
        %v4212 = vpop.f32.mrb[0].mxu0
        %v4213 = vpop.f32.mrb[0].mxu0
        %v4214 = vadd.f32 0.0, %v4213
        %v4215 = vpop.f32.mrb[0].mxu0
        %4216 = vmatprep.mubr.bf16.mxu0 0
        %4217 = vmatmul.mubr.bf16.gmra.mrb[0].mxu0 %v3813
        %v4218 = vpop.f32.mrb[0].mxu0
        %v4219 = vadd.f32 0.0, %v4218
        %v4220 = vpop.f32.mrb[0].mxu0
        %v4221 = vpop.f32.mrb[0].mxu0
        %v4222 = vadd.f32 0.0, %v4221
        %v4223 = vpop.f32.mrb[0].mxu0
        %4224 = vmatprep.mubr.bf16.mxu0 0
        %4225 = vmatmul.mubr.bf16.gmra.mrb[0].mxu0 %v3814
        %v4226 = vpop.f32.mrb[0].mxu0
        %v4227 = vadd.f32 0.0, %v4226
        %v4228 = vpop.f32.mrb[0].mxu0
        %v4229 = vpop.f32.mrb[0].mxu0
        %v4230 = vadd.f32 0.0, %v4229
        %v4231 = vpop.f32.mrb[0].mxu0
        %4232 = vmatprep.mubr.bf16.mxu0 0
        %4233 = vmatmul.mubr.bf16.gmra.mrb[0].mxu0 %v3815
        %v4234 = vpop.f32.mrb[0].mxu0
        %v4235 = vadd.f32 0.0, %v4234
        %v4236 = vpop.f32.mrb[0].mxu0
        %v4237 = vpop.f32.mrb[0].mxu0
        %v4238 = vadd.f32 0.0, %v4237
        %v4239 = vpop.f32.mrb[0].mxu0
        %4240 = vmatprep.mubr.bf16.mxu0 0
        %4241 = vmatmul.mubr.bf16.gmra.mrb[0].mxu0 %v3816
        %v4242 = vpop.f32.mrb[0].mxu0
        %v4243 = vadd.f32 0.0, %v4242
        %v4244 = vpop.f32.mrb[0].mxu0
        %v4245 = vpop.f32.mrb[0].mxu0
        %v4246 = vadd.f32 0.0, %v4245
        %v4247 = vpop.f32.mrb[0].mxu0
        %4248 = vmatprep.mubr.bf16.mxu0 0
        %4249 = vmatmul.mubr.bf16.gmra.mrb[0].mxu0 %v3817
        %v4250 = vpop.f32.mrb[0].mxu0
        %v4251 = vadd.f32 0.0, %v4250
        %v4252 = vpop.f32.mrb[0].mxu0
        %v4253 = vpop.f32.mrb[0].mxu0
        %v4254 = vadd.f32 0.0, %v4253
        %v4255 = vpop.f32.mrb[0].mxu0
        %4256 = vmatprep.mubr.bf16.mxu0 0
        %4257 = vmatmul.mubr.bf16.gmra.mrb[0].mxu0 %v3818
        %v4258 = vpop.f32.mrb[0].mxu0
        %v4259 = vadd.f32 0.0, %v4258
        %v4260 = vpop.f32.mrb[0].mxu0
        %v4261 = vpop.f32.mrb[0].mxu0
        %v4262 = vadd.f32 0.0, %v4261
        %v4263 = vpop.f32.mrb[0].mxu0
        %4264 = vmatprep.mubr.bf16.mxu0 0
        %4265 = vmatmul.mubr.bf16.gmra.mrb[0].mxu0 %v3819
        %v4266 = vpop.f32.mrb[0].mxu0
        %v4267 = vadd.f32 0.0, %v4266
        %v4268 = vpop.f32.mrb[0].mxu0
        %v4269 = vpop.f32.mrb[0].mxu0
        %v4270 = vadd.f32 0.0, %v4269
        %v4271 = vpop.f32.mrb[0].mxu0
        %4272 = vmatprep.mubr.bf16.mxu0 0
        %4273 = vmatmul.mubr.bf16.gmra.mrb[0].mxu0 %v3820
        %v4274 = vpop.f32.mrb[0].mxu0
        %v4275 = vadd.f32 0.0, %v4274
        %v4276 = vpop.f32.mrb[0].mxu0
        %v4277 = vpop.f32.mrb[0].mxu0
        %v4278 = vadd.f32 0.0, %v4277
        %v4279 = vpop.f32.mrb[0].mxu0
        %4280 = vmatprep.mubr.bf16.mxu0 0
        %4281 = vmatmul.mubr.bf16.gmra.mrb[0].mxu0 %v3821
        %v4282 = vpop.f32.mrb[0].mxu0
        %v4283 = vadd.f32 0.0, %v4282
        %v4284 = vpop.f32.mrb[0].mxu0
        %v4285 = vpop.f32.mrb[0].mxu0
        %v4286 = vadd.f32 0.0, %v4285
        %v4287 = vpop.f32.mrb[0].mxu0
        %4288 = vmatprep.mubr.bf16.mxu0 0
        %4289 = vmatmul.mubr.bf16.gmra.mrb[0].mxu0 %v3822
        %v4290 = vpop.f32.mrb[0].mxu0
        %v4291 = vadd.f32 0.0, %v4290
        %v4292 = vpop.f32.mrb[0].mxu0
        %v4293 = vpop.f32.mrb[0].mxu0
        %v4294 = vadd.f32 0.0, %v4293
        %v4295 = vpop.f32.mrb[0].mxu0
        %4296 = vdwg.mxu0
        %s4297 = scalar_lea.vmem %s1751, 1176 [#allocation2]
        %v4298 = vld [vmem:[%s4297] sm:$0xf]
        %v4299 = vld [vmem:[%s4297 + $0x4] sm:$0xf]
        %v4300 = vld [vmem:[%s4297 + $0x8] sm:$0xf]
        %v4301 = vld [vmem:[%s4297 + $0xc] sm:$0xf]
        %v4302 = vld [vmem:[%s4297 + $0x10] sm:$0xf]
        %v4303 = vld [vmem:[%s4297 + $0x14] sm:$0xf]
        %v4304 = vld [vmem:[%s4297 + $0x18] sm:$0xf]
        %v4305 = vld [vmem:[%s4297 + $0x1c] sm:$0xf]
        %v4306 = vld [vmem:[%s4297 + $0x20] sm:$0xf]
        %v4307 = vld [vmem:[%s4297 + $0x24] sm:$0xf]
        %v4308 = vld [vmem:[%s4297 + $0x28] sm:$0xf]
        %v4309 = vld [vmem:[%s4297 + $0x2c] sm:$0xf]
        %v4310 = vld [vmem:[%s4297 + $0x30] sm:$0xf]
        %v4311 = vld [vmem:[%s4297 + $0x34] sm:$0xf]
        %v4312 = vld [vmem:[%s4297 + $0x38] sm:$0xf]
        %v4313 = vld [vmem:[%s4297 + $0x3c] sm:$0xf]
        %v4314 = vld [vmem:[%s4297 + $0x40] sm:$0xf]
        %v4315 = vld [vmem:[%s4297 + $0x44] sm:$0xf]
        %v4316 = vld [vmem:[%s4297 + $0x48] sm:$0xf]
        %v4317 = vld [vmem:[%s4297 + $0x4c] sm:$0xf]
        %v4318 = vld [vmem:[%s4297 + $0x50] sm:$0xf]
        %v4319 = vld [vmem:[%s4297 + $0x54] sm:$0xf]
        %v4320 = vld [vmem:[%s4297 + $0x58] sm:$0xf]
        %v4321 = vld [vmem:[%s4297 + $0x5c] sm:$0xf]
        %v4322 = vld [vmem:[%s4297 + $0x60] sm:$0xf]
        %v4323 = vld [vmem:[%s4297 + $0x64] sm:$0xf]
        %v4324 = vld [vmem:[%s4297 + $0x68] sm:$0xf]
        %v4325 = vld [vmem:[%s4297 + $0x6c] sm:$0xf]
        %v4326 = vld [vmem:[%s4297 + $0x70] sm:$0xf]
        %v4327 = vld [vmem:[%s4297 + $0x74] sm:$0xf]
        %v4328 = vld [vmem:[%s4297 + $0x78] sm:$0xf]
        %v4329 = vld [vmem:[%s4297 + $0x7c] sm:$0xf]
        %v4330 = vld [vmem:[%s4297 + $0x80] sm:$0xf]
        %v4331 = vld [vmem:[%s4297 + $0x84] sm:$0xf]
        %v4332 = vld [vmem:[%s4297 + $0x88] sm:$0xf]
        %v4333 = vld [vmem:[%s4297 + $0x8c] sm:$0xf]
        %v4334 = vld [vmem:[%s4297 + $0x90] sm:$0xf]
        %v4335 = vld [vmem:[%s4297 + $0x94] sm:$0xf]
        %v4336 = vld [vmem:[%s4297 + $0x98] sm:$0xf]
        %v4337 = vld [vmem:[%s4297 + $0x9c] sm:$0xf]
        %v4338 = vld [vmem:[%s4297 + $0xa0] sm:$0xf]
        %v4339 = vld [vmem:[%s4297 + $0xa4] sm:$0xf]
        %v4340 = vld [vmem:[%s4297 + $0xa8] sm:$0xf]
        %v4341 = vld [vmem:[%s4297 + $0xac] sm:$0xf]
        %v4342 = vld [vmem:[%s4297 + $0xb0] sm:$0xf]
        %v4343 = vld [vmem:[%s4297 + $0xb4] sm:$0xf]
        %v4344 = vld [vmem:[%s4297 + $0xb8] sm:$0xf]
        %v4345 = vld [vmem:[%s4297 + $0xbc] sm:$0xf]
        %v4346 = vld [vmem:[%s4297 + $0xc0] sm:$0xf]
        %v4347 = vld [vmem:[%s4297 + $0xc4] sm:$0xf]
        %v4348 = vld [vmem:[%s4297 + $0xc8] sm:$0xf]
        %v4349 = vld [vmem:[%s4297 + $0xcc] sm:$0xf]
        %v4350 = vld [vmem:[%s4297 + $0xd0] sm:$0xf]
        %v4351 = vld [vmem:[%s4297 + $0xd4] sm:$0xf]
        %v4352 = vld [vmem:[%s4297 + $0xd8] sm:$0xf]
        %v4353 = vld [vmem:[%s4297 + $0xdc] sm:$0xf]
        %v4354 = vld [vmem:[%s4297 + $0xe0] sm:$0xf]
        %v4355 = vld [vmem:[%s4297 + $0xe4] sm:$0xf]
        %v4356 = vld [vmem:[%s4297 + $0xe8] sm:$0xf]
        %v4357 = vld [vmem:[%s4297 + $0xec] sm:$0xf]
        %v4358 = vld [vmem:[%s4297 + $0xf0] sm:$0xf]
        %v4359 = vld [vmem:[%s4297 + $0xf4] sm:$0xf]
        %v4360 = vld [vmem:[%s4297 + $0xf8] sm:$0xf]
        %v4361 = vld [vmem:[%s4297 + $0xfc] sm:$0xf]
        %v4362 = vld [vmem:[%s4297 + $0x100] sm:$0xf]
        %v4363 = vld [vmem:[%s4297 + $0x104] sm:$0xf]
        %v4364 = vld [vmem:[%s4297 + $0x108] sm:$0xf]
        %v4365 = vld [vmem:[%s4297 + $0x10c] sm:$0xf]
        %v4366 = vld [vmem:[%s4297 + $0x110] sm:$0xf]
        %v4367 = vld [vmem:[%s4297 + $0x114] sm:$0xf]
        %v4368 = vld [vmem:[%s4297 + $0x118] sm:$0xf]
        %v4369 = vld [vmem:[%s4297 + $0x11c] sm:$0xf]
        %v4370 = vld [vmem:[%s4297 + $0x120] sm:$0xf]
        %v4371 = vld [vmem:[%s4297 + $0x124] sm:$0xf]
        %v4372 = vld [vmem:[%s4297 + $0x128] sm:$0xf]
        %v4373 = vld [vmem:[%s4297 + $0x12c] sm:$0xf]
        %v4374 = vld [vmem:[%s4297 + $0x130] sm:$0xf]
        %v4375 = vld [vmem:[%s4297 + $0x134] sm:$0xf]
        %v4376 = vld [vmem:[%s4297 + $0x138] sm:$0xf]
        %v4377 = vld [vmem:[%s4297 + $0x13c] sm:$0xf]
        %v4378 = vld [vmem:[%s4297 + $0x140] sm:$0xf]
        %v4379 = vld [vmem:[%s4297 + $0x144] sm:$0xf]
        %v4380 = vld [vmem:[%s4297 + $0x148] sm:$0xf]
        %v4381 = vld [vmem:[%s4297 + $0x14c] sm:$0xf]
        %v4382 = vld [vmem:[%s4297 + $0x150] sm:$0xf]
        %v4383 = vld [vmem:[%s4297 + $0x154] sm:$0xf]
        %v4384 = vld [vmem:[%s4297 + $0x158] sm:$0xf]
        %v4385 = vld [vmem:[%s4297 + $0x15c] sm:$0xf]
        %v4386 = vld [vmem:[%s4297 + $0x160] sm:$0xf]
        %v4387 = vld [vmem:[%s4297 + $0x164] sm:$0xf]
        %v4388 = vld [vmem:[%s4297 + $0x168] sm:$0xf]
        %v4389 = vld [vmem:[%s4297 + $0x16c] sm:$0xf]
        %v4390 = vld [vmem:[%s4297 + $0x170] sm:$0xf]
        %v4391 = vld [vmem:[%s4297 + $0x174] sm:$0xf]
        %v4392 = vld [vmem:[%s4297 + $0x178] sm:$0xf]
        %v4393 = vld [vmem:[%s4297 + $0x17c] sm:$0xf]
        %v4394 = vld [vmem:[%s4297 + $0x180] sm:$0xf]
        %v4395 = vld [vmem:[%s4297 + $0x184] sm:$0xf]
        %v4494 = vunpack.c.l.b16 %v4298
        %v4495 = vunpack.c.l.b16 %v4299
        %v4496 = vunpack.c.l.b16 %v4300
        %v4497 = vunpack.c.l.b16 %v4301
        %v4498 = vunpack.c.l.b16 %v4302
        %v4499 = vunpack.c.l.b16 %v4303
        %v4500 = vunpack.c.l.b16 %v4304
        %v4501 = vunpack.c.l.b16 %v4305
        %v4502 = vunpack.c.l.b16 %v4306
        %v4503 = vunpack.c.l.b16 %v4307
        %v4504 = vunpack.c.l.b16 %v4308
        %v4505 = vunpack.c.l.b16 %v4309
        %v4506 = vunpack.c.l.b16 %v4310
        %v4507 = vunpack.c.l.b16 %v4311
        %v4508 = vunpack.c.l.b16 %v4312
        %v4509 = vunpack.c.l.b16 %v4313
        %v4510 = vunpack.c.l.b16 %v4314
        %v4511 = vunpack.c.l.b16 %v4315
        %v4512 = vunpack.c.l.b16 %v4316
        %v4513 = vunpack.c.l.b16 %v4317
        %v4514 = vunpack.c.l.b16 %v4318
        %v4515 = vunpack.c.l.b16 %v4319
        %v4516 = vunpack.c.l.b16 %v4320
        %v4517 = vunpack.c.l.b16 %v4321
        %v4518 = vunpack.c.l.b16 %v4322
        %v4519 = vunpack.c.l.b16 %v4323
        %v4520 = vunpack.c.l.b16 %v4324
        %v4521 = vunpack.c.l.b16 %v4325
        %v4522 = vunpack.c.l.b16 %v4326
        %v4523 = vunpack.c.l.b16 %v4327
        %v4524 = vunpack.c.l.b16 %v4328
        %v4525 = vunpack.c.l.b16 %v4329
        %v4526 = vunpack.c.l.b16 %v4330
        %v4527 = vunpack.c.l.b16 %v4331
        %v4528 = vunpack.c.l.b16 %v4332
        %v4529 = vunpack.c.l.b16 %v4333
        %v4530 = vunpack.c.l.b16 %v4334
        %v4531 = vunpack.c.l.b16 %v4335
        %v4532 = vunpack.c.l.b16 %v4336
        %v4533 = vunpack.c.l.b16 %v4337
        %v4534 = vunpack.c.l.b16 %v4338
        %v4535 = vunpack.c.l.b16 %v4339
        %v4536 = vunpack.c.l.b16 %v4340
        %v4537 = vunpack.c.l.b16 %v4341
        %v4538 = vunpack.c.l.b16 %v4342
        %v4539 = vunpack.c.l.b16 %v4343
        %v4540 = vunpack.c.l.b16 %v4344
        %v4541 = vunpack.c.l.b16 %v4345
        %v4542 = vunpack.c.l.b16 %v4346
        %v4543 = vunpack.c.l.b16 %v4347
        %v4544 = vunpack.c.l.b16 %v4348
        %v4545 = vunpack.c.l.b16 %v4349
        %v4546 = vunpack.c.l.b16 %v4350
        %v4547 = vunpack.c.l.b16 %v4351
        %v4548 = vunpack.c.l.b16 %v4352
        %v4549 = vunpack.c.l.b16 %v4353
        %v4550 = vunpack.c.l.b16 %v4354
        %v4551 = vunpack.c.l.b16 %v4355
        %v4552 = vunpack.c.l.b16 %v4356
        %v4553 = vunpack.c.l.b16 %v4357
        %v4554 = vunpack.c.l.b16 %v4358
        %v4555 = vunpack.c.l.b16 %v4359
        %v4556 = vunpack.c.l.b16 %v4360
        %v4557 = vunpack.c.l.b16 %v4361
        %v4558 = vunpack.c.l.b16 %v4362
        %v4559 = vunpack.c.l.b16 %v4363
        %v4560 = vunpack.c.l.b16 %v4364
        %v4561 = vunpack.c.l.b16 %v4365
        %v4562 = vunpack.c.l.b16 %v4366
        %v4563 = vunpack.c.l.b16 %v4367
        %v4564 = vunpack.c.l.b16 %v4368
        %v4565 = vunpack.c.l.b16 %v4369
        %v4566 = vunpack.c.l.b16 %v4370
        %v4567 = vunpack.c.l.b16 %v4371
        %v4568 = vunpack.c.l.b16 %v4372
        %v4569 = vunpack.c.l.b16 %v4373
        %v4570 = vunpack.c.l.b16 %v4374
        %v4571 = vunpack.c.l.b16 %v4375
        %v4572 = vunpack.c.l.b16 %v4376
        %v4573 = vunpack.c.l.b16 %v4377
        %v4574 = vunpack.c.l.b16 %v4378
        %v4575 = vunpack.c.l.b16 %v4379
        %v4576 = vunpack.c.l.b16 %v4380
        %v4577 = vunpack.c.l.b16 %v4381
        %v4578 = vunpack.c.l.b16 %v4382
        %v4579 = vunpack.c.l.b16 %v4383
        %v4580 = vunpack.c.l.b16 %v4384
        %v4581 = vunpack.c.l.b16 %v4385
        %v4582 = vunpack.c.l.b16 %v4386
        %v4583 = vunpack.c.l.b16 %v4387
        %v4584 = vunpack.c.l.b16 %v4388
        %v4585 = vunpack.c.l.b16 %v4389
        %v4586 = vunpack.c.l.b16 %v4390
        %v4587 = vunpack.c.l.b16 %v4391
        %v4588 = vunpack.c.l.b16 %v4392
        %v4589 = vunpack.c.l.b16 %v4393
        %v4590 = vunpack.c.l.b16 %v4394
        %v4591 = vunpack.c.l.b16 %v4395
        %v4592 = vpack.c.b16 %v4495, %v4494
        %v4593 = vpack.c.b16 %v4497, %v4496
        %v4594 = vpack.c.b16 %v4499, %v4498
        %v4595 = vpack.c.b16 %v4501, %v4500
        %v4596 = vpack.c.b16 %v4503, %v4502
        %v4597 = vpack.c.b16 %v4505, %v4504
        %v4598 = vpack.c.b16 %v4507, %v4506
        %v4599 = vpack.c.b16 %v4509, %v4508
        %v4600 = vpack.c.b16 %v4511, %v4510
        %v4601 = vpack.c.b16 %v4513, %v4512
        %v4602 = vpack.c.b16 %v4515, %v4514
        %v4603 = vpack.c.b16 %v4517, %v4516
        %v4604 = vpack.c.b16 %v4519, %v4518
        %v4605 = vpack.c.b16 %v4521, %v4520
        %v4606 = vpack.c.b16 %v4523, %v4522
        %v4607 = vpack.c.b16 %v4525, %v4524
        %v4608 = vpack.c.b16 %v4527, %v4526
        %v4609 = vpack.c.b16 %v4529, %v4528
        %v4610 = vpack.c.b16 %v4531, %v4530
        %v4611 = vpack.c.b16 %v4533, %v4532
        %v4612 = vpack.c.b16 %v4535, %v4534
        %v4613 = vpack.c.b16 %v4537, %v4536
        %v4614 = vpack.c.b16 %v4539, %v4538
        %v4615 = vpack.c.b16 %v4541, %v4540
        %v4616 = vpack.c.b16 %v4543, %v4542
        %v4617 = vpack.c.b16 %v4545, %v4544
        %v4618 = vpack.c.b16 %v4547, %v4546
        %v4619 = vpack.c.b16 %v4549, %v4548
        %v4620 = vpack.c.b16 %v4551, %v4550
        %v4621 = vpack.c.b16 %v4553, %v4552
        %v4622 = vpack.c.b16 %v4555, %v4554
        %v4623 = vpack.c.b16 %v4557, %v4556
        %v4624 = vpack.c.b16 %v4559, %v4558
        %v4625 = vpack.c.b16 %v4561, %v4560
        %v4626 = vpack.c.b16 %v4563, %v4562
        %v4627 = vpack.c.b16 %v4565, %v4564
        %v4628 = vpack.c.b16 %v4567, %v4566
        %v4629 = vpack.c.b16 %v4569, %v4568
        %v4630 = vpack.c.b16 %v4571, %v4570
        %v4631 = vpack.c.b16 %v4573, %v4572
        %v4632 = vpack.c.b16 %v4575, %v4574
        %v4633 = vpack.c.b16 %v4577, %v4576
        %v4634 = vpack.c.b16 %v4579, %v4578
        %v4635 = vpack.c.b16 %v4581, %v4580
        %v4636 = vpack.c.b16 %v4583, %v4582
        %v4637 = vpack.c.b16 %v4585, %v4584
        %v4638 = vpack.c.b16 %v4587, %v4586
        %v4639 = vpack.c.b16 %v4589, %v4588
        %v4640 = vpack.c.b16 %v4591, %v4590
        %4690 = vmatprep.subr.bf16.mxu0 0
        %4691 = vmatpush1.bf16.msra.mxu0 %v2220
        %4692 = vmatprep.subr.bf16.mxu0 0
        %4693 = vmatpush1.bf16.msra.mxu0 %v2221
        %4694 = vmatprep.subr.bf16.mxu0 0
        %4695 = vmatpush1.bf16.msra.mxu0 %v2222
        %4696 = vmatprep.subr.bf16.mxu0 0
        %4697 = vmatpush1.bf16.msra.mxu0 %v2223
        %4698 = vmatprep.subr.bf16.mxu0 0
        %4699 = vmatpush1.bf16.msra.mxu0 %v2224
        %4700 = vmatprep.subr.bf16.mxu0 0
        %4701 = vmatpush1.bf16.msra.mxu0 %v2225
        %4702 = vmatprep.subr.bf16.mxu0 0
        %4703 = vmatpush1.bf16.msra.mxu0 %v2226
        %4704 = vmatprep.subr.bf16.mxu0 0
        %4705 = vmatpush1.bf16.msra.mxu0 %v2227
        %4706 = vmatprep.subr.bf16.mxu0 0
        %4707 = vmatpush1.bf16.msra.mxu0 0
        %4708 = vmatprep.subr.bf16.mxu0 0
        %4709 = vmatpush1.bf16.msra.mxu0 0
        %4710 = vmatprep.subr.bf16.mxu0 0
        %4711 = vmatpush1.bf16.msra.mxu0 0
        %4712 = vmatprep.subr.bf16.mxu0 0
        %4713 = vmatpush1.bf16.msra.mxu0 0
        %4714 = vmatprep.subr.bf16.mxu0 0
        %4715 = vmatpush1.bf16.msra.mxu0 0
        %4716 = vmatprep.subr.bf16.mxu0 0
        %4717 = vmatpush1.bf16.msra.mxu0 0
        %4718 = vmatprep.subr.bf16.mxu0 0
        %4719 = vmatpush1.bf16.msra.mxu0 0
        %4720 = vmatprep.subr.bf16.mxu0 0
        %4721 = vmatpush1.bf16.msra.mxu0 0
        %4722 = vmatprep.mubr.bf16.mxu0 0
        %4723 = vmatmul.mubr.bf16.gmra.mrb[0].mxu0 %v4592
        %v4724 = vpop.f32.mrb[0].mxu0
        %v4725 = vadd.f32 0.0, %v4724
        %v4726 = vpop.f32.mrb[0].mxu0
        %v4727 = vpop.f32.mrb[0].mxu0
        %v4728 = vadd.f32 0.0, %v4727
        %v4729 = vpop.f32.mrb[0].mxu0
        %4730 = vmatprep.mubr.bf16.mxu0 0
        %4731 = vmatmul.mubr.bf16.gmra.mrb[0].mxu0 %v4593
        %v4732 = vpop.f32.mrb[0].mxu0
        %v4733 = vadd.f32 0.0, %v4732
        %v4734 = vpop.f32.mrb[0].mxu0
        %v4735 = vpop.f32.mrb[0].mxu0
        %v4736 = vadd.f32 0.0, %v4735
        %v4737 = vpop.f32.mrb[0].mxu0
        %4738 = vmatprep.mubr.bf16.mxu0 0
        %4739 = vmatmul.mubr.bf16.gmra.mrb[0].mxu0 %v4594
        %v4740 = vpop.f32.mrb[0].mxu0
        %v4741 = vadd.f32 0.0, %v4740
        %v4742 = vpop.f32.mrb[0].mxu0
        %v4743 = vpop.f32.mrb[0].mxu0
        %v4744 = vadd.f32 0.0, %v4743
        %v4745 = vpop.f32.mrb[0].mxu0
        %4746 = vmatprep.mubr.bf16.mxu0 0
        %4747 = vmatmul.mubr.bf16.gmra.mrb[0].mxu0 %v4595
        %v4748 = vpop.f32.mrb[0].mxu0
        %v4749 = vadd.f32 0.0, %v4748
        %v4750 = vpop.f32.mrb[0].mxu0
        %v4751 = vpop.f32.mrb[0].mxu0
        %v4752 = vadd.f32 0.0, %v4751
        %v4753 = vpop.f32.mrb[0].mxu0
        %4754 = vmatprep.mubr.bf16.mxu0 0
        %4755 = vmatmul.mubr.bf16.gmra.mrb[0].mxu0 %v4596
        %v4756 = vpop.f32.mrb[0].mxu0
        %v4757 = vadd.f32 0.0, %v4756
        %v4758 = vpop.f32.mrb[0].mxu0
        %v4759 = vpop.f32.mrb[0].mxu0
        %v4760 = vadd.f32 0.0, %v4759
        %v4761 = vpop.f32.mrb[0].mxu0
        %4762 = vmatprep.mubr.bf16.mxu0 0
        %4763 = vmatmul.mubr.bf16.gmra.mrb[0].mxu0 %v4597
        %v4764 = vpop.f32.mrb[0].mxu0
        %v4765 = vadd.f32 0.0, %v4764
        %v4766 = vpop.f32.mrb[0].mxu0
        %v4767 = vpop.f32.mrb[0].mxu0
        %v4768 = vadd.f32 0.0, %v4767
        %v4769 = vpop.f32.mrb[0].mxu0
        %4770 = vmatprep.mubr.bf16.mxu0 0
        %4771 = vmatmul.mubr.bf16.gmra.mrb[0].mxu0 %v4598
        %v4772 = vpop.f32.mrb[0].mxu0
        %v4773 = vadd.f32 0.0, %v4772
        %v4774 = vpop.f32.mrb[0].mxu0
        %v4775 = vpop.f32.mrb[0].mxu0
        %v4776 = vadd.f32 0.0, %v4775
        %v4777 = vpop.f32.mrb[0].mxu0
        %4778 = vmatprep.mubr.bf16.mxu0 0
        %4779 = vmatmul.mubr.bf16.gmra.mrb[0].mxu0 %v4599
        %v4780 = vpop.f32.mrb[0].mxu0
        %v4781 = vadd.f32 0.0, %v4780
        %v4782 = vpop.f32.mrb[0].mxu0
        %v4783 = vpop.f32.mrb[0].mxu0
        %v4784 = vadd.f32 0.0, %v4783
        %v4785 = vpop.f32.mrb[0].mxu0
        %4786 = vmatprep.mubr.bf16.mxu0 0
        %4787 = vmatmul.mubr.bf16.gmra.mrb[0].mxu0 %v4600
        %v4788 = vpop.f32.mrb[0].mxu0
        %v4789 = vadd.f32 0.0, %v4788
        %v4790 = vpop.f32.mrb[0].mxu0
        %v4791 = vpop.f32.mrb[0].mxu0
        %v4792 = vadd.f32 0.0, %v4791
        %v4793 = vpop.f32.mrb[0].mxu0
        %4794 = vmatprep.mubr.bf16.mxu0 0
        %4795 = vmatmul.mubr.bf16.gmra.mrb[0].mxu0 %v4601
        %v4796 = vpop.f32.mrb[0].mxu0
        %v4797 = vadd.f32 0.0, %v4796
        %v4798 = vpop.f32.mrb[0].mxu0
        %v4799 = vpop.f32.mrb[0].mxu0
        %v4800 = vadd.f32 0.0, %v4799
        %v4801 = vpop.f32.mrb[0].mxu0
        %4802 = vmatprep.mubr.bf16.mxu0 0
        %4803 = vmatmul.mubr.bf16.gmra.mrb[0].mxu0 %v4602
        %v4804 = vpop.f32.mrb[0].mxu0
        %v4805 = vadd.f32 0.0, %v4804
        %v4806 = vpop.f32.mrb[0].mxu0
        %v4807 = vpop.f32.mrb[0].mxu0
        %v4808 = vadd.f32 0.0, %v4807
        %v4809 = vpop.f32.mrb[0].mxu0
        %4810 = vmatprep.mubr.bf16.mxu0 0
        %4811 = vmatmul.mubr.bf16.gmra.mrb[0].mxu0 %v4603
        %v4812 = vpop.f32.mrb[0].mxu0
        %v4813 = vadd.f32 0.0, %v4812
        %v4814 = vpop.f32.mrb[0].mxu0
        %v4815 = vpop.f32.mrb[0].mxu0
        %v4816 = vadd.f32 0.0, %v4815
        %v4817 = vpop.f32.mrb[0].mxu0
        %4818 = vmatprep.mubr.bf16.mxu0 0
        %4819 = vmatmul.mubr.bf16.gmra.mrb[0].mxu0 %v4604
        %v4820 = vpop.f32.mrb[0].mxu0
        %v4821 = vadd.f32 0.0, %v4820
        %v4822 = vpop.f32.mrb[0].mxu0
        %v4823 = vpop.f32.mrb[0].mxu0
        %v4824 = vadd.f32 0.0, %v4823
        %v4825 = vpop.f32.mrb[0].mxu0
        %4826 = vmatprep.mubr.bf16.mxu0 0
        %4827 = vmatmul.mubr.bf16.gmra.mrb[0].mxu0 %v4605
        %v4828 = vpop.f32.mrb[0].mxu0
        %v4829 = vadd.f32 0.0, %v4828
        %v4830 = vpop.f32.mrb[0].mxu0
        %v4831 = vpop.f32.mrb[0].mxu0
        %v4832 = vadd.f32 0.0, %v4831
        %v4833 = vpop.f32.mrb[0].mxu0
        %4834 = vmatprep.mubr.bf16.mxu0 0
        %4835 = vmatmul.mubr.bf16.gmra.mrb[0].mxu0 %v4606
        %v4836 = vpop.f32.mrb[0].mxu0
        %v4837 = vadd.f32 0.0, %v4836
        %v4838 = vpop.f32.mrb[0].mxu0
        %v4839 = vpop.f32.mrb[0].mxu0
        %v4840 = vadd.f32 0.0, %v4839
        %v4841 = vpop.f32.mrb[0].mxu0
        %4842 = vmatprep.mubr.bf16.mxu0 0
        %4843 = vmatmul.mubr.bf16.gmra.mrb[0].mxu0 %v4607
        %v4844 = vpop.f32.mrb[0].mxu0
        %v4845 = vadd.f32 0.0, %v4844
        %v4846 = vpop.f32.mrb[0].mxu0
        %v4847 = vpop.f32.mrb[0].mxu0
        %v4848 = vadd.f32 0.0, %v4847
        %v4849 = vpop.f32.mrb[0].mxu0
        %4850 = vmatprep.mubr.bf16.mxu0 0
        %4851 = vmatmul.mubr.bf16.gmra.mrb[0].mxu0 %v4608
        %v4852 = vpop.f32.mrb[0].mxu0
        %v4853 = vadd.f32 0.0, %v4852
        %v4854 = vpop.f32.mrb[0].mxu0
        %v4855 = vpop.f32.mrb[0].mxu0
        %v4856 = vadd.f32 0.0, %v4855
        %v4857 = vpop.f32.mrb[0].mxu0
        %4858 = vmatprep.mubr.bf16.mxu0 0
        %4859 = vmatmul.mubr.bf16.gmra.mrb[0].mxu0 %v4609
        %v4860 = vpop.f32.mrb[0].mxu0
        %v4861 = vadd.f32 0.0, %v4860
        %v4862 = vpop.f32.mrb[0].mxu0
        %v4863 = vpop.f32.mrb[0].mxu0
        %v4864 = vadd.f32 0.0, %v4863
        %v4865 = vpop.f32.mrb[0].mxu0
        %4866 = vmatprep.mubr.bf16.mxu0 0
        %4867 = vmatmul.mubr.bf16.gmra.mrb[0].mxu0 %v4610
        %v4868 = vpop.f32.mrb[0].mxu0
        %v4869 = vadd.f32 0.0, %v4868
        %v4870 = vpop.f32.mrb[0].mxu0
        %v4871 = vpop.f32.mrb[0].mxu0
        %v4872 = vadd.f32 0.0, %v4871
        %v4873 = vpop.f32.mrb[0].mxu0
        %4874 = vmatprep.mubr.bf16.mxu0 0
        %4875 = vmatmul.mubr.bf16.gmra.mrb[0].mxu0 %v4611
        %v4876 = vpop.f32.mrb[0].mxu0
        %v4877 = vadd.f32 0.0, %v4876
        %v4878 = vpop.f32.mrb[0].mxu0
        %v4879 = vpop.f32.mrb[0].mxu0
        %v4880 = vadd.f32 0.0, %v4879
        %v4881 = vpop.f32.mrb[0].mxu0
        %4882 = vmatprep.mubr.bf16.mxu0 0
        %4883 = vmatmul.mubr.bf16.gmra.mrb[0].mxu0 %v4612
        %v4884 = vpop.f32.mrb[0].mxu0
        %v4885 = vadd.f32 0.0, %v4884
        %v4886 = vpop.f32.mrb[0].mxu0
        %v4887 = vpop.f32.mrb[0].mxu0
        %v4888 = vadd.f32 0.0, %v4887
        %v4889 = vpop.f32.mrb[0].mxu0
        %4890 = vmatprep.mubr.bf16.mxu0 0
        %4891 = vmatmul.mubr.bf16.gmra.mrb[0].mxu0 %v4613
        %v4892 = vpop.f32.mrb[0].mxu0
        %v4893 = vadd.f32 0.0, %v4892
        %v4894 = vpop.f32.mrb[0].mxu0
        %v4895 = vpop.f32.mrb[0].mxu0
        %v4896 = vadd.f32 0.0, %v4895
        %v4897 = vpop.f32.mrb[0].mxu0
        %4898 = vmatprep.mubr.bf16.mxu0 0
        %4899 = vmatmul.mubr.bf16.gmra.mrb[0].mxu0 %v4614
        %v4900 = vpop.f32.mrb[0].mxu0
        %v4901 = vadd.f32 0.0, %v4900
        %v4902 = vpop.f32.mrb[0].mxu0
        %v4903 = vpop.f32.mrb[0].mxu0
        %v4904 = vadd.f32 0.0, %v4903
        %v4905 = vpop.f32.mrb[0].mxu0
        %4906 = vmatprep.mubr.bf16.mxu0 0
        %4907 = vmatmul.mubr.bf16.gmra.mrb[0].mxu0 %v4615
        %v4908 = vpop.f32.mrb[0].mxu0
        %v4909 = vadd.f32 0.0, %v4908
        %v4910 = vpop.f32.mrb[0].mxu0
        %v4911 = vpop.f32.mrb[0].mxu0
        %v4912 = vadd.f32 0.0, %v4911
        %v4913 = vpop.f32.mrb[0].mxu0
        %4914 = vmatprep.mubr.bf16.mxu0 0
        %4915 = vmatmul.mubr.bf16.gmra.mrb[0].mxu0 %v4616
        %v4916 = vpop.f32.mrb[0].mxu0
        %v4917 = vadd.f32 0.0, %v4916
        %v4918 = vpop.f32.mrb[0].mxu0
        %v4919 = vpop.f32.mrb[0].mxu0
        %v4920 = vadd.f32 0.0, %v4919
        %v4921 = vpop.f32.mrb[0].mxu0
        %4922 = vmatprep.mubr.bf16.mxu0 0
        %4923 = vmatmul.mubr.bf16.gmra.mrb[0].mxu0 %v4617
        %v4924 = vpop.f32.mrb[0].mxu0
        %v4925 = vadd.f32 0.0, %v4924
        %v4926 = vpop.f32.mrb[0].mxu0
        %v4927 = vpop.f32.mrb[0].mxu0
        %v4928 = vadd.f32 0.0, %v4927
        %v4929 = vpop.f32.mrb[0].mxu0
        %4930 = vmatprep.mubr.bf16.mxu0 0
        %4931 = vmatmul.mubr.bf16.gmra.mrb[0].mxu0 %v4618
        %v4932 = vpop.f32.mrb[0].mxu0
        %v4933 = vadd.f32 0.0, %v4932
        %v4934 = vpop.f32.mrb[0].mxu0
        %v4935 = vpop.f32.mrb[0].mxu0
        %v4936 = vadd.f32 0.0, %v4935
        %v4937 = vpop.f32.mrb[0].mxu0
        %4938 = vmatprep.mubr.bf16.mxu0 0
        %4939 = vmatmul.mubr.bf16.gmra.mrb[0].mxu0 %v4619
        %v4940 = vpop.f32.mrb[0].mxu0
        %v4941 = vadd.f32 0.0, %v4940
        %v4942 = vpop.f32.mrb[0].mxu0
        %v4943 = vpop.f32.mrb[0].mxu0
        %v4944 = vadd.f32 0.0, %v4943
        %v4945 = vpop.f32.mrb[0].mxu0
        %4946 = vmatprep.mubr.bf16.mxu0 0
        %4947 = vmatmul.mubr.bf16.gmra.mrb[0].mxu0 %v4620
        %v4948 = vpop.f32.mrb[0].mxu0
        %v4949 = vadd.f32 0.0, %v4948
        %v4950 = vpop.f32.mrb[0].mxu0
        %v4951 = vpop.f32.mrb[0].mxu0
        %v4952 = vadd.f32 0.0, %v4951
        %v4953 = vpop.f32.mrb[0].mxu0
        %4954 = vmatprep.mubr.bf16.mxu0 0
        %4955 = vmatmul.mubr.bf16.gmra.mrb[0].mxu0 %v4621
        %v4956 = vpop.f32.mrb[0].mxu0
        %v4957 = vadd.f32 0.0, %v4956
        %v4958 = vpop.f32.mrb[0].mxu0
        %v4959 = vpop.f32.mrb[0].mxu0
        %v4960 = vadd.f32 0.0, %v4959
        %v4961 = vpop.f32.mrb[0].mxu0
        %4962 = vmatprep.mubr.bf16.mxu0 0
        %4963 = vmatmul.mubr.bf16.gmra.mrb[0].mxu0 %v4622
        %v4964 = vpop.f32.mrb[0].mxu0
        %v4965 = vadd.f32 0.0, %v4964
        %v4966 = vpop.f32.mrb[0].mxu0
        %v4967 = vpop.f32.mrb[0].mxu0
        %v4968 = vadd.f32 0.0, %v4967
        %v4969 = vpop.f32.mrb[0].mxu0
        %4970 = vmatprep.mubr.bf16.mxu0 0
        %4971 = vmatmul.mubr.bf16.gmra.mrb[0].mxu0 %v4623
        %v4972 = vpop.f32.mrb[0].mxu0
        %v4973 = vadd.f32 0.0, %v4972
        %v4974 = vpop.f32.mrb[0].mxu0
        %v4975 = vpop.f32.mrb[0].mxu0
        %v4976 = vadd.f32 0.0, %v4975
        %v4977 = vpop.f32.mrb[0].mxu0
        %4978 = vmatprep.mubr.bf16.mxu0 0
        %4979 = vmatmul.mubr.bf16.gmra.mrb[0].mxu0 %v4624
        %v4980 = vpop.f32.mrb[0].mxu0
        %v4981 = vadd.f32 0.0, %v4980
        %v4982 = vpop.f32.mrb[0].mxu0
        %v4983 = vpop.f32.mrb[0].mxu0
        %v4984 = vadd.f32 0.0, %v4983
        %v4985 = vpop.f32.mrb[0].mxu0
        %4986 = vmatprep.mubr.bf16.mxu0 0
        %4987 = vmatmul.mubr.bf16.gmra.mrb[0].mxu0 %v4625
        %v4988 = vpop.f32.mrb[0].mxu0
        %v4989 = vadd.f32 0.0, %v4988
        %v4990 = vpop.f32.mrb[0].mxu0
        %v4991 = vpop.f32.mrb[0].mxu0
        %v4992 = vadd.f32 0.0, %v4991
        %v4993 = vpop.f32.mrb[0].mxu0
        %4994 = vmatprep.mubr.bf16.mxu0 0
        %4995 = vmatmul.mubr.bf16.gmra.mrb[0].mxu0 %v4626
        %v4996 = vpop.f32.mrb[0].mxu0
        %v4997 = vadd.f32 0.0, %v4996
        %v4998 = vpop.f32.mrb[0].mxu0
        %v4999 = vpop.f32.mrb[0].mxu0
        %v5000 = vadd.f32 0.0, %v4999
        %v5001 = vpop.f32.mrb[0].mxu0
        %5002 = vmatprep.mubr.bf16.mxu0 0
        %5003 = vmatmul.mubr.bf16.gmra.mrb[0].mxu0 %v4627
        %v5004 = vpop.f32.mrb[0].mxu0
        %v5005 = vadd.f32 0.0, %v5004
        %v5006 = vpop.f32.mrb[0].mxu0
        %v5007 = vpop.f32.mrb[0].mxu0
        %v5008 = vadd.f32 0.0, %v5007
        %v5009 = vpop.f32.mrb[0].mxu0
        %5010 = vmatprep.mubr.bf16.mxu0 0
        %5011 = vmatmul.mubr.bf16.gmra.mrb[0].mxu0 %v4628
        %v5012 = vpop.f32.mrb[0].mxu0
        %v5013 = vadd.f32 0.0, %v5012
        %v5014 = vpop.f32.mrb[0].mxu0
        %v5015 = vpop.f32.mrb[0].mxu0
        %v5016 = vadd.f32 0.0, %v5015
        %v5017 = vpop.f32.mrb[0].mxu0
        %5018 = vmatprep.mubr.bf16.mxu0 0
        %5019 = vmatmul.mubr.bf16.gmra.mrb[0].mxu0 %v4629
        %v5020 = vpop.f32.mrb[0].mxu0
        %v5021 = vadd.f32 0.0, %v5020
        %v5022 = vpop.f32.mrb[0].mxu0
        %v5023 = vpop.f32.mrb[0].mxu0
        %v5024 = vadd.f32 0.0, %v5023
        %v5025 = vpop.f32.mrb[0].mxu0
        %5026 = vmatprep.mubr.bf16.mxu0 0
        %5027 = vmatmul.mubr.bf16.gmra.mrb[0].mxu0 %v4630
        %v5028 = vpop.f32.mrb[0].mxu0
        %v5029 = vadd.f32 0.0, %v5028
        %v5030 = vpop.f32.mrb[0].mxu0
        %v5031 = vpop.f32.mrb[0].mxu0
        %v5032 = vadd.f32 0.0, %v5031
        %v5033 = vpop.f32.mrb[0].mxu0
        %5034 = vmatprep.mubr.bf16.mxu0 0
        %5035 = vmatmul.mubr.bf16.gmra.mrb[0].mxu0 %v4631
        %v5036 = vpop.f32.mrb[0].mxu0
        %v5037 = vadd.f32 0.0, %v5036
        %v5038 = vpop.f32.mrb[0].mxu0
        %v5039 = vpop.f32.mrb[0].mxu0
        %v5040 = vadd.f32 0.0, %v5039
        %v5041 = vpop.f32.mrb[0].mxu0
        %5042 = vmatprep.mubr.bf16.mxu0 0
        %5043 = vmatmul.mubr.bf16.gmra.mrb[0].mxu0 %v4632
        %v5044 = vpop.f32.mrb[0].mxu0
        %v5045 = vadd.f32 0.0, %v5044
        %v5046 = vpop.f32.mrb[0].mxu0
        %v5047 = vpop.f32.mrb[0].mxu0
        %v5048 = vadd.f32 0.0, %v5047
        %v5049 = vpop.f32.mrb[0].mxu0
        %5050 = vmatprep.mubr.bf16.mxu0 0
        %5051 = vmatmul.mubr.bf16.gmra.mrb[0].mxu0 %v4633
        %v5052 = vpop.f32.mrb[0].mxu0
        %v5053 = vadd.f32 0.0, %v5052
        %v5054 = vpop.f32.mrb[0].mxu0
        %v5055 = vpop.f32.mrb[0].mxu0
        %v5056 = vadd.f32 0.0, %v5055
        %v5057 = vpop.f32.mrb[0].mxu0
        %5058 = vmatprep.mubr.bf16.mxu0 0
        %5059 = vmatmul.mubr.bf16.gmra.mrb[0].mxu0 %v4634
        %v5060 = vpop.f32.mrb[0].mxu0
        %v5061 = vadd.f32 0.0, %v5060
        %v5062 = vpop.f32.mrb[0].mxu0
        %v5063 = vpop.f32.mrb[0].mxu0
        %v5064 = vadd.f32 0.0, %v5063
        %v5065 = vpop.f32.mrb[0].mxu0
        %5066 = vmatprep.mubr.bf16.mxu0 0
        %5067 = vmatmul.mubr.bf16.gmra.mrb[0].mxu0 %v4635
        %v5068 = vpop.f32.mrb[0].mxu0
        %v5069 = vadd.f32 0.0, %v5068
        %v5070 = vpop.f32.mrb[0].mxu0
        %v5071 = vpop.f32.mrb[0].mxu0
        %v5072 = vadd.f32 0.0, %v5071
        %v5073 = vpop.f32.mrb[0].mxu0
        %5074 = vmatprep.mubr.bf16.mxu0 0
        %5075 = vmatmul.mubr.bf16.gmra.mrb[0].mxu0 %v4636
        %v5076 = vpop.f32.mrb[0].mxu0
        %v5077 = vadd.f32 0.0, %v5076
        %v5078 = vpop.f32.mrb[0].mxu0
        %v5079 = vpop.f32.mrb[0].mxu0
        %v5080 = vadd.f32 0.0, %v5079
        %v5081 = vpop.f32.mrb[0].mxu0
        %5082 = vmatprep.mubr.bf16.mxu0 0
        %5083 = vmatmul.mubr.bf16.gmra.mrb[0].mxu0 %v4637
        %v5084 = vpop.f32.mrb[0].mxu0
        %v5085 = vadd.f32 0.0, %v5084
        %v5086 = vpop.f32.mrb[0].mxu0
        %v5087 = vpop.f32.mrb[0].mxu0
        %v5088 = vadd.f32 0.0, %v5087
        %v5089 = vpop.f32.mrb[0].mxu0
        %5090 = vmatprep.mubr.bf16.mxu0 0
        %5091 = vmatmul.mubr.bf16.gmra.mrb[0].mxu0 %v4638
        %v5092 = vpop.f32.mrb[0].mxu0
        %v5093 = vadd.f32 0.0, %v5092
        %v5094 = vpop.f32.mrb[0].mxu0
        %v5095 = vpop.f32.mrb[0].mxu0
        %v5096 = vadd.f32 0.0, %v5095
        %v5097 = vpop.f32.mrb[0].mxu0
        %5098 = vmatprep.mubr.bf16.mxu0 0
        %5099 = vmatmul.mubr.bf16.gmra.mrb[0].mxu0 %v4639
        %v5100 = vpop.f32.mrb[0].mxu0
        %v5101 = vadd.f32 0.0, %v5100
        %v5102 = vpop.f32.mrb[0].mxu0
        %v5103 = vpop.f32.mrb[0].mxu0
        %v5104 = vadd.f32 0.0, %v5103
        %v5105 = vpop.f32.mrb[0].mxu0
        %5106 = vmatprep.mubr.bf16.mxu0 0
        %5107 = vmatmul.mubr.bf16.gmra.mrb[0].mxu0 %v4640
        %v5108 = vpop.f32.mrb[0].mxu0
        %v5109 = vadd.f32 0.0, %v5108
        %v5110 = vpop.f32.mrb[0].mxu0
        %v5111 = vpop.f32.mrb[0].mxu0
        %v5112 = vadd.f32 0.0, %v5111
        %v5113 = vpop.f32.mrb[0].mxu0
        %5114 = vdwg.mxu0
        %v5115 = vmax.f32 %v2271, %v3089
        %v5116 = vmax.f32 %v2274, %v3092
        %v5117 = vmax.f32 %v2279, %v3097
        %v5118 = vmax.f32 %v2282, %v3100
        %v5119 = vmax.f32 %v2287, %v3105
        %v5120 = vmax.f32 %v2290, %v3108
        %v5121 = vmax.f32 %v2295, %v3113
        %v5122 = vmax.f32 %v2298, %v3116
        %v5123 = vmax.f32 %v2303, %v3121
        %v5124 = vmax.f32 %v2306, %v3124
        %v5125 = vmax.f32 %v2311, %v3129
        %v5126 = vmax.f32 %v2314, %v3132
        %v5127 = vmax.f32 %v2319, %v3137
        %v5128 = vmax.f32 %v2322, %v3140
        %v5129 = vmax.f32 %v2327, %v3145
        %v5130 = vmax.f32 %v2330, %v3148
        %v5131 = vmax.f32 %v2335, %v3153
        %v5132 = vmax.f32 %v2338, %v3156
        %v5133 = vmax.f32 %v2343, %v3161
        %v5134 = vmax.f32 %v2346, %v3164
        %v5135 = vmax.f32 %v2351, %v3169
        %v5136 = vmax.f32 %v2354, %v3172
        %v5137 = vmax.f32 %v2359, %v3177
        %v5138 = vmax.f32 %v2362, %v3180
        %v5139 = vmax.f32 %v2367, %v3185
        %v5140 = vmax.f32 %v2370, %v3188
        %v5141 = vmax.f32 %v2375, %v3193
        %v5142 = vmax.f32 %v2378, %v3196
        %v5143 = vmax.f32 %v2383, %v3201
        %v5144 = vmax.f32 %v2386, %v3204
        %v5145 = vmax.f32 %v2391, %v3209
        %v5146 = vmax.f32 %v2394, %v3212
        %v5147 = vmax.f32 %v2399, %v3217
        %v5148 = vmax.f32 %v2402, %v3220
        %v5149 = vmax.f32 %v2407, %v3225
        %v5150 = vmax.f32 %v2410, %v3228
        %v5151 = vmax.f32 %v2415, %v3233
        %v5152 = vmax.f32 %v2418, %v3236
        %v5153 = vmax.f32 %v2423, %v3241
        %v5154 = vmax.f32 %v2426, %v3244
        %v5155 = vmax.f32 %v2431, %v3249
        %v5156 = vmax.f32 %v2434, %v3252
        %v5157 = vmax.f32 %v2439, %v3257
        %v5158 = vmax.f32 %v2442, %v3260
        %v5159 = vmax.f32 %v2447, %v3265
        %v5160 = vmax.f32 %v2450, %v3268
        %v5161 = vmax.f32 %v2455, %v3273
        %v5162 = vmax.f32 %v2458, %v3276
        %v5163 = vmax.f32 %v2463, %v3281
        %v5164 = vmax.f32 %v2466, %v3284
        %v5165 = vmax.f32 %v2471, %v3289
        %v5166 = vmax.f32 %v2474, %v3292
        %v5167 = vmax.f32 %v2479, %v3297
        %v5168 = vmax.f32 %v2482, %v3300
        %v5169 = vmax.f32 %v2487, %v3305
        %v5170 = vmax.f32 %v2490, %v3308
        %v5171 = vmax.f32 %v2495, %v3313
        %v5172 = vmax.f32 %v2498, %v3316
        %v5173 = vmax.f32 %v2503, %v3321
        %v5174 = vmax.f32 %v2506, %v3324
        %v5175 = vmax.f32 %v2511, %v3329
        %v5176 = vmax.f32 %v2514, %v3332
        %v5177 = vmax.f32 %v2519, %v3337
        %v5178 = vmax.f32 %v2522, %v3340
        %v5179 = vmax.f32 %v2527, %v3345
        %v5180 = vmax.f32 %v2530, %v3348
        %v5181 = vmax.f32 %v2535, %v3353
        %v5182 = vmax.f32 %v2538, %v3356
        %v5183 = vmax.f32 %v2543, %v3361
        %v5184 = vmax.f32 %v2546, %v3364
        %v5185 = vmax.f32 %v2551, %v3369
        %v5186 = vmax.f32 %v2554, %v3372
        %v5187 = vmax.f32 %v2559, %v3377
        %v5188 = vmax.f32 %v2562, %v3380
        %v5189 = vmax.f32 %v2567, %v3385
        %v5190 = vmax.f32 %v2570, %v3388
        %v5191 = vmax.f32 %v2575, %v3393
        %v5192 = vmax.f32 %v2578, %v3396
        %v5193 = vmax.f32 %v2583, %v3401
        %v5194 = vmax.f32 %v2586, %v3404
        %v5195 = vmax.f32 %v2591, %v3409
        %v5196 = vmax.f32 %v2594, %v3412
        %v5197 = vmax.f32 %v2599, %v3417
        %v5198 = vmax.f32 %v2602, %v3420
        %v5199 = vmax.f32 %v2607, %v3425
        %v5200 = vmax.f32 %v2610, %v3428
        %v5201 = vmax.f32 %v2615, %v3433
        %v5202 = vmax.f32 %v2618, %v3436
        %v5203 = vmax.f32 %v2623, %v3441
        %v5204 = vmax.f32 %v2626, %v3444
        %v5205 = vmax.f32 %v2631, %v3449
        %v5206 = vmax.f32 %v2634, %v3452
        %v5207 = vmax.f32 %v2639, %v3457
        %v5208 = vmax.f32 %v2642, %v3460
        %v5209 = vmax.f32 %v2647, %v3465
        %v5210 = vmax.f32 %v2650, %v3468
        %v5211 = vmax.f32 %v2655, %v3473
        %v5212 = vmax.f32 %v2658, %v3476
        %v5213 = vmax.f32 %v3907, %v4725
        %v5214 = vmax.f32 %v3910, %v4728
        %v5215 = vmax.f32 %v3915, %v4733
        %v5216 = vmax.f32 %v3918, %v4736
        %v5217 = vmax.f32 %v3923, %v4741
        %v5218 = vmax.f32 %v3926, %v4744
        %v5219 = vmax.f32 %v3931, %v4749
        %v5220 = vmax.f32 %v3934, %v4752
        %v5221 = vmax.f32 %v3939, %v4757
        %v5222 = vmax.f32 %v3942, %v4760
        %v5223 = vmax.f32 %v3947, %v4765
        %v5224 = vmax.f32 %v3950, %v4768
        %v5225 = vmax.f32 %v3955, %v4773
        %v5226 = vmax.f32 %v3958, %v4776
        %v5227 = vmax.f32 %v3963, %v4781
        %v5228 = vmax.f32 %v3966, %v4784
        %v5229 = vmax.f32 %v3971, %v4789
        %v5230 = vmax.f32 %v3974, %v4792
        %v5231 = vmax.f32 %v3979, %v4797
        %v5232 = vmax.f32 %v3982, %v4800
        %v5233 = vmax.f32 %v3987, %v4805
        %v5234 = vmax.f32 %v3990, %v4808
        %v5235 = vmax.f32 %v3995, %v4813
        %v5236 = vmax.f32 %v3998, %v4816
        %v5237 = vmax.f32 %v4003, %v4821
        %v5238 = vmax.f32 %v4006, %v4824
        %v5239 = vmax.f32 %v4011, %v4829
        %v5240 = vmax.f32 %v4014, %v4832
        %v5241 = vmax.f32 %v4019, %v4837
        %v5242 = vmax.f32 %v4022, %v4840
        %v5243 = vmax.f32 %v4027, %v4845
        %v5244 = vmax.f32 %v4030, %v4848
        %v5245 = vmax.f32 %v4035, %v4853
        %v5246 = vmax.f32 %v4038, %v4856
        %v5247 = vmax.f32 %v4043, %v4861
        %v5248 = vmax.f32 %v4046, %v4864
        %v5249 = vmax.f32 %v4051, %v4869
        %v5250 = vmax.f32 %v4054, %v4872
        %v5251 = vmax.f32 %v4059, %v4877
        %v5252 = vmax.f32 %v4062, %v4880
        %v5253 = vmax.f32 %v4067, %v4885
        %v5254 = vmax.f32 %v4070, %v4888
        %v5255 = vmax.f32 %v4075, %v4893
        %v5256 = vmax.f32 %v4078, %v4896
        %v5257 = vmax.f32 %v4083, %v4901
        %v5258 = vmax.f32 %v4086, %v4904
        %v5259 = vmax.f32 %v4091, %v4909
        %v5260 = vmax.f32 %v4094, %v4912
        %v5261 = vmax.f32 %v4099, %v4917
        %v5262 = vmax.f32 %v4102, %v4920
        %v5263 = vmax.f32 %v4107, %v4925
        %v5264 = vmax.f32 %v4110, %v4928
        %v5265 = vmax.f32 %v4115, %v4933
        %v5266 = vmax.f32 %v4118, %v4936
        %v5267 = vmax.f32 %v4123, %v4941
        %v5268 = vmax.f32 %v4126, %v4944
        %v5269 = vmax.f32 %v4131, %v4949
        %v5270 = vmax.f32 %v4134, %v4952
        %v5271 = vmax.f32 %v4139, %v4957
        %v5272 = vmax.f32 %v4142, %v4960
        %v5273 = vmax.f32 %v4147, %v4965
        %v5274 = vmax.f32 %v4150, %v4968
        %v5275 = vmax.f32 %v4155, %v4973
        %v5276 = vmax.f32 %v4158, %v4976
        %v5277 = vmax.f32 %v4163, %v4981
        %v5278 = vmax.f32 %v4166, %v4984
        %v5279 = vmax.f32 %v4171, %v4989
        %v5280 = vmax.f32 %v4174, %v4992
        %v5281 = vmax.f32 %v4179, %v4997
        %v5282 = vmax.f32 %v4182, %v5000
        %v5283 = vmax.f32 %v4187, %v5005
        %v5284 = vmax.f32 %v4190, %v5008
        %v5285 = vmax.f32 %v4195, %v5013
        %v5286 = vmax.f32 %v4198, %v5016
        %v5287 = vmax.f32 %v4203, %v5021
        %v5288 = vmax.f32 %v4206, %v5024
        %v5289 = vmax.f32 %v4211, %v5029
        %v5290 = vmax.f32 %v4214, %v5032
        %v5291 = vmax.f32 %v4219, %v5037
        %v5292 = vmax.f32 %v4222, %v5040
        %v5293 = vmax.f32 %v4227, %v5045
        %v5294 = vmax.f32 %v4230, %v5048
        %v5295 = vmax.f32 %v4235, %v5053
        %v5296 = vmax.f32 %v4238, %v5056
        %v5297 = vmax.f32 %v4243, %v5061
        %v5298 = vmax.f32 %v4246, %v5064
        %v5299 = vmax.f32 %v4251, %v5069
        %v5300 = vmax.f32 %v4254, %v5072
        %v5301 = vmax.f32 %v4259, %v5077
        %v5302 = vmax.f32 %v4262, %v5080
        %v5303 = vmax.f32 %v4267, %v5085
        %v5304 = vmax.f32 %v4270, %v5088
        %v5305 = vmax.f32 %v4275, %v5093
        %v5306 = vmax.f32 %v4278, %v5096
        %v5307 = vmax.f32 %v4283, %v5101
        %v5308 = vmax.f32 %v4286, %v5104
        %v5309 = vmax.f32 %v4291, %v5109
        %v5310 = vmax.f32 %v4294, %v5112
        %v5311 = vmax.f32 %v5115, %v5213
        %v5312 = vmax.f32 %v5116, %v5214
        %v5313 = vmax.f32 %v5117, %v5215
        %v5314 = vmax.f32 %v5118, %v5216
        %v5315 = vmax.f32 %v5119, %v5217
        %v5316 = vmax.f32 %v5120, %v5218
        %v5317 = vmax.f32 %v5121, %v5219
        %v5318 = vmax.f32 %v5122, %v5220
        %v5319 = vmax.f32 %v5123, %v5221
        %v5320 = vmax.f32 %v5124, %v5222
        %v5321 = vmax.f32 %v5125, %v5223
        %v5322 = vmax.f32 %v5126, %v5224
        %v5323 = vmax.f32 %v5127, %v5225
        %v5324 = vmax.f32 %v5128, %v5226
        %v5325 = vmax.f32 %v5129, %v5227
        %v5326 = vmax.f32 %v5130, %v5228
        %v5327 = vmax.f32 %v5131, %v5229
        %v5328 = vmax.f32 %v5132, %v5230
        %v5329 = vmax.f32 %v5133, %v5231
        %v5330 = vmax.f32 %v5134, %v5232
        %v5331 = vmax.f32 %v5135, %v5233
        %v5332 = vmax.f32 %v5136, %v5234
        %v5333 = vmax.f32 %v5137, %v5235
        %v5334 = vmax.f32 %v5138, %v5236
        %v5335 = vmax.f32 %v5139, %v5237
        %v5336 = vmax.f32 %v5140, %v5238
        %v5337 = vmax.f32 %v5141, %v5239
        %v5338 = vmax.f32 %v5142, %v5240
        %v5339 = vmax.f32 %v5143, %v5241
        %v5340 = vmax.f32 %v5144, %v5242
        %v5341 = vmax.f32 %v5145, %v5243
        %v5342 = vmax.f32 %v5146, %v5244
        %v5343 = vmax.f32 %v5147, %v5245
        %v5344 = vmax.f32 %v5148, %v5246
        %v5345 = vmax.f32 %v5149, %v5247
        %v5346 = vmax.f32 %v5150, %v5248
        %v5347 = vmax.f32 %v5151, %v5249
        %v5348 = vmax.f32 %v5152, %v5250
        %v5349 = vmax.f32 %v5153, %v5251
        %v5350 = vmax.f32 %v5154, %v5252
        %v5351 = vmax.f32 %v5155, %v5253
        %v5352 = vmax.f32 %v5156, %v5254
        %v5353 = vmax.f32 %v5157, %v5255
        %v5354 = vmax.f32 %v5158, %v5256
        %v5355 = vmax.f32 %v5159, %v5257
        %v5356 = vmax.f32 %v5160, %v5258
        %v5357 = vmax.f32 %v5161, %v5259
        %v5358 = vmax.f32 %v5162, %v5260
        %v5359 = vmax.f32 %v5163, %v5261
        %v5360 = vmax.f32 %v5164, %v5262
        %v5361 = vmax.f32 %v5165, %v5263
        %v5362 = vmax.f32 %v5166, %v5264
        %v5363 = vmax.f32 %v5167, %v5265
        %v5364 = vmax.f32 %v5168, %v5266
        %v5365 = vmax.f32 %v5169, %v5267
        %v5366 = vmax.f32 %v5170, %v5268
        %v5367 = vmax.f32 %v5171, %v5269
        %v5368 = vmax.f32 %v5172, %v5270
        %v5369 = vmax.f32 %v5173, %v5271
        %v5370 = vmax.f32 %v5174, %v5272
        %v5371 = vmax.f32 %v5175, %v5273
        %v5372 = vmax.f32 %v5176, %v5274
        %v5373 = vmax.f32 %v5177, %v5275
        %v5374 = vmax.f32 %v5178, %v5276
        %v5375 = vmax.f32 %v5179, %v5277
        %v5376 = vmax.f32 %v5180, %v5278
        %v5377 = vmax.f32 %v5181, %v5279
        %v5378 = vmax.f32 %v5182, %v5280
        %v5379 = vmax.f32 %v5183, %v5281
        %v5380 = vmax.f32 %v5184, %v5282
        %v5381 = vmax.f32 %v5185, %v5283
        %v5382 = vmax.f32 %v5186, %v5284
        %v5383 = vmax.f32 %v5187, %v5285
        %v5384 = vmax.f32 %v5188, %v5286
        %v5385 = vmax.f32 %v5189, %v5287
        %v5386 = vmax.f32 %v5190, %v5288
        %v5387 = vmax.f32 %v5191, %v5289
        %v5388 = vmax.f32 %v5192, %v5290
        %v5389 = vmax.f32 %v5193, %v5291
        %v5390 = vmax.f32 %v5194, %v5292
        %v5391 = vmax.f32 %v5195, %v5293
        %v5392 = vmax.f32 %v5196, %v5294
        %v5393 = vmax.f32 %v5197, %v5295
        %v5394 = vmax.f32 %v5198, %v5296
        %v5395 = vmax.f32 %v5199, %v5297
        %v5396 = vmax.f32 %v5200, %v5298
        %v5397 = vmax.f32 %v5201, %v5299
        %v5398 = vmax.f32 %v5202, %v5300
        %v5399 = vmax.f32 %v5203, %v5301
        %v5400 = vmax.f32 %v5204, %v5302
        %v5401 = vmax.f32 %v5205, %v5303
        %v5402 = vmax.f32 %v5206, %v5304
        %v5403 = vmax.f32 %v5207, %v5305
        %v5404 = vmax.f32 %v5208, %v5306
        %v5405 = vmax.f32 %v5209, %v5307
        %v5406 = vmax.f32 %v5210, %v5308
        %v5407 = vmax.f32 %v5211, %v5309
        %v5408 = vmax.f32 %v5212, %v5310
        %v5409 = vld [vmem:[%s2] sm:$0x1]
        %v5411 = vlaneseq
        %v5412 = vshrl.u32 %v5411, 7
        %v5413 = vsub.s32 0, %v5412
        %v5414 = vrot.slane %v5409, %v5413
        %v5416 = vadd.f32 %v5311, %v5414
        %v5417 = vadd.f32 %v5312, %v5414
        %v5418 = vadd.f32 %v5313, %v5414
        %v5419 = vadd.f32 %v5314, %v5414
        %v5420 = vadd.f32 %v5315, %v5414
        %v5421 = vadd.f32 %v5316, %v5414
        %v5422 = vadd.f32 %v5317, %v5414
        %v5423 = vadd.f32 %v5318, %v5414
        %v5424 = vadd.f32 %v5319, %v5414
        %v5425 = vadd.f32 %v5320, %v5414
        %v5426 = vadd.f32 %v5321, %v5414
        %v5427 = vadd.f32 %v5322, %v5414
        %v5428 = vadd.f32 %v5323, %v5414
        %v5429 = vadd.f32 %v5324, %v5414
        %v5430 = vadd.f32 %v5325, %v5414
        %v5431 = vadd.f32 %v5326, %v5414
        %v5432 = vadd.f32 %v5327, %v5414
        %v5433 = vadd.f32 %v5328, %v5414
        %v5434 = vadd.f32 %v5329, %v5414
        %v5435 = vadd.f32 %v5330, %v5414
        %v5436 = vadd.f32 %v5331, %v5414
        %v5437 = vadd.f32 %v5332, %v5414
        %v5438 = vadd.f32 %v5333, %v5414
        %v5439 = vadd.f32 %v5334, %v5414
        %v5440 = vadd.f32 %v5335, %v5414
        %v5441 = vadd.f32 %v5336, %v5414
        %v5442 = vadd.f32 %v5337, %v5414
        %v5443 = vadd.f32 %v5338, %v5414
        %v5444 = vadd.f32 %v5339, %v5414
        %v5445 = vadd.f32 %v5340, %v5414
        %v5446 = vadd.f32 %v5341, %v5414
        %v5447 = vadd.f32 %v5342, %v5414
        %v5448 = vadd.f32 %v5343, %v5414
        %v5449 = vadd.f32 %v5344, %v5414
        %v5450 = vadd.f32 %v5345, %v5414
        %v5451 = vadd.f32 %v5346, %v5414
        %v5452 = vadd.f32 %v5347, %v5414
        %v5453 = vadd.f32 %v5348, %v5414
        %v5454 = vadd.f32 %v5349, %v5414
        %v5455 = vadd.f32 %v5350, %v5414
        %v5456 = vadd.f32 %v5351, %v5414
        %v5457 = vadd.f32 %v5352, %v5414
        %v5458 = vadd.f32 %v5353, %v5414
        %v5459 = vadd.f32 %v5354, %v5414
        %v5460 = vadd.f32 %v5355, %v5414
        %v5461 = vadd.f32 %v5356, %v5414
        %v5462 = vadd.f32 %v5357, %v5414
        %v5463 = vadd.f32 %v5358, %v5414
        %v5464 = vadd.f32 %v5359, %v5414
        %v5465 = vadd.f32 %v5360, %v5414
        %v5466 = vadd.f32 %v5361, %v5414
        %v5467 = vadd.f32 %v5362, %v5414
        %v5468 = vadd.f32 %v5363, %v5414
        %v5469 = vadd.f32 %v5364, %v5414
        %v5470 = vadd.f32 %v5365, %v5414
        %v5471 = vadd.f32 %v5366, %v5414
        %v5472 = vadd.f32 %v5367, %v5414
        %v5473 = vadd.f32 %v5368, %v5414
        %v5474 = vadd.f32 %v5369, %v5414
        %v5475 = vadd.f32 %v5370, %v5414
        %v5476 = vadd.f32 %v5371, %v5414
        %v5477 = vadd.f32 %v5372, %v5414
        %v5478 = vadd.f32 %v5373, %v5414
        %v5479 = vadd.f32 %v5374, %v5414
        %v5480 = vadd.f32 %v5375, %v5414
        %v5481 = vadd.f32 %v5376, %v5414
        %v5482 = vadd.f32 %v5377, %v5414
        %v5483 = vadd.f32 %v5378, %v5414
        %v5484 = vadd.f32 %v5379, %v5414
        %v5485 = vadd.f32 %v5380, %v5414
        %v5486 = vadd.f32 %v5381, %v5414
        %v5487 = vadd.f32 %v5382, %v5414
        %v5488 = vadd.f32 %v5383, %v5414
        %v5489 = vadd.f32 %v5384, %v5414
        %v5490 = vadd.f32 %v5385, %v5414
        %v5491 = vadd.f32 %v5386, %v5414
        %v5492 = vadd.f32 %v5387, %v5414
        %v5493 = vadd.f32 %v5388, %v5414
        %v5494 = vadd.f32 %v5389, %v5414
        %v5495 = vadd.f32 %v5390, %v5414
        %v5496 = vadd.f32 %v5391, %v5414
        %v5497 = vadd.f32 %v5392, %v5414
        %v5498 = vadd.f32 %v5393, %v5414
        %v5499 = vadd.f32 %v5394, %v5414
        %v5500 = vadd.f32 %v5395, %v5414
        %v5501 = vadd.f32 %v5396, %v5414
        %v5502 = vadd.f32 %v5397, %v5414
        %v5503 = vadd.f32 %v5398, %v5414
        %v5504 = vadd.f32 %v5399, %v5414
        %v5505 = vadd.f32 %v5400, %v5414
        %v5506 = vadd.f32 %v5401, %v5414
        %v5507 = vadd.f32 %v5402, %v5414
        %v5508 = vadd.f32 %v5403, %v5414
        %v5509 = vadd.f32 %v5404, %v5414
        %v5510 = vadd.f32 %v5405, %v5414
        %v5511 = vadd.f32 %v5406, %v5414
        %v5512 = vadd.f32 %v5407, %v5414
        %v5513 = vadd.f32 %v5408, %v5414
        %v5514 = vmax.f32 %v5416, 0.0
        %v5515 = vmax.f32 %v5417, 0.0
        %v5516 = vmax.f32 %v5418, 0.0
        %v5517 = vmax.f32 %v5419, 0.0
        %v5518 = vmax.f32 %v5420, 0.0
        %v5519 = vmax.f32 %v5421, 0.0
        %v5520 = vmax.f32 %v5422, 0.0
        %v5521 = vmax.f32 %v5423, 0.0
        %v5522 = vmax.f32 %v5424, 0.0
        %v5523 = vmax.f32 %v5425, 0.0
        %v5524 = vmax.f32 %v5426, 0.0
        %v5525 = vmax.f32 %v5427, 0.0
        %v5526 = vmax.f32 %v5428, 0.0
        %v5527 = vmax.f32 %v5429, 0.0
        %v5528 = vmax.f32 %v5430, 0.0
        %v5529 = vmax.f32 %v5431, 0.0
        %v5530 = vmax.f32 %v5432, 0.0
        %v5531 = vmax.f32 %v5433, 0.0
        %v5532 = vmax.f32 %v5434, 0.0
        %v5533 = vmax.f32 %v5435, 0.0
        %v5534 = vmax.f32 %v5436, 0.0
        %v5535 = vmax.f32 %v5437, 0.0
        %v5536 = vmax.f32 %v5438, 0.0
        %v5537 = vmax.f32 %v5439, 0.0
        %v5538 = vmax.f32 %v5440, 0.0
        %v5539 = vmax.f32 %v5441, 0.0
        %v5540 = vmax.f32 %v5442, 0.0
        %v5541 = vmax.f32 %v5443, 0.0
        %v5542 = vmax.f32 %v5444, 0.0
        %v5543 = vmax.f32 %v5445, 0.0
        %v5544 = vmax.f32 %v5446, 0.0
        %v5545 = vmax.f32 %v5447, 0.0
        %v5546 = vmax.f32 %v5448, 0.0
        %v5547 = vmax.f32 %v5449, 0.0
        %v5548 = vmax.f32 %v5450, 0.0
        %v5549 = vmax.f32 %v5451, 0.0
        %v5550 = vmax.f32 %v5452, 0.0
        %v5551 = vmax.f32 %v5453, 0.0
        %v5552 = vmax.f32 %v5454, 0.0
        %v5553 = vmax.f32 %v5455, 0.0
        %v5554 = vmax.f32 %v5456, 0.0
        %v5555 = vmax.f32 %v5457, 0.0
        %v5556 = vmax.f32 %v5458, 0.0
        %v5557 = vmax.f32 %v5459, 0.0
        %v5558 = vmax.f32 %v5460, 0.0
        %v5559 = vmax.f32 %v5461, 0.0
        %v5560 = vmax.f32 %v5462, 0.0
        %v5561 = vmax.f32 %v5463, 0.0
        %v5562 = vmax.f32 %v5464, 0.0
        %v5563 = vmax.f32 %v5465, 0.0
        %v5564 = vmax.f32 %v5466, 0.0
        %v5565 = vmax.f32 %v5467, 0.0
        %v5566 = vmax.f32 %v5468, 0.0
        %v5567 = vmax.f32 %v5469, 0.0
        %v5568 = vmax.f32 %v5470, 0.0
        %v5569 = vmax.f32 %v5471, 0.0
        %v5570 = vmax.f32 %v5472, 0.0
        %v5571 = vmax.f32 %v5473, 0.0
        %v5572 = vmax.f32 %v5474, 0.0
        %v5573 = vmax.f32 %v5475, 0.0
        %v5574 = vmax.f32 %v5476, 0.0
        %v5575 = vmax.f32 %v5477, 0.0
        %v5576 = vmax.f32 %v5478, 0.0
        %v5577 = vmax.f32 %v5479, 0.0
        %v5578 = vmax.f32 %v5480, 0.0
        %v5579 = vmax.f32 %v5481, 0.0
        %v5580 = vmax.f32 %v5482, 0.0
        %v5581 = vmax.f32 %v5483, 0.0
        %v5582 = vmax.f32 %v5484, 0.0
        %v5583 = vmax.f32 %v5485, 0.0
        %v5584 = vmax.f32 %v5486, 0.0
        %v5585 = vmax.f32 %v5487, 0.0
        %v5586 = vmax.f32 %v5488, 0.0
        %v5587 = vmax.f32 %v5489, 0.0
        %v5588 = vmax.f32 %v5490, 0.0
        %v5589 = vmax.f32 %v5491, 0.0
        %v5590 = vmax.f32 %v5492, 0.0
        %v5591 = vmax.f32 %v5493, 0.0
        %v5592 = vmax.f32 %v5494, 0.0
        %v5593 = vmax.f32 %v5495, 0.0
        %v5594 = vmax.f32 %v5496, 0.0
        %v5595 = vmax.f32 %v5497, 0.0
        %v5596 = vmax.f32 %v5498, 0.0
        %v5597 = vmax.f32 %v5499, 0.0
        %v5598 = vmax.f32 %v5500, 0.0
        %v5599 = vmax.f32 %v5501, 0.0
        %v5600 = vmax.f32 %v5502, 0.0
        %v5601 = vmax.f32 %v5503, 0.0
        %v5602 = vmax.f32 %v5504, 0.0
        %v5603 = vmax.f32 %v5505, 0.0
        %v5604 = vmax.f32 %v5506, 0.0
        %v5605 = vmax.f32 %v5507, 0.0
        %v5606 = vmax.f32 %v5508, 0.0
        %v5607 = vmax.f32 %v5509, 0.0
        %v5608 = vmax.f32 %v5510, 0.0
        %v5609 = vmax.f32 %v5511, 0.0
        %v5610 = vmax.f32 %v5512, 0.0
        %v5611 = vmax.f32 %v5513, 0.0
        %v5612 = vpack.c.bf16 %v5515, %v5514
        %v5613 = vpack.c.bf16 %v5517, %v5516
        %v5614 = vpack.c.bf16 %v5519, %v5518
        %v5615 = vpack.c.bf16 %v5521, %v5520
        %v5616 = vpack.c.bf16 %v5523, %v5522
        %v5617 = vpack.c.bf16 %v5525, %v5524
        %v5618 = vpack.c.bf16 %v5527, %v5526
        %v5619 = vpack.c.bf16 %v5529, %v5528
        %v5620 = vpack.c.bf16 %v5531, %v5530
        %v5621 = vpack.c.bf16 %v5533, %v5532
        %v5622 = vpack.c.bf16 %v5535, %v5534
        %v5623 = vpack.c.bf16 %v5537, %v5536
        %v5624 = vpack.c.bf16 %v5539, %v5538
        %v5625 = vpack.c.bf16 %v5541, %v5540
        %v5626 = vpack.c.bf16 %v5543, %v5542
        %v5627 = vpack.c.bf16 %v5545, %v5544
        %v5628 = vpack.c.bf16 %v5547, %v5546
        %v5629 = vpack.c.bf16 %v5549, %v5548
        %v5630 = vpack.c.bf16 %v5551, %v5550
        %v5631 = vpack.c.bf16 %v5553, %v5552
        %v5632 = vpack.c.bf16 %v5555, %v5554
        %v5633 = vpack.c.bf16 %v5557, %v5556
        %v5634 = vpack.c.bf16 %v5559, %v5558
        %v5635 = vpack.c.bf16 %v5561, %v5560
        %v5636 = vpack.c.bf16 %v5563, %v5562
        %v5637 = vpack.c.bf16 %v5565, %v5564
        %v5638 = vpack.c.bf16 %v5567, %v5566
        %v5639 = vpack.c.bf16 %v5569, %v5568
        %v5640 = vpack.c.bf16 %v5571, %v5570
        %v5641 = vpack.c.bf16 %v5573, %v5572
        %v5642 = vpack.c.bf16 %v5575, %v5574
        %v5643 = vpack.c.bf16 %v5577, %v5576
        %v5644 = vpack.c.bf16 %v5579, %v5578
        %v5645 = vpack.c.bf16 %v5581, %v5580
        %v5646 = vpack.c.bf16 %v5583, %v5582
        %v5647 = vpack.c.bf16 %v5585, %v5584
        %v5648 = vpack.c.bf16 %v5587, %v5586
        %v5649 = vpack.c.bf16 %v5589, %v5588
        %v5650 = vpack.c.bf16 %v5591, %v5590
        %v5651 = vpack.c.bf16 %v5593, %v5592
        %v5652 = vpack.c.bf16 %v5595, %v5594
        %v5653 = vpack.c.bf16 %v5597, %v5596
        %v5654 = vpack.c.bf16 %v5599, %v5598
        %v5655 = vpack.c.bf16 %v5601, %v5600
        %v5656 = vpack.c.bf16 %v5603, %v5602
        %v5657 = vpack.c.bf16 %v5605, %v5604
        %v5658 = vpack.c.bf16 %v5607, %v5606
        %v5659 = vpack.c.bf16 %v5609, %v5608
        %v5660 = vpack.c.bf16 %v5611, %v5610
        %v5710 = vunpack.c.l.b16 %v5612
        %v5711 = vunpack.c.h.b16 %v5612
        %v5712 = vunpack.c.l.b16 %v5613
        %v5713 = vunpack.c.h.b16 %v5613
        %v5714 = vunpack.c.l.b16 %v5614
        %v5715 = vunpack.c.h.b16 %v5614
        %v5716 = vunpack.c.l.b16 %v5615
        %v5717 = vunpack.c.h.b16 %v5615
        %v5718 = vunpack.c.l.b16 %v5616
        %v5719 = vunpack.c.h.b16 %v5616
        %v5720 = vunpack.c.l.b16 %v5617
        %v5721 = vunpack.c.h.b16 %v5617
        %v5722 = vunpack.c.l.b16 %v5618
        %v5723 = vunpack.c.h.b16 %v5618
        %v5724 = vunpack.c.l.b16 %v5619
        %v5725 = vunpack.c.h.b16 %v5619
        %v5726 = vunpack.c.l.b16 %v5620
        %v5727 = vunpack.c.h.b16 %v5620
        %v5728 = vunpack.c.l.b16 %v5621
        %v5729 = vunpack.c.h.b16 %v5621
        %v5730 = vunpack.c.l.b16 %v5622
        %v5731 = vunpack.c.h.b16 %v5622
        %v5732 = vunpack.c.l.b16 %v5623
        %v5733 = vunpack.c.h.b16 %v5623
        %v5734 = vunpack.c.l.b16 %v5624
        %v5735 = vunpack.c.h.b16 %v5624
        %v5736 = vunpack.c.l.b16 %v5625
        %v5737 = vunpack.c.h.b16 %v5625
        %v5738 = vunpack.c.l.b16 %v5626
        %v5739 = vunpack.c.h.b16 %v5626
        %v5740 = vunpack.c.l.b16 %v5627
        %v5741 = vunpack.c.h.b16 %v5627
        %v5742 = vunpack.c.l.b16 %v5628
        %v5743 = vunpack.c.h.b16 %v5628
        %v5744 = vunpack.c.l.b16 %v5629
        %v5745 = vunpack.c.h.b16 %v5629
        %v5746 = vunpack.c.l.b16 %v5630
        %v5747 = vunpack.c.h.b16 %v5630
        %v5748 = vunpack.c.l.b16 %v5631
        %v5749 = vunpack.c.h.b16 %v5631
        %v5750 = vunpack.c.l.b16 %v5632
        %v5751 = vunpack.c.h.b16 %v5632
        %v5752 = vunpack.c.l.b16 %v5633
        %v5753 = vunpack.c.h.b16 %v5633
        %v5754 = vunpack.c.l.b16 %v5634
        %v5755 = vunpack.c.h.b16 %v5634
        %v5756 = vunpack.c.l.b16 %v5635
        %v5757 = vunpack.c.h.b16 %v5635
        %v5758 = vunpack.c.l.b16 %v5636
        %v5759 = vunpack.c.h.b16 %v5636
        %v5760 = vunpack.c.l.b16 %v5637
        %v5761 = vunpack.c.h.b16 %v5637
        %v5762 = vunpack.c.l.b16 %v5638
        %v5763 = vunpack.c.h.b16 %v5638
        %v5764 = vunpack.c.l.b16 %v5639
        %v5765 = vunpack.c.h.b16 %v5639
        %v5766 = vunpack.c.l.b16 %v5640
        %v5767 = vunpack.c.h.b16 %v5640
        %v5768 = vunpack.c.l.b16 %v5641
        %v5769 = vunpack.c.h.b16 %v5641
        %v5770 = vunpack.c.l.b16 %v5642
        %v5771 = vunpack.c.h.b16 %v5642
        %v5772 = vunpack.c.l.b16 %v5643
        %v5773 = vunpack.c.h.b16 %v5643
        %v5774 = vunpack.c.l.b16 %v5644
        %v5775 = vunpack.c.h.b16 %v5644
        %v5776 = vunpack.c.l.b16 %v5645
        %v5777 = vunpack.c.h.b16 %v5645
        %v5778 = vunpack.c.l.b16 %v5646
        %v5779 = vunpack.c.h.b16 %v5646
        %v5780 = vunpack.c.l.b16 %v5647
        %v5781 = vunpack.c.h.b16 %v5647
        %v5782 = vunpack.c.l.b16 %v5648
        %v5783 = vunpack.c.h.b16 %v5648
        %v5784 = vunpack.c.l.b16 %v5649
        %v5785 = vunpack.c.h.b16 %v5649
        %v5786 = vunpack.c.l.b16 %v5650
        %v5787 = vunpack.c.h.b16 %v5650
        %v5788 = vunpack.c.l.b16 %v5651
        %v5789 = vunpack.c.h.b16 %v5651
        %v5790 = vunpack.c.l.b16 %v5652
        %v5791 = vunpack.c.h.b16 %v5652
        %v5792 = vunpack.c.l.b16 %v5653
        %v5793 = vunpack.c.h.b16 %v5653
        %v5794 = vunpack.c.l.b16 %v5654
        %v5795 = vunpack.c.h.b16 %v5654
        %v5796 = vunpack.c.l.b16 %v5655
        %v5797 = vunpack.c.h.b16 %v5655
        %v5798 = vunpack.c.l.b16 %v5656
        %v5799 = vunpack.c.h.b16 %v5656
        %v5800 = vunpack.c.l.b16 %v5657
        %v5801 = vunpack.c.h.b16 %v5657
        %v5802 = vunpack.c.l.b16 %v5658
        %v5803 = vunpack.c.h.b16 %v5658
        %v5804 = vunpack.c.l.b16 %v5659
        %v5805 = vunpack.c.h.b16 %v5659
        %v5806 = vunpack.c.l.b16 %v5660
        %v5807 = vunpack.c.h.b16 %v5660
        %v5808 = vpack.c.b16 %v5710, %v5710
        %v5809 = vpack.c.b16 %v5711, %v5711
        %v5810 = vpack.c.b16 %v5712, %v5712
        %v5811 = vpack.c.b16 %v5713, %v5713
        %v5812 = vpack.c.b16 %v5714, %v5714
        %v5813 = vpack.c.b16 %v5715, %v5715
        %v5814 = vpack.c.b16 %v5716, %v5716
        %v5815 = vpack.c.b16 %v5717, %v5717
        %v5816 = vpack.c.b16 %v5718, %v5718
        %v5817 = vpack.c.b16 %v5719, %v5719
        %v5818 = vpack.c.b16 %v5720, %v5720
        %v5819 = vpack.c.b16 %v5721, %v5721
        %v5820 = vpack.c.b16 %v5722, %v5722
        %v5821 = vpack.c.b16 %v5723, %v5723
        %v5822 = vpack.c.b16 %v5724, %v5724
        %v5823 = vpack.c.b16 %v5725, %v5725
        %v5824 = vpack.c.b16 %v5726, %v5726
        %v5825 = vpack.c.b16 %v5727, %v5727
        %v5826 = vpack.c.b16 %v5728, %v5728
        %v5827 = vpack.c.b16 %v5729, %v5729
        %v5828 = vpack.c.b16 %v5730, %v5730
        %v5829 = vpack.c.b16 %v5731, %v5731
        %v5830 = vpack.c.b16 %v5732, %v5732
        %v5831 = vpack.c.b16 %v5733, %v5733
        %v5832 = vpack.c.b16 %v5734, %v5734
        %v5833 = vpack.c.b16 %v5735, %v5735
        %v5834 = vpack.c.b16 %v5736, %v5736
        %v5835 = vpack.c.b16 %v5737, %v5737
        %v5836 = vpack.c.b16 %v5738, %v5738
        %v5837 = vpack.c.b16 %v5739, %v5739
        %v5838 = vpack.c.b16 %v5740, %v5740
        %v5839 = vpack.c.b16 %v5741, %v5741
        %v5840 = vpack.c.b16 %v5742, %v5742
        %v5841 = vpack.c.b16 %v5743, %v5743
        %v5842 = vpack.c.b16 %v5744, %v5744
        %v5843 = vpack.c.b16 %v5745, %v5745
        %v5844 = vpack.c.b16 %v5746, %v5746
        %v5845 = vpack.c.b16 %v5747, %v5747
        %v5846 = vpack.c.b16 %v5748, %v5748
        %v5847 = vpack.c.b16 %v5749, %v5749
        %v5848 = vpack.c.b16 %v5750, %v5750
        %v5849 = vpack.c.b16 %v5751, %v5751
        %v5850 = vpack.c.b16 %v5752, %v5752
        %v5851 = vpack.c.b16 %v5753, %v5753
        %v5852 = vpack.c.b16 %v5754, %v5754
        %v5853 = vpack.c.b16 %v5755, %v5755
        %v5854 = vpack.c.b16 %v5756, %v5756
        %v5855 = vpack.c.b16 %v5757, %v5757
        %v5856 = vpack.c.b16 %v5758, %v5758
        %v5857 = vpack.c.b16 %v5759, %v5759
        %v5858 = vpack.c.b16 %v5760, %v5760
        %v5859 = vpack.c.b16 %v5761, %v5761
        %v5860 = vpack.c.b16 %v5762, %v5762
        %v5861 = vpack.c.b16 %v5763, %v5763
        %v5862 = vpack.c.b16 %v5764, %v5764
        %v5863 = vpack.c.b16 %v5765, %v5765
        %v5864 = vpack.c.b16 %v5766, %v5766
        %v5865 = vpack.c.b16 %v5767, %v5767
        %v5866 = vpack.c.b16 %v5768, %v5768
        %v5867 = vpack.c.b16 %v5769, %v5769
        %v5868 = vpack.c.b16 %v5770, %v5770
        %v5869 = vpack.c.b16 %v5771, %v5771
        %v5870 = vpack.c.b16 %v5772, %v5772
        %v5871 = vpack.c.b16 %v5773, %v5773
        %v5872 = vpack.c.b16 %v5774, %v5774
        %v5873 = vpack.c.b16 %v5775, %v5775
        %v5874 = vpack.c.b16 %v5776, %v5776
        %v5875 = vpack.c.b16 %v5777, %v5777
        %v5876 = vpack.c.b16 %v5778, %v5778
        %v5877 = vpack.c.b16 %v5779, %v5779
        %v5878 = vpack.c.b16 %v5780, %v5780
        %v5879 = vpack.c.b16 %v5781, %v5781
        %v5880 = vpack.c.b16 %v5782, %v5782
        %v5881 = vpack.c.b16 %v5783, %v5783
        %v5882 = vpack.c.b16 %v5784, %v5784
        %v5883 = vpack.c.b16 %v5785, %v5785
        %v5884 = vpack.c.b16 %v5786, %v5786
        %v5885 = vpack.c.b16 %v5787, %v5787
        %v5886 = vpack.c.b16 %v5788, %v5788
        %v5887 = vpack.c.b16 %v5789, %v5789
        %v5888 = vpack.c.b16 %v5790, %v5790
        %v5889 = vpack.c.b16 %v5791, %v5791
        %v5890 = vpack.c.b16 %v5792, %v5792
        %v5891 = vpack.c.b16 %v5793, %v5793
        %v5892 = vpack.c.b16 %v5794, %v5794
        %v5893 = vpack.c.b16 %v5795, %v5795
        %v5894 = vpack.c.b16 %v5796, %v5796
        %v5895 = vpack.c.b16 %v5797, %v5797
        %v5896 = vpack.c.b16 %v5798, %v5798
        %v5897 = vpack.c.b16 %v5799, %v5799
        %v5898 = vpack.c.b16 %v5800, %v5800
        %v5899 = vpack.c.b16 %v5801, %v5801
        %v5900 = vpack.c.b16 %v5802, %v5802
        %v5901 = vpack.c.b16 %v5803, %v5803
        %v5902 = vpack.c.b16 %v5804, %v5804
        %v5903 = vpack.c.b16 %v5805, %v5805
        %v5904 = vpack.c.b16 %v5806, %v5806
        %v5905 = vpack.c.b16 %v5807, %v5807
        %6004 = vst [vmem:[%s1777] sm:$0xf] %v5808
        %6005 = vst [vmem:[%s1777 + $0x4] sm:$0xf] %v5809
        %6006 = vst [vmem:[%s1777 + $0x8] sm:$0xf] %v5810
        %6007 = vst [vmem:[%s1777 + $0xc] sm:$0xf] %v5811
        %6008 = vst [vmem:[%s1777 + $0x10] sm:$0xf] %v5812
        %6009 = vst [vmem:[%s1777 + $0x14] sm:$0xf] %v5813
        %6010 = vst [vmem:[%s1777 + $0x18] sm:$0xf] %v5814
        %6011 = vst [vmem:[%s1777 + $0x1c] sm:$0xf] %v5815
        %6012 = vst [vmem:[%s1777 + $0x20] sm:$0xf] %v5816
        %6013 = vst [vmem:[%s1777 + $0x24] sm:$0xf] %v5817
        %6014 = vst [vmem:[%s1777 + $0x28] sm:$0xf] %v5818
        %6015 = vst [vmem:[%s1777 + $0x2c] sm:$0xf] %v5819
        %6016 = vst [vmem:[%s1777 + $0x30] sm:$0xf] %v5820
        %6017 = vst [vmem:[%s1777 + $0x34] sm:$0xf] %v5821
        %6018 = vst [vmem:[%s1777 + $0x38] sm:$0xf] %v5822
        %6019 = vst [vmem:[%s1777 + $0x3c] sm:$0xf] %v5823
        %6020 = vst [vmem:[%s1777 + $0x40] sm:$0xf] %v5824
        %6021 = vst [vmem:[%s1777 + $0x44] sm:$0xf] %v5825
        %6022 = vst [vmem:[%s1777 + $0x48] sm:$0xf] %v5826
        %6023 = vst [vmem:[%s1777 + $0x4c] sm:$0xf] %v5827
        %6024 = vst [vmem:[%s1777 + $0x50] sm:$0xf] %v5828
        %6025 = vst [vmem:[%s1777 + $0x54] sm:$0xf] %v5829
        %6026 = vst [vmem:[%s1777 + $0x58] sm:$0xf] %v5830
        %6027 = vst [vmem:[%s1777 + $0x5c] sm:$0xf] %v5831
        %6028 = vst [vmem:[%s1777 + $0x60] sm:$0xf] %v5832
        %6029 = vst [vmem:[%s1777 + $0x64] sm:$0xf] %v5833
        %6030 = vst [vmem:[%s1777 + $0x68] sm:$0xf] %v5834
        %6031 = vst [vmem:[%s1777 + $0x6c] sm:$0xf] %v5835
        %6032 = vst [vmem:[%s1777 + $0x70] sm:$0xf] %v5836
        %6033 = vst [vmem:[%s1777 + $0x74] sm:$0xf] %v5837
        %6034 = vst [vmem:[%s1777 + $0x78] sm:$0xf] %v5838
        %6035 = vst [vmem:[%s1777 + $0x7c] sm:$0xf] %v5839
        %6036 = vst [vmem:[%s1777 + $0x80] sm:$0xf] %v5840
        %6037 = vst [vmem:[%s1777 + $0x84] sm:$0xf] %v5841
        %6038 = vst [vmem:[%s1777 + $0x88] sm:$0xf] %v5842
        %6039 = vst [vmem:[%s1777 + $0x8c] sm:$0xf] %v5843
        %6040 = vst [vmem:[%s1777 + $0x90] sm:$0xf] %v5844
        %6041 = vst [vmem:[%s1777 + $0x94] sm:$0xf] %v5845
        %6042 = vst [vmem:[%s1777 + $0x98] sm:$0xf] %v5846
        %6043 = vst [vmem:[%s1777 + $0x9c] sm:$0xf] %v5847
        %6044 = vst [vmem:[%s1777 + $0xa0] sm:$0xf] %v5848
        %6045 = vst [vmem:[%s1777 + $0xa4] sm:$0xf] %v5849
        %6046 = vst [vmem:[%s1777 + $0xa8] sm:$0xf] %v5850
        %6047 = vst [vmem:[%s1777 + $0xac] sm:$0xf] %v5851
        %6048 = vst [vmem:[%s1777 + $0xb0] sm:$0xf] %v5852
        %6049 = vst [vmem:[%s1777 + $0xb4] sm:$0xf] %v5853
        %6050 = vst [vmem:[%s1777 + $0xb8] sm:$0xf] %v5854
        %6051 = vst [vmem:[%s1777 + $0xbc] sm:$0xf] %v5855
        %6052 = vst [vmem:[%s1777 + $0xc0] sm:$0xf] %v5856
        %6053 = vst [vmem:[%s1777 + $0xc4] sm:$0xf] %v5857
        %6054 = vst [vmem:[%s1777 + $0xc8] sm:$0xf] %v5858
        %6055 = vst [vmem:[%s1777 + $0xcc] sm:$0xf] %v5859
        %6056 = vst [vmem:[%s1777 + $0xd0] sm:$0xf] %v5860
        %6057 = vst [vmem:[%s1777 + $0xd4] sm:$0xf] %v5861
        %6058 = vst [vmem:[%s1777 + $0xd8] sm:$0xf] %v5862
        %6059 = vst [vmem:[%s1777 + $0xdc] sm:$0xf] %v5863
        %6060 = vst [vmem:[%s1777 + $0xe0] sm:$0xf] %v5864
        %6061 = vst [vmem:[%s1777 + $0xe4] sm:$0xf] %v5865
        %6062 = vst [vmem:[%s1777 + $0xe8] sm:$0xf] %v5866
        %6063 = vst [vmem:[%s1777 + $0xec] sm:$0xf] %v5867
        %6064 = vst [vmem:[%s1777 + $0xf0] sm:$0xf] %v5868
        %6065 = vst [vmem:[%s1777 + $0xf4] sm:$0xf] %v5869
        %6066 = vst [vmem:[%s1777 + $0xf8] sm:$0xf] %v5870
        %6067 = vst [vmem:[%s1777 + $0xfc] sm:$0xf] %v5871
        %6068 = vst [vmem:[%s1777 + $0x100] sm:$0xf] %v5872
        %6069 = vst [vmem:[%s1777 + $0x104] sm:$0xf] %v5873
        %6070 = vst [vmem:[%s1777 + $0x108] sm:$0xf] %v5874
        %6071 = vst [vmem:[%s1777 + $0x10c] sm:$0xf] %v5875
        %6072 = vst [vmem:[%s1777 + $0x110] sm:$0xf] %v5876
        %6073 = vst [vmem:[%s1777 + $0x114] sm:$0xf] %v5877
        %6074 = vst [vmem:[%s1777 + $0x118] sm:$0xf] %v5878
        %6075 = vst [vmem:[%s1777 + $0x11c] sm:$0xf] %v5879
        %6076 = vst [vmem:[%s1777 + $0x120] sm:$0xf] %v5880
        %6077 = vst [vmem:[%s1777 + $0x124] sm:$0xf] %v5881
        %6078 = vst [vmem:[%s1777 + $0x128] sm:$0xf] %v5882
        %6079 = vst [vmem:[%s1777 + $0x12c] sm:$0xf] %v5883
        %6080 = vst [vmem:[%s1777 + $0x130] sm:$0xf] %v5884
        %6081 = vst [vmem:[%s1777 + $0x134] sm:$0xf] %v5885
        %6082 = vst [vmem:[%s1777 + $0x138] sm:$0xf] %v5886
        %6083 = vst [vmem:[%s1777 + $0x13c] sm:$0xf] %v5887
        %6084 = vst [vmem:[%s1777 + $0x140] sm:$0xf] %v5888
        %6085 = vst [vmem:[%s1777 + $0x144] sm:$0xf] %v5889
        %6086 = vst [vmem:[%s1777 + $0x148] sm:$0xf] %v5890
        %6087 = vst [vmem:[%s1777 + $0x14c] sm:$0xf] %v5891
        %6088 = vst [vmem:[%s1777 + $0x150] sm:$0xf] %v5892
        %6089 = vst [vmem:[%s1777 + $0x154] sm:$0xf] %v5893
        %6090 = vst [vmem:[%s1777 + $0x158] sm:$0xf] %v5894
        %6091 = vst [vmem:[%s1777 + $0x15c] sm:$0xf] %v5895
        %6092 = vst [vmem:[%s1777 + $0x160] sm:$0xf] %v5896
        %6093 = vst [vmem:[%s1777 + $0x164] sm:$0xf] %v5897
        %6094 = vst [vmem:[%s1777 + $0x168] sm:$0xf] %v5898
        %6095 = vst [vmem:[%s1777 + $0x16c] sm:$0xf] %v5899
        %6096 = vst [vmem:[%s1777 + $0x170] sm:$0xf] %v5900
        %6097 = vst [vmem:[%s1777 + $0x174] sm:$0xf] %v5901
        %6098 = vst [vmem:[%s1777 + $0x178] sm:$0xf] %v5902
        %6099 = vst [vmem:[%s1777 + $0x17c] sm:$0xf] %v5903
        %6100 = vst [vmem:[%s1777 + $0x180] sm:$0xf] %v5904
        %6101 = vst [vmem:[%s1777 + $0x184] sm:$0xf] %v5905
        %s6102 = smul.u32 98, %s14
        %p6103 = scmp.lt.s32.totalorder %s6102, 195
        %s6104 = scalar_select %p6103, %s6102, 195
        %s6105 = smul.addr %s6104, 4
        %s6106 = scalar_lea.vmem %s3, %s6105
        // Predicated region
        $region74: #{net_forward.3} parent=68 // pred_check
          %p6107 = pneg %p100
        $region75: #{net_forward.3} parent=68 // pred_check_branch
          %6109 = sbr.rel (%p6107) target = $region77
        $region76: #{net_forward.3} parent=68 // pred_region
          %s6110 = smul.u32 98, %s14
        $region77: #{net_forward.3} parent=68 // pred_fallthru
          _
      $region69: #{net_forward.3} parent=5 // pred_fallthru
        _
      %p6111 = scmp.le.s32.totalorder 2, %s9
      // Predicated region
      $region78: #{net_forward.3} parent=5 // pred_check
        %p6112 = pneg %p6111
      $region79: #{net_forward.3} parent=5 // pred_check_branch
        %6114 = sbr.rel (%p6112) target = $region81
      $region80: #{net_forward.3} parent=5 // pred_region
        %s6115 = ssub.s32 %s9, 2
        // Predicated region
        $region82: #{net_forward.3} parent=80 // pred_check
          %p6116 = pneg %p106
        $region83: #{net_forward.3} parent=80 // pred_check_branch
          %6118 = sbr.rel (%p6116) target = $region85
        $region84: #{net_forward.3} parent=80 // pred_region
          %s6119 = smul.u32 98, %s15
          %p6120 = scmp.lt.s32.totalorder %s6119, 195
          %s6121 = scalar_select %p6120, %s6119, 195
          %s6122 = smul.addr %s6121, 4
          %s6123 = scalar_lea.vmem %s3, %s6122
        $region85: #{net_forward.3} parent=80 // pred_fallthru
          _
      $region81: #{net_forward.3} parent=5 // pred_fallthru
        _
    $region6: #{net_forward.3} parent=1 // loop_footer
      %s13 = sadd.s32 1, %s9
    $region7: #{net_forward.3} parent=1 // loop_footer_branch
      %8 = sbr.rel target = $region3
    $region8: #{net_forward.3} parent=1 // loop_exit
      _

// kernel: net_forward.4
$region0: #{net_forward.4}
  #allocation0 [shape = 'u32[]', space=smem, size = 0x4, offset = 0x4, fixed_abs, tag = 'smem constant byte address 0x4 - core index']
  #allocation1 [shape = 'u32[144,128]{1,0:T(1,128)}', space=vmem, size = 0x12000, scoped, tag = 'internal scratch']
  %s0 = inlined_call_operand.vmem [shape: bf16[4,208,256], index: 0, kind: input, shape index: {}]
  %s1 = inlined_call_operand.vmem [shape: bf16[256,128], index: 1, kind: input, shape index: {}]
  %s2 = inlined_call_operand.vmem [shape: f32[1,128], index: 2, kind: input, shape index: {}]
  %s3 = inlined_call_operand.vmem [shape: bf16[208,128], index: 3, kind: output, shape index: {}]
  %s4 = sld [smem:[#allocation0]]
  $region83: #{net_forward.4} parent=0
    _
  %s6 = ssub.s32 1, %s4
  %s7 = scalar_select 0, %s6, %s4
  $region1: #{net_forward.4} parent=0
    #allocation2 [shape = 'u8[425984]{0}', space=vmem, size = 0x68000, scoped, tag = 'input window, operand 0']
    loop: start=0, step=1, limit=4
    $region2: #{net_forward.4} parent=1 // loop_pre_header
      _
    $region3: #{net_forward.4} parent=1 // loop_header
      %s9 = sphi 0, %s13
      %p10 = scmp.ge.s32.totalorder %s9, 4
      %s19 = sphi 0, %s21
      %s22 = sphi 0, %s19
      %s23 = sphi 0, %s22
      %s39 = sphi 0, %s23
      %s43 = sphi 0, %s43
      %s45 = sphi 0, %s43
      %s46 = sphi 0, %s45
      %s60 = sphi 0, %s46
      %s64 = sphi 0, %s64
      %s66 = sphi 0, %s64
      %s67 = sphi 0, %s66
      %s81 = sphi 0, %s67
      %s87 = sphi 0, %s89
      %s90 = sphi 0, %s87
      %s91 = sphi 0, %s90
      %s107 = sphi 0, %s91
    $region4: #{net_forward.4} parent=1 // loop_header_branch
      %12 = sbr.rel (%p10) target = $region8
    $region5: #{net_forward.4} parent=1 // loop_body
      %s14 = ssub.s32 %s9, 1
      %s15 = ssub.s32 %s9, 2
      %s16 = sadd.s32 %s9, 1
      %s17 = ssub.s32 %s9, %s16
      %p18 = scmp.eq.s32.totalorder %s17, 0
      %s20 = sadd.s32 %s19, 1
      %s21 = scalar_select %p18, %s19, %s20
      %p24 = pneg %p18
      %p25 = scmp.eq.s32.totalorder %s9, 1
      %p26 = por %p24, %p25
      %p27 = scmp.ne.s32.totalorder %s19, %s22
      %p28 = scmp.eq.s32.totalorder %s9, 0
      %p29 = por %p27, %p28
      %p30 = scmp.ne.s32.totalorder %s19, %s22
      %p31 = scmp.eq.s32.totalorder %s14, 1
      %p32 = por %p30, %p31
      %p33 = scmp.ne.s32.totalorder %s22, %s23
      %p34 = scmp.eq.s32.totalorder %s14, 0
      %p35 = por %p33, %p34
      %p36 = scmp.ne.s32.totalorder %s22, %s23
      %p37 = scmp.eq.s32.totalorder %s15, 1
      %p38 = por %p36, %p37
      %p40 = scmp.ne.s32.totalorder %s23, %s39
      %p41 = scmp.eq.s32.totalorder %s15, 0
      %p42 = por %p40, %p41
      %s44 = sadd.s32 %s43, 1
      %p47 = scmp.eq.s32.totalorder %s9, 1
      %p48 = scmp.ne.s32.totalorder %s43, %s45
      %p49 = scmp.eq.s32.totalorder %s9, 0
      %p50 = por %p48, %p49
      %p51 = scmp.ne.s32.totalorder %s43, %s45
      %p52 = scmp.eq.s32.totalorder %s14, 1
      %p53 = por %p51, %p52
      %p54 = scmp.ne.s32.totalorder %s45, %s46
      %p55 = scmp.eq.s32.totalorder %s14, 0
      %p56 = por %p54, %p55
      %p57 = scmp.ne.s32.totalorder %s45, %s46
      %p58 = scmp.eq.s32.totalorder %s15, 1
      %p59 = por %p57, %p58
      %p61 = scmp.ne.s32.totalorder %s46, %s60
      %p62 = scmp.eq.s32.totalorder %s15, 0
      %p63 = por %p61, %p62
      %s65 = sadd.s32 %s64, 1
      %p68 = scmp.eq.s32.totalorder %s9, 1
      %p69 = scmp.ne.s32.totalorder %s64, %s66
      %p70 = scmp.eq.s32.totalorder %s9, 0
      %p71 = por %p69, %p70
      %p72 = scmp.ne.s32.totalorder %s64, %s66
      %p73 = scmp.eq.s32.totalorder %s14, 1
      %p74 = por %p72, %p73
      %p75 = scmp.ne.s32.totalorder %s66, %s67
      %p76 = scmp.eq.s32.totalorder %s14, 0
      %p77 = por %p75, %p76
      %p78 = scmp.ne.s32.totalorder %s66, %s67
      %p79 = scmp.eq.s32.totalorder %s15, 1
      %p80 = por %p78, %p79
      %p82 = scmp.ne.s32.totalorder %s67, %s81
      %p83 = scmp.eq.s32.totalorder %s15, 0
      %p84 = por %p82, %p83
      %s85 = ssub.s32 %s9, %s16
      %p86 = scmp.eq.s32.totalorder %s85, 0
      %s88 = sadd.s32 %s87, 1
      %s89 = scalar_select %p86, %s87, %s88
      %p92 = pneg %p86
      %p93 = scmp.eq.s32.totalorder %s9, 1
      %p94 = por %p92, %p93
      %p95 = scmp.ne.s32.totalorder %s87, %s90
      %p96 = scmp.eq.s32.totalorder %s9, 0
      %p97 = por %p95, %p96
      %p98 = scmp.ne.s32.totalorder %s87, %s90
      %p99 = scmp.eq.s32.totalorder %s14, 1
      %p100 = por %p98, %p99
      %p101 = scmp.ne.s32.totalorder %s90, %s91
      %p102 = scmp.eq.s32.totalorder %s14, 0
      %p103 = por %p101, %p102
      %p104 = scmp.ne.s32.totalorder %s90, %s91
      %p105 = scmp.eq.s32.totalorder %s15, 1
      %p106 = por %p104, %p105
      %p108 = scmp.ne.s32.totalorder %s91, %s107
      %p109 = scmp.eq.s32.totalorder %s15, 0
      %p110 = por %p108, %p109
      %p111 = scmp.le.s32.totalorder 1, %s9
      %p112 = scmp.lt.s32.totalorder %s9, 3
      %p113 = pnand %p111, %p112
      %p114 = pneg %p113
      // Predicated region
      $region9: #{net_forward.4} parent=5 // pred_check
        _
      $region10: #{net_forward.4} parent=5 // pred_check_branch
        %116 = sbr.rel (%p113) target = $region12
      $region11: #{net_forward.4} parent=5 // pred_region
        %s117 = ssub.s32 %s9, 1
        // Predicated region
        $region13: #{net_forward.4} parent=11 // pred_check
          %p118 = pneg %p56
        $region14: #{net_forward.4} parent=11 // pred_check_branch
          %120 = sbr.rel (%p118) target = $region16
        $region15: #{net_forward.4} parent=11 // pred_region
          _
        $region16: #{net_forward.4} parent=11 // pred_fallthru
          _
        // Predicated region
        $region17: #{net_forward.4} parent=11 // pred_check
          %p121 = pneg %p77
        $region18: #{net_forward.4} parent=11 // pred_check_branch
          %123 = sbr.rel (%p121) target = $region20
        $region19: #{net_forward.4} parent=11 // pred_region
          _
        $region20: #{net_forward.4} parent=11 // pred_fallthru
          _
      $region12: #{net_forward.4} parent=5 // pred_fallthru
        _
      %p124 = scmp.lt.s32.totalorder %s9, 2
      // Predicated region
      $region21: #{net_forward.4} parent=5 // pred_check
        %p125 = pneg %p124
      $region22: #{net_forward.4} parent=5 // pred_check_branch
        %127 = sbr.rel (%p125) target = $region24
      $region23: #{net_forward.4} parent=5 // pred_region
        // Predicated region
        $region25: #{net_forward.4} parent=23 // pred_check
          %p128 = pneg %p29
        $region26: #{net_forward.4} parent=23 // pred_check_branch
          %130 = sbr.rel (%p128) target = $region28
        $region27: #{net_forward.4} parent=23 // pred_region
          %s131 = sand.u32 %s19, 1
          %s132 = sand.u32 %s19, 1
          %s133 = smul.addr %s132, 416
          %s134 = scalar_lea.vmem [#allocation2], %s133
          %s135 = smul.u32 13, %s9
          %s136 = smul.addr %s135, 2
          %s137 = smul.addr %s136, 4
          %s138 = scalar_lea.vmem %s0, %s137
          // Predicated region
          $region29: #{net_forward.4} parent=27 // pred_check
            _
          $region30: #{net_forward.4} parent=27 // pred_check_branch
            %140 = sbr.rel (0) target = $region32
          $region31: #{net_forward.4} parent=27 // pred_region
            // Predicated region
            $region33: #{net_forward.4} parent=31 // pred_check
              _
            $region34: #{net_forward.4} parent=31 // pred_check_branch
              %142 = sbr.rel (0) target = $region36
            $region35: #{net_forward.4} parent=31 // pred_region
              // Predicated region
              $region48: #{net_forward.4} parent=35 // pred_check
                _
              $region49: #{net_forward.4} parent=35 // pred_check_branch
                %259 = sbr.rel (0) target = $region51
              $region50: #{net_forward.4} parent=35 // pred_region
                loop: start=0, step=1, limit=1
                $region52: #{net_forward.4} parent=50 // loop_pre_header
                  _
                $region53: #{net_forward.4} parent=50 // loop_header
                  %s261 = sphi 0, %s265
                  %p262 = scmp.ge.s32.totalorder %s261, 1
                  %s266 = sphi %s138, %s138
                  %s267 = sphi %s134, %s134
                $region54: #{net_forward.4} parent=50 // loop_header_branch
                  %264 = sbr.rel (%p262) target = $region58
                $region55: #{net_forward.4} parent=50 // loop_body
                  %v268 = vld [vmem:[%s266] sm:$0xff]
                  %269 = vst [vmem:[%s267] sm:$0xff] %v268
                  %v270 = vld [vmem:[%s266 + $0x8] sm:$0xff]
                  %271 = vst [vmem:[%s267 + $0x8] sm:$0xff] %v270
                  %v272 = vld [vmem:[%s266 + $0x10] sm:$0xff]
                  %273 = vst [vmem:[%s267 + $0x10] sm:$0xff] %v272
                  %v274 = vld [vmem:[%s266 + $0x18] sm:$0xff]
                  %275 = vst [vmem:[%s267 + $0x18] sm:$0xff] %v274
                  %v276 = vld [vmem:[%s266 + $0x20] sm:$0xff]
                  %277 = vst [vmem:[%s267 + $0x20] sm:$0xff] %v276
                  %v278 = vld [vmem:[%s266 + $0x28] sm:$0xff]
                  %279 = vst [vmem:[%s267 + $0x28] sm:$0xff] %v278
                  %v280 = vld [vmem:[%s266 + $0x30] sm:$0xff]
                  %281 = vst [vmem:[%s267 + $0x30] sm:$0xff] %v280
                  %v282 = vld [vmem:[%s266 + $0x38] sm:$0xff]
                  %283 = vst [vmem:[%s267 + $0x38] sm:$0xff] %v282
                  %v284 = vld [vmem:[%s266 + $0x40] sm:$0xff]
                  %285 = vst [vmem:[%s267 + $0x40] sm:$0xff] %v284
                  %v286 = vld [vmem:[%s266 + $0x48] sm:$0xff]
                  %287 = vst [vmem:[%s267 + $0x48] sm:$0xff] %v286
                  %v288 = vld [vmem:[%s266 + $0x50] sm:$0xff]
                  %289 = vst [vmem:[%s267 + $0x50] sm:$0xff] %v288
                  %v290 = vld [vmem:[%s266 + $0x58] sm:$0xff]
                  %291 = vst [vmem:[%s267 + $0x58] sm:$0xff] %v290
                  %v292 = vld [vmem:[%s266 + $0x60] sm:$0xff]
                  %293 = vst [vmem:[%s267 + $0x60] sm:$0xff] %v292
                  %v294 = vld [vmem:[%s266 + $0xd0] sm:$0xff]
                  %295 = vst [vmem:[%s267 + $0x68] sm:$0xff] %v294
                  %v296 = vld [vmem:[%s266 + $0xd8] sm:$0xff]
                  %297 = vst [vmem:[%s267 + $0x70] sm:$0xff] %v296
                  %v298 = vld [vmem:[%s266 + $0xe0] sm:$0xff]
                  %299 = vst [vmem:[%s267 + $0x78] sm:$0xff] %v298
                  %v300 = vld [vmem:[%s266 + $0xe8] sm:$0xff]
                  %301 = vst [vmem:[%s267 + $0x80] sm:$0xff] %v300
                  %v302 = vld [vmem:[%s266 + $0xf0] sm:$0xff]
                  %303 = vst [vmem:[%s267 + $0x88] sm:$0xff] %v302
                  %v304 = vld [vmem:[%s266 + $0xf8] sm:$0xff]
                  %305 = vst [vmem:[%s267 + $0x90] sm:$0xff] %v304
                  %v306 = vld [vmem:[%s266 + $0x100] sm:$0xff]
                  %307 = vst [vmem:[%s267 + $0x98] sm:$0xff] %v306
                  %v308 = vld [vmem:[%s266 + $0x108] sm:$0xff]
                  %309 = vst [vmem:[%s267 + $0xa0] sm:$0xff] %v308
                  %v310 = vld [vmem:[%s266 + $0x110] sm:$0xff]
                  %311 = vst [vmem:[%s267 + $0xa8] sm:$0xff] %v310
                  %v312 = vld [vmem:[%s266 + $0x118] sm:$0xff]
                  %313 = vst [vmem:[%s267 + $0xb0] sm:$0xff] %v312
                  %v314 = vld [vmem:[%s266 + $0x120] sm:$0xff]
                  %315 = vst [vmem:[%s267 + $0xb8] sm:$0xff] %v314
                  %v316 = vld [vmem:[%s266 + $0x128] sm:$0xff]
                  %317 = vst [vmem:[%s267 + $0xc0] sm:$0xff] %v316
                  %v318 = vld [vmem:[%s266 + $0x130] sm:$0xff]
                  %319 = vst [vmem:[%s267 + $0xc8] sm:$0xff] %v318
                  %v320 = vld [vmem:[%s266 + $0x1a0] sm:$0xff]
                  %321 = vst [vmem:[%s267 + $0xd0] sm:$0xff] %v320
                  %v322 = vld [vmem:[%s266 + $0x1a8] sm:$0xff]
                  %323 = vst [vmem:[%s267 + $0xd8] sm:$0xff] %v322
                  %v324 = vld [vmem:[%s266 + $0x1b0] sm:$0xff]
                  %325 = vst [vmem:[%s267 + $0xe0] sm:$0xff] %v324
                  %v326 = vld [vmem:[%s266 + $0x1b8] sm:$0xff]
                  %327 = vst [vmem:[%s267 + $0xe8] sm:$0xff] %v326
                  %v328 = vld [vmem:[%s266 + $0x1c0] sm:$0xff]
                  %329 = vst [vmem:[%s267 + $0xf0] sm:$0xff] %v328
                  %v330 = vld [vmem:[%s266 + $0x1c8] sm:$0xff]
                  %331 = vst [vmem:[%s267 + $0xf8] sm:$0xff] %v330
                  %v332 = vld [vmem:[%s266 + $0x1d0] sm:$0xff]
                  %333 = vst [vmem:[%s267 + $0x100] sm:$0xff] %v332
                  %v334 = vld [vmem:[%s266 + $0x1d8] sm:$0xff]
                  %335 = vst [vmem:[%s267 + $0x108] sm:$0xff] %v334
                  %v336 = vld [vmem:[%s266 + $0x1e0] sm:$0xff]
                  %337 = vst [vmem:[%s267 + $0x110] sm:$0xff] %v336
                  %v338 = vld [vmem:[%s266 + $0x1e8] sm:$0xff]
                  %339 = vst [vmem:[%s267 + $0x118] sm:$0xff] %v338
                  %v340 = vld [vmem:[%s266 + $0x1f0] sm:$0xff]
                  %341 = vst [vmem:[%s267 + $0x120] sm:$0xff] %v340
                  %v342 = vld [vmem:[%s266 + $0x1f8] sm:$0xff]
                  %343 = vst [vmem:[%s267 + $0x128] sm:$0xff] %v342
                  %v344 = vld [vmem:[%s266 + $0x200] sm:$0xff]
                  %345 = vst [vmem:[%s267 + $0x130] sm:$0xff] %v344
                  %v346 = vld [vmem:[%s266 + $0x270] sm:$0xff]
                  %347 = vst [vmem:[%s267 + $0x138] sm:$0xff] %v346
                  %v348 = vld [vmem:[%s266 + $0x278] sm:$0xff]
                  %349 = vst [vmem:[%s267 + $0x140] sm:$0xff] %v348
                  %v350 = vld [vmem:[%s266 + $0x280] sm:$0xff]
                  %351 = vst [vmem:[%s267 + $0x148] sm:$0xff] %v350
                  %v352 = vld [vmem:[%s266 + $0x288] sm:$0xff]
                  %353 = vst [vmem:[%s267 + $0x150] sm:$0xff] %v352
                  %v354 = vld [vmem:[%s266 + $0x290] sm:$0xff]
                  %355 = vst [vmem:[%s267 + $0x158] sm:$0xff] %v354
                  %v356 = vld [vmem:[%s266 + $0x298] sm:$0xff]
                  %357 = vst [vmem:[%s267 + $0x160] sm:$0xff] %v356
                  %v358 = vld [vmem:[%s266 + $0x2a0] sm:$0xff]
                  %359 = vst [vmem:[%s267 + $0x168] sm:$0xff] %v358
                  %v360 = vld [vmem:[%s266 + $0x2a8] sm:$0xff]
                  %361 = vst [vmem:[%s267 + $0x170] sm:$0xff] %v360
                  %v362 = vld [vmem:[%s266 + $0x2b0] sm:$0xff]
                  %363 = vst [vmem:[%s267 + $0x178] sm:$0xff] %v362
                  %v364 = vld [vmem:[%s266 + $0x2b8] sm:$0xff]
                  %365 = vst [vmem:[%s267 + $0x180] sm:$0xff] %v364
                  %v366 = vld [vmem:[%s266 + $0x2c0] sm:$0xff]
                  %367 = vst [vmem:[%s267 + $0x188] sm:$0xff] %v366
                  %v368 = vld [vmem:[%s266 + $0x2c8] sm:$0xff]
                  %369 = vst [vmem:[%s267 + $0x190] sm:$0xff] %v368
                  %v370 = vld [vmem:[%s266 + $0x2d0] sm:$0xff]
                  %371 = vst [vmem:[%s267 + $0x198] sm:$0xff] %v370
                $region56: #{net_forward.4} parent=50 // loop_footer
                  %s265 = sadd.s32 1, %s261
                $region57: #{net_forward.4} parent=50 // loop_footer_branch
                  %260 = sbr.rel target = $region53
                $region58: #{net_forward.4} parent=50 // loop_exit
                  _
              $region51: #{net_forward.4} parent=35 // pred_fallthru
                _
              // Predicated region
              $region59: #{net_forward.4} parent=35 // pred_check
                _
              $region60: #{net_forward.4} parent=35 // pred_check_branch
                %373 = sbr.rel target = $region62
              $region61: #{net_forward.4} parent=35 // pred_region
                _
              $region62: #{net_forward.4} parent=35 // pred_fallthru
                _
            $region36: #{net_forward.4} parent=31 // pred_fallthru
              _
            // Predicated region
            $region37: #{net_forward.4} parent=31 // pred_check
              _
            $region38: #{net_forward.4} parent=31 // pred_check_branch
              %144 = sbr.rel target = $region40
            $region39: #{net_forward.4} parent=31 // pred_region
              loop: start=0, step=1, limit=1
              $region41: #{net_forward.4} parent=39 // loop_pre_header
                _
              $region42: #{net_forward.4} parent=39 // loop_header
                %s147 = sphi 0, %s151
                %p148 = scmp.ge.s32.totalorder %s147, 1
                %s152 = sphi %s138, %s138
                %s153 = sphi %s134, %s134
              $region43: #{net_forward.4} parent=39 // loop_header_branch
                %150 = sbr.rel (%p148) target = $region47
              $region44: #{net_forward.4} parent=39 // loop_body
                %v154 = vld [vmem:[%s152] sm:$0xff]
                %155 = vst [vmem:[%s153] sm:$0xff] %v154
                %v156 = vld [vmem:[%s152 + $0x8] sm:$0xff]
                %157 = vst [vmem:[%s153 + $0x8] sm:$0xff] %v156
                %v158 = vld [vmem:[%s152 + $0x10] sm:$0xff]
                %159 = vst [vmem:[%s153 + $0x10] sm:$0xff] %v158
                %v160 = vld [vmem:[%s152 + $0x18] sm:$0xff]
                %161 = vst [vmem:[%s153 + $0x18] sm:$0xff] %v160
                %v162 = vld [vmem:[%s152 + $0x20] sm:$0xff]
                %163 = vst [vmem:[%s153 + $0x20] sm:$0xff] %v162
                %v164 = vld [vmem:[%s152 + $0x28] sm:$0xff]
                %165 = vst [vmem:[%s153 + $0x28] sm:$0xff] %v164
                %v166 = vld [vmem:[%s152 + $0x30] sm:$0xff]
                %167 = vst [vmem:[%s153 + $0x30] sm:$0xff] %v166
                %v168 = vld [vmem:[%s152 + $0x38] sm:$0xff]
                %169 = vst [vmem:[%s153 + $0x38] sm:$0xff] %v168
                %v170 = vld [vmem:[%s152 + $0x40] sm:$0xff]
                %171 = vst [vmem:[%s153 + $0x40] sm:$0xff] %v170
                %v172 = vld [vmem:[%s152 + $0x48] sm:$0xff]
                %173 = vst [vmem:[%s153 + $0x48] sm:$0xff] %v172
                %v174 = vld [vmem:[%s152 + $0x50] sm:$0xff]
                %175 = vst [vmem:[%s153 + $0x50] sm:$0xff] %v174
                %v176 = vld [vmem:[%s152 + $0x58] sm:$0xff]
                %177 = vst [vmem:[%s153 + $0x58] sm:$0xff] %v176
                %v178 = vld [vmem:[%s152 + $0x60] sm:$0xff]
                %179 = vst [vmem:[%s153 + $0x60] sm:$0xff] %v178
                %v180 = vld [vmem:[%s152 + $0xd0] sm:$0xff]
                %181 = vst [vmem:[%s153 + $0x68] sm:$0xff] %v180
                %v182 = vld [vmem:[%s152 + $0xd8] sm:$0xff]
                %183 = vst [vmem:[%s153 + $0x70] sm:$0xff] %v182
                %v184 = vld [vmem:[%s152 + $0xe0] sm:$0xff]
                %185 = vst [vmem:[%s153 + $0x78] sm:$0xff] %v184
                %v186 = vld [vmem:[%s152 + $0xe8] sm:$0xff]
                %187 = vst [vmem:[%s153 + $0x80] sm:$0xff] %v186
                %v188 = vld [vmem:[%s152 + $0xf0] sm:$0xff]
                %189 = vst [vmem:[%s153 + $0x88] sm:$0xff] %v188
                %v190 = vld [vmem:[%s152 + $0xf8] sm:$0xff]
                %191 = vst [vmem:[%s153 + $0x90] sm:$0xff] %v190
                %v192 = vld [vmem:[%s152 + $0x100] sm:$0xff]
                %193 = vst [vmem:[%s153 + $0x98] sm:$0xff] %v192
                %v194 = vld [vmem:[%s152 + $0x108] sm:$0xff]
                %195 = vst [vmem:[%s153 + $0xa0] sm:$0xff] %v194
                %v196 = vld [vmem:[%s152 + $0x110] sm:$0xff]
                %197 = vst [vmem:[%s153 + $0xa8] sm:$0xff] %v196
                %v198 = vld [vmem:[%s152 + $0x118] sm:$0xff]
                %199 = vst [vmem:[%s153 + $0xb0] sm:$0xff] %v198
                %v200 = vld [vmem:[%s152 + $0x120] sm:$0xff]
                %201 = vst [vmem:[%s153 + $0xb8] sm:$0xff] %v200
                %v202 = vld [vmem:[%s152 + $0x128] sm:$0xff]
                %203 = vst [vmem:[%s153 + $0xc0] sm:$0xff] %v202
                %v204 = vld [vmem:[%s152 + $0x130] sm:$0xff]
                %205 = vst [vmem:[%s153 + $0xc8] sm:$0xff] %v204
                %v206 = vld [vmem:[%s152 + $0x1a0] sm:$0xff]
                %207 = vst [vmem:[%s153 + $0xd0] sm:$0xff] %v206
                %v208 = vld [vmem:[%s152 + $0x1a8] sm:$0xff]
                %209 = vst [vmem:[%s153 + $0xd8] sm:$0xff] %v208
                %v210 = vld [vmem:[%s152 + $0x1b0] sm:$0xff]
                %211 = vst [vmem:[%s153 + $0xe0] sm:$0xff] %v210
                %v212 = vld [vmem:[%s152 + $0x1b8] sm:$0xff]
                %213 = vst [vmem:[%s153 + $0xe8] sm:$0xff] %v212
                %v214 = vld [vmem:[%s152 + $0x1c0] sm:$0xff]
                %215 = vst [vmem:[%s153 + $0xf0] sm:$0xff] %v214
                %v216 = vld [vmem:[%s152 + $0x1c8] sm:$0xff]
                %217 = vst [vmem:[%s153 + $0xf8] sm:$0xff] %v216
                %v218 = vld [vmem:[%s152 + $0x1d0] sm:$0xff]
                %219 = vst [vmem:[%s153 + $0x100] sm:$0xff] %v218
                %v220 = vld [vmem:[%s152 + $0x1d8] sm:$0xff]
                %221 = vst [vmem:[%s153 + $0x108] sm:$0xff] %v220
                %v222 = vld [vmem:[%s152 + $0x1e0] sm:$0xff]
                %223 = vst [vmem:[%s153 + $0x110] sm:$0xff] %v222
                %v224 = vld [vmem:[%s152 + $0x1e8] sm:$0xff]
                %225 = vst [vmem:[%s153 + $0x118] sm:$0xff] %v224
                %v226 = vld [vmem:[%s152 + $0x1f0] sm:$0xff]
                %227 = vst [vmem:[%s153 + $0x120] sm:$0xff] %v226
                %v228 = vld [vmem:[%s152 + $0x1f8] sm:$0xff]
                %229 = vst [vmem:[%s153 + $0x128] sm:$0xff] %v228
                %v230 = vld [vmem:[%s152 + $0x200] sm:$0xff]
                %231 = vst [vmem:[%s153 + $0x130] sm:$0xff] %v230
                %v232 = vld [vmem:[%s152 + $0x270] sm:$0xff]
                %233 = vst [vmem:[%s153 + $0x138] sm:$0xff] %v232
                %v234 = vld [vmem:[%s152 + $0x278] sm:$0xff]
                %235 = vst [vmem:[%s153 + $0x140] sm:$0xff] %v234
                %v236 = vld [vmem:[%s152 + $0x280] sm:$0xff]
                %237 = vst [vmem:[%s153 + $0x148] sm:$0xff] %v236
                %v238 = vld [vmem:[%s152 + $0x288] sm:$0xff]
                %239 = vst [vmem:[%s153 + $0x150] sm:$0xff] %v238
                %v240 = vld [vmem:[%s152 + $0x290] sm:$0xff]
                %241 = vst [vmem:[%s153 + $0x158] sm:$0xff] %v240
                %v242 = vld [vmem:[%s152 + $0x298] sm:$0xff]
                %243 = vst [vmem:[%s153 + $0x160] sm:$0xff] %v242
                %v244 = vld [vmem:[%s152 + $0x2a0] sm:$0xff]
                %245 = vst [vmem:[%s153 + $0x168] sm:$0xff] %v244
                %v246 = vld [vmem:[%s152 + $0x2a8] sm:$0xff]
                %247 = vst [vmem:[%s153 + $0x170] sm:$0xff] %v246
                %v248 = vld [vmem:[%s152 + $0x2b0] sm:$0xff]
                %249 = vst [vmem:[%s153 + $0x178] sm:$0xff] %v248
                %v250 = vld [vmem:[%s152 + $0x2b8] sm:$0xff]
                %251 = vst [vmem:[%s153 + $0x180] sm:$0xff] %v250
                %v252 = vld [vmem:[%s152 + $0x2c0] sm:$0xff]
                %253 = vst [vmem:[%s153 + $0x188] sm:$0xff] %v252
                %v254 = vld [vmem:[%s152 + $0x2c8] sm:$0xff]
                %255 = vst [vmem:[%s153 + $0x190] sm:$0xff] %v254
                %v256 = vld [vmem:[%s152 + $0x2d0] sm:$0xff]
                %257 = vst [vmem:[%s153 + $0x198] sm:$0xff] %v256
              $region45: #{net_forward.4} parent=39 // loop_footer
                %s151 = sadd.s32 1, %s147
              $region46: #{net_forward.4} parent=39 // loop_footer_branch
                %146 = sbr.rel target = $region42
              $region47: #{net_forward.4} parent=39 // loop_exit
                _
            $region40: #{net_forward.4} parent=31 // pred_fallthru
              _
          $region32: #{net_forward.4} parent=27 // pred_fallthru
            _
          %374 = vnop
        $region28: #{net_forward.4} parent=23 // pred_fallthru
          _
      $region24: #{net_forward.4} parent=5 // pred_fallthru
        _
      %p375 = scmp.le.s32.totalorder 1, %s9
      %p376 = scmp.lt.s32.totalorder %s9, 3
      %p377 = pnand %p375, %p376
      %p378 = pneg %p377
      // Predicated region
      $region63: #{net_forward.4} parent=5 // pred_check
        _
      $region64: #{net_forward.4} parent=5 // pred_check_branch
        %380 = sbr.rel (%p377) target = $region66
      $region65: #{net_forward.4} parent=5 // pred_region
        %s381 = ssub.s32 %s9, 1
        %s382 = sand.u32 %s22, 1
        %s383 = sand.u32 %s22, 1
        %s384 = smul.addr %s383, 416
        %s385 = scalar_lea.vmem [#allocation2], %s384
        // Predicated region
        $region67: #{net_forward.4} parent=65 // pred_check
          %p386 = pneg %p35
        $region68: #{net_forward.4} parent=65 // pred_check_branch
          %388 = sbr.rel (%p386) target = $region70
        $region69: #{net_forward.4} parent=65 // pred_region
          _
        $region70: #{net_forward.4} parent=65 // pred_fallthru
          _
        %s389 = sand.u32 %s22, 1
        %s390 = sand.u32 %s22, 1
        %s391 = smul.addr %s390, 416
        %s392 = scalar_lea.vmem [#allocation2], %s391
        %p393 = pneg %p35
        %p394 = pneg %p32
        %p395 = pneg %p56
        %p396 = pneg %p53
        %p397 = pneg %p77
        %p398 = pneg %p74
        %p399 = pneg %p103
        %p400 = pneg %p100
        %s401 = smul.u32 13, %s14
        %p402 = scmp.lt.s32.totalorder %s401, 25
        %s403 = scalar_select %p402, %s401, 25
        %s404 = smul.addr %s403, 4
        %s405 = scalar_lea.vmem %s3, %s404
        %s406 = smul.u32 13, %s14
        %s407 = smul.u32 13, %s14
        %p408 = scmp.lt.s32.totalorder %s407, 25
        %s409 = scalar_select %p408, %s407, 25
        %s410 = smul.addr %s409, 4
        %s411 = scalar_lea.vmem %s3, %s410
        %s412 = smul.u32 13, %s14
        %v414 = vld [vmem:[%s1] sm:$0xf]
        %v415 = vld [vmem:[%s1 + $0x4] sm:$0xf]
        %v416 = vld [vmem:[%s1 + $0x8] sm:$0xf]
        %v417 = vld [vmem:[%s1 + $0xc] sm:$0xf]
        %v418 = vld [vmem:[%s1 + $0x10] sm:$0xf]
        %v419 = vld [vmem:[%s1 + $0x14] sm:$0xf]
        %v420 = vld [vmem:[%s1 + $0x18] sm:$0xf]
        %v421 = vld [vmem:[%s1 + $0x1c] sm:$0xf]
        %v422 = vld [vmem:[%s1 + $0x20] sm:$0xf]
        %v423 = vld [vmem:[%s1 + $0x24] sm:$0xf]
        %v424 = vld [vmem:[%s1 + $0x28] sm:$0xf]
        %v425 = vld [vmem:[%s1 + $0x2c] sm:$0xf]
        %v426 = vld [vmem:[%s1 + $0x30] sm:$0xf]
        %v427 = vld [vmem:[%s1 + $0x34] sm:$0xf]
        %v428 = vld [vmem:[%s1 + $0x38] sm:$0xf]
        %v429 = vld [vmem:[%s1 + $0x3c] sm:$0xf]
        %v430 = vld [vmem:[%s1 + $0x40] sm:$0xf]
        %v431 = vld [vmem:[%s1 + $0x44] sm:$0xf]
        %v432 = vld [vmem:[%s1 + $0x48] sm:$0xf]
        %v433 = vld [vmem:[%s1 + $0x4c] sm:$0xf]
        %v434 = vld [vmem:[%s1 + $0x50] sm:$0xf]
        %v435 = vld [vmem:[%s1 + $0x54] sm:$0xf]
        %v436 = vld [vmem:[%s1 + $0x58] sm:$0xf]
        %v437 = vld [vmem:[%s1 + $0x5c] sm:$0xf]
        %v438 = vld [vmem:[%s1 + $0x60] sm:$0xf]
        %v439 = vld [vmem:[%s1 + $0x64] sm:$0xf]
        %v440 = vld [vmem:[%s1 + $0x68] sm:$0xf]
        %v441 = vld [vmem:[%s1 + $0x6c] sm:$0xf]
        %v442 = vld [vmem:[%s1 + $0x70] sm:$0xf]
        %v443 = vld [vmem:[%s1 + $0x74] sm:$0xf]
        %v444 = vld [vmem:[%s1 + $0x78] sm:$0xf]
        %v445 = vld [vmem:[%s1 + $0x7c] sm:$0xf]
        %v446 = vld [vmem:[%s385] sm:$0xff]
        %v447 = vld [vmem:[%s385 + $0x8] sm:$0xff]
        %v448 = vld [vmem:[%s385 + $0x10] sm:$0xff]
        %v449 = vld [vmem:[%s385 + $0x18] sm:$0xff]
        %v450 = vld [vmem:[%s385 + $0x20] sm:$0xff]
        %v451 = vld [vmem:[%s385 + $0x28] sm:$0xff]
        %v452 = vld [vmem:[%s385 + $0x30] sm:$0xff]
        %v453 = vld [vmem:[%s385 + $0x38] sm:$0xff]
        %v454 = vld [vmem:[%s385 + $0x40] sm:$0xff]
        %v455 = vld [vmem:[%s385 + $0x48] sm:$0xff]
        %v456 = vld [vmem:[%s385 + $0x50] sm:$0xff]
        %v457 = vld [vmem:[%s385 + $0x58] sm:$0xff]
        %v458 = vld [vmem:[%s385 + $0x60] sm:$0xff]
        %v472 = vunpack.c.l.b16 %v446
        %v473 = vunpack.c.h.b16 %v446
        %v474 = vunpack.c.l.b16 %v447
        %v475 = vunpack.c.h.b16 %v447
        %v476 = vunpack.c.l.b16 %v448
        %v477 = vunpack.c.h.b16 %v448
        %v478 = vunpack.c.l.b16 %v449
        %v479 = vunpack.c.h.b16 %v449
        %v480 = vunpack.c.l.b16 %v450
        %v481 = vunpack.c.h.b16 %v450
        %v482 = vunpack.c.l.b16 %v451
        %v483 = vunpack.c.h.b16 %v451
        %v484 = vunpack.c.l.b16 %v452
        %v485 = vunpack.c.h.b16 %v452
        %v486 = vunpack.c.l.b16 %v453
        %v487 = vunpack.c.h.b16 %v453
        %v488 = vunpack.c.l.b16 %v454
        %v489 = vunpack.c.h.b16 %v454
        %v490 = vunpack.c.l.b16 %v455
        %v491 = vunpack.c.h.b16 %v455
        %v492 = vunpack.c.l.b16 %v456
        %v493 = vunpack.c.h.b16 %v456
        %v494 = vunpack.c.l.b16 %v457
        %v495 = vunpack.c.h.b16 %v457
        %v496 = vunpack.c.l.b16 %v458
        %v497 = vunpack.c.h.b16 %v458
        %v498 = vpack.c.b16 %v474, %v472
        %v499 = vpack.c.b16 %v475, %v473
        %v500 = vpack.c.b16 %v478, %v476
        %v501 = vpack.c.b16 %v479, %v477
        %v502 = vpack.c.b16 %v482, %v480
        %v503 = vpack.c.b16 %v483, %v481
        %v504 = vpack.c.b16 %v486, %v484
        %v505 = vpack.c.b16 %v487, %v485
        %v506 = vpack.c.b16 %v490, %v488
        %v507 = vpack.c.b16 %v491, %v489
        %v508 = vpack.c.b16 %v494, %v492
        %v509 = vpack.c.b16 %v495, %v493
        %v510 = vpack.c.b16 %v496, %v496
        %v511 = vpack.c.b16 %v497, %v497
        %v558 = vunpack.c.l.b16 %v414
        %v559 = vunpack.c.l.b16 %v415
        %v560 = vunpack.c.l.b16 %v416
        %v561 = vunpack.c.l.b16 %v417
        %v562 = vunpack.c.l.b16 %v418
        %v563 = vunpack.c.l.b16 %v419
        %v564 = vunpack.c.l.b16 %v420
        %v565 = vunpack.c.l.b16 %v421
        %v566 = vunpack.c.l.b16 %v422
        %v567 = vunpack.c.l.b16 %v423
        %v568 = vunpack.c.l.b16 %v424
        %v569 = vunpack.c.l.b16 %v425
        %v570 = vunpack.c.l.b16 %v426
        %v571 = vunpack.c.l.b16 %v427
        %v572 = vunpack.c.l.b16 %v428
        %v573 = vunpack.c.l.b16 %v429
        %v574 = vunpack.c.l.b16 %v430
        %v575 = vunpack.c.l.b16 %v431
        %v576 = vunpack.c.l.b16 %v432
        %v577 = vunpack.c.l.b16 %v433
        %v578 = vunpack.c.l.b16 %v434
        %v579 = vunpack.c.l.b16 %v435
        %v580 = vunpack.c.l.b16 %v436
        %v581 = vunpack.c.l.b16 %v437
        %v582 = vunpack.c.l.b16 %v438
        %v583 = vunpack.c.l.b16 %v439
        %v584 = vunpack.c.l.b16 %v440
        %v585 = vunpack.c.l.b16 %v441
        %v586 = vunpack.c.l.b16 %v442
        %v587 = vunpack.c.l.b16 %v443
        %v588 = vunpack.c.l.b16 %v444
        %v589 = vunpack.c.l.b16 %v445
        %v590 = vpack.c.b16 %v559, %v558
        %v591 = vpack.c.b16 %v561, %v560
        %v592 = vpack.c.b16 %v563, %v562
        %v593 = vpack.c.b16 %v565, %v564
        %v594 = vpack.c.b16 %v567, %v566
        %v595 = vpack.c.b16 %v569, %v568
        %v596 = vpack.c.b16 %v571, %v570
        %v597 = vpack.c.b16 %v573, %v572
        %v598 = vpack.c.b16 %v575, %v574
        %v599 = vpack.c.b16 %v577, %v576
        %v600 = vpack.c.b16 %v579, %v578
        %v601 = vpack.c.b16 %v581, %v580
        %v602 = vpack.c.b16 %v583, %v582
        %v603 = vpack.c.b16 %v585, %v584
        %v604 = vpack.c.b16 %v587, %v586
        %v605 = vpack.c.b16 %v589, %v588
        %622 = vmatprep.subr.bf16.mxu0 0
        %623 = vmatpush1.bf16.msra.mxu0 %v590
        %624 = vmatprep.subr.bf16.mxu0 0
        %625 = vmatpush1.bf16.msra.mxu0 %v591
        %626 = vmatprep.subr.bf16.mxu0 0
        %627 = vmatpush1.bf16.msra.mxu0 %v592
        %628 = vmatprep.subr.bf16.mxu0 0
        %629 = vmatpush1.bf16.msra.mxu0 %v593
        %630 = vmatprep.subr.bf16.mxu0 0
        %631 = vmatpush1.bf16.msra.mxu0 %v594
        %632 = vmatprep.subr.bf16.mxu0 0
        %633 = vmatpush1.bf16.msra.mxu0 %v595
        %634 = vmatprep.subr.bf16.mxu0 0
        %635 = vmatpush1.bf16.msra.mxu0 %v596
        %636 = vmatprep.subr.bf16.mxu0 0
        %637 = vmatpush1.bf16.msra.mxu0 %v597
        %638 = vmatprep.subr.bf16.mxu0 0
        %639 = vmatpush1.bf16.msra.mxu0 %v598
        %640 = vmatprep.subr.bf16.mxu0 0
        %641 = vmatpush1.bf16.msra.mxu0 %v599
        %642 = vmatprep.subr.bf16.mxu0 0
        %643 = vmatpush1.bf16.msra.mxu0 %v600
        %644 = vmatprep.subr.bf16.mxu0 0
        %645 = vmatpush1.bf16.msra.mxu0 %v601
        %646 = vmatprep.subr.bf16.mxu0 0
        %647 = vmatpush1.bf16.msra.mxu0 %v602
        %648 = vmatprep.subr.bf16.mxu0 0
        %649 = vmatpush1.bf16.msra.mxu0 %v603
        %650 = vmatprep.subr.bf16.mxu0 0
        %651 = vmatpush1.bf16.msra.mxu0 %v604
        %652 = vmatprep.subr.bf16.mxu0 0
        %653 = vmatpush1.bf16.msra.mxu0 %v605
        %654 = vmatprep.mubr.bf16.mxu0 %v499
        %655 = vmatmul.mubr.bf16.gmra.mrb[0].mxu0 %v498
        %v656 = vpop.f32.mrb[0].mxu0
        %v657 = vadd.f32 0.0, %v656
        %v658 = vpop.f32.mrb[0].mxu0
        %v659 = vpop.f32.mrb[0].mxu0
        %v660 = vadd.f32 0.0, %v659
        %v661 = vpop.f32.mrb[0].mxu0
        %662 = vmatprep.mubr.bf16.mxu0 %v501
        %663 = vmatmul.mubr.bf16.gmra.mrb[0].mxu0 %v500
        %v664 = vpop.f32.mrb[0].mxu0
        %v665 = vadd.f32 0.0, %v664
        %v666 = vpop.f32.mrb[0].mxu0
        %v667 = vpop.f32.mrb[0].mxu0
        %v668 = vadd.f32 0.0, %v667
        %v669 = vpop.f32.mrb[0].mxu0
        %670 = vmatprep.mubr.bf16.mxu0 %v503
        %671 = vmatmul.mubr.bf16.gmra.mrb[0].mxu0 %v502
        %v672 = vpop.f32.mrb[0].mxu0
        %v673 = vadd.f32 0.0, %v672
        %v674 = vpop.f32.mrb[0].mxu0
        %v675 = vpop.f32.mrb[0].mxu0
        %v676 = vadd.f32 0.0, %v675
        %v677 = vpop.f32.mrb[0].mxu0
        %678 = vmatprep.mubr.bf16.mxu0 %v505
        %679 = vmatmul.mubr.bf16.gmra.mrb[0].mxu0 %v504
        %v680 = vpop.f32.mrb[0].mxu0
        %v681 = vadd.f32 0.0, %v680
        %v682 = vpop.f32.mrb[0].mxu0
        %v683 = vpop.f32.mrb[0].mxu0
        %v684 = vadd.f32 0.0, %v683
        %v685 = vpop.f32.mrb[0].mxu0
        %686 = vmatprep.mubr.bf16.mxu0 %v507
        %687 = vmatmul.mubr.bf16.gmra.mrb[0].mxu0 %v506
        %v688 = vpop.f32.mrb[0].mxu0
        %v689 = vadd.f32 0.0, %v688
        %v690 = vpop.f32.mrb[0].mxu0
        %v691 = vpop.f32.mrb[0].mxu0
        %v692 = vadd.f32 0.0, %v691
        %v693 = vpop.f32.mrb[0].mxu0
        %694 = vmatprep.mubr.bf16.mxu0 %v509
        %695 = vmatmul.mubr.bf16.gmra.mrb[0].mxu0 %v508
        %v696 = vpop.f32.mrb[0].mxu0
        %v697 = vadd.f32 0.0, %v696
        %v698 = vpop.f32.mrb[0].mxu0
        %v699 = vpop.f32.mrb[0].mxu0
        %v700 = vadd.f32 0.0, %v699
        %v701 = vpop.f32.mrb[0].mxu0
        %702 = vmatprep.mubr.bf16.mxu0 %v511
        %703 = vmatmul.mubr.bf16.gmra.mrb[0].mxu0 %v510
        %v704 = vpop.f32.mrb[0].mxu0
        %v705 = vadd.f32 0.0, %v704
        %v706 = vpop.f32.mrb[0].mxu0
        %v707 = vpop.f32.mrb[0].mxu0
        %v708 = vpop.f32.mrb[0].mxu0
        %709 = vdwg.mxu0
        %s710 = scalar_lea.vmem %s385, 104 [#allocation2]
        %v711 = vld [vmem:[%s710] sm:$0xff]
        %v712 = vld [vmem:[%s710 + $0x8] sm:$0xff]
        %v713 = vld [vmem:[%s710 + $0x10] sm:$0xff]
        %v714 = vld [vmem:[%s710 + $0x18] sm:$0xff]
        %v715 = vld [vmem:[%s710 + $0x20] sm:$0xff]
        %v716 = vld [vmem:[%s710 + $0x28] sm:$0xff]
        %v717 = vld [vmem:[%s710 + $0x30] sm:$0xff]
        %v718 = vld [vmem:[%s710 + $0x38] sm:$0xff]
        %v719 = vld [vmem:[%s710 + $0x40] sm:$0xff]
        %v720 = vld [vmem:[%s710 + $0x48] sm:$0xff]
        %v721 = vld [vmem:[%s710 + $0x50] sm:$0xff]
        %v722 = vld [vmem:[%s710 + $0x58] sm:$0xff]
        %v723 = vld [vmem:[%s710 + $0x60] sm:$0xff]
        %v737 = vunpack.c.l.b16 %v711
        %v738 = vunpack.c.h.b16 %v711
        %v739 = vunpack.c.l.b16 %v712
        %v740 = vunpack.c.h.b16 %v712
        %v741 = vunpack.c.l.b16 %v713
        %v742 = vunpack.c.h.b16 %v713
        %v743 = vunpack.c.l.b16 %v714
        %v744 = vunpack.c.h.b16 %v714
        %v745 = vunpack.c.l.b16 %v715
        %v746 = vunpack.c.h.b16 %v715
        %v747 = vunpack.c.l.b16 %v716
        %v748 = vunpack.c.h.b16 %v716
        %v749 = vunpack.c.l.b16 %v717
        %v750 = vunpack.c.h.b16 %v717
        %v751 = vunpack.c.l.b16 %v718
        %v752 = vunpack.c.h.b16 %v718
        %v753 = vunpack.c.l.b16 %v719
        %v754 = vunpack.c.h.b16 %v719
        %v755 = vunpack.c.l.b16 %v720
        %v756 = vunpack.c.h.b16 %v720
        %v757 = vunpack.c.l.b16 %v721
        %v758 = vunpack.c.h.b16 %v721
        %v759 = vunpack.c.l.b16 %v722
        %v760 = vunpack.c.h.b16 %v722
        %v761 = vunpack.c.l.b16 %v723
        %v762 = vunpack.c.h.b16 %v723
        %v763 = vpack.c.b16 %v739, %v737
        %v764 = vpack.c.b16 %v740, %v738
        %v765 = vpack.c.b16 %v743, %v741
        %v766 = vpack.c.b16 %v744, %v742
        %v767 = vpack.c.b16 %v747, %v745
        %v768 = vpack.c.b16 %v748, %v746
        %v769 = vpack.c.b16 %v751, %v749
        %v770 = vpack.c.b16 %v752, %v750
        %v771 = vpack.c.b16 %v755, %v753
        %v772 = vpack.c.b16 %v756, %v754
        %v773 = vpack.c.b16 %v759, %v757
        %v774 = vpack.c.b16 %v760, %v758
        %v775 = vpack.c.b16 %v761, %v761
        %v776 = vpack.c.b16 %v762, %v762
        %791 = vmatprep.subr.bf16.mxu0 0
        %792 = vmatpush1.bf16.msra.mxu0 %v590
        %793 = vmatprep.subr.bf16.mxu0 0
        %794 = vmatpush1.bf16.msra.mxu0 %v591
        %795 = vmatprep.subr.bf16.mxu0 0
        %796 = vmatpush1.bf16.msra.mxu0 %v592
        %797 = vmatprep.subr.bf16.mxu0 0
        %798 = vmatpush1.bf16.msra.mxu0 %v593
        %799 = vmatprep.subr.bf16.mxu0 0
        %800 = vmatpush1.bf16.msra.mxu0 %v594
        %801 = vmatprep.subr.bf16.mxu0 0
        %802 = vmatpush1.bf16.msra.mxu0 %v595
        %803 = vmatprep.subr.bf16.mxu0 0
        %804 = vmatpush1.bf16.msra.mxu0 %v596
        %805 = vmatprep.subr.bf16.mxu0 0
        %806 = vmatpush1.bf16.msra.mxu0 %v597
        %807 = vmatprep.subr.bf16.mxu0 0
        %808 = vmatpush1.bf16.msra.mxu0 %v598
        %809 = vmatprep.subr.bf16.mxu0 0
        %810 = vmatpush1.bf16.msra.mxu0 %v599
        %811 = vmatprep.subr.bf16.mxu0 0
        %812 = vmatpush1.bf16.msra.mxu0 %v600
        %813 = vmatprep.subr.bf16.mxu0 0
        %814 = vmatpush1.bf16.msra.mxu0 %v601
        %815 = vmatprep.subr.bf16.mxu0 0
        %816 = vmatpush1.bf16.msra.mxu0 %v602
        %817 = vmatprep.subr.bf16.mxu0 0
        %818 = vmatpush1.bf16.msra.mxu0 %v603
        %819 = vmatprep.subr.bf16.mxu0 0
        %820 = vmatpush1.bf16.msra.mxu0 %v604
        %821 = vmatprep.subr.bf16.mxu0 0
        %822 = vmatpush1.bf16.msra.mxu0 %v605
        %823 = vmatprep.mubr.bf16.mxu0 %v764
        %824 = vmatmul.mubr.bf16.gmra.mrb[0].mxu0 %v763
        %v825 = vpop.f32.mrb[0].mxu0
        %v826 = vadd.f32 0.0, %v825
        %v827 = vpop.f32.mrb[0].mxu0
        %v828 = vpop.f32.mrb[0].mxu0
        %v829 = vadd.f32 0.0, %v828
        %v830 = vpop.f32.mrb[0].mxu0
        %831 = vmatprep.mubr.bf16.mxu0 %v766
        %832 = vmatmul.mubr.bf16.gmra.mrb[0].mxu0 %v765
        %v833 = vpop.f32.mrb[0].mxu0
        %v834 = vadd.f32 0.0, %v833
        %v835 = vpop.f32.mrb[0].mxu0
        %v836 = vpop.f32.mrb[0].mxu0
        %v837 = vadd.f32 0.0, %v836
        %v838 = vpop.f32.mrb[0].mxu0
        %839 = vmatprep.mubr.bf16.mxu0 %v768
        %840 = vmatmul.mubr.bf16.gmra.mrb[0].mxu0 %v767
        %v841 = vpop.f32.mrb[0].mxu0
        %v842 = vadd.f32 0.0, %v841
        %v843 = vpop.f32.mrb[0].mxu0
        %v844 = vpop.f32.mrb[0].mxu0
        %v845 = vadd.f32 0.0, %v844
        %v846 = vpop.f32.mrb[0].mxu0
        %847 = vmatprep.mubr.bf16.mxu0 %v770
        %848 = vmatmul.mubr.bf16.gmra.mrb[0].mxu0 %v769
        %v849 = vpop.f32.mrb[0].mxu0
        %v850 = vadd.f32 0.0, %v849
        %v851 = vpop.f32.mrb[0].mxu0
        %v852 = vpop.f32.mrb[0].mxu0
        %v853 = vadd.f32 0.0, %v852
        %v854 = vpop.f32.mrb[0].mxu0
        %855 = vmatprep.mubr.bf16.mxu0 %v772
        %856 = vmatmul.mubr.bf16.gmra.mrb[0].mxu0 %v771
        %v857 = vpop.f32.mrb[0].mxu0
        %v858 = vadd.f32 0.0, %v857
        %v859 = vpop.f32.mrb[0].mxu0
        %v860 = vpop.f32.mrb[0].mxu0
        %v861 = vadd.f32 0.0, %v860
        %v862 = vpop.f32.mrb[0].mxu0
        %863 = vmatprep.mubr.bf16.mxu0 %v774
        %864 = vmatmul.mubr.bf16.gmra.mrb[0].mxu0 %v773
        %v865 = vpop.f32.mrb[0].mxu0
        %v866 = vadd.f32 0.0, %v865
        %v867 = vpop.f32.mrb[0].mxu0
        %v868 = vpop.f32.mrb[0].mxu0
        %v869 = vadd.f32 0.0, %v868
        %v870 = vpop.f32.mrb[0].mxu0
        %871 = vmatprep.mubr.bf16.mxu0 %v776
        %872 = vmatmul.mubr.bf16.gmra.mrb[0].mxu0 %v775
        %v873 = vpop.f32.mrb[0].mxu0
        %v874 = vadd.f32 0.0, %v873
        %v875 = vpop.f32.mrb[0].mxu0
        %v876 = vpop.f32.mrb[0].mxu0
        %v877 = vpop.f32.mrb[0].mxu0
        %878 = vdwg.mxu0
        %s879 = scalar_lea.vmem %s385, 208 [#allocation2]
        %v880 = vld [vmem:[%s879] sm:$0xff]
        %v881 = vld [vmem:[%s879 + $0x8] sm:$0xff]
        %v882 = vld [vmem:[%s879 + $0x10] sm:$0xff]
        %v883 = vld [vmem:[%s879 + $0x18] sm:$0xff]
        %v884 = vld [vmem:[%s879 + $0x20] sm:$0xff]
        %v885 = vld [vmem:[%s879 + $0x28] sm:$0xff]
        %v886 = vld [vmem:[%s879 + $0x30] sm:$0xff]
        %v887 = vld [vmem:[%s879 + $0x38] sm:$0xff]
        %v888 = vld [vmem:[%s879 + $0x40] sm:$0xff]
        %v889 = vld [vmem:[%s879 + $0x48] sm:$0xff]
        %v890 = vld [vmem:[%s879 + $0x50] sm:$0xff]
        %v891 = vld [vmem:[%s879 + $0x58] sm:$0xff]
        %v892 = vld [vmem:[%s879 + $0x60] sm:$0xff]
        %v906 = vunpack.c.l.b16 %v880
        %v907 = vunpack.c.h.b16 %v880
        %v908 = vunpack.c.l.b16 %v881
        %v909 = vunpack.c.h.b16 %v881
        %v910 = vunpack.c.l.b16 %v882
        %v911 = vunpack.c.h.b16 %v882
        %v912 = vunpack.c.l.b16 %v883
        %v913 = vunpack.c.h.b16 %v883
        %v914 = vunpack.c.l.b16 %v884
        %v915 = vunpack.c.h.b16 %v884
        %v916 = vunpack.c.l.b16 %v885
        %v917 = vunpack.c.h.b16 %v885
        %v918 = vunpack.c.l.b16 %v886
        %v919 = vunpack.c.h.b16 %v886
        %v920 = vunpack.c.l.b16 %v887
        %v921 = vunpack.c.h.b16 %v887
        %v922 = vunpack.c.l.b16 %v888
        %v923 = vunpack.c.h.b16 %v888
        %v924 = vunpack.c.l.b16 %v889
        %v925 = vunpack.c.h.b16 %v889
        %v926 = vunpack.c.l.b16 %v890
        %v927 = vunpack.c.h.b16 %v890
        %v928 = vunpack.c.l.b16 %v891
        %v929 = vunpack.c.h.b16 %v891
        %v930 = vunpack.c.l.b16 %v892
        %v931 = vunpack.c.h.b16 %v892
        %v932 = vpack.c.b16 %v908, %v906
        %v933 = vpack.c.b16 %v909, %v907
        %v934 = vpack.c.b16 %v912, %v910
        %v935 = vpack.c.b16 %v913, %v911
        %v936 = vpack.c.b16 %v916, %v914
        %v937 = vpack.c.b16 %v917, %v915
        %v938 = vpack.c.b16 %v920, %v918
        %v939 = vpack.c.b16 %v921, %v919
        %v940 = vpack.c.b16 %v924, %v922
        %v941 = vpack.c.b16 %v925, %v923
        %v942 = vpack.c.b16 %v928, %v926
        %v943 = vpack.c.b16 %v929, %v927
        %v944 = vpack.c.b16 %v930, %v930
        %v945 = vpack.c.b16 %v931, %v931
        %960 = vmatprep.subr.bf16.mxu0 0
        %961 = vmatpush1.bf16.msra.mxu0 %v590
        %962 = vmatprep.subr.bf16.mxu0 0
        %963 = vmatpush1.bf16.msra.mxu0 %v591
        %964 = vmatprep.subr.bf16.mxu0 0
        %965 = vmatpush1.bf16.msra.mxu0 %v592
        %966 = vmatprep.subr.bf16.mxu0 0
        %967 = vmatpush1.bf16.msra.mxu0 %v593
        %968 = vmatprep.subr.bf16.mxu0 0
        %969 = vmatpush1.bf16.msra.mxu0 %v594
        %970 = vmatprep.subr.bf16.mxu0 0
        %971 = vmatpush1.bf16.msra.mxu0 %v595
        %972 = vmatprep.subr.bf16.mxu0 0
        %973 = vmatpush1.bf16.msra.mxu0 %v596
        %974 = vmatprep.subr.bf16.mxu0 0
        %975 = vmatpush1.bf16.msra.mxu0 %v597
        %976 = vmatprep.subr.bf16.mxu0 0
        %977 = vmatpush1.bf16.msra.mxu0 %v598
        %978 = vmatprep.subr.bf16.mxu0 0
        %979 = vmatpush1.bf16.msra.mxu0 %v599
        %980 = vmatprep.subr.bf16.mxu0 0
        %981 = vmatpush1.bf16.msra.mxu0 %v600
        %982 = vmatprep.subr.bf16.mxu0 0
        %983 = vmatpush1.bf16.msra.mxu0 %v601
        %984 = vmatprep.subr.bf16.mxu0 0
        %985 = vmatpush1.bf16.msra.mxu0 %v602
        %986 = vmatprep.subr.bf16.mxu0 0
        %987 = vmatpush1.bf16.msra.mxu0 %v603
        %988 = vmatprep.subr.bf16.mxu0 0
        %989 = vmatpush1.bf16.msra.mxu0 %v604
        %990 = vmatprep.subr.bf16.mxu0 0
        %991 = vmatpush1.bf16.msra.mxu0 %v605
        %992 = vmatprep.mubr.bf16.mxu0 %v933
        %993 = vmatmul.mubr.bf16.gmra.mrb[0].mxu0 %v932
        %v994 = vpop.f32.mrb[0].mxu0
        %v995 = vadd.f32 0.0, %v994
        %v996 = vpop.f32.mrb[0].mxu0
        %v997 = vpop.f32.mrb[0].mxu0
        %v998 = vadd.f32 0.0, %v997
        %v999 = vpop.f32.mrb[0].mxu0
        %1000 = vmatprep.mubr.bf16.mxu0 %v935
        %1001 = vmatmul.mubr.bf16.gmra.mrb[0].mxu0 %v934
        %v1002 = vpop.f32.mrb[0].mxu0
        %v1003 = vadd.f32 0.0, %v1002
        %v1004 = vpop.f32.mrb[0].mxu0
        %v1005 = vpop.f32.mrb[0].mxu0
        %v1006 = vadd.f32 0.0, %v1005
        %v1007 = vpop.f32.mrb[0].mxu0
        %1008 = vmatprep.mubr.bf16.mxu0 %v937
        %1009 = vmatmul.mubr.bf16.gmra.mrb[0].mxu0 %v936
        %v1010 = vpop.f32.mrb[0].mxu0
        %v1011 = vadd.f32 0.0, %v1010
        %v1012 = vpop.f32.mrb[0].mxu0
        %v1013 = vpop.f32.mrb[0].mxu0
        %v1014 = vadd.f32 0.0, %v1013
        %v1015 = vpop.f32.mrb[0].mxu0
        %1016 = vmatprep.mubr.bf16.mxu0 %v939
        %1017 = vmatmul.mubr.bf16.gmra.mrb[0].mxu0 %v938
        %v1018 = vpop.f32.mrb[0].mxu0
        %v1019 = vadd.f32 0.0, %v1018
        %v1020 = vpop.f32.mrb[0].mxu0
        %v1021 = vpop.f32.mrb[0].mxu0
        %v1022 = vadd.f32 0.0, %v1021
        %v1023 = vpop.f32.mrb[0].mxu0
        %1024 = vmatprep.mubr.bf16.mxu0 %v941
        %1025 = vmatmul.mubr.bf16.gmra.mrb[0].mxu0 %v940
        %v1026 = vpop.f32.mrb[0].mxu0
        %v1027 = vadd.f32 0.0, %v1026
        %v1028 = vpop.f32.mrb[0].mxu0
        %v1029 = vpop.f32.mrb[0].mxu0
        %v1030 = vadd.f32 0.0, %v1029
        %v1031 = vpop.f32.mrb[0].mxu0
        %1032 = vmatprep.mubr.bf16.mxu0 %v943
        %1033 = vmatmul.mubr.bf16.gmra.mrb[0].mxu0 %v942
        %v1034 = vpop.f32.mrb[0].mxu0
        %v1035 = vadd.f32 0.0, %v1034
        %v1036 = vpop.f32.mrb[0].mxu0
        %v1037 = vpop.f32.mrb[0].mxu0
        %v1038 = vadd.f32 0.0, %v1037
        %v1039 = vpop.f32.mrb[0].mxu0
        %1040 = vmatprep.mubr.bf16.mxu0 %v945
        %1041 = vmatmul.mubr.bf16.gmra.mrb[0].mxu0 %v944
        %v1042 = vpop.f32.mrb[0].mxu0
        %v1043 = vadd.f32 0.0, %v1042
        %v1044 = vpop.f32.mrb[0].mxu0
        %v1045 = vpop.f32.mrb[0].mxu0
        %v1046 = vpop.f32.mrb[0].mxu0
        %1047 = vdwg.mxu0
        %s1048 = scalar_lea.vmem %s385, 312 [#allocation2]
        %v1049 = vld [vmem:[%s1048] sm:$0xff]
        %v1050 = vld [vmem:[%s1048 + $0x8] sm:$0xff]
        %v1051 = vld [vmem:[%s1048 + $0x10] sm:$0xff]
        %v1052 = vld [vmem:[%s1048 + $0x18] sm:$0xff]
        %v1053 = vld [vmem:[%s1048 + $0x20] sm:$0xff]
        %v1054 = vld [vmem:[%s1048 + $0x28] sm:$0xff]
        %v1055 = vld [vmem:[%s1048 + $0x30] sm:$0xff]
        %v1056 = vld [vmem:[%s1048 + $0x38] sm:$0xff]
        %v1057 = vld [vmem:[%s1048 + $0x40] sm:$0xff]
        %v1058 = vld [vmem:[%s1048 + $0x48] sm:$0xff]
        %v1059 = vld [vmem:[%s1048 + $0x50] sm:$0xff]
        %v1060 = vld [vmem:[%s1048 + $0x58] sm:$0xff]
        %v1061 = vld [vmem:[%s1048 + $0x60] sm:$0xff]
        %v1075 = vunpack.c.l.b16 %v1049
        %v1076 = vunpack.c.h.b16 %v1049
        %v1077 = vunpack.c.l.b16 %v1050
        %v1078 = vunpack.c.h.b16 %v1050
        %v1079 = vunpack.c.l.b16 %v1051
        %v1080 = vunpack.c.h.b16 %v1051
        %v1081 = vunpack.c.l.b16 %v1052
        %v1082 = vunpack.c.h.b16 %v1052
        %v1083 = vunpack.c.l.b16 %v1053
        %v1084 = vunpack.c.h.b16 %v1053
        %v1085 = vunpack.c.l.b16 %v1054
        %v1086 = vunpack.c.h.b16 %v1054
        %v1087 = vunpack.c.l.b16 %v1055
        %v1088 = vunpack.c.h.b16 %v1055
        %v1089 = vunpack.c.l.b16 %v1056
        %v1090 = vunpack.c.h.b16 %v1056
        %v1091 = vunpack.c.l.b16 %v1057
        %v1092 = vunpack.c.h.b16 %v1057
        %v1093 = vunpack.c.l.b16 %v1058
        %v1094 = vunpack.c.h.b16 %v1058
        %v1095 = vunpack.c.l.b16 %v1059
        %v1096 = vunpack.c.h.b16 %v1059
        %v1097 = vunpack.c.l.b16 %v1060
        %v1098 = vunpack.c.h.b16 %v1060
        %v1099 = vunpack.c.l.b16 %v1061
        %v1100 = vunpack.c.h.b16 %v1061
        %v1101 = vpack.c.b16 %v1077, %v1075
        %v1102 = vpack.c.b16 %v1078, %v1076
        %v1103 = vpack.c.b16 %v1081, %v1079
        %v1104 = vpack.c.b16 %v1082, %v1080
        %v1105 = vpack.c.b16 %v1085, %v1083
        %v1106 = vpack.c.b16 %v1086, %v1084
        %v1107 = vpack.c.b16 %v1089, %v1087
        %v1108 = vpack.c.b16 %v1090, %v1088
        %v1109 = vpack.c.b16 %v1093, %v1091
        %v1110 = vpack.c.b16 %v1094, %v1092
        %v1111 = vpack.c.b16 %v1097, %v1095
        %v1112 = vpack.c.b16 %v1098, %v1096
        %v1113 = vpack.c.b16 %v1099, %v1099
        %v1114 = vpack.c.b16 %v1100, %v1100
        %1129 = vmatprep.subr.bf16.mxu0 0
        %1130 = vmatpush1.bf16.msra.mxu0 %v590
        %1131 = vmatprep.subr.bf16.mxu0 0
        %1132 = vmatpush1.bf16.msra.mxu0 %v591
        %1133 = vmatprep.subr.bf16.mxu0 0
        %1134 = vmatpush1.bf16.msra.mxu0 %v592
        %1135 = vmatprep.subr.bf16.mxu0 0
        %1136 = vmatpush1.bf16.msra.mxu0 %v593
        %1137 = vmatprep.subr.bf16.mxu0 0
        %1138 = vmatpush1.bf16.msra.mxu0 %v594
        %1139 = vmatprep.subr.bf16.mxu0 0
        %1140 = vmatpush1.bf16.msra.mxu0 %v595
        %1141 = vmatprep.subr.bf16.mxu0 0
        %1142 = vmatpush1.bf16.msra.mxu0 %v596
        %1143 = vmatprep.subr.bf16.mxu0 0
        %1144 = vmatpush1.bf16.msra.mxu0 %v597
        %1145 = vmatprep.subr.bf16.mxu0 0
        %1146 = vmatpush1.bf16.msra.mxu0 %v598
        %1147 = vmatprep.subr.bf16.mxu0 0
        %1148 = vmatpush1.bf16.msra.mxu0 %v599
        %1149 = vmatprep.subr.bf16.mxu0 0
        %1150 = vmatpush1.bf16.msra.mxu0 %v600
        %1151 = vmatprep.subr.bf16.mxu0 0
        %1152 = vmatpush1.bf16.msra.mxu0 %v601
        %1153 = vmatprep.subr.bf16.mxu0 0
        %1154 = vmatpush1.bf16.msra.mxu0 %v602
        %1155 = vmatprep.subr.bf16.mxu0 0
        %1156 = vmatpush1.bf16.msra.mxu0 %v603
        %1157 = vmatprep.subr.bf16.mxu0 0
        %1158 = vmatpush1.bf16.msra.mxu0 %v604
        %1159 = vmatprep.subr.bf16.mxu0 0
        %1160 = vmatpush1.bf16.msra.mxu0 %v605
        %1161 = vmatprep.mubr.bf16.mxu0 %v1102
        %1162 = vmatmul.mubr.bf16.gmra.mrb[0].mxu0 %v1101
        %v1163 = vpop.f32.mrb[0].mxu0
        %v1164 = vadd.f32 0.0, %v1163
        %v1165 = vpop.f32.mrb[0].mxu0
        %v1166 = vpop.f32.mrb[0].mxu0
        %v1167 = vadd.f32 0.0, %v1166
        %v1168 = vpop.f32.mrb[0].mxu0
        %1169 = vmatprep.mubr.bf16.mxu0 %v1104
        %1170 = vmatmul.mubr.bf16.gmra.mrb[0].mxu0 %v1103
        %v1171 = vpop.f32.mrb[0].mxu0
        %v1172 = vadd.f32 0.0, %v1171
        %v1173 = vpop.f32.mrb[0].mxu0
        %v1174 = vpop.f32.mrb[0].mxu0
        %v1175 = vadd.f32 0.0, %v1174
        %v1176 = vpop.f32.mrb[0].mxu0
        %1177 = vmatprep.mubr.bf16.mxu0 %v1106
        %1178 = vmatmul.mubr.bf16.gmra.mrb[0].mxu0 %v1105
        %v1179 = vpop.f32.mrb[0].mxu0
        %v1180 = vadd.f32 0.0, %v1179
        %v1181 = vpop.f32.mrb[0].mxu0
        %v1182 = vpop.f32.mrb[0].mxu0
        %v1183 = vadd.f32 0.0, %v1182
        %v1184 = vpop.f32.mrb[0].mxu0
        %1185 = vmatprep.mubr.bf16.mxu0 %v1108
        %1186 = vmatmul.mubr.bf16.gmra.mrb[0].mxu0 %v1107
        %v1187 = vpop.f32.mrb[0].mxu0
        %v1188 = vadd.f32 0.0, %v1187
        %v1189 = vpop.f32.mrb[0].mxu0
        %v1190 = vpop.f32.mrb[0].mxu0
        %v1191 = vadd.f32 0.0, %v1190
        %v1192 = vpop.f32.mrb[0].mxu0
        %1193 = vmatprep.mubr.bf16.mxu0 %v1110
        %1194 = vmatmul.mubr.bf16.gmra.mrb[0].mxu0 %v1109
        %v1195 = vpop.f32.mrb[0].mxu0
        %v1196 = vadd.f32 0.0, %v1195
        %v1197 = vpop.f32.mrb[0].mxu0
        %v1198 = vpop.f32.mrb[0].mxu0
        %v1199 = vadd.f32 0.0, %v1198
        %v1200 = vpop.f32.mrb[0].mxu0
        %1201 = vmatprep.mubr.bf16.mxu0 %v1112
        %1202 = vmatmul.mubr.bf16.gmra.mrb[0].mxu0 %v1111
        %v1203 = vpop.f32.mrb[0].mxu0
        %v1204 = vadd.f32 0.0, %v1203
        %v1205 = vpop.f32.mrb[0].mxu0
        %v1206 = vpop.f32.mrb[0].mxu0
        %v1207 = vadd.f32 0.0, %v1206
        %v1208 = vpop.f32.mrb[0].mxu0
        %1209 = vmatprep.mubr.bf16.mxu0 %v1114
        %1210 = vmatmul.mubr.bf16.gmra.mrb[0].mxu0 %v1113
        %v1211 = vpop.f32.mrb[0].mxu0
        %v1212 = vadd.f32 0.0, %v1211
        %v1213 = vpop.f32.mrb[0].mxu0
        %v1214 = vpop.f32.mrb[0].mxu0
        %v1215 = vpop.f32.mrb[0].mxu0
        %1216 = vdwg.mxu0
        %v1217 = vmax.f32 %v657, %v826
        %v1218 = vmax.f32 %v660, %v829
        %v1219 = vmax.f32 %v665, %v834
        %v1220 = vmax.f32 %v668, %v837
        %v1221 = vmax.f32 %v673, %v842
        %v1222 = vmax.f32 %v676, %v845
        %v1223 = vmax.f32 %v681, %v850
        %v1224 = vmax.f32 %v684, %v853
        %v1225 = vmax.f32 %v689, %v858
        %v1226 = vmax.f32 %v692, %v861
        %v1227 = vmax.f32 %v697, %v866
        %v1228 = vmax.f32 %v700, %v869
        %v1229 = vmax.f32 %v705, %v874
        %v1230 = vmax.f32 %v995, %v1164
        %v1231 = vmax.f32 %v998, %v1167
        %v1232 = vmax.f32 %v1003, %v1172
        %v1233 = vmax.f32 %v1006, %v1175
        %v1234 = vmax.f32 %v1011, %v1180
        %v1235 = vmax.f32 %v1014, %v1183
        %v1236 = vmax.f32 %v1019, %v1188
        %v1237 = vmax.f32 %v1022, %v1191
        %v1238 = vmax.f32 %v1027, %v1196
        %v1239 = vmax.f32 %v1030, %v1199
        %v1240 = vmax.f32 %v1035, %v1204
        %v1241 = vmax.f32 %v1038, %v1207
        %v1242 = vmax.f32 %v1043, %v1212
        %v1243 = vmax.f32 %v1217, %v1230
        %v1244 = vmax.f32 %v1218, %v1231
        %v1245 = vmax.f32 %v1219, %v1232
        %v1246 = vmax.f32 %v1220, %v1233
        %v1247 = vmax.f32 %v1221, %v1234
        %v1248 = vmax.f32 %v1222, %v1235
        %v1249 = vmax.f32 %v1223, %v1236
        %v1250 = vmax.f32 %v1224, %v1237
        %v1251 = vmax.f32 %v1225, %v1238
        %v1252 = vmax.f32 %v1226, %v1239
        %v1253 = vmax.f32 %v1227, %v1240
        %v1254 = vmax.f32 %v1228, %v1241
        %v1255 = vmax.f32 %v1229, %v1242
        %v1256 = vld [vmem:[%s2] sm:$0x1]
        %v1258 = vlaneseq
        %v1259 = vshrl.u32 %v1258, 7
        %v1260 = vsub.s32 0, %v1259
        %v1261 = vrot.slane %v1256, %v1260
        %v1263 = vadd.f32 %v1243, %v1261
        %v1264 = vadd.f32 %v1244, %v1261
        %v1265 = vadd.f32 %v1245, %v1261
        %v1266 = vadd.f32 %v1246, %v1261
        %v1267 = vadd.f32 %v1247, %v1261
        %v1268 = vadd.f32 %v1248, %v1261
        %v1269 = vadd.f32 %v1249, %v1261
        %v1270 = vadd.f32 %v1250, %v1261
        %v1271 = vadd.f32 %v1251, %v1261
        %v1272 = vadd.f32 %v1252, %v1261
        %v1273 = vadd.f32 %v1253, %v1261
        %v1274 = vadd.f32 %v1254, %v1261
        %v1275 = vadd.f32 %v1255, %v1261
        %v1276 = vmax.f32 %v1263, 0.0
        %v1277 = vmax.f32 %v1264, 0.0
        %v1278 = vmax.f32 %v1265, 0.0
        %v1279 = vmax.f32 %v1266, 0.0
        %v1280 = vmax.f32 %v1267, 0.0
        %v1281 = vmax.f32 %v1268, 0.0
        %v1282 = vmax.f32 %v1269, 0.0
        %v1283 = vmax.f32 %v1270, 0.0
        %v1284 = vmax.f32 %v1271, 0.0
        %v1285 = vmax.f32 %v1272, 0.0
        %v1286 = vmax.f32 %v1273, 0.0
        %v1287 = vmax.f32 %v1274, 0.0
        %v1288 = vmax.f32 %v1275, 0.0
        %v1289 = vpack.c.bf16 %v1277, %v1276
        %v1290 = vpack.c.bf16 %v1279, %v1278
        %v1291 = vpack.c.bf16 %v1281, %v1280
        %v1292 = vpack.c.bf16 %v1283, %v1282
        %v1293 = vpack.c.bf16 %v1285, %v1284
        %v1294 = vpack.c.bf16 %v1287, %v1286
        %v1295 = vpack.c.bf16 %v1288, %v1288
        %v1303 = vunpack.c.l.b16 %v1289
        %v1304 = vunpack.c.h.b16 %v1289
        %v1305 = vunpack.c.l.b16 %v1290
        %v1306 = vunpack.c.h.b16 %v1290
        %v1307 = vunpack.c.l.b16 %v1291
        %v1308 = vunpack.c.h.b16 %v1291
        %v1309 = vunpack.c.l.b16 %v1292
        %v1310 = vunpack.c.h.b16 %v1292
        %v1311 = vunpack.c.l.b16 %v1293
        %v1312 = vunpack.c.h.b16 %v1293
        %v1313 = vunpack.c.l.b16 %v1294
        %v1314 = vunpack.c.h.b16 %v1294
        %v1315 = vunpack.c.l.b16 %v1295
        %v1316 = vpack.c.b16 %v1303, %v1303
        %v1317 = vpack.c.b16 %v1304, %v1304
        %v1318 = vpack.c.b16 %v1305, %v1305
        %v1319 = vpack.c.b16 %v1306, %v1306
        %v1320 = vpack.c.b16 %v1307, %v1307
        %v1321 = vpack.c.b16 %v1308, %v1308
        %v1322 = vpack.c.b16 %v1309, %v1309
        %v1323 = vpack.c.b16 %v1310, %v1310
        %v1324 = vpack.c.b16 %v1311, %v1311
        %v1325 = vpack.c.b16 %v1312, %v1312
        %v1326 = vpack.c.b16 %v1313, %v1313
        %v1327 = vpack.c.b16 %v1314, %v1314
        %v1328 = vpack.c.b16 %v1315, %v1315
        %1342 = vst [vmem:[%s411] sm:$0xf] %v1316
        %1343 = vst [vmem:[%s411 + $0x4] sm:$0xf] %v1317
        %1344 = vst [vmem:[%s411 + $0x8] sm:$0xf] %v1318
        %1345 = vst [vmem:[%s411 + $0xc] sm:$0xf] %v1319
        %1346 = vst [vmem:[%s411 + $0x10] sm:$0xf] %v1320
        %1347 = vst [vmem:[%s411 + $0x14] sm:$0xf] %v1321
        %1348 = vst [vmem:[%s411 + $0x18] sm:$0xf] %v1322
        %1349 = vst [vmem:[%s411 + $0x1c] sm:$0xf] %v1323
        %1350 = vst [vmem:[%s411 + $0x20] sm:$0xf] %v1324
        %1351 = vst [vmem:[%s411 + $0x24] sm:$0xf] %v1325
        %1352 = vst [vmem:[%s411 + $0x28] sm:$0xf] %v1326
        %1353 = vst [vmem:[%s411 + $0x2c] sm:$0xf] %v1327
        %1354 = vst [vmem:[%s411 + $0x30] sm:$0xf] %v1328
        %s1355 = smul.u32 13, %s14
        %p1356 = scmp.lt.s32.totalorder %s1355, 25
        %s1357 = scalar_select %p1356, %s1355, 25
        %s1358 = smul.addr %s1357, 4
        %s1359 = scalar_lea.vmem %s3, %s1358
        // Predicated region
        $region71: #{net_forward.4} parent=65 // pred_check
          %p1360 = pneg %p100
        $region72: #{net_forward.4} parent=65 // pred_check_branch
          %1362 = sbr.rel (%p1360) target = $region74
        $region73: #{net_forward.4} parent=65 // pred_region
          %s1363 = smul.u32 13, %s14
        $region74: #{net_forward.4} parent=65 // pred_fallthru
          _
      $region66: #{net_forward.4} parent=5 // pred_fallthru
        _
      %p1364 = scmp.le.s32.totalorder 2, %s9
      // Predicated region
      $region75: #{net_forward.4} parent=5 // pred_check
        %p1365 = pneg %p1364
      $region76: #{net_forward.4} parent=5 // pred_check_branch
        %1367 = sbr.rel (%p1365) target = $region78
      $region77: #{net_forward.4} parent=5 // pred_region
        %s1368 = ssub.s32 %s9, 2
        // Predicated region
        $region79: #{net_forward.4} parent=77 // pred_check
          %p1369 = pneg %p106
        $region80: #{net_forward.4} parent=77 // pred_check_branch
          %1371 = sbr.rel (%p1369) target = $region82
        $region81: #{net_forward.4} parent=77 // pred_region
          %s1372 = smul.u32 13, %s15
          %p1373 = scmp.lt.s32.totalorder %s1372, 25
          %s1374 = scalar_select %p1373, %s1372, 25
          %s1375 = smul.addr %s1374, 4
          %s1376 = scalar_lea.vmem %s3, %s1375
        $region82: #{net_forward.4} parent=77 // pred_fallthru
          _
      $region78: #{net_forward.4} parent=5 // pred_fallthru
        _
    $region6: #{net_forward.4} parent=1 // loop_footer
      %s13 = sadd.s32 1, %s9
    $region7: #{net_forward.4} parent=1 // loop_footer_branch
      %8 = sbr.rel target = $region3
    $region8: #{net_forward.4} parent=1 // loop_exit
      _

// kernel: net_forward.5
$region0: #{net_forward.5}
  #allocation0 [shape = 'u32[]', space=smem, size = 0x4, offset = 0x4, fixed_abs, tag = 'smem constant byte address 0x4 - core index']
  #allocation1 [shape = 'u32[144,128]{1,0:T(1,128)}', space=vmem, size = 0x12000, scoped, tag = 'internal scratch']
  %s0 = inlined_call_operand.vmem [shape: bf16[8,3200], index: 0, kind: input, shape index: {}]
  %s1 = inlined_call_operand.vmem [shape: bf16[3200,128], index: 1, kind: input, shape index: {}]
  %s2 = inlined_call_operand.vmem [shape: f32[1,128], index: 2, kind: input, shape index: {}]
  %s3 = inlined_call_operand.vmem [shape: bf16[128,128], index: 3, kind: input, shape index: {}]
  %s4 = inlined_call_operand.vmem [shape: f32[1,128], index: 4, kind: input, shape index: {}]
  %s5 = inlined_call_operand.vmem [shape: bf16[128,128], index: 5, kind: input, shape index: {}]
  %s6 = inlined_call_operand.vmem [shape: f32[1,128], index: 6, kind: input, shape index: {}]
  %s7 = inlined_call_operand.hbm [shape: f32[8,128], index: 7, kind: output, shape index: {}]
  %s8 = sld [smem:[#allocation0]]
  $region38: #{net_forward.5} parent=0
    _
  %s10 = ssub.s32 1, %s8
  %s11 = scalar_select 0, %s10, %s8
  $region1: #{net_forward.5} parent=0
    #allocation2 [shape = 'u8[4096]{0}', space=vmem, size = 0x1000, scoped, tag = 'output window, operand 0, single buffered']
    #allocation3 [shape = 's32[1]{0}', space=sflag, size = 0x4, scoped, tag = 'scoped memory for net_forward.5']
    %12 = vsyncpa [#allocation3], 0
    // Predicated region
    $region2: #{net_forward.5} parent=1 // pred_check
      _
    $region3: #{net_forward.5} parent=1 // pred_check_branch
      %14 = sbr.rel (0) target = $region5
    $region4: #{net_forward.5} parent=1 // pred_region
      _
    $region5: #{net_forward.5} parent=1 // pred_fallthru
      _
    // Predicated region
    $region6: #{net_forward.5} parent=1 // pred_check
      _
    $region7: #{net_forward.5} parent=1 // pred_check_branch
      %16 = sbr.rel (0) target = $region9
    $region8: #{net_forward.5} parent=1 // pred_region
      _
    $region9: #{net_forward.5} parent=1 // pred_fallthru
      _
    // Predicated region
    $region10: #{net_forward.5} parent=1 // pred_check
      _
    $region11: #{net_forward.5} parent=1 // pred_check_branch
      %18 = sbr.rel (0) target = $region13
    $region12: #{net_forward.5} parent=1 // pred_region
      _
    $region13: #{net_forward.5} parent=1 // pred_fallthru
      _
    // Predicated region
    $region14: #{net_forward.5} parent=1 // pred_check
      _
    $region15: #{net_forward.5} parent=1 // pred_check_branch
      %20 = sbr.rel (0) target = $region17
    $region16: #{net_forward.5} parent=1 // pred_region
      _
    $region17: #{net_forward.5} parent=1 // pred_fallthru
      _
    // Predicated region
    $region18: #{net_forward.5} parent=1 // pred_check
      _
    $region19: #{net_forward.5} parent=1 // pred_check_branch
      %22 = sbr.rel (0) target = $region21
    $region20: #{net_forward.5} parent=1 // pred_region
      _
    $region21: #{net_forward.5} parent=1 // pred_fallthru
      _
    // Predicated region
    $region22: #{net_forward.5} parent=1 // pred_check
      _
    $region23: #{net_forward.5} parent=1 // pred_check_branch
      %24 = sbr.rel (0) target = $region25
    $region24: #{net_forward.5} parent=1 // pred_region
      _
    $region25: #{net_forward.5} parent=1 // pred_fallthru
      _
    // Predicated region
    $region26: #{net_forward.5} parent=1 // pred_check
      _
    $region27: #{net_forward.5} parent=1 // pred_check_branch
      %26 = sbr.rel (0) target = $region29
    $region28: #{net_forward.5} parent=1 // pred_region
      _
    $region29: #{net_forward.5} parent=1 // pred_fallthru
      _
    %v28 = vld [vmem:[%s0] sm:$0xff]
    %v29 = vld [vmem:[%s0 + $0x8] sm:$0xff]
    %v30 = vld [vmem:[%s0 + $0x10] sm:$0xff]
    %v31 = vld [vmem:[%s0 + $0x18] sm:$0xff]
    %v32 = vld [vmem:[%s0 + $0x20] sm:$0xff]
    %v33 = vld [vmem:[%s0 + $0x28] sm:$0xff]
    %v34 = vld [vmem:[%s0 + $0x30] sm:$0xff]
    %v35 = vld [vmem:[%s0 + $0x38] sm:$0xff]
    %v36 = vld [vmem:[%s0 + $0x40] sm:$0xff]
    %v37 = vld [vmem:[%s0 + $0x48] sm:$0xff]
    %v38 = vld [vmem:[%s0 + $0x50] sm:$0xff]
    %v39 = vld [vmem:[%s0 + $0x58] sm:$0xff]
    %v40 = vld [vmem:[%s0 + $0x60] sm:$0xf]
    %v41 = vld [vmem:[%s1] sm:$0xf]
    %v42 = vld [vmem:[%s1 + $0x4] sm:$0xf]
    %v43 = vld [vmem:[%s1 + $0x8] sm:$0xf]
    %v44 = vld [vmem:[%s1 + $0xc] sm:$0xf]
    %v45 = vld [vmem:[%s1 + $0x10] sm:$0xf]
    %v46 = vld [vmem:[%s1 + $0x14] sm:$0xf]
    %v47 = vld [vmem:[%s1 + $0x18] sm:$0xf]
    %v48 = vld [vmem:[%s1 + $0x1c] sm:$0xf]
    %v49 = vld [vmem:[%s1 + $0x20] sm:$0xf]
    %v50 = vld [vmem:[%s1 + $0x24] sm:$0xf]
    %v51 = vld [vmem:[%s1 + $0x28] sm:$0xf]
    %v52 = vld [vmem:[%s1 + $0x2c] sm:$0xf]
    %v53 = vld [vmem:[%s1 + $0x30] sm:$0xf]
    %v54 = vld [vmem:[%s1 + $0x34] sm:$0xf]
    %v55 = vld [vmem:[%s1 + $0x38] sm:$0xf]
    %v56 = vld [vmem:[%s1 + $0x3c] sm:$0xf]
    %v57 = vld [vmem:[%s1 + $0x40] sm:$0xf]
    %v58 = vld [vmem:[%s1 + $0x44] sm:$0xf]
    %v59 = vld [vmem:[%s1 + $0x48] sm:$0xf]
    %v60 = vld [vmem:[%s1 + $0x4c] sm:$0xf]
    %v61 = vld [vmem:[%s1 + $0x50] sm:$0xf]
    %v62 = vld [vmem:[%s1 + $0x54] sm:$0xf]
    %v63 = vld [vmem:[%s1 + $0x58] sm:$0xf]
    %v64 = vld [vmem:[%s1 + $0x5c] sm:$0xf]
    %v65 = vld [vmem:[%s1 + $0x60] sm:$0xf]
    %v66 = vld [vmem:[%s1 + $0x64] sm:$0xf]
    %v67 = vld [vmem:[%s1 + $0x68] sm:$0xf]
    %v68 = vld [vmem:[%s1 + $0x6c] sm:$0xf]
    %v69 = vld [vmem:[%s1 + $0x70] sm:$0xf]
    %v70 = vld [vmem:[%s1 + $0x74] sm:$0xf]
    %v71 = vld [vmem:[%s1 + $0x78] sm:$0xf]
    %v72 = vld [vmem:[%s1 + $0x7c] sm:$0xf]
    %v73 = vld [vmem:[%s1 + $0x80] sm:$0xf]
    %v74 = vld [vmem:[%s1 + $0x84] sm:$0xf]
    %v75 = vld [vmem:[%s1 + $0x88] sm:$0xf]
    %v76 = vld [vmem:[%s1 + $0x8c] sm:$0xf]
    %v77 = vld [vmem:[%s1 + $0x90] sm:$0xf]
    %v78 = vld [vmem:[%s1 + $0x94] sm:$0xf]
    %v79 = vld [vmem:[%s1 + $0x98] sm:$0xf]
    %v80 = vld [vmem:[%s1 + $0x9c] sm:$0xf]
    %v81 = vld [vmem:[%s1 + $0xa0] sm:$0xf]
    %v82 = vld [vmem:[%s1 + $0xa4] sm:$0xf]
    %v83 = vld [vmem:[%s1 + $0xa8] sm:$0xf]
    %v84 = vld [vmem:[%s1 + $0xac] sm:$0xf]
    %v85 = vld [vmem:[%s1 + $0xb0] sm:$0xf]
    %v86 = vld [vmem:[%s1 + $0xb4] sm:$0xf]
    %v87 = vld [vmem:[%s1 + $0xb8] sm:$0xf]
    %v88 = vld [vmem:[%s1 + $0xbc] sm:$0xf]
    %v89 = vld [vmem:[%s1 + $0xc0] sm:$0xf]
    %v90 = vld [vmem:[%s1 + $0xc4] sm:$0xf]
    %v91 = vld [vmem:[%s1 + $0xc8] sm:$0xf]
    %v92 = vld [vmem:[%s1 + $0xcc] sm:$0xf]
    %v93 = vld [vmem:[%s1 + $0xd0] sm:$0xf]
    %v94 = vld [vmem:[%s1 + $0xd4] sm:$0xf]
    %v95 = vld [vmem:[%s1 + $0xd8] sm:$0xf]
    %v96 = vld [vmem:[%s1 + $0xdc] sm:$0xf]
    %v97 = vld [vmem:[%s1 + $0xe0] sm:$0xf]
    %v98 = vld [vmem:[%s1 + $0xe4] sm:$0xf]
    %v99 = vld [vmem:[%s1 + $0xe8] sm:$0xf]
    %v100 = vld [vmem:[%s1 + $0xec] sm:$0xf]
    %v101 = vld [vmem:[%s1 + $0xf0] sm:$0xf]
    %v102 = vld [vmem:[%s1 + $0xf4] sm:$0xf]
    %v103 = vld [vmem:[%s1 + $0xf8] sm:$0xf]
    %v104 = vld [vmem:[%s1 + $0xfc] sm:$0xf]
    %v105 = vld [vmem:[%s1 + $0x100] sm:$0xf]
    %v106 = vld [vmem:[%s1 + $0x104] sm:$0xf]
    %v107 = vld [vmem:[%s1 + $0x108] sm:$0xf]
    %v108 = vld [vmem:[%s1 + $0x10c] sm:$0xf]
    %v109 = vld [vmem:[%s1 + $0x110] sm:$0xf]
    %v110 = vld [vmem:[%s1 + $0x114] sm:$0xf]
    %v111 = vld [vmem:[%s1 + $0x118] sm:$0xf]
    %v112 = vld [vmem:[%s1 + $0x11c] sm:$0xf]
    %v113 = vld [vmem:[%s1 + $0x120] sm:$0xf]
    %v114 = vld [vmem:[%s1 + $0x124] sm:$0xf]
    %v115 = vld [vmem:[%s1 + $0x128] sm:$0xf]
    %v116 = vld [vmem:[%s1 + $0x12c] sm:$0xf]
    %v117 = vld [vmem:[%s1 + $0x130] sm:$0xf]
    %v118 = vld [vmem:[%s1 + $0x134] sm:$0xf]
    %v119 = vld [vmem:[%s1 + $0x138] sm:$0xf]
    %v120 = vld [vmem:[%s1 + $0x13c] sm:$0xf]
    %v121 = vld [vmem:[%s1 + $0x140] sm:$0xf]
    %v122 = vld [vmem:[%s1 + $0x144] sm:$0xf]
    %v123 = vld [vmem:[%s1 + $0x148] sm:$0xf]
    %v124 = vld [vmem:[%s1 + $0x14c] sm:$0xf]
    %v125 = vld [vmem:[%s1 + $0x150] sm:$0xf]
    %v126 = vld [vmem:[%s1 + $0x154] sm:$0xf]
    %v127 = vld [vmem:[%s1 + $0x158] sm:$0xf]
    %v128 = vld [vmem:[%s1 + $0x15c] sm:$0xf]
    %v129 = vld [vmem:[%s1 + $0x160] sm:$0xf]
    %v130 = vld [vmem:[%s1 + $0x164] sm:$0xf]
    %v131 = vld [vmem:[%s1 + $0x168] sm:$0xf]
    %v132 = vld [vmem:[%s1 + $0x16c] sm:$0xf]
    %v133 = vld [vmem:[%s1 + $0x170] sm:$0xf]
    %v134 = vld [vmem:[%s1 + $0x174] sm:$0xf]
    %v135 = vld [vmem:[%s1 + $0x178] sm:$0xf]
    %v136 = vld [vmem:[%s1 + $0x17c] sm:$0xf]
    %v137 = vld [vmem:[%s1 + $0x180] sm:$0xf]
    %v138 = vld [vmem:[%s1 + $0x184] sm:$0xf]
    %v139 = vld [vmem:[%s1 + $0x188] sm:$0xf]
    %v140 = vld [vmem:[%s1 + $0x18c] sm:$0xf]
    %v141 = vld [vmem:[%s1 + $0x190] sm:$0xf]
    %v142 = vld [vmem:[%s1 + $0x194] sm:$0xf]
    %v143 = vld [vmem:[%s1 + $0x198] sm:$0xf]
    %v144 = vld [vmem:[%s1 + $0x19c] sm:$0xf]
    %v145 = vld [vmem:[%s1 + $0x1a0] sm:$0xf]
    %v146 = vld [vmem:[%s1 + $0x1a4] sm:$0xf]
    %v147 = vld [vmem:[%s1 + $0x1a8] sm:$0xf]
    %v148 = vld [vmem:[%s1 + $0x1ac] sm:$0xf]
    %v149 = vld [vmem:[%s1 + $0x1b0] sm:$0xf]
    %v150 = vld [vmem:[%s1 + $0x1b4] sm:$0xf]
    %v151 = vld [vmem:[%s1 + $0x1b8] sm:$0xf]
    %v152 = vld [vmem:[%s1 + $0x1bc] sm:$0xf]
    %v153 = vld [vmem:[%s1 + $0x1c0] sm:$0xf]
    %v154 = vld [vmem:[%s1 + $0x1c4] sm:$0xf]
    %v155 = vld [vmem:[%s1 + $0x1c8] sm:$0xf]
    %v156 = vld [vmem:[%s1 + $0x1cc] sm:$0xf]
    %v157 = vld [vmem:[%s1 + $0x1d0] sm:$0xf]
    %v158 = vld [vmem:[%s1 + $0x1d4] sm:$0xf]
    %v159 = vld [vmem:[%s1 + $0x1d8] sm:$0xf]
    %v160 = vld [vmem:[%s1 + $0x1dc] sm:$0xf]
    %v161 = vld [vmem:[%s1 + $0x1e0] sm:$0xf]
    %v162 = vld [vmem:[%s1 + $0x1e4] sm:$0xf]
    %v163 = vld [vmem:[%s1 + $0x1e8] sm:$0xf]
    %v164 = vld [vmem:[%s1 + $0x1ec] sm:$0xf]
    %v165 = vld [vmem:[%s1 + $0x1f0] sm:$0xf]
    %v166 = vld [vmem:[%s1 + $0x1f4] sm:$0xf]
    %v167 = vld [vmem:[%s1 + $0x1f8] sm:$0xf]
    %v168 = vld [vmem:[%s1 + $0x1fc] sm:$0xf]
    %v169 = vld [vmem:[%s1 + $0x200] sm:$0xf]
    %v170 = vld [vmem:[%s1 + $0x204] sm:$0xf]
    %v171 = vld [vmem:[%s1 + $0x208] sm:$0xf]
    %v172 = vld [vmem:[%s1 + $0x20c] sm:$0xf]
    %v173 = vld [vmem:[%s1 + $0x210] sm:$0xf]
    %v174 = vld [vmem:[%s1 + $0x214] sm:$0xf]
    %v175 = vld [vmem:[%s1 + $0x218] sm:$0xf]
    %v176 = vld [vmem:[%s1 + $0x21c] sm:$0xf]
    %v177 = vld [vmem:[%s1 + $0x220] sm:$0xf]
    %v178 = vld [vmem:[%s1 + $0x224] sm:$0xf]
    %v179 = vld [vmem:[%s1 + $0x228] sm:$0xf]
    %v180 = vld [vmem:[%s1 + $0x22c] sm:$0xf]
    %v181 = vld [vmem:[%s1 + $0x230] sm:$0xf]
    %v182 = vld [vmem:[%s1 + $0x234] sm:$0xf]
    %v183 = vld [vmem:[%s1 + $0x238] sm:$0xf]
    %v184 = vld [vmem:[%s1 + $0x23c] sm:$0xf]
    %v185 = vld [vmem:[%s1 + $0x240] sm:$0xf]
    %v186 = vld [vmem:[%s1 + $0x244] sm:$0xf]
    %v187 = vld [vmem:[%s1 + $0x248] sm:$0xf]
    %v188 = vld [vmem:[%s1 + $0x24c] sm:$0xf]
    %v189 = vld [vmem:[%s1 + $0x250] sm:$0xf]
    %v190 = vld [vmem:[%s1 + $0x254] sm:$0xf]
    %v191 = vld [vmem:[%s1 + $0x258] sm:$0xf]
    %v192 = vld [vmem:[%s1 + $0x25c] sm:$0xf]
    %v193 = vld [vmem:[%s1 + $0x260] sm:$0xf]
    %v194 = vld [vmem:[%s1 + $0x264] sm:$0xf]
    %v195 = vld [vmem:[%s1 + $0x268] sm:$0xf]
    %v196 = vld [vmem:[%s1 + $0x26c] sm:$0xf]
    %v197 = vld [vmem:[%s1 + $0x270] sm:$0xf]
    %v198 = vld [vmem:[%s1 + $0x274] sm:$0xf]
    %v199 = vld [vmem:[%s1 + $0x278] sm:$0xf]
    %v200 = vld [vmem:[%s1 + $0x27c] sm:$0xf]
    %v201 = vld [vmem:[%s1 + $0x280] sm:$0xf]
    %v202 = vld [vmem:[%s1 + $0x284] sm:$0xf]
    %v203 = vld [vmem:[%s1 + $0x288] sm:$0xf]
    %v204 = vld [vmem:[%s1 + $0x28c] sm:$0xf]
    %v205 = vld [vmem:[%s1 + $0x290] sm:$0xf]
    %v206 = vld [vmem:[%s1 + $0x294] sm:$0xf]
    %v207 = vld [vmem:[%s1 + $0x298] sm:$0xf]
    %v208 = vld [vmem:[%s1 + $0x29c] sm:$0xf]
    %v209 = vld [vmem:[%s1 + $0x2a0] sm:$0xf]
    %v210 = vld [vmem:[%s1 + $0x2a4] sm:$0xf]
    %v211 = vld [vmem:[%s1 + $0x2a8] sm:$0xf]
    %v212 = vld [vmem:[%s1 + $0x2ac] sm:$0xf]
    %v213 = vld [vmem:[%s1 + $0x2b0] sm:$0xf]
    %v214 = vld [vmem:[%s1 + $0x2b4] sm:$0xf]
    %v215 = vld [vmem:[%s1 + $0x2b8] sm:$0xf]
    %v216 = vld [vmem:[%s1 + $0x2bc] sm:$0xf]
    %v217 = vld [vmem:[%s1 + $0x2c0] sm:$0xf]
    %v218 = vld [vmem:[%s1 + $0x2c4] sm:$0xf]
    %v219 = vld [vmem:[%s1 + $0x2c8] sm:$0xf]
    %v220 = vld [vmem:[%s1 + $0x2cc] sm:$0xf]
    %v221 = vld [vmem:[%s1 + $0x2d0] sm:$0xf]
    %v222 = vld [vmem:[%s1 + $0x2d4] sm:$0xf]
    %v223 = vld [vmem:[%s1 + $0x2d8] sm:$0xf]
    %v224 = vld [vmem:[%s1 + $0x2dc] sm:$0xf]
    %v225 = vld [vmem:[%s1 + $0x2e0] sm:$0xf]
    %v226 = vld [vmem:[%s1 + $0x2e4] sm:$0xf]
    %v227 = vld [vmem:[%s1 + $0x2e8] sm:$0xf]
    %v228 = vld [vmem:[%s1 + $0x2ec] sm:$0xf]
    %v229 = vld [vmem:[%s1 + $0x2f0] sm:$0xf]
    %v230 = vld [vmem:[%s1 + $0x2f4] sm:$0xf]
    %v231 = vld [vmem:[%s1 + $0x2f8] sm:$0xf]
    %v232 = vld [vmem:[%s1 + $0x2fc] sm:$0xf]
    %v233 = vld [vmem:[%s1 + $0x300] sm:$0xf]
    %v234 = vld [vmem:[%s1 + $0x304] sm:$0xf]
    %v235 = vld [vmem:[%s1 + $0x308] sm:$0xf]
    %v236 = vld [vmem:[%s1 + $0x30c] sm:$0xf]
    %v237 = vld [vmem:[%s1 + $0x310] sm:$0xf]
    %v238 = vld [vmem:[%s1 + $0x314] sm:$0xf]
    %v239 = vld [vmem:[%s1 + $0x318] sm:$0xf]
    %v240 = vld [vmem:[%s1 + $0x31c] sm:$0xf]
    %v241 = vld [vmem:[%s1 + $0x320] sm:$0xf]
    %v242 = vld [vmem:[%s1 + $0x324] sm:$0xf]
    %v243 = vld [vmem:[%s1 + $0x328] sm:$0xf]
    %v244 = vld [vmem:[%s1 + $0x32c] sm:$0xf]
    %v245 = vld [vmem:[%s1 + $0x330] sm:$0xf]
    %v246 = vld [vmem:[%s1 + $0x334] sm:$0xf]
    %v247 = vld [vmem:[%s1 + $0x338] sm:$0xf]
    %v248 = vld [vmem:[%s1 + $0x33c] sm:$0xf]
    %v249 = vld [vmem:[%s1 + $0x340] sm:$0xf]
    %v250 = vld [vmem:[%s1 + $0x344] sm:$0xf]
    %v251 = vld [vmem:[%s1 + $0x348] sm:$0xf]
    %v252 = vld [vmem:[%s1 + $0x34c] sm:$0xf]
    %v253 = vld [vmem:[%s1 + $0x350] sm:$0xf]
    %v254 = vld [vmem:[%s1 + $0x354] sm:$0xf]
    %v255 = vld [vmem:[%s1 + $0x358] sm:$0xf]
    %v256 = vld [vmem:[%s1 + $0x35c] sm:$0xf]
    %v257 = vld [vmem:[%s1 + $0x360] sm:$0xf]
    %v258 = vld [vmem:[%s1 + $0x364] sm:$0xf]
    %v259 = vld [vmem:[%s1 + $0x368] sm:$0xf]
    %v260 = vld [vmem:[%s1 + $0x36c] sm:$0xf]
    %v261 = vld [vmem:[%s1 + $0x370] sm:$0xf]
    %v262 = vld [vmem:[%s1 + $0x374] sm:$0xf]
    %v263 = vld [vmem:[%s1 + $0x378] sm:$0xf]
    %v264 = vld [vmem:[%s1 + $0x37c] sm:$0xf]
    %v265 = vld [vmem:[%s1 + $0x380] sm:$0xf]
    %v266 = vld [vmem:[%s1 + $0x384] sm:$0xf]
    %v267 = vld [vmem:[%s1 + $0x388] sm:$0xf]
    %v268 = vld [vmem:[%s1 + $0x38c] sm:$0xf]
    %v269 = vld [vmem:[%s1 + $0x390] sm:$0xf]
    %v270 = vld [vmem:[%s1 + $0x394] sm:$0xf]
    %v271 = vld [vmem:[%s1 + $0x398] sm:$0xf]
    %v272 = vld [vmem:[%s1 + $0x39c] sm:$0xf]
    %v273 = vld [vmem:[%s1 + $0x3a0] sm:$0xf]
    %v274 = vld [vmem:[%s1 + $0x3a4] sm:$0xf]
    %v275 = vld [vmem:[%s1 + $0x3a8] sm:$0xf]
    %v276 = vld [vmem:[%s1 + $0x3ac] sm:$0xf]
    %v277 = vld [vmem:[%s1 + $0x3b0] sm:$0xf]
    %v278 = vld [vmem:[%s1 + $0x3b4] sm:$0xf]
    %v279 = vld [vmem:[%s1 + $0x3b8] sm:$0xf]
    %v280 = vld [vmem:[%s1 + $0x3bc] sm:$0xf]
    %v281 = vld [vmem:[%s1 + $0x3c0] sm:$0xf]
    %v282 = vld [vmem:[%s1 + $0x3c4] sm:$0xf]
    %v283 = vld [vmem:[%s1 + $0x3c8] sm:$0xf]
    %v284 = vld [vmem:[%s1 + $0x3cc] sm:$0xf]
    %v285 = vld [vmem:[%s1 + $0x3d0] sm:$0xf]
    %v286 = vld [vmem:[%s1 + $0x3d4] sm:$0xf]
    %v287 = vld [vmem:[%s1 + $0x3d8] sm:$0xf]
    %v288 = vld [vmem:[%s1 + $0x3dc] sm:$0xf]
    %v289 = vld [vmem:[%s1 + $0x3e0] sm:$0xf]
    %v290 = vld [vmem:[%s1 + $0x3e4] sm:$0xf]
    %v291 = vld [vmem:[%s1 + $0x3e8] sm:$0xf]
    %v292 = vld [vmem:[%s1 + $0x3ec] sm:$0xf]
    %v293 = vld [vmem:[%s1 + $0x3f0] sm:$0xf]
    %v294 = vld [vmem:[%s1 + $0x3f4] sm:$0xf]
    %v295 = vld [vmem:[%s1 + $0x3f8] sm:$0xf]
    %v296 = vld [vmem:[%s1 + $0x3fc] sm:$0xf]
    %v297 = vld [vmem:[%s1 + $0x400] sm:$0xf]
    %v298 = vld [vmem:[%s1 + $0x404] sm:$0xf]
    %v299 = vld [vmem:[%s1 + $0x408] sm:$0xf]
    %v300 = vld [vmem:[%s1 + $0x40c] sm:$0xf]
    %v301 = vld [vmem:[%s1 + $0x410] sm:$0xf]
    %v302 = vld [vmem:[%s1 + $0x414] sm:$0xf]
    %v303 = vld [vmem:[%s1 + $0x418] sm:$0xf]
    %v304 = vld [vmem:[%s1 + $0x41c] sm:$0xf]
    %v305 = vld [vmem:[%s1 + $0x420] sm:$0xf]
    %v306 = vld [vmem:[%s1 + $0x424] sm:$0xf]
    %v307 = vld [vmem:[%s1 + $0x428] sm:$0xf]
    %v308 = vld [vmem:[%s1 + $0x42c] sm:$0xf]
    %v309 = vld [vmem:[%s1 + $0x430] sm:$0xf]
    %v310 = vld [vmem:[%s1 + $0x434] sm:$0xf]
    %v311 = vld [vmem:[%s1 + $0x438] sm:$0xf]
    %v312 = vld [vmem:[%s1 + $0x43c] sm:$0xf]
    %v313 = vld [vmem:[%s1 + $0x440] sm:$0xf]
    %v314 = vld [vmem:[%s1 + $0x444] sm:$0xf]
    %v315 = vld [vmem:[%s1 + $0x448] sm:$0xf]
    %v316 = vld [vmem:[%s1 + $0x44c] sm:$0xf]
    %v317 = vld [vmem:[%s1 + $0x450] sm:$0xf]
    %v318 = vld [vmem:[%s1 + $0x454] sm:$0xf]
    %v319 = vld [vmem:[%s1 + $0x458] sm:$0xf]
    %v320 = vld [vmem:[%s1 + $0x45c] sm:$0xf]
    %v321 = vld [vmem:[%s1 + $0x460] sm:$0xf]
    %v322 = vld [vmem:[%s1 + $0x464] sm:$0xf]
    %v323 = vld [vmem:[%s1 + $0x468] sm:$0xf]
    %v324 = vld [vmem:[%s1 + $0x46c] sm:$0xf]
    %v325 = vld [vmem:[%s1 + $0x470] sm:$0xf]
    %v326 = vld [vmem:[%s1 + $0x474] sm:$0xf]
    %v327 = vld [vmem:[%s1 + $0x478] sm:$0xf]
    %v328 = vld [vmem:[%s1 + $0x47c] sm:$0xf]
    %v329 = vld [vmem:[%s1 + $0x480] sm:$0xf]
    %v330 = vld [vmem:[%s1 + $0x484] sm:$0xf]
    %v331 = vld [vmem:[%s1 + $0x488] sm:$0xf]
    %v332 = vld [vmem:[%s1 + $0x48c] sm:$0xf]
    %v333 = vld [vmem:[%s1 + $0x490] sm:$0xf]
    %v334 = vld [vmem:[%s1 + $0x494] sm:$0xf]
    %v335 = vld [vmem:[%s1 + $0x498] sm:$0xf]
    %v336 = vld [vmem:[%s1 + $0x49c] sm:$0xf]
    %v337 = vld [vmem:[%s1 + $0x4a0] sm:$0xf]
    %v338 = vld [vmem:[%s1 + $0x4a4] sm:$0xf]
    %v339 = vld [vmem:[%s1 + $0x4a8] sm:$0xf]
    %v340 = vld [vmem:[%s1 + $0x4ac] sm:$0xf]
    %v341 = vld [vmem:[%s1 + $0x4b0] sm:$0xf]
    %v342 = vld [vmem:[%s1 + $0x4b4] sm:$0xf]
    %v343 = vld [vmem:[%s1 + $0x4b8] sm:$0xf]
    %v344 = vld [vmem:[%s1 + $0x4bc] sm:$0xf]
    %v345 = vld [vmem:[%s1 + $0x4c0] sm:$0xf]
    %v346 = vld [vmem:[%s1 + $0x4c4] sm:$0xf]
    %v347 = vld [vmem:[%s1 + $0x4c8] sm:$0xf]
    %v348 = vld [vmem:[%s1 + $0x4cc] sm:$0xf]
    %v349 = vld [vmem:[%s1 + $0x4d0] sm:$0xf]
    %v350 = vld [vmem:[%s1 + $0x4d4] sm:$0xf]
    %v351 = vld [vmem:[%s1 + $0x4d8] sm:$0xf]
    %v352 = vld [vmem:[%s1 + $0x4dc] sm:$0xf]
    %v353 = vld [vmem:[%s1 + $0x4e0] sm:$0xf]
    %v354 = vld [vmem:[%s1 + $0x4e4] sm:$0xf]
    %v355 = vld [vmem:[%s1 + $0x4e8] sm:$0xf]
    %v356 = vld [vmem:[%s1 + $0x4ec] sm:$0xf]
    %v357 = vld [vmem:[%s1 + $0x4f0] sm:$0xf]
    %v358 = vld [vmem:[%s1 + $0x4f4] sm:$0xf]
    %v359 = vld [vmem:[%s1 + $0x4f8] sm:$0xf]
    %v360 = vld [vmem:[%s1 + $0x4fc] sm:$0xf]
    %v361 = vld [vmem:[%s1 + $0x500] sm:$0xf]
    %v362 = vld [vmem:[%s1 + $0x504] sm:$0xf]
    %v363 = vld [vmem:[%s1 + $0x508] sm:$0xf]
    %v364 = vld [vmem:[%s1 + $0x50c] sm:$0xf]
    %v365 = vld [vmem:[%s1 + $0x510] sm:$0xf]
    %v366 = vld [vmem:[%s1 + $0x514] sm:$0xf]
    %v367 = vld [vmem:[%s1 + $0x518] sm:$0xf]
    %v368 = vld [vmem:[%s1 + $0x51c] sm:$0xf]
    %v369 = vld [vmem:[%s1 + $0x520] sm:$0xf]
    %v370 = vld [vmem:[%s1 + $0x524] sm:$0xf]
    %v371 = vld [vmem:[%s1 + $0x528] sm:$0xf]
    %v372 = vld [vmem:[%s1 + $0x52c] sm:$0xf]
    %v373 = vld [vmem:[%s1 + $0x530] sm:$0xf]
    %v374 = vld [vmem:[%s1 + $0x534] sm:$0xf]
    %v375 = vld [vmem:[%s1 + $0x538] sm:$0xf]
    %v376 = vld [vmem:[%s1 + $0x53c] sm:$0xf]
    %v377 = vld [vmem:[%s1 + $0x540] sm:$0xf]
    %v378 = vld [vmem:[%s1 + $0x544] sm:$0xf]
    %v379 = vld [vmem:[%s1 + $0x548] sm:$0xf]
    %v380 = vld [vmem:[%s1 + $0x54c] sm:$0xf]
    %v381 = vld [vmem:[%s1 + $0x550] sm:$0xf]
    %v382 = vld [vmem:[%s1 + $0x554] sm:$0xf]
    %v383 = vld [vmem:[%s1 + $0x558] sm:$0xf]
    %v384 = vld [vmem:[%s1 + $0x55c] sm:$0xf]
    %v385 = vld [vmem:[%s1 + $0x560] sm:$0xf]
    %v386 = vld [vmem:[%s1 + $0x564] sm:$0xf]
    %v387 = vld [vmem:[%s1 + $0x568] sm:$0xf]
    %v388 = vld [vmem:[%s1 + $0x56c] sm:$0xf]
    %v389 = vld [vmem:[%s1 + $0x570] sm:$0xf]
    %v390 = vld [vmem:[%s1 + $0x574] sm:$0xf]
    %v391 = vld [vmem:[%s1 + $0x578] sm:$0xf]
    %v392 = vld [vmem:[%s1 + $0x57c] sm:$0xf]
    %v393 = vld [vmem:[%s1 + $0x580] sm:$0xf]
    %v394 = vld [vmem:[%s1 + $0x584] sm:$0xf]
    %v395 = vld [vmem:[%s1 + $0x588] sm:$0xf]
    %v396 = vld [vmem:[%s1 + $0x58c] sm:$0xf]
    %v397 = vld [vmem:[%s1 + $0x590] sm:$0xf]
    %v398 = vld [vmem:[%s1 + $0x594] sm:$0xf]
    %v399 = vld [vmem:[%s1 + $0x598] sm:$0xf]
    %v400 = vld [vmem:[%s1 + $0x59c] sm:$0xf]
    %v401 = vld [vmem:[%s1 + $0x5a0] sm:$0xf]
    %v402 = vld [vmem:[%s1 + $0x5a4] sm:$0xf]
    %v403 = vld [vmem:[%s1 + $0x5a8] sm:$0xf]
    %v404 = vld [vmem:[%s1 + $0x5ac] sm:$0xf]
    %v405 = vld [vmem:[%s1 + $0x5b0] sm:$0xf]
    %v406 = vld [vmem:[%s1 + $0x5b4] sm:$0xf]
    %v407 = vld [vmem:[%s1 + $0x5b8] sm:$0xf]
    %v408 = vld [vmem:[%s1 + $0x5bc] sm:$0xf]
    %v409 = vld [vmem:[%s1 + $0x5c0] sm:$0xf]
    %v410 = vld [vmem:[%s1 + $0x5c4] sm:$0xf]
    %v411 = vld [vmem:[%s1 + $0x5c8] sm:$0xf]
    %v412 = vld [vmem:[%s1 + $0x5cc] sm:$0xf]
    %v413 = vld [vmem:[%s1 + $0x5d0] sm:$0xf]
    %v414 = vld [vmem:[%s1 + $0x5d4] sm:$0xf]
    %v415 = vld [vmem:[%s1 + $0x5d8] sm:$0xf]
    %v416 = vld [vmem:[%s1 + $0x5dc] sm:$0xf]
    %v417 = vld [vmem:[%s1 + $0x5e0] sm:$0xf]
    %v418 = vld [vmem:[%s1 + $0x5e4] sm:$0xf]
    %v419 = vld [vmem:[%s1 + $0x5e8] sm:$0xf]
    %v420 = vld [vmem:[%s1 + $0x5ec] sm:$0xf]
    %v421 = vld [vmem:[%s1 + $0x5f0] sm:$0xf]
    %v422 = vld [vmem:[%s1 + $0x5f4] sm:$0xf]
    %v423 = vld [vmem:[%s1 + $0x5f8] sm:$0xf]
    %v424 = vld [vmem:[%s1 + $0x5fc] sm:$0xf]
    %v425 = vld [vmem:[%s1 + $0x600] sm:$0xf]
    %v426 = vld [vmem:[%s1 + $0x604] sm:$0xf]
    %v427 = vld [vmem:[%s1 + $0x608] sm:$0xf]
    %v428 = vld [vmem:[%s1 + $0x60c] sm:$0xf]
    %v429 = vld [vmem:[%s1 + $0x610] sm:$0xf]
    %v430 = vld [vmem:[%s1 + $0x614] sm:$0xf]
    %v431 = vld [vmem:[%s1 + $0x618] sm:$0xf]
    %v432 = vld [vmem:[%s1 + $0x61c] sm:$0xf]
    %v433 = vld [vmem:[%s1 + $0x620] sm:$0xf]
    %v434 = vld [vmem:[%s1 + $0x624] sm:$0xf]
    %v435 = vld [vmem:[%s1 + $0x628] sm:$0xf]
    %v436 = vld [vmem:[%s1 + $0x62c] sm:$0xf]
    %v437 = vld [vmem:[%s1 + $0x630] sm:$0xf]
    %v438 = vld [vmem:[%s1 + $0x634] sm:$0xf]
    %v439 = vld [vmem:[%s1 + $0x638] sm:$0xf]
    %v440 = vld [vmem:[%s1 + $0x63c] sm:$0xf]
    %v441 = vld [vmem:[%s2] sm:$0x1]
    %v443 = vlaneseq
    %v444 = vshrl.u32 %v443, 7
    %v445 = vsub.s32 0, %v444
    %v446 = vrot.slane %v441, %v445
    %v461 = vunpack.c.l.b16 %v28
    %v462 = vunpack.c.h.b16 %v28
    %v463 = vunpack.c.l.b16 %v29
    %v464 = vunpack.c.h.b16 %v29
    %v465 = vunpack.c.l.b16 %v30
    %v466 = vunpack.c.h.b16 %v30
    %v467 = vunpack.c.l.b16 %v31
    %v468 = vunpack.c.h.b16 %v31
    %v469 = vunpack.c.l.b16 %v32
    %v470 = vunpack.c.h.b16 %v32
    %v471 = vunpack.c.l.b16 %v33
    %v472 = vunpack.c.h.b16 %v33
    %v473 = vunpack.c.l.b16 %v34
    %v474 = vunpack.c.h.b16 %v34
    %v475 = vunpack.c.l.b16 %v35
    %v476 = vunpack.c.h.b16 %v35
    %v477 = vunpack.c.l.b16 %v36
    %v478 = vunpack.c.h.b16 %v36
    %v479 = vunpack.c.l.b16 %v37
    %v480 = vunpack.c.h.b16 %v37
    %v481 = vunpack.c.l.b16 %v38
    %v482 = vunpack.c.h.b16 %v38
    %v483 = vunpack.c.l.b16 %v39
    %v484 = vunpack.c.h.b16 %v39
    %v485 = vunpack.c.l.b16 %v40
    %v486 = vpack.c.b16 %v461, %v461
    %v487 = vpack.c.b16 %v462, %v462
    %v488 = vpack.c.b16 %v463, %v463
    %v489 = vpack.c.b16 %v464, %v464
    %v490 = vpack.c.b16 %v465, %v465
    %v491 = vpack.c.b16 %v466, %v466
    %v492 = vpack.c.b16 %v467, %v467
    %v493 = vpack.c.b16 %v468, %v468
    %v494 = vpack.c.b16 %v469, %v469
    %v495 = vpack.c.b16 %v470, %v470
    %v496 = vpack.c.b16 %v471, %v471
    %v497 = vpack.c.b16 %v472, %v472
    %v498 = vpack.c.b16 %v473, %v473
    %v499 = vpack.c.b16 %v474, %v474
    %v500 = vpack.c.b16 %v475, %v475
    %v501 = vpack.c.b16 %v476, %v476
    %v502 = vpack.c.b16 %v477, %v477
    %v503 = vpack.c.b16 %v478, %v478
    %v504 = vpack.c.b16 %v479, %v479
    %v505 = vpack.c.b16 %v480, %v480
    %v506 = vpack.c.b16 %v481, %v481
    %v507 = vpack.c.b16 %v482, %v482
    %v508 = vpack.c.b16 %v483, %v483
    %v509 = vpack.c.b16 %v484, %v484
    %v510 = vpack.c.b16 %v485, %v485
    %v936 = vunpack.c.l.b16 %v41
    %v937 = vunpack.c.l.b16 %v42
    %v938 = vunpack.c.l.b16 %v43
    %v939 = vunpack.c.l.b16 %v44
    %v940 = vunpack.c.l.b16 %v45
    %v941 = vunpack.c.l.b16 %v46
    %v942 = vunpack.c.l.b16 %v47
    %v943 = vunpack.c.l.b16 %v48
    %v944 = vunpack.c.l.b16 %v49
    %v945 = vunpack.c.l.b16 %v50
    %v946 = vunpack.c.l.b16 %v51
    %v947 = vunpack.c.l.b16 %v52
    %v948 = vunpack.c.l.b16 %v53
    %v949 = vunpack.c.l.b16 %v54
    %v950 = vunpack.c.l.b16 %v55
    %v951 = vunpack.c.l.b16 %v56
    %v952 = vunpack.c.l.b16 %v57
    %v953 = vunpack.c.l.b16 %v58
    %v954 = vunpack.c.l.b16 %v59
    %v955 = vunpack.c.l.b16 %v60
    %v956 = vunpack.c.l.b16 %v61
    %v957 = vunpack.c.l.b16 %v62
    %v958 = vunpack.c.l.b16 %v63
    %v959 = vunpack.c.l.b16 %v64
    %v960 = vunpack.c.l.b16 %v65
    %v961 = vunpack.c.l.b16 %v66
    %v962 = vunpack.c.l.b16 %v67
    %v963 = vunpack.c.l.b16 %v68
    %v964 = vunpack.c.l.b16 %v69
    %v965 = vunpack.c.l.b16 %v70
    %v966 = vunpack.c.l.b16 %v71
    %v967 = vunpack.c.l.b16 %v72
    %v968 = vunpack.c.l.b16 %v73
    %v969 = vunpack.c.l.b16 %v74
    %v970 = vunpack.c.l.b16 %v75
    %v971 = vunpack.c.l.b16 %v76
    %v972 = vunpack.c.l.b16 %v77
    %v973 = vunpack.c.l.b16 %v78
    %v974 = vunpack.c.l.b16 %v79
    %v975 = vunpack.c.l.b16 %v80
    %v976 = vunpack.c.l.b16 %v81
    %v977 = vunpack.c.l.b16 %v82
    %v978 = vunpack.c.l.b16 %v83
    %v979 = vunpack.c.l.b16 %v84
    %v980 = vunpack.c.l.b16 %v85
    %v981 = vunpack.c.l.b16 %v86
    %v982 = vunpack.c.l.b16 %v87
    %v983 = vunpack.c.l.b16 %v88
    %v984 = vunpack.c.l.b16 %v89
    %v985 = vunpack.c.l.b16 %v90
    %v986 = vunpack.c.l.b16 %v91
    %v987 = vunpack.c.l.b16 %v92
    %v988 = vunpack.c.l.b16 %v93
    %v989 = vunpack.c.l.b16 %v94
    %v990 = vunpack.c.l.b16 %v95
    %v991 = vunpack.c.l.b16 %v96
    %v992 = vunpack.c.l.b16 %v97
    %v993 = vunpack.c.l.b16 %v98
    %v994 = vunpack.c.l.b16 %v99
    %v995 = vunpack.c.l.b16 %v100
    %v996 = vunpack.c.l.b16 %v101
    %v997 = vunpack.c.l.b16 %v102
    %v998 = vunpack.c.l.b16 %v103
    %v999 = vunpack.c.l.b16 %v104
    %v1000 = vunpack.c.l.b16 %v105
    %v1001 = vunpack.c.l.b16 %v106
    %v1002 = vunpack.c.l.b16 %v107
    %v1003 = vunpack.c.l.b16 %v108
    %v1004 = vunpack.c.l.b16 %v109
    %v1005 = vunpack.c.l.b16 %v110
    %v1006 = vunpack.c.l.b16 %v111
    %v1007 = vunpack.c.l.b16 %v112
    %v1008 = vunpack.c.l.b16 %v113
    %v1009 = vunpack.c.l.b16 %v114
    %v1010 = vunpack.c.l.b16 %v115
    %v1011 = vunpack.c.l.b16 %v116
    %v1012 = vunpack.c.l.b16 %v117
    %v1013 = vunpack.c.l.b16 %v118
    %v1014 = vunpack.c.l.b16 %v119
    %v1015 = vunpack.c.l.b16 %v120
    %v1016 = vunpack.c.l.b16 %v121
    %v1017 = vunpack.c.l.b16 %v122
    %v1018 = vunpack.c.l.b16 %v123
    %v1019 = vunpack.c.l.b16 %v124
    %v1020 = vunpack.c.l.b16 %v125
    %v1021 = vunpack.c.l.b16 %v126
    %v1022 = vunpack.c.l.b16 %v127
    %v1023 = vunpack.c.l.b16 %v128
    %v1024 = vunpack.c.l.b16 %v129
    %v1025 = vunpack.c.l.b16 %v130
    %v1026 = vunpack.c.l.b16 %v131
    %v1027 = vunpack.c.l.b16 %v132
    %v1028 = vunpack.c.l.b16 %v133
    %v1029 = vunpack.c.l.b16 %v134
    %v1030 = vunpack.c.l.b16 %v135
    %v1031 = vunpack.c.l.b16 %v136
    %v1032 = vunpack.c.l.b16 %v137
    %v1033 = vunpack.c.l.b16 %v138
    %v1034 = vunpack.c.l.b16 %v139
    %v1035 = vunpack.c.l.b16 %v140
    %v1036 = vunpack.c.l.b16 %v141
    %v1037 = vunpack.c.l.b16 %v142
    %v1038 = vunpack.c.l.b16 %v143
    %v1039 = vunpack.c.l.b16 %v144
    %v1040 = vunpack.c.l.b16 %v145
    %v1041 = vunpack.c.l.b16 %v146
    %v1042 = vunpack.c.l.b16 %v147
    %v1043 = vunpack.c.l.b16 %v148
    %v1044 = vunpack.c.l.b16 %v149
    %v1045 = vunpack.c.l.b16 %v150
    %v1046 = vunpack.c.l.b16 %v151
    %v1047 = vunpack.c.l.b16 %v152
    %v1048 = vunpack.c.l.b16 %v153
    %v1049 = vunpack.c.l.b16 %v154
    %v1050 = vunpack.c.l.b16 %v155
    %v1051 = vunpack.c.l.b16 %v156
    %v1052 = vunpack.c.l.b16 %v157
    %v1053 = vunpack.c.l.b16 %v158
    %v1054 = vunpack.c.l.b16 %v159
    %v1055 = vunpack.c.l.b16 %v160
    %v1056 = vunpack.c.l.b16 %v161
    %v1057 = vunpack.c.l.b16 %v162
    %v1058 = vunpack.c.l.b16 %v163
    %v1059 = vunpack.c.l.b16 %v164
    %v1060 = vunpack.c.l.b16 %v165
    %v1061 = vunpack.c.l.b16 %v166
    %v1062 = vunpack.c.l.b16 %v167
    %v1063 = vunpack.c.l.b16 %v168
    %v1064 = vunpack.c.l.b16 %v169
    %v1065 = vunpack.c.l.b16 %v170
    %v1066 = vunpack.c.l.b16 %v171
    %v1067 = vunpack.c.l.b16 %v172
    %v1068 = vunpack.c.l.b16 %v173
    %v1069 = vunpack.c.l.b16 %v174
    %v1070 = vunpack.c.l.b16 %v175
    %v1071 = vunpack.c.l.b16 %v176
    %v1072 = vunpack.c.l.b16 %v177
    %v1073 = vunpack.c.l.b16 %v178
    %v1074 = vunpack.c.l.b16 %v179
    %v1075 = vunpack.c.l.b16 %v180
    %v1076 = vunpack.c.l.b16 %v181
    %v1077 = vunpack.c.l.b16 %v182
    %v1078 = vunpack.c.l.b16 %v183
    %v1079 = vunpack.c.l.b16 %v184
    %v1080 = vunpack.c.l.b16 %v185
    %v1081 = vunpack.c.l.b16 %v186
    %v1082 = vunpack.c.l.b16 %v187
    %v1083 = vunpack.c.l.b16 %v188
    %v1084 = vunpack.c.l.b16 %v189
    %v1085 = vunpack.c.l.b16 %v190
    %v1086 = vunpack.c.l.b16 %v191
    %v1087 = vunpack.c.l.b16 %v192
    %v1088 = vunpack.c.l.b16 %v193
    %v1089 = vunpack.c.l.b16 %v194
    %v1090 = vunpack.c.l.b16 %v195
    %v1091 = vunpack.c.l.b16 %v196
    %v1092 = vunpack.c.l.b16 %v197
    %v1093 = vunpack.c.l.b16 %v198
    %v1094 = vunpack.c.l.b16 %v199
    %v1095 = vunpack.c.l.b16 %v200
    %v1096 = vunpack.c.l.b16 %v201
    %v1097 = vunpack.c.l.b16 %v202
    %v1098 = vunpack.c.l.b16 %v203
    %v1099 = vunpack.c.l.b16 %v204
    %v1100 = vunpack.c.l.b16 %v205
    %v1101 = vunpack.c.l.b16 %v206
    %v1102 = vunpack.c.l.b16 %v207
    %v1103 = vunpack.c.l.b16 %v208
    %v1104 = vunpack.c.l.b16 %v209
    %v1105 = vunpack.c.l.b16 %v210
    %v1106 = vunpack.c.l.b16 %v211
    %v1107 = vunpack.c.l.b16 %v212
    %v1108 = vunpack.c.l.b16 %v213
    %v1109 = vunpack.c.l.b16 %v214
    %v1110 = vunpack.c.l.b16 %v215
    %v1111 = vunpack.c.l.b16 %v216
    %v1112 = vunpack.c.l.b16 %v217
    %v1113 = vunpack.c.l.b16 %v218
    %v1114 = vunpack.c.l.b16 %v219
    %v1115 = vunpack.c.l.b16 %v220
    %v1116 = vunpack.c.l.b16 %v221
    %v1117 = vunpack.c.l.b16 %v222
    %v1118 = vunpack.c.l.b16 %v223
    %v1119 = vunpack.c.l.b16 %v224
    %v1120 = vunpack.c.l.b16 %v225
    %v1121 = vunpack.c.l.b16 %v226
    %v1122 = vunpack.c.l.b16 %v227
    %v1123 = vunpack.c.l.b16 %v228
    %v1124 = vunpack.c.l.b16 %v229
    %v1125 = vunpack.c.l.b16 %v230
    %v1126 = vunpack.c.l.b16 %v231
    %v1127 = vunpack.c.l.b16 %v232
    %v1128 = vunpack.c.l.b16 %v233
    %v1129 = vunpack.c.l.b16 %v234
    %v1130 = vunpack.c.l.b16 %v235
    %v1131 = vunpack.c.l.b16 %v236
    %v1132 = vunpack.c.l.b16 %v237
    %v1133 = vunpack.c.l.b16 %v238
    %v1134 = vunpack.c.l.b16 %v239
    %v1135 = vunpack.c.l.b16 %v240
    %v1136 = vunpack.c.l.b16 %v241
    %v1137 = vunpack.c.l.b16 %v242
    %v1138 = vunpack.c.l.b16 %v243
    %v1139 = vunpack.c.l.b16 %v244
    %v1140 = vunpack.c.l.b16 %v245
    %v1141 = vunpack.c.l.b16 %v246
    %v1142 = vunpack.c.l.b16 %v247
    %v1143 = vunpack.c.l.b16 %v248
    %v1144 = vunpack.c.l.b16 %v249
    %v1145 = vunpack.c.l.b16 %v250
    %v1146 = vunpack.c.l.b16 %v251
    %v1147 = vunpack.c.l.b16 %v252
    %v1148 = vunpack.c.l.b16 %v253
    %v1149 = vunpack.c.l.b16 %v254
    %v1150 = vunpack.c.l.b16 %v255
    %v1151 = vunpack.c.l.b16 %v256
    %v1152 = vunpack.c.l.b16 %v257
    %v1153 = vunpack.c.l.b16 %v258
    %v1154 = vunpack.c.l.b16 %v259
    %v1155 = vunpack.c.l.b16 %v260
    %v1156 = vunpack.c.l.b16 %v261
    %v1157 = vunpack.c.l.b16 %v262
    %v1158 = vunpack.c.l.b16 %v263
    %v1159 = vunpack.c.l.b16 %v264
    %v1160 = vunpack.c.l.b16 %v265
    %v1161 = vunpack.c.l.b16 %v266
    %v1162 = vunpack.c.l.b16 %v267
    %v1163 = vunpack.c.l.b16 %v268
    %v1164 = vunpack.c.l.b16 %v269
    %v1165 = vunpack.c.l.b16 %v270
    %v1166 = vunpack.c.l.b16 %v271
    %v1167 = vunpack.c.l.b16 %v272
    %v1168 = vunpack.c.l.b16 %v273
    %v1169 = vunpack.c.l.b16 %v274
    %v1170 = vunpack.c.l.b16 %v275
    %v1171 = vunpack.c.l.b16 %v276
    %v1172 = vunpack.c.l.b16 %v277
    %v1173 = vunpack.c.l.b16 %v278
    %v1174 = vunpack.c.l.b16 %v279
    %v1175 = vunpack.c.l.b16 %v280
    %v1176 = vunpack.c.l.b16 %v281
    %v1177 = vunpack.c.l.b16 %v282
    %v1178 = vunpack.c.l.b16 %v283
    %v1179 = vunpack.c.l.b16 %v284
    %v1180 = vunpack.c.l.b16 %v285
    %v1181 = vunpack.c.l.b16 %v286
    %v1182 = vunpack.c.l.b16 %v287
    %v1183 = vunpack.c.l.b16 %v288
    %v1184 = vunpack.c.l.b16 %v289
    %v1185 = vunpack.c.l.b16 %v290
    %v1186 = vunpack.c.l.b16 %v291
    %v1187 = vunpack.c.l.b16 %v292
    %v1188 = vunpack.c.l.b16 %v293
    %v1189 = vunpack.c.l.b16 %v294
    %v1190 = vunpack.c.l.b16 %v295
    %v1191 = vunpack.c.l.b16 %v296
    %v1192 = vunpack.c.l.b16 %v297
    %v1193 = vunpack.c.l.b16 %v298
    %v1194 = vunpack.c.l.b16 %v299
    %v1195 = vunpack.c.l.b16 %v300
    %v1196 = vunpack.c.l.b16 %v301
    %v1197 = vunpack.c.l.b16 %v302
    %v1198 = vunpack.c.l.b16 %v303
    %v1199 = vunpack.c.l.b16 %v304
    %v1200 = vunpack.c.l.b16 %v305
    %v1201 = vunpack.c.l.b16 %v306
    %v1202 = vunpack.c.l.b16 %v307
    %v1203 = vunpack.c.l.b16 %v308
    %v1204 = vunpack.c.l.b16 %v309
    %v1205 = vunpack.c.l.b16 %v310
    %v1206 = vunpack.c.l.b16 %v311
    %v1207 = vunpack.c.l.b16 %v312
    %v1208 = vunpack.c.l.b16 %v313
    %v1209 = vunpack.c.l.b16 %v314
    %v1210 = vunpack.c.l.b16 %v315
    %v1211 = vunpack.c.l.b16 %v316
    %v1212 = vunpack.c.l.b16 %v317
    %v1213 = vunpack.c.l.b16 %v318
    %v1214 = vunpack.c.l.b16 %v319
    %v1215 = vunpack.c.l.b16 %v320
    %v1216 = vunpack.c.l.b16 %v321
    %v1217 = vunpack.c.l.b16 %v322
    %v1218 = vunpack.c.l.b16 %v323
    %v1219 = vunpack.c.l.b16 %v324
    %v1220 = vunpack.c.l.b16 %v325
    %v1221 = vunpack.c.l.b16 %v326
    %v1222 = vunpack.c.l.b16 %v327
    %v1223 = vunpack.c.l.b16 %v328
    %v1224 = vunpack.c.l.b16 %v329
    %v1225 = vunpack.c.l.b16 %v330
    %v1226 = vunpack.c.l.b16 %v331
    %v1227 = vunpack.c.l.b16 %v332
    %v1228 = vunpack.c.l.b16 %v333
    %v1229 = vunpack.c.l.b16 %v334
    %v1230 = vunpack.c.l.b16 %v335
    %v1231 = vunpack.c.l.b16 %v336
    %v1232 = vunpack.c.l.b16 %v337
    %v1233 = vunpack.c.l.b16 %v338
    %v1234 = vunpack.c.l.b16 %v339
    %v1235 = vunpack.c.l.b16 %v340
    %v1236 = vunpack.c.l.b16 %v341
    %v1237 = vunpack.c.l.b16 %v342
    %v1238 = vunpack.c.l.b16 %v343
    %v1239 = vunpack.c.l.b16 %v344
    %v1240 = vunpack.c.l.b16 %v345
    %v1241 = vunpack.c.l.b16 %v346
    %v1242 = vunpack.c.l.b16 %v347
    %v1243 = vunpack.c.l.b16 %v348
    %v1244 = vunpack.c.l.b16 %v349
    %v1245 = vunpack.c.l.b16 %v350
    %v1246 = vunpack.c.l.b16 %v351
    %v1247 = vunpack.c.l.b16 %v352
    %v1248 = vunpack.c.l.b16 %v353
    %v1249 = vunpack.c.l.b16 %v354
    %v1250 = vunpack.c.l.b16 %v355
    %v1251 = vunpack.c.l.b16 %v356
    %v1252 = vunpack.c.l.b16 %v357
    %v1253 = vunpack.c.l.b16 %v358
    %v1254 = vunpack.c.l.b16 %v359
    %v1255 = vunpack.c.l.b16 %v360
    %v1256 = vunpack.c.l.b16 %v361
    %v1257 = vunpack.c.l.b16 %v362
    %v1258 = vunpack.c.l.b16 %v363
    %v1259 = vunpack.c.l.b16 %v364
    %v1260 = vunpack.c.l.b16 %v365
    %v1261 = vunpack.c.l.b16 %v366
    %v1262 = vunpack.c.l.b16 %v367
    %v1263 = vunpack.c.l.b16 %v368
    %v1264 = vunpack.c.l.b16 %v369
    %v1265 = vunpack.c.l.b16 %v370
    %v1266 = vunpack.c.l.b16 %v371
    %v1267 = vunpack.c.l.b16 %v372
    %v1268 = vunpack.c.l.b16 %v373
    %v1269 = vunpack.c.l.b16 %v374
    %v1270 = vunpack.c.l.b16 %v375
    %v1271 = vunpack.c.l.b16 %v376
    %v1272 = vunpack.c.l.b16 %v377
    %v1273 = vunpack.c.l.b16 %v378
    %v1274 = vunpack.c.l.b16 %v379
    %v1275 = vunpack.c.l.b16 %v380
    %v1276 = vunpack.c.l.b16 %v381
    %v1277 = vunpack.c.l.b16 %v382
    %v1278 = vunpack.c.l.b16 %v383
    %v1279 = vunpack.c.l.b16 %v384
    %v1280 = vunpack.c.l.b16 %v385
    %v1281 = vunpack.c.l.b16 %v386
    %v1282 = vunpack.c.l.b16 %v387
    %v1283 = vunpack.c.l.b16 %v388
    %v1284 = vunpack.c.l.b16 %v389
    %v1285 = vunpack.c.l.b16 %v390
    %v1286 = vunpack.c.l.b16 %v391
    %v1287 = vunpack.c.l.b16 %v392
    %v1288 = vunpack.c.l.b16 %v393
    %v1289 = vunpack.c.l.b16 %v394
    %v1290 = vunpack.c.l.b16 %v395
    %v1291 = vunpack.c.l.b16 %v396
    %v1292 = vunpack.c.l.b16 %v397
    %v1293 = vunpack.c.l.b16 %v398
    %v1294 = vunpack.c.l.b16 %v399
    %v1295 = vunpack.c.l.b16 %v400
    %v1296 = vunpack.c.l.b16 %v401
    %v1297 = vunpack.c.l.b16 %v402
    %v1298 = vunpack.c.l.b16 %v403
    %v1299 = vunpack.c.l.b16 %v404
    %v1300 = vunpack.c.l.b16 %v405
    %v1301 = vunpack.c.l.b16 %v406
    %v1302 = vunpack.c.l.b16 %v407
    %v1303 = vunpack.c.l.b16 %v408
    %v1304 = vunpack.c.l.b16 %v409
    %v1305 = vunpack.c.l.b16 %v410
    %v1306 = vunpack.c.l.b16 %v411
    %v1307 = vunpack.c.l.b16 %v412
    %v1308 = vunpack.c.l.b16 %v413
    %v1309 = vunpack.c.l.b16 %v414
    %v1310 = vunpack.c.l.b16 %v415
    %v1311 = vunpack.c.l.b16 %v416
    %v1312 = vunpack.c.l.b16 %v417
    %v1313 = vunpack.c.l.b16 %v418
    %v1314 = vunpack.c.l.b16 %v419
    %v1315 = vunpack.c.l.b16 %v420
    %v1316 = vunpack.c.l.b16 %v421
    %v1317 = vunpack.c.l.b16 %v422
    %v1318 = vunpack.c.l.b16 %v423
    %v1319 = vunpack.c.l.b16 %v424
    %v1320 = vunpack.c.l.b16 %v425
    %v1321 = vunpack.c.l.b16 %v426
    %v1322 = vunpack.c.l.b16 %v427
    %v1323 = vunpack.c.l.b16 %v428
    %v1324 = vunpack.c.l.b16 %v429
    %v1325 = vunpack.c.l.b16 %v430
    %v1326 = vunpack.c.l.b16 %v431
    %v1327 = vunpack.c.l.b16 %v432
    %v1328 = vunpack.c.l.b16 %v433
    %v1329 = vunpack.c.l.b16 %v434
    %v1330 = vunpack.c.l.b16 %v435
    %v1331 = vunpack.c.l.b16 %v436
    %v1332 = vunpack.c.l.b16 %v437
    %v1333 = vunpack.c.l.b16 %v438
    %v1334 = vunpack.c.l.b16 %v439
    %v1335 = vunpack.c.l.b16 %v440
    %v1336 = vpack.c.b16 %v937, %v936
    %v1337 = vpack.c.b16 %v939, %v938
    %v1338 = vpack.c.b16 %v941, %v940
    %v1339 = vpack.c.b16 %v943, %v942
    %v1340 = vpack.c.b16 %v945, %v944
    %v1341 = vpack.c.b16 %v947, %v946
    %v1342 = vpack.c.b16 %v949, %v948
    %v1343 = vpack.c.b16 %v951, %v950
    %v1344 = vpack.c.b16 %v953, %v952
    %v1345 = vpack.c.b16 %v955, %v954
    %v1346 = vpack.c.b16 %v957, %v956
    %v1347 = vpack.c.b16 %v959, %v958
    %v1348 = vpack.c.b16 %v961, %v960
    %v1349 = vpack.c.b16 %v963, %v962
    %v1350 = vpack.c.b16 %v965, %v964
    %v1351 = vpack.c.b16 %v967, %v966
    %v1352 = vpack.c.b16 %v969, %v968
    %v1353 = vpack.c.b16 %v971, %v970
    %v1354 = vpack.c.b16 %v973, %v972
    %v1355 = vpack.c.b16 %v975, %v974
    %v1356 = vpack.c.b16 %v977, %v976
    %v1357 = vpack.c.b16 %v979, %v978
    %v1358 = vpack.c.b16 %v981, %v980
    %v1359 = vpack.c.b16 %v983, %v982
    %v1360 = vpack.c.b16 %v985, %v984
    %v1361 = vpack.c.b16 %v987, %v986
    %v1362 = vpack.c.b16 %v989, %v988
    %v1363 = vpack.c.b16 %v991, %v990
    %v1364 = vpack.c.b16 %v993, %v992
    %v1365 = vpack.c.b16 %v995, %v994
    %v1366 = vpack.c.b16 %v997, %v996
    %v1367 = vpack.c.b16 %v999, %v998
    %v1368 = vpack.c.b16 %v1001, %v1000
    %v1369 = vpack.c.b16 %v1003, %v1002
    %v1370 = vpack.c.b16 %v1005, %v1004
    %v1371 = vpack.c.b16 %v1007, %v1006
    %v1372 = vpack.c.b16 %v1009, %v1008
    %v1373 = vpack.c.b16 %v1011, %v1010
    %v1374 = vpack.c.b16 %v1013, %v1012
    %v1375 = vpack.c.b16 %v1015, %v1014
    %v1376 = vpack.c.b16 %v1017, %v1016
    %v1377 = vpack.c.b16 %v1019, %v1018
    %v1378 = vpack.c.b16 %v1021, %v1020
    %v1379 = vpack.c.b16 %v1023, %v1022
    %v1380 = vpack.c.b16 %v1025, %v1024
    %v1381 = vpack.c.b16 %v1027, %v1026
    %v1382 = vpack.c.b16 %v1029, %v1028
    %v1383 = vpack.c.b16 %v1031, %v1030
    %v1384 = vpack.c.b16 %v1033, %v1032
    %v1385 = vpack.c.b16 %v1035, %v1034
    %v1386 = vpack.c.b16 %v1037, %v1036
    %v1387 = vpack.c.b16 %v1039, %v1038
    %v1388 = vpack.c.b16 %v1041, %v1040
    %v1389 = vpack.c.b16 %v1043, %v1042
    %v1390 = vpack.c.b16 %v1045, %v1044
    %v1391 = vpack.c.b16 %v1047, %v1046
    %v1392 = vpack.c.b16 %v1049, %v1048
    %v1393 = vpack.c.b16 %v1051, %v1050
    %v1394 = vpack.c.b16 %v1053, %v1052
    %v1395 = vpack.c.b16 %v1055, %v1054
    %v1396 = vpack.c.b16 %v1057, %v1056
    %v1397 = vpack.c.b16 %v1059, %v1058
    %v1398 = vpack.c.b16 %v1061, %v1060
    %v1399 = vpack.c.b16 %v1063, %v1062
    %v1400 = vpack.c.b16 %v1065, %v1064
    %v1401 = vpack.c.b16 %v1067, %v1066
    %v1402 = vpack.c.b16 %v1069, %v1068
    %v1403 = vpack.c.b16 %v1071, %v1070
    %v1404 = vpack.c.b16 %v1073, %v1072
    %v1405 = vpack.c.b16 %v1075, %v1074
    %v1406 = vpack.c.b16 %v1077, %v1076
    %v1407 = vpack.c.b16 %v1079, %v1078
    %v1408 = vpack.c.b16 %v1081, %v1080
    %v1409 = vpack.c.b16 %v1083, %v1082
    %v1410 = vpack.c.b16 %v1085, %v1084
    %v1411 = vpack.c.b16 %v1087, %v1086
    %v1412 = vpack.c.b16 %v1089, %v1088
    %v1413 = vpack.c.b16 %v1091, %v1090
    %v1414 = vpack.c.b16 %v1093, %v1092
    %v1415 = vpack.c.b16 %v1095, %v1094
    %v1416 = vpack.c.b16 %v1097, %v1096
    %v1417 = vpack.c.b16 %v1099, %v1098
    %v1418 = vpack.c.b16 %v1101, %v1100
    %v1419 = vpack.c.b16 %v1103, %v1102
    %v1420 = vpack.c.b16 %v1105, %v1104
    %v1421 = vpack.c.b16 %v1107, %v1106
    %v1422 = vpack.c.b16 %v1109, %v1108
    %v1423 = vpack.c.b16 %v1111, %v1110
    %v1424 = vpack.c.b16 %v1113, %v1112
    %v1425 = vpack.c.b16 %v1115, %v1114
    %v1426 = vpack.c.b16 %v1117, %v1116
    %v1427 = vpack.c.b16 %v1119, %v1118
    %v1428 = vpack.c.b16 %v1121, %v1120
    %v1429 = vpack.c.b16 %v1123, %v1122
    %v1430 = vpack.c.b16 %v1125, %v1124
    %v1431 = vpack.c.b16 %v1127, %v1126
    %v1432 = vpack.c.b16 %v1129, %v1128
    %v1433 = vpack.c.b16 %v1131, %v1130
    %v1434 = vpack.c.b16 %v1133, %v1132
    %v1435 = vpack.c.b16 %v1135, %v1134
    %v1436 = vpack.c.b16 %v1137, %v1136
    %v1437 = vpack.c.b16 %v1139, %v1138
    %v1438 = vpack.c.b16 %v1141, %v1140
    %v1439 = vpack.c.b16 %v1143, %v1142
    %v1440 = vpack.c.b16 %v1145, %v1144
    %v1441 = vpack.c.b16 %v1147, %v1146
    %v1442 = vpack.c.b16 %v1149, %v1148
    %v1443 = vpack.c.b16 %v1151, %v1150
    %v1444 = vpack.c.b16 %v1153, %v1152
    %v1445 = vpack.c.b16 %v1155, %v1154
    %v1446 = vpack.c.b16 %v1157, %v1156
    %v1447 = vpack.c.b16 %v1159, %v1158
    %v1448 = vpack.c.b16 %v1161, %v1160
    %v1449 = vpack.c.b16 %v1163, %v1162
    %v1450 = vpack.c.b16 %v1165, %v1164
    %v1451 = vpack.c.b16 %v1167, %v1166
    %v1452 = vpack.c.b16 %v1169, %v1168
    %v1453 = vpack.c.b16 %v1171, %v1170
    %v1454 = vpack.c.b16 %v1173, %v1172
    %v1455 = vpack.c.b16 %v1175, %v1174
    %v1456 = vpack.c.b16 %v1177, %v1176
    %v1457 = vpack.c.b16 %v1179, %v1178
    %v1458 = vpack.c.b16 %v1181, %v1180
    %v1459 = vpack.c.b16 %v1183, %v1182
    %v1460 = vpack.c.b16 %v1185, %v1184
    %v1461 = vpack.c.b16 %v1187, %v1186
    %v1462 = vpack.c.b16 %v1189, %v1188
    %v1463 = vpack.c.b16 %v1191, %v1190
    %v1464 = vpack.c.b16 %v1193, %v1192
    %v1465 = vpack.c.b16 %v1195, %v1194
    %v1466 = vpack.c.b16 %v1197, %v1196
    %v1467 = vpack.c.b16 %v1199, %v1198
    %v1468 = vpack.c.b16 %v1201, %v1200
    %v1469 = vpack.c.b16 %v1203, %v1202
    %v1470 = vpack.c.b16 %v1205, %v1204
    %v1471 = vpack.c.b16 %v1207, %v1206
    %v1472 = vpack.c.b16 %v1209, %v1208
    %v1473 = vpack.c.b16 %v1211, %v1210
    %v1474 = vpack.c.b16 %v1213, %v1212
    %v1475 = vpack.c.b16 %v1215, %v1214
    %v1476 = vpack.c.b16 %v1217, %v1216
    %v1477 = vpack.c.b16 %v1219, %v1218
    %v1478 = vpack.c.b16 %v1221, %v1220
    %v1479 = vpack.c.b16 %v1223, %v1222
    %v1480 = vpack.c.b16 %v1225, %v1224
    %v1481 = vpack.c.b16 %v1227, %v1226
    %v1482 = vpack.c.b16 %v1229, %v1228
    %v1483 = vpack.c.b16 %v1231, %v1230
    %v1484 = vpack.c.b16 %v1233, %v1232
    %v1485 = vpack.c.b16 %v1235, %v1234
    %v1486 = vpack.c.b16 %v1237, %v1236
    %v1487 = vpack.c.b16 %v1239, %v1238
    %v1488 = vpack.c.b16 %v1241, %v1240
    %v1489 = vpack.c.b16 %v1243, %v1242
    %v1490 = vpack.c.b16 %v1245, %v1244
    %v1491 = vpack.c.b16 %v1247, %v1246
    %v1492 = vpack.c.b16 %v1249, %v1248
    %v1493 = vpack.c.b16 %v1251, %v1250
    %v1494 = vpack.c.b16 %v1253, %v1252
    %v1495 = vpack.c.b16 %v1255, %v1254
    %v1496 = vpack.c.b16 %v1257, %v1256
    %v1497 = vpack.c.b16 %v1259, %v1258
    %v1498 = vpack.c.b16 %v1261, %v1260
    %v1499 = vpack.c.b16 %v1263, %v1262
    %v1500 = vpack.c.b16 %v1265, %v1264
    %v1501 = vpack.c.b16 %v1267, %v1266
    %v1502 = vpack.c.b16 %v1269, %v1268
    %v1503 = vpack.c.b16 %v1271, %v1270
    %v1504 = vpack.c.b16 %v1273, %v1272
    %v1505 = vpack.c.b16 %v1275, %v1274
    %v1506 = vpack.c.b16 %v1277, %v1276
    %v1507 = vpack.c.b16 %v1279, %v1278
    %v1508 = vpack.c.b16 %v1281, %v1280
    %v1509 = vpack.c.b16 %v1283, %v1282
    %v1510 = vpack.c.b16 %v1285, %v1284
    %v1511 = vpack.c.b16 %v1287, %v1286
    %v1512 = vpack.c.b16 %v1289, %v1288
    %v1513 = vpack.c.b16 %v1291, %v1290
    %v1514 = vpack.c.b16 %v1293, %v1292
    %v1515 = vpack.c.b16 %v1295, %v1294
    %v1516 = vpack.c.b16 %v1297, %v1296
    %v1517 = vpack.c.b16 %v1299, %v1298
    %v1518 = vpack.c.b16 %v1301, %v1300
    %v1519 = vpack.c.b16 %v1303, %v1302
    %v1520 = vpack.c.b16 %v1305, %v1304
    %v1521 = vpack.c.b16 %v1307, %v1306
    %v1522 = vpack.c.b16 %v1309, %v1308
    %v1523 = vpack.c.b16 %v1311, %v1310
    %v1524 = vpack.c.b16 %v1313, %v1312
    %v1525 = vpack.c.b16 %v1315, %v1314
    %v1526 = vpack.c.b16 %v1317, %v1316
    %v1527 = vpack.c.b16 %v1319, %v1318
    %v1528 = vpack.c.b16 %v1321, %v1320
    %v1529 = vpack.c.b16 %v1323, %v1322
    %v1530 = vpack.c.b16 %v1325, %v1324
    %v1531 = vpack.c.b16 %v1327, %v1326
    %v1532 = vpack.c.b16 %v1329, %v1328
    %v1533 = vpack.c.b16 %v1331, %v1330
    %v1534 = vpack.c.b16 %v1333, %v1332
    %v1535 = vpack.c.b16 %v1335, %v1334
    %1736 = vmatprep.subr.bf16.mxu0 0
    %1737 = vmatpush1.bf16.msra.mxu0 %v1336
    %1738 = vmatprep.subr.bf16.mxu0 0
    %1739 = vmatpush1.bf16.msra.mxu0 %v1337
    %1740 = vmatprep.subr.bf16.mxu0 0
    %1741 = vmatpush1.bf16.msra.mxu0 %v1338
    %1742 = vmatprep.subr.bf16.mxu0 0
    %1743 = vmatpush1.bf16.msra.mxu0 %v1339
    %1744 = vmatprep.subr.bf16.mxu0 0
    %1745 = vmatpush1.bf16.msra.mxu0 %v1340
    %1746 = vmatprep.subr.bf16.mxu0 0
    %1747 = vmatpush1.bf16.msra.mxu0 %v1341
    %1748 = vmatprep.subr.bf16.mxu0 0
    %1749 = vmatpush1.bf16.msra.mxu0 %v1342
    %1750 = vmatprep.subr.bf16.mxu0 0
    %1751 = vmatpush1.bf16.msra.mxu0 %v1343
    %1752 = vmatprep.subr.bf16.mxu0 0
    %1753 = vmatpush1.bf16.msra.mxu0 %v1344
    %1754 = vmatprep.subr.bf16.mxu0 0
    %1755 = vmatpush1.bf16.msra.mxu0 %v1345
    %1756 = vmatprep.subr.bf16.mxu0 0
    %1757 = vmatpush1.bf16.msra.mxu0 %v1346
    %1758 = vmatprep.subr.bf16.mxu0 0
    %1759 = vmatpush1.bf16.msra.mxu0 %v1347
    %1760 = vmatprep.subr.bf16.mxu0 0
    %1761 = vmatpush1.bf16.msra.mxu0 %v1348
    %1762 = vmatprep.subr.bf16.mxu0 0
    %1763 = vmatpush1.bf16.msra.mxu0 %v1349
    %1764 = vmatprep.subr.bf16.mxu0 0
    %1765 = vmatpush1.bf16.msra.mxu0 %v1350
    %1766 = vmatprep.subr.bf16.mxu0 0
    %1767 = vmatpush1.bf16.msra.mxu0 %v1351
    %1768 = vmatprep.mubr.bf16.mxu0 %v487
    %1769 = vmatmul.mubr.bf16.gmra.mrb[0].mxu0 %v486
    %v1770 = vpop.f32.mrb[0].mxu0
    %v1771 = vadd.f32 %v446, %v1770
    %v1772 = vpop.f32.mrb[0].mxu0
    %v1773 = vpop.f32.mrb[0].mxu0
    %v1774 = vpop.f32.mrb[0].mxu0
    %1775 = vdwg.mxu0
    %1776 = vmatprep.subr.bf16.mxu0 0
    %1777 = vmatpush1.bf16.msra.mxu0 %v1352
    %1778 = vmatprep.subr.bf16.mxu0 0
    %1779 = vmatpush1.bf16.msra.mxu0 %v1353
    %1780 = vmatprep.subr.bf16.mxu0 0
    %1781 = vmatpush1.bf16.msra.mxu0 %v1354
    %1782 = vmatprep.subr.bf16.mxu0 0
    %1783 = vmatpush1.bf16.msra.mxu0 %v1355
    %1784 = vmatprep.subr.bf16.mxu0 0
    %1785 = vmatpush1.bf16.msra.mxu0 %v1356
    %1786 = vmatprep.subr.bf16.mxu0 0
    %1787 = vmatpush1.bf16.msra.mxu0 %v1357
    %1788 = vmatprep.subr.bf16.mxu0 0
    %1789 = vmatpush1.bf16.msra.mxu0 %v1358
    %1790 = vmatprep.subr.bf16.mxu0 0
    %1791 = vmatpush1.bf16.msra.mxu0 %v1359
    %1792 = vmatprep.subr.bf16.mxu0 0
    %1793 = vmatpush1.bf16.msra.mxu0 %v1360
    %1794 = vmatprep.subr.bf16.mxu0 0
    %1795 = vmatpush1.bf16.msra.mxu0 %v1361
    %1796 = vmatprep.subr.bf16.mxu0 0
    %1797 = vmatpush1.bf16.msra.mxu0 %v1362
    %1798 = vmatprep.subr.bf16.mxu0 0
    %1799 = vmatpush1.bf16.msra.mxu0 %v1363
    %1800 = vmatprep.subr.bf16.mxu0 0
    %1801 = vmatpush1.bf16.msra.mxu0 %v1364
    %1802 = vmatprep.subr.bf16.mxu0 0
    %1803 = vmatpush1.bf16.msra.mxu0 %v1365
    %1804 = vmatprep.subr.bf16.mxu0 0
    %1805 = vmatpush1.bf16.msra.mxu0 %v1366
    %1806 = vmatprep.subr.bf16.mxu0 0
    %1807 = vmatpush1.bf16.msra.mxu0 %v1367
    %1808 = vmatprep.mubr.bf16.mxu0 %v489
    %1809 = vmatmul.mubr.bf16.gmra.mrb[0].mxu0 %v488
    %v1810 = vpop.f32.mrb[0].mxu0
    %v1811 = vadd.f32 %v1771, %v1810
    %v1812 = vpop.f32.mrb[0].mxu0
    %v1813 = vpop.f32.mrb[0].mxu0
    %v1814 = vpop.f32.mrb[0].mxu0
    %1815 = vdwg.mxu0
    %1816 = vmatprep.subr.bf16.mxu0 0
    %1817 = vmatpush1.bf16.msra.mxu0 %v1368
    %1818 = vmatprep.subr.bf16.mxu0 0
    %1819 = vmatpush1.bf16.msra.mxu0 %v1369
    %1820 = vmatprep.subr.bf16.mxu0 0
    %1821 = vmatpush1.bf16.msra.mxu0 %v1370
    %1822 = vmatprep.subr.bf16.mxu0 0
    %1823 = vmatpush1.bf16.msra.mxu0 %v1371
    %1824 = vmatprep.subr.bf16.mxu0 0
    %1825 = vmatpush1.bf16.msra.mxu0 %v1372
    %1826 = vmatprep.subr.bf16.mxu0 0
    %1827 = vmatpush1.bf16.msra.mxu0 %v1373
    %1828 = vmatprep.subr.bf16.mxu0 0
    %1829 = vmatpush1.bf16.msra.mxu0 %v1374
    %1830 = vmatprep.subr.bf16.mxu0 0
    %1831 = vmatpush1.bf16.msra.mxu0 %v1375
    %1832 = vmatprep.subr.bf16.mxu0 0
    %1833 = vmatpush1.bf16.msra.mxu0 %v1376
    %1834 = vmatprep.subr.bf16.mxu0 0
    %1835 = vmatpush1.bf16.msra.mxu0 %v1377
    %1836 = vmatprep.subr.bf16.mxu0 0
    %1837 = vmatpush1.bf16.msra.mxu0 %v1378
    %1838 = vmatprep.subr.bf16.mxu0 0
    %1839 = vmatpush1.bf16.msra.mxu0 %v1379
    %1840 = vmatprep.subr.bf16.mxu0 0
    %1841 = vmatpush1.bf16.msra.mxu0 %v1380
    %1842 = vmatprep.subr.bf16.mxu0 0
    %1843 = vmatpush1.bf16.msra.mxu0 %v1381
    %1844 = vmatprep.subr.bf16.mxu0 0
    %1845 = vmatpush1.bf16.msra.mxu0 %v1382
    %1846 = vmatprep.subr.bf16.mxu0 0
    %1847 = vmatpush1.bf16.msra.mxu0 %v1383
    %1848 = vmatprep.mubr.bf16.mxu0 %v491
    %1849 = vmatmul.mubr.bf16.gmra.mrb[0].mxu0 %v490
    %v1850 = vpop.f32.mrb[0].mxu0
    %v1851 = vadd.f32 %v1811, %v1850
    %v1852 = vpop.f32.mrb[0].mxu0
    %v1853 = vpop.f32.mrb[0].mxu0
    %v1854 = vpop.f32.mrb[0].mxu0
    %1855 = vdwg.mxu0
    %1856 = vmatprep.subr.bf16.mxu0 0
    %1857 = vmatpush1.bf16.msra.mxu0 %v1384
    %1858 = vmatprep.subr.bf16.mxu0 0
    %1859 = vmatpush1.bf16.msra.mxu0 %v1385
    %1860 = vmatprep.subr.bf16.mxu0 0
    %1861 = vmatpush1.bf16.msra.mxu0 %v1386
    %1862 = vmatprep.subr.bf16.mxu0 0
    %1863 = vmatpush1.bf16.msra.mxu0 %v1387
    %1864 = vmatprep.subr.bf16.mxu0 0
    %1865 = vmatpush1.bf16.msra.mxu0 %v1388
    %1866 = vmatprep.subr.bf16.mxu0 0
    %1867 = vmatpush1.bf16.msra.mxu0 %v1389
    %1868 = vmatprep.subr.bf16.mxu0 0
    %1869 = vmatpush1.bf16.msra.mxu0 %v1390
    %1870 = vmatprep.subr.bf16.mxu0 0
    %1871 = vmatpush1.bf16.msra.mxu0 %v1391
    %1872 = vmatprep.subr.bf16.mxu0 0
    %1873 = vmatpush1.bf16.msra.mxu0 %v1392
    %1874 = vmatprep.subr.bf16.mxu0 0
    %1875 = vmatpush1.bf16.msra.mxu0 %v1393
    %1876 = vmatprep.subr.bf16.mxu0 0
    %1877 = vmatpush1.bf16.msra.mxu0 %v1394
    %1878 = vmatprep.subr.bf16.mxu0 0
    %1879 = vmatpush1.bf16.msra.mxu0 %v1395
    %1880 = vmatprep.subr.bf16.mxu0 0
    %1881 = vmatpush1.bf16.msra.mxu0 %v1396
    %1882 = vmatprep.subr.bf16.mxu0 0
    %1883 = vmatpush1.bf16.msra.mxu0 %v1397
    %1884 = vmatprep.subr.bf16.mxu0 0
    %1885 = vmatpush1.bf16.msra.mxu0 %v1398
    %1886 = vmatprep.subr.bf16.mxu0 0
    %1887 = vmatpush1.bf16.msra.mxu0 %v1399
    %1888 = vmatprep.mubr.bf16.mxu0 %v493
    %1889 = vmatmul.mubr.bf16.gmra.mrb[0].mxu0 %v492
    %v1890 = vpop.f32.mrb[0].mxu0
    %v1891 = vadd.f32 %v1851, %v1890
    %v1892 = vpop.f32.mrb[0].mxu0
    %v1893 = vpop.f32.mrb[0].mxu0
    %v1894 = vpop.f32.mrb[0].mxu0
    %1895 = vdwg.mxu0
    %1896 = vmatprep.subr.bf16.mxu0 0
    %1897 = vmatpush1.bf16.msra.mxu0 %v1400
    %1898 = vmatprep.subr.bf16.mxu0 0
    %1899 = vmatpush1.bf16.msra.mxu0 %v1401
    %1900 = vmatprep.subr.bf16.mxu0 0
    %1901 = vmatpush1.bf16.msra.mxu0 %v1402
    %1902 = vmatprep.subr.bf16.mxu0 0
    %1903 = vmatpush1.bf16.msra.mxu0 %v1403
    %1904 = vmatprep.subr.bf16.mxu0 0
    %1905 = vmatpush1.bf16.msra.mxu0 %v1404
    %1906 = vmatprep.subr.bf16.mxu0 0
    %1907 = vmatpush1.bf16.msra.mxu0 %v1405
    %1908 = vmatprep.subr.bf16.mxu0 0
    %1909 = vmatpush1.bf16.msra.mxu0 %v1406
    %1910 = vmatprep.subr.bf16.mxu0 0
    %1911 = vmatpush1.bf16.msra.mxu0 %v1407
    %1912 = vmatprep.subr.bf16.mxu0 0
    %1913 = vmatpush1.bf16.msra.mxu0 %v1408
    %1914 = vmatprep.subr.bf16.mxu0 0
    %1915 = vmatpush1.bf16.msra.mxu0 %v1409
    %1916 = vmatprep.subr.bf16.mxu0 0
    %1917 = vmatpush1.bf16.msra.mxu0 %v1410
    %1918 = vmatprep.subr.bf16.mxu0 0
    %1919 = vmatpush1.bf16.msra.mxu0 %v1411
    %1920 = vmatprep.subr.bf16.mxu0 0
    %1921 = vmatpush1.bf16.msra.mxu0 %v1412
    %1922 = vmatprep.subr.bf16.mxu0 0
    %1923 = vmatpush1.bf16.msra.mxu0 %v1413
    %1924 = vmatprep.subr.bf16.mxu0 0
    %1925 = vmatpush1.bf16.msra.mxu0 %v1414
    %1926 = vmatprep.subr.bf16.mxu0 0
    %1927 = vmatpush1.bf16.msra.mxu0 %v1415
    %1928 = vmatprep.mubr.bf16.mxu0 %v495
    %1929 = vmatmul.mubr.bf16.gmra.mrb[0].mxu0 %v494
    %v1930 = vpop.f32.mrb[0].mxu0
    %v1931 = vadd.f32 %v1891, %v1930
    %v1932 = vpop.f32.mrb[0].mxu0
    %v1933 = vpop.f32.mrb[0].mxu0
    %v1934 = vpop.f32.mrb[0].mxu0
    %1935 = vdwg.mxu0
    %1936 = vmatprep.subr.bf16.mxu0 0
    %1937 = vmatpush1.bf16.msra.mxu0 %v1416
    %1938 = vmatprep.subr.bf16.mxu0 0
    %1939 = vmatpush1.bf16.msra.mxu0 %v1417
    %1940 = vmatprep.subr.bf16.mxu0 0
    %1941 = vmatpush1.bf16.msra.mxu0 %v1418
    %1942 = vmatprep.subr.bf16.mxu0 0
    %1943 = vmatpush1.bf16.msra.mxu0 %v1419
    %1944 = vmatprep.subr.bf16.mxu0 0
    %1945 = vmatpush1.bf16.msra.mxu0 %v1420
    %1946 = vmatprep.subr.bf16.mxu0 0
    %1947 = vmatpush1.bf16.msra.mxu0 %v1421
    %1948 = vmatprep.subr.bf16.mxu0 0
    %1949 = vmatpush1.bf16.msra.mxu0 %v1422
    %1950 = vmatprep.subr.bf16.mxu0 0
    %1951 = vmatpush1.bf16.msra.mxu0 %v1423
    %1952 = vmatprep.subr.bf16.mxu0 0
    %1953 = vmatpush1.bf16.msra.mxu0 %v1424
    %1954 = vmatprep.subr.bf16.mxu0 0
    %1955 = vmatpush1.bf16.msra.mxu0 %v1425
    %1956 = vmatprep.subr.bf16.mxu0 0
    %1957 = vmatpush1.bf16.msra.mxu0 %v1426
    %1958 = vmatprep.subr.bf16.mxu0 0
    %1959 = vmatpush1.bf16.msra.mxu0 %v1427
    %1960 = vmatprep.subr.bf16.mxu0 0
    %1961 = vmatpush1.bf16.msra.mxu0 %v1428
    %1962 = vmatprep.subr.bf16.mxu0 0
    %1963 = vmatpush1.bf16.msra.mxu0 %v1429
    %1964 = vmatprep.subr.bf16.mxu0 0
    %1965 = vmatpush1.bf16.msra.mxu0 %v1430
    %1966 = vmatprep.subr.bf16.mxu0 0
    %1967 = vmatpush1.bf16.msra.mxu0 %v1431
    %1968 = vmatprep.mubr.bf16.mxu0 %v497
    %1969 = vmatmul.mubr.bf16.gmra.mrb[0].mxu0 %v496
    %v1970 = vpop.f32.mrb[0].mxu0
    %v1971 = vadd.f32 %v1931, %v1970
    %v1972 = vpop.f32.mrb[0].mxu0
    %v1973 = vpop.f32.mrb[0].mxu0
    %v1974 = vpop.f32.mrb[0].mxu0
    %1975 = vdwg.mxu0
    %1976 = vmatprep.subr.bf16.mxu0 0
    %1977 = vmatpush1.bf16.msra.mxu0 %v1432
    %1978 = vmatprep.subr.bf16.mxu0 0
    %1979 = vmatpush1.bf16.msra.mxu0 %v1433
    %1980 = vmatprep.subr.bf16.mxu0 0
    %1981 = vmatpush1.bf16.msra.mxu0 %v1434
    %1982 = vmatprep.subr.bf16.mxu0 0
    %1983 = vmatpush1.bf16.msra.mxu0 %v1435
    %1984 = vmatprep.subr.bf16.mxu0 0
    %1985 = vmatpush1.bf16.msra.mxu0 %v1436
    %1986 = vmatprep.subr.bf16.mxu0 0
    %1987 = vmatpush1.bf16.msra.mxu0 %v1437
    %1988 = vmatprep.subr.bf16.mxu0 0
    %1989 = vmatpush1.bf16.msra.mxu0 %v1438
    %1990 = vmatprep.subr.bf16.mxu0 0
    %1991 = vmatpush1.bf16.msra.mxu0 %v1439
    %1992 = vmatprep.subr.bf16.mxu0 0
    %1993 = vmatpush1.bf16.msra.mxu0 %v1440
    %1994 = vmatprep.subr.bf16.mxu0 0
    %1995 = vmatpush1.bf16.msra.mxu0 %v1441
    %1996 = vmatprep.subr.bf16.mxu0 0
    %1997 = vmatpush1.bf16.msra.mxu0 %v1442
    %1998 = vmatprep.subr.bf16.mxu0 0
    %1999 = vmatpush1.bf16.msra.mxu0 %v1443
    %2000 = vmatprep.subr.bf16.mxu0 0
    %2001 = vmatpush1.bf16.msra.mxu0 %v1444
    %2002 = vmatprep.subr.bf16.mxu0 0
    %2003 = vmatpush1.bf16.msra.mxu0 %v1445
    %2004 = vmatprep.subr.bf16.mxu0 0
    %2005 = vmatpush1.bf16.msra.mxu0 %v1446
    %2006 = vmatprep.subr.bf16.mxu0 0
    %2007 = vmatpush1.bf16.msra.mxu0 %v1447
    %2008 = vmatprep.mubr.bf16.mxu0 %v499
    %2009 = vmatmul.mubr.bf16.gmra.mrb[0].mxu0 %v498
    %v2010 = vpop.f32.mrb[0].mxu0
    %v2011 = vadd.f32 %v1971, %v2010
    %v2012 = vpop.f32.mrb[0].mxu0
    %v2013 = vpop.f32.mrb[0].mxu0
    %v2014 = vpop.f32.mrb[0].mxu0
    %2015 = vdwg.mxu0
    %2016 = vmatprep.subr.bf16.mxu0 0
    %2017 = vmatpush1.bf16.msra.mxu0 %v1448
    %2018 = vmatprep.subr.bf16.mxu0 0
    %2019 = vmatpush1.bf16.msra.mxu0 %v1449
    %2020 = vmatprep.subr.bf16.mxu0 0
    %2021 = vmatpush1.bf16.msra.mxu0 %v1450
    %2022 = vmatprep.subr.bf16.mxu0 0
    %2023 = vmatpush1.bf16.msra.mxu0 %v1451
    %2024 = vmatprep.subr.bf16.mxu0 0
    %2025 = vmatpush1.bf16.msra.mxu0 %v1452
    %2026 = vmatprep.subr.bf16.mxu0 0
    %2027 = vmatpush1.bf16.msra.mxu0 %v1453
    %2028 = vmatprep.subr.bf16.mxu0 0
    %2029 = vmatpush1.bf16.msra.mxu0 %v1454
    %2030 = vmatprep.subr.bf16.mxu0 0
    %2031 = vmatpush1.bf16.msra.mxu0 %v1455
    %2032 = vmatprep.subr.bf16.mxu0 0
    %2033 = vmatpush1.bf16.msra.mxu0 %v1456
    %2034 = vmatprep.subr.bf16.mxu0 0
    %2035 = vmatpush1.bf16.msra.mxu0 %v1457
    %2036 = vmatprep.subr.bf16.mxu0 0
    %2037 = vmatpush1.bf16.msra.mxu0 %v1458
    %2038 = vmatprep.subr.bf16.mxu0 0
    %2039 = vmatpush1.bf16.msra.mxu0 %v1459
    %2040 = vmatprep.subr.bf16.mxu0 0
    %2041 = vmatpush1.bf16.msra.mxu0 %v1460
    %2042 = vmatprep.subr.bf16.mxu0 0
    %2043 = vmatpush1.bf16.msra.mxu0 %v1461
    %2044 = vmatprep.subr.bf16.mxu0 0
    %2045 = vmatpush1.bf16.msra.mxu0 %v1462
    %2046 = vmatprep.subr.bf16.mxu0 0
    %2047 = vmatpush1.bf16.msra.mxu0 %v1463
    %2048 = vmatprep.mubr.bf16.mxu0 %v501
    %2049 = vmatmul.mubr.bf16.gmra.mrb[0].mxu0 %v500
    %v2050 = vpop.f32.mrb[0].mxu0
    %v2051 = vadd.f32 %v2011, %v2050
    %v2052 = vpop.f32.mrb[0].mxu0
    %v2053 = vpop.f32.mrb[0].mxu0
    %v2054 = vpop.f32.mrb[0].mxu0
    %2055 = vdwg.mxu0
    %2056 = vmatprep.subr.bf16.mxu0 0
    %2057 = vmatpush1.bf16.msra.mxu0 %v1464
    %2058 = vmatprep.subr.bf16.mxu0 0
    %2059 = vmatpush1.bf16.msra.mxu0 %v1465
    %2060 = vmatprep.subr.bf16.mxu0 0
    %2061 = vmatpush1.bf16.msra.mxu0 %v1466
    %2062 = vmatprep.subr.bf16.mxu0 0
    %2063 = vmatpush1.bf16.msra.mxu0 %v1467
    %2064 = vmatprep.subr.bf16.mxu0 0
    %2065 = vmatpush1.bf16.msra.mxu0 %v1468
    %2066 = vmatprep.subr.bf16.mxu0 0
    %2067 = vmatpush1.bf16.msra.mxu0 %v1469
    %2068 = vmatprep.subr.bf16.mxu0 0
    %2069 = vmatpush1.bf16.msra.mxu0 %v1470
    %2070 = vmatprep.subr.bf16.mxu0 0
    %2071 = vmatpush1.bf16.msra.mxu0 %v1471
    %2072 = vmatprep.subr.bf16.mxu0 0
    %2073 = vmatpush1.bf16.msra.mxu0 %v1472
    %2074 = vmatprep.subr.bf16.mxu0 0
    %2075 = vmatpush1.bf16.msra.mxu0 %v1473
    %2076 = vmatprep.subr.bf16.mxu0 0
    %2077 = vmatpush1.bf16.msra.mxu0 %v1474
    %2078 = vmatprep.subr.bf16.mxu0 0
    %2079 = vmatpush1.bf16.msra.mxu0 %v1475
    %2080 = vmatprep.subr.bf16.mxu0 0
    %2081 = vmatpush1.bf16.msra.mxu0 %v1476
    %2082 = vmatprep.subr.bf16.mxu0 0
    %2083 = vmatpush1.bf16.msra.mxu0 %v1477
    %2084 = vmatprep.subr.bf16.mxu0 0
    %2085 = vmatpush1.bf16.msra.mxu0 %v1478
    %2086 = vmatprep.subr.bf16.mxu0 0
    %2087 = vmatpush1.bf16.msra.mxu0 %v1479
    %2088 = vmatprep.mubr.bf16.mxu0 %v503
    %2089 = vmatmul.mubr.bf16.gmra.mrb[0].mxu0 %v502
    %v2090 = vpop.f32.mrb[0].mxu0
    %v2091 = vadd.f32 %v2051, %v2090
    %v2092 = vpop.f32.mrb[0].mxu0
    %v2093 = vpop.f32.mrb[0].mxu0
    %v2094 = vpop.f32.mrb[0].mxu0
    %2095 = vdwg.mxu0
    %2096 = vmatprep.subr.bf16.mxu0 0
    %2097 = vmatpush1.bf16.msra.mxu0 %v1480
    %2098 = vmatprep.subr.bf16.mxu0 0
    %2099 = vmatpush1.bf16.msra.mxu0 %v1481
    %2100 = vmatprep.subr.bf16.mxu0 0
    %2101 = vmatpush1.bf16.msra.mxu0 %v1482
    %2102 = vmatprep.subr.bf16.mxu0 0
    %2103 = vmatpush1.bf16.msra.mxu0 %v1483
    %2104 = vmatprep.subr.bf16.mxu0 0
    %2105 = vmatpush1.bf16.msra.mxu0 %v1484
    %2106 = vmatprep.subr.bf16.mxu0 0
    %2107 = vmatpush1.bf16.msra.mxu0 %v1485
    %2108 = vmatprep.subr.bf16.mxu0 0
    %2109 = vmatpush1.bf16.msra.mxu0 %v1486
    %2110 = vmatprep.subr.bf16.mxu0 0
    %2111 = vmatpush1.bf16.msra.mxu0 %v1487
    %2112 = vmatprep.subr.bf16.mxu0 0
    %2113 = vmatpush1.bf16.msra.mxu0 %v1488
    %2114 = vmatprep.subr.bf16.mxu0 0
    %2115 = vmatpush1.bf16.msra.mxu0 %v1489
    %2116 = vmatprep.subr.bf16.mxu0 0
    %2117 = vmatpush1.bf16.msra.mxu0 %v1490
    %2118 = vmatprep.subr.bf16.mxu0 0
    %2119 = vmatpush1.bf16.msra.mxu0 %v1491
    %2120 = vmatprep.subr.bf16.mxu0 0
    %2121 = vmatpush1.bf16.msra.mxu0 %v1492
    %2122 = vmatprep.subr.bf16.mxu0 0
    %2123 = vmatpush1.bf16.msra.mxu0 %v1493
    %2124 = vmatprep.subr.bf16.mxu0 0
    %2125 = vmatpush1.bf16.msra.mxu0 %v1494
    %2126 = vmatprep.subr.bf16.mxu0 0
    %2127 = vmatpush1.bf16.msra.mxu0 %v1495
    %2128 = vmatprep.mubr.bf16.mxu0 %v505
    %2129 = vmatmul.mubr.bf16.gmra.mrb[0].mxu0 %v504
    %v2130 = vpop.f32.mrb[0].mxu0
    %v2131 = vadd.f32 %v2091, %v2130
    %v2132 = vpop.f32.mrb[0].mxu0
    %v2133 = vpop.f32.mrb[0].mxu0
    %v2134 = vpop.f32.mrb[0].mxu0
    %2135 = vdwg.mxu0
    %2136 = vmatprep.subr.bf16.mxu0 0
    %2137 = vmatpush1.bf16.msra.mxu0 %v1496
    %2138 = vmatprep.subr.bf16.mxu0 0
    %2139 = vmatpush1.bf16.msra.mxu0 %v1497
    %2140 = vmatprep.subr.bf16.mxu0 0
    %2141 = vmatpush1.bf16.msra.mxu0 %v1498
    %2142 = vmatprep.subr.bf16.mxu0 0
    %2143 = vmatpush1.bf16.msra.mxu0 %v1499
    %2144 = vmatprep.subr.bf16.mxu0 0
    %2145 = vmatpush1.bf16.msra.mxu0 %v1500
    %2146 = vmatprep.subr.bf16.mxu0 0
    %2147 = vmatpush1.bf16.msra.mxu0 %v1501
    %2148 = vmatprep.subr.bf16.mxu0 0
    %2149 = vmatpush1.bf16.msra.mxu0 %v1502
    %2150 = vmatprep.subr.bf16.mxu0 0
    %2151 = vmatpush1.bf16.msra.mxu0 %v1503
    %2152 = vmatprep.subr.bf16.mxu0 0
    %2153 = vmatpush1.bf16.msra.mxu0 %v1504
    %2154 = vmatprep.subr.bf16.mxu0 0
    %2155 = vmatpush1.bf16.msra.mxu0 %v1505
    %2156 = vmatprep.subr.bf16.mxu0 0
    %2157 = vmatpush1.bf16.msra.mxu0 %v1506
    %2158 = vmatprep.subr.bf16.mxu0 0
    %2159 = vmatpush1.bf16.msra.mxu0 %v1507
    %2160 = vmatprep.subr.bf16.mxu0 0
    %2161 = vmatpush1.bf16.msra.mxu0 %v1508
    %2162 = vmatprep.subr.bf16.mxu0 0
    %2163 = vmatpush1.bf16.msra.mxu0 %v1509
    %2164 = vmatprep.subr.bf16.mxu0 0
    %2165 = vmatpush1.bf16.msra.mxu0 %v1510
    %2166 = vmatprep.subr.bf16.mxu0 0
    %2167 = vmatpush1.bf16.msra.mxu0 %v1511
    %2168 = vmatprep.mubr.bf16.mxu0 %v507
    %2169 = vmatmul.mubr.bf16.gmra.mrb[0].mxu0 %v506
    %v2170 = vpop.f32.mrb[0].mxu0
    %v2171 = vadd.f32 %v2131, %v2170
    %v2172 = vpop.f32.mrb[0].mxu0
    %v2173 = vpop.f32.mrb[0].mxu0
    %v2174 = vpop.f32.mrb[0].mxu0
    %2175 = vdwg.mxu0
    %2176 = vmatprep.subr.bf16.mxu0 0
    %2177 = vmatpush1.bf16.msra.mxu0 %v1512
    %2178 = vmatprep.subr.bf16.mxu0 0
    %2179 = vmatpush1.bf16.msra.mxu0 %v1513
    %2180 = vmatprep.subr.bf16.mxu0 0
    %2181 = vmatpush1.bf16.msra.mxu0 %v1514
    %2182 = vmatprep.subr.bf16.mxu0 0
    %2183 = vmatpush1.bf16.msra.mxu0 %v1515
    %2184 = vmatprep.subr.bf16.mxu0 0
    %2185 = vmatpush1.bf16.msra.mxu0 %v1516
    %2186 = vmatprep.subr.bf16.mxu0 0
    %2187 = vmatpush1.bf16.msra.mxu0 %v1517
    %2188 = vmatprep.subr.bf16.mxu0 0
    %2189 = vmatpush1.bf16.msra.mxu0 %v1518
    %2190 = vmatprep.subr.bf16.mxu0 0
    %2191 = vmatpush1.bf16.msra.mxu0 %v1519
    %2192 = vmatprep.subr.bf16.mxu0 0
    %2193 = vmatpush1.bf16.msra.mxu0 %v1520
    %2194 = vmatprep.subr.bf16.mxu0 0
    %2195 = vmatpush1.bf16.msra.mxu0 %v1521
    %2196 = vmatprep.subr.bf16.mxu0 0
    %2197 = vmatpush1.bf16.msra.mxu0 %v1522
    %2198 = vmatprep.subr.bf16.mxu0 0
    %2199 = vmatpush1.bf16.msra.mxu0 %v1523
    %2200 = vmatprep.subr.bf16.mxu0 0
    %2201 = vmatpush1.bf16.msra.mxu0 %v1524
    %2202 = vmatprep.subr.bf16.mxu0 0
    %2203 = vmatpush1.bf16.msra.mxu0 %v1525
    %2204 = vmatprep.subr.bf16.mxu0 0
    %2205 = vmatpush1.bf16.msra.mxu0 %v1526
    %2206 = vmatprep.subr.bf16.mxu0 0
    %2207 = vmatpush1.bf16.msra.mxu0 %v1527
    %2208 = vmatprep.mubr.bf16.mxu0 %v509
    %2209 = vmatmul.mubr.bf16.gmra.mrb[0].mxu0 %v508
    %v2210 = vpop.f32.mrb[0].mxu0
    %v2211 = vadd.f32 %v2171, %v2210
    %v2212 = vpop.f32.mrb[0].mxu0
    %v2213 = vpop.f32.mrb[0].mxu0
    %v2214 = vpop.f32.mrb[0].mxu0
    %2215 = vdwg.mxu0
    %2216 = vmatprep.subr.bf16.mxu0 0
    %2217 = vmatpush1.bf16.msra.mxu0 %v1528
    %2218 = vmatprep.subr.bf16.mxu0 0
    %2219 = vmatpush1.bf16.msra.mxu0 %v1529
    %2220 = vmatprep.subr.bf16.mxu0 0
    %2221 = vmatpush1.bf16.msra.mxu0 %v1530
    %2222 = vmatprep.subr.bf16.mxu0 0
    %2223 = vmatpush1.bf16.msra.mxu0 %v1531
    %2224 = vmatprep.subr.bf16.mxu0 0
    %2225 = vmatpush1.bf16.msra.mxu0 %v1532
    %2226 = vmatprep.subr.bf16.mxu0 0
    %2227 = vmatpush1.bf16.msra.mxu0 %v1533
    %2228 = vmatprep.subr.bf16.mxu0 0
    %2229 = vmatpush1.bf16.msra.mxu0 %v1534
    %2230 = vmatprep.subr.bf16.mxu0 0
    %2231 = vmatpush1.bf16.msra.mxu0 %v1535
    %2232 = vmatprep.subr.bf16.mxu0 0
    %2233 = vmatpush1.bf16.msra.mxu0 0
    %2234 = vmatprep.subr.bf16.mxu0 0
    %2235 = vmatpush1.bf16.msra.mxu0 0
    %2236 = vmatprep.subr.bf16.mxu0 0
    %2237 = vmatpush1.bf16.msra.mxu0 0
    %2238 = vmatprep.subr.bf16.mxu0 0
    %2239 = vmatpush1.bf16.msra.mxu0 0
    %2240 = vmatprep.subr.bf16.mxu0 0
    %2241 = vmatpush1.bf16.msra.mxu0 0
    %2242 = vmatprep.subr.bf16.mxu0 0
    %2243 = vmatpush1.bf16.msra.mxu0 0
    %2244 = vmatprep.subr.bf16.mxu0 0
    %2245 = vmatpush1.bf16.msra.mxu0 0
    %2246 = vmatprep.subr.bf16.mxu0 0
    %2247 = vmatpush1.bf16.msra.mxu0 0
    %2248 = vmatprep.mubr.bf16.mxu0 0
    %2249 = vmatmul.mubr.bf16.gmra.mrb[0].mxu0 %v510
    %v2250 = vpop.f32.mrb[0].mxu0
    %v2251 = vadd.f32 %v2211, %v2250
    %v2252 = vpop.f32.mrb[0].mxu0
    %v2253 = vpop.f32.mrb[0].mxu0
    %v2254 = vpop.f32.mrb[0].mxu0
    %2255 = vdwg.mxu0
    %v2256 = vmax.f32 %v2251, 0.0
    %v2257 = vpack.c.bf16 %v2256, %v2256
    %v2258 = vld [vmem:[%s3] sm:$0xf]
    %v2259 = vld [vmem:[%s3 + $0x4] sm:$0xf]
    %v2260 = vld [vmem:[%s3 + $0x8] sm:$0xf]
    %v2261 = vld [vmem:[%s3 + $0xc] sm:$0xf]
    %v2262 = vld [vmem:[%s3 + $0x10] sm:$0xf]
    %v2263 = vld [vmem:[%s3 + $0x14] sm:$0xf]
    %v2264 = vld [vmem:[%s3 + $0x18] sm:$0xf]
    %v2265 = vld [vmem:[%s3 + $0x1c] sm:$0xf]
    %v2266 = vld [vmem:[%s3 + $0x20] sm:$0xf]
    %v2267 = vld [vmem:[%s3 + $0x24] sm:$0xf]
    %v2268 = vld [vmem:[%s3 + $0x28] sm:$0xf]
    %v2269 = vld [vmem:[%s3 + $0x2c] sm:$0xf]
    %v2270 = vld [vmem:[%s3 + $0x30] sm:$0xf]
    %v2271 = vld [vmem:[%s3 + $0x34] sm:$0xf]
    %v2272 = vld [vmem:[%s3 + $0x38] sm:$0xf]
    %v2273 = vld [vmem:[%s3 + $0x3c] sm:$0xf]
    %v2274 = vld [vmem:[%s4] sm:$0x1]
    %v2276 = vlaneseq
    %v2277 = vshrl.u32 %v2276, 7
    %v2278 = vsub.s32 0, %v2277
    %v2279 = vrot.slane %v2274, %v2278
    %v2297 = vunpack.c.l.b16 %v2258
    %v2298 = vunpack.c.l.b16 %v2259
    %v2299 = vunpack.c.l.b16 %v2260
    %v2300 = vunpack.c.l.b16 %v2261
    %v2301 = vunpack.c.l.b16 %v2262
    %v2302 = vunpack.c.l.b16 %v2263
    %v2303 = vunpack.c.l.b16 %v2264
    %v2304 = vunpack.c.l.b16 %v2265
    %v2305 = vunpack.c.l.b16 %v2266
    %v2306 = vunpack.c.l.b16 %v2267
    %v2307 = vunpack.c.l.b16 %v2268
    %v2308 = vunpack.c.l.b16 %v2269
    %v2309 = vunpack.c.l.b16 %v2270
    %v2310 = vunpack.c.l.b16 %v2271
    %v2311 = vunpack.c.l.b16 %v2272
    %v2312 = vunpack.c.l.b16 %v2273
    %v2313 = vpack.c.b16 %v2298, %v2297
    %v2314 = vpack.c.b16 %v2300, %v2299
    %v2315 = vpack.c.b16 %v2302, %v2301
    %v2316 = vpack.c.b16 %v2304, %v2303
    %v2317 = vpack.c.b16 %v2306, %v2305
    %v2318 = vpack.c.b16 %v2308, %v2307
    %v2319 = vpack.c.b16 %v2310, %v2309
    %v2320 = vpack.c.b16 %v2312, %v2311
    %2329 = vmatprep.subr.bf16.mxu0 0
    %2330 = vmatpush1.bf16.msra.mxu0 %v2313
    %2331 = vmatprep.subr.bf16.mxu0 0
    %2332 = vmatpush1.bf16.msra.mxu0 %v2314
    %2333 = vmatprep.subr.bf16.mxu0 0
    %2334 = vmatpush1.bf16.msra.mxu0 %v2315
    %2335 = vmatprep.subr.bf16.mxu0 0
    %2336 = vmatpush1.bf16.msra.mxu0 %v2316
    %2337 = vmatprep.subr.bf16.mxu0 0
    %2338 = vmatpush1.bf16.msra.mxu0 %v2317
    %2339 = vmatprep.subr.bf16.mxu0 0
    %2340 = vmatpush1.bf16.msra.mxu0 %v2318
    %2341 = vmatprep.subr.bf16.mxu0 0
    %2342 = vmatpush1.bf16.msra.mxu0 %v2319
    %2343 = vmatprep.subr.bf16.mxu0 0
    %2344 = vmatpush1.bf16.msra.mxu0 %v2320
    %2345 = vmatprep.subr.bf16.mxu0 0
    %2346 = vmatpush1.bf16.msra.mxu0 0
    %2347 = vmatprep.subr.bf16.mxu0 0
    %2348 = vmatpush1.bf16.msra.mxu0 0
    %2349 = vmatprep.subr.bf16.mxu0 0
    %2350 = vmatpush1.bf16.msra.mxu0 0
    %2351 = vmatprep.subr.bf16.mxu0 0
    %2352 = vmatpush1.bf16.msra.mxu0 0
    %2353 = vmatprep.subr.bf16.mxu0 0
    %2354 = vmatpush1.bf16.msra.mxu0 0
    %2355 = vmatprep.subr.bf16.mxu0 0
    %2356 = vmatpush1.bf16.msra.mxu0 0
    %2357 = vmatprep.subr.bf16.mxu0 0
    %2358 = vmatpush1.bf16.msra.mxu0 0
    %2359 = vmatprep.subr.bf16.mxu0 0
    %2360 = vmatpush1.bf16.msra.mxu0 0
    %2361 = vmatprep.mubr.bf16.mxu0 0
    %2362 = vmatmul.mubr.bf16.gmra.mrb[0].mxu0 %v2257
    %v2363 = vpop.f32.mrb[0].mxu0
    %v2364 = vadd.f32 %v2279, %v2363
    %v2365 = vpop.f32.mrb[0].mxu0
    %v2366 = vpop.f32.mrb[0].mxu0
    %v2367 = vpop.f32.mrb[0].mxu0
    %2368 = vdwg.mxu0
    %v2369 = vmax.f32 %v2364, 0.0
    %v2370 = vpack.c.bf16 %v2369, %v2369
    %v2371 = vld [vmem:[%s5] sm:$0xf]
    %v2372 = vld [vmem:[%s5 + $0x4] sm:$0xf]
    %v2373 = vld [vmem:[%s5 + $0x8] sm:$0xf]
    %v2374 = vld [vmem:[%s5 + $0xc] sm:$0xf]
    %v2375 = vld [vmem:[%s5 + $0x10] sm:$0xf]
    %v2376 = vld [vmem:[%s5 + $0x14] sm:$0xf]
    %v2377 = vld [vmem:[%s5 + $0x18] sm:$0xf]
    %v2378 = vld [vmem:[%s5 + $0x1c] sm:$0xf]
    %v2379 = vld [vmem:[%s5 + $0x20] sm:$0xf]
    %v2380 = vld [vmem:[%s5 + $0x24] sm:$0xf]
    %v2381 = vld [vmem:[%s5 + $0x28] sm:$0xf]
    %v2382 = vld [vmem:[%s5 + $0x2c] sm:$0xf]
    %v2383 = vld [vmem:[%s5 + $0x30] sm:$0xf]
    %v2384 = vld [vmem:[%s5 + $0x34] sm:$0xf]
    %v2385 = vld [vmem:[%s5 + $0x38] sm:$0xf]
    %v2386 = vld [vmem:[%s5 + $0x3c] sm:$0xf]
    %v2387 = vld [vmem:[%s6] sm:$0x1]
    %v2389 = vlaneseq
    %v2390 = vshrl.u32 %v2389, 7
    %v2391 = vsub.s32 0, %v2390
    %v2392 = vrot.slane %v2387, %v2391
    %v2410 = vunpack.c.l.b16 %v2371
    %v2411 = vunpack.c.l.b16 %v2372
    %v2412 = vunpack.c.l.b16 %v2373
    %v2413 = vunpack.c.l.b16 %v2374
    %v2414 = vunpack.c.l.b16 %v2375
    %v2415 = vunpack.c.l.b16 %v2376
    %v2416 = vunpack.c.l.b16 %v2377
    %v2417 = vunpack.c.l.b16 %v2378
    %v2418 = vunpack.c.l.b16 %v2379
    %v2419 = vunpack.c.l.b16 %v2380
    %v2420 = vunpack.c.l.b16 %v2381
    %v2421 = vunpack.c.l.b16 %v2382
    %v2422 = vunpack.c.l.b16 %v2383
    %v2423 = vunpack.c.l.b16 %v2384
    %v2424 = vunpack.c.l.b16 %v2385
    %v2425 = vunpack.c.l.b16 %v2386
    %v2426 = vpack.c.b16 %v2411, %v2410
    %v2427 = vpack.c.b16 %v2413, %v2412
    %v2428 = vpack.c.b16 %v2415, %v2414
    %v2429 = vpack.c.b16 %v2417, %v2416
    %v2430 = vpack.c.b16 %v2419, %v2418
    %v2431 = vpack.c.b16 %v2421, %v2420
    %v2432 = vpack.c.b16 %v2423, %v2422
    %v2433 = vpack.c.b16 %v2425, %v2424
    %2442 = vmatprep.subr.bf16.mxu0 0
    %2443 = vmatpush1.bf16.msra.mxu0 %v2426
    %2444 = vmatprep.subr.bf16.mxu0 0
    %2445 = vmatpush1.bf16.msra.mxu0 %v2427
    %2446 = vmatprep.subr.bf16.mxu0 0
    %2447 = vmatpush1.bf16.msra.mxu0 %v2428
    %2448 = vmatprep.subr.bf16.mxu0 0
    %2449 = vmatpush1.bf16.msra.mxu0 %v2429
    %2450 = vmatprep.subr.bf16.mxu0 0
    %2451 = vmatpush1.bf16.msra.mxu0 %v2430
    %2452 = vmatprep.subr.bf16.mxu0 0
    %2453 = vmatpush1.bf16.msra.mxu0 %v2431
    %2454 = vmatprep.subr.bf16.mxu0 0
    %2455 = vmatpush1.bf16.msra.mxu0 %v2432
    %2456 = vmatprep.subr.bf16.mxu0 0
    %2457 = vmatpush1.bf16.msra.mxu0 %v2433
    %2458 = vmatprep.subr.bf16.mxu0 0
    %2459 = vmatpush1.bf16.msra.mxu0 0
    %2460 = vmatprep.subr.bf16.mxu0 0
    %2461 = vmatpush1.bf16.msra.mxu0 0
    %2462 = vmatprep.subr.bf16.mxu0 0
    %2463 = vmatpush1.bf16.msra.mxu0 0
    %2464 = vmatprep.subr.bf16.mxu0 0
    %2465 = vmatpush1.bf16.msra.mxu0 0
    %2466 = vmatprep.subr.bf16.mxu0 0
    %2467 = vmatpush1.bf16.msra.mxu0 0
    %2468 = vmatprep.subr.bf16.mxu0 0
    %2469 = vmatpush1.bf16.msra.mxu0 0
    %2470 = vmatprep.subr.bf16.mxu0 0
    %2471 = vmatpush1.bf16.msra.mxu0 0
    %2472 = vmatprep.subr.bf16.mxu0 0
    %2473 = vmatpush1.bf16.msra.mxu0 0
    %2474 = vmatprep.mubr.bf16.mxu0 0
    %2475 = vmatmul.mubr.bf16.gmra.mrb[0].mxu0 %v2370
    %v2476 = vpop.f32.mrb[0].mxu0
    %v2477 = vadd.f32 %v2392, %v2476
    %v2478 = vpop.f32.mrb[0].mxu0
    %v2479 = vpop.f32.mrb[0].mxu0
    %v2480 = vpop.f32.mrb[0].mxu0
    %2481 = vdwg.mxu0
    %2482 = vst [vmem:[#allocation2] sm:$0xff] %v2477
    // Predicated region
    $region30: #{net_forward.5} parent=1 // pred_check
      _
    $region31: #{net_forward.5} parent=1 // pred_check_branch
      %2484 = sbr.rel (0) target = $region33
    $region32: #{net_forward.5} parent=1 // pred_region
      %s2486 = ssub.s32 128, 128
      %2487 = vsyncadd [#allocation3], %s2486
      %s2489 = sshll.u32 [#allocation2], 4
      %s2490 = int_to_ptr.vmem [resolvable:$true] %s2489
      %2492 = dma.vmem_to_hbm [thread:$0]  %s2490, 128, %s7, [#allocation3]
    $region33: #{net_forward.5} parent=1 // pred_fallthru
      _
    // Predicated region
    $region34: #{net_forward.5} parent=1 // pred_check
      _
    $region35: #{net_forward.5} parent=1 // pred_check_branch
      %2494 = sbr.rel (0) target = $region37
    $region36: #{net_forward.5} parent=1 // pred_region
      %2495 = dma.done [#allocation3], 128
    $region37: #{net_forward.5} parent=1 // pred_fallthru
      _
    %2496 = vsyncpa [#allocation3], 1

</llo_original>
